<compile_context>
chip_gen: v6e
topology: v6e:2x2x1
jax: 0.10.0
libtpu: 0.0.40
codegen_flags: <defaults>
</compile_context>

<pallas_src>
import functools

import numpy as np
import jax
import jax.numpy as jnp
from jax import lax
from jax.experimental import pallas as pl
from jax.experimental.pallas import tpu as pltpu


# ----------------------------------------------------------------------------
# Phase/tap structure of ConvTranspose2d(k=4, s=2, p=1, bias=False):
#   output row 2*i + py receives contributions from padded-input row i + ro with
#   kernel row ky, where:
_ROW_TAPS = {0: {0: 3, 1: 1},    # py -> {padded row offset ro: kernel row ky}
             1: {1: 2, 2: 0}}
# (identical structure for columns / px / kx)


def _round_up(x, m):
    return (x + m - 1) // m * m


# ----------------------------------------------------------------------------
# Weight preparation
# ----------------------------------------------------------------------------
def _build_tap_weights(w, scale):
    """w: (Cin, Cout, 4, 4) torch ConvTranspose2d layout, BN scale folded over Cout.
    Returns (9, Cin, 4*Cout): per distinct spatial tap (ro, co) in {0,1,2}^2, the
    weight for all 4 output phases phase-major (py, px, cout); (tap, phase) pairs
    that do not interact are zero blocks."""
    cin, cout = w.shape[0], w.shape[1]
    wf = w * scale[None, :, None, None]
    zero = jnp.zeros((cin, cout), wf.dtype)
    taps = []
    for ro in range(3):
        for co in range(3):
            blocks = []
            for py in range(2):
                for px in range(2):
                    if ro in _ROW_TAPS[py] and co in _ROW_TAPS[px]:
                        blocks.append(wf[:, :, _ROW_TAPS[py][ro], _ROW_TAPS[px][co]])
                    else:
                        blocks.append(zero)
            taps.append(jnp.concatenate(blocks, axis=1))       # (Cin, 4*Cout)
    return jnp.stack(taps, axis=0)                             # (9, Cin, 4*Cout)


def _block_diag4(m):
    """(K, N) -> (4K, 4N) block-diagonal (one copy per output phase)."""
    zero = jnp.zeros_like(m)
    rows = [jnp.concatenate([m if k == ph else zero for k in range(4)], axis=1)
            for ph in range(4)]
    return jnp.concatenate(rows, axis=0)


# ----------------------------------------------------------------------------
# Activation layout helpers (pure JAX, tiny arrays)
#   Activations are kept zero-padded and row-flattened: (B, (H+2)*(W+2), C).
#   A deconv layer's output keeps the 2 junk columns of each padded row
#   (M = H*(W+2) rows); they are dropped when re-padding for the next layer.
# ----------------------------------------------------------------------------
def _input_to_padded_flat(x_nchw):
    B, C, H, W = x_nchw.shape
    x = jnp.transpose(x_nchw, (0, 2, 3, 1)).astype(jnp.bfloat16)
    xp = jnp.pad(x, ((0, 0), (1, 1), (1, 1), (0, 0)))
    L = (H + 2) * (W + 2)
    Lp = _round_up(L + 2, 8)                       # +2: last tap window overrun
    xf = xp.reshape(B, L, C)
    return jnp.pad(xf, ((0, 0), (0, Lp - L), (0, 0)))


def _phase_to_padded_flat(y, B, H, W, C):
    """y: (B, H*(W+2), 4*C) phase-major layer output -> next layer's padded,
    row-flattened input (B, Lp, C) at resolution (2H, 2W)."""
    y = y.reshape(B, H, W + 2, 2, 2, C)[:, :, :W]               # drop junk cols
    z = jnp.transpose(y, (0, 1, 3, 2, 4, 5)).reshape(B, 2 * H, 2 * W, C)
    zp = jnp.pad(z, ((0, 0), (1, 1), (1, 1), (0, 0)))
    Hp, Wp = 2 * H + 2, 2 * W + 2
    L = Hp * Wp
    Lp = _round_up(L + 2, 8)
    zf = zp.reshape(B, L, C)
    return jnp.pad(zf, ((0, 0), (0, Lp - L), (0, 0)))


# ----------------------------------------------------------------------------
# Pallas kernel 1: phase-decomposed deconv + fused BN shift + ReLU
#   9 accumulating K=C matmuls over shifted windows of the VMEM-resident padded
#   input, one lane-dense (M, 4*Cout) store.
# ----------------------------------------------------------------------------
def _deconv_kernel(x_ref, w_ref, shift_ref, o_ref, *, wp2):
    # x_ref : (1, L, Cin) bf16   w_ref : (9, Cin, 4*Cout) bf16
    # shift : (1, 4*Cout) f32    o_ref : (1, M, 4*Cout)   M = H*(W+2)
    m = o_ref.shape[1]
    acc = jnp.zeros((m, o_ref.shape[2]), jnp.float32)
    for ro in range(3):
        for co in range(3):
            off = ro * wp2 + co
            acc += jnp.dot(x_ref[0, off:off + m, :], w_ref[ro * 3 + co],
                           preferred_element_type=jnp.float32)
    o_ref[0] = jnp.maximum(acc + shift_ref[...], 0.0).astype(o_ref.dtype)


def _call_deconv(xflat, w9, shift, *, H, W, out_dtype):
    B, L, cin = xflat.shape
    M = H * (W + 2)
    n = w9.shape[-1]
    return pl.pallas_call(
        functools.partial(_deconv_kernel, wp2=W + 2),
        out_shape=jax.ShapeDtypeStruct((B, M, n), out_dtype),
        grid=(B,),
        in_specs=[
            pl.BlockSpec((1, L, cin), lambda b: (b, 0, 0)),
            pl.BlockSpec(w9.shape, lambda b: (0, 0, 0)),
            pl.BlockSpec(shift.shape, lambda b: (0, 0)),
        ],
        out_specs=pl.BlockSpec((1, M, n), lambda b: (b, 0, 0)),
        compiler_params=pltpu.CompilerParams(dimension_semantics=("parallel",)),
    )(xflat, w9, shift)


# ----------------------------------------------------------------------------
# Pallas kernel 2: last deconv layer fused with the OffsetHead 1x1 convs
#   (second matmul against a phase-block-diagonal (4*Cout, 4*4J) weight)
# ----------------------------------------------------------------------------
def _deconv_offset_kernel(x_ref, w_ref, shift_ref, wo_ref, bo_ref, o_ref, *, wp2):
    m = o_ref.shape[1]
    acc = jnp.zeros((m, w_ref.shape[2]), jnp.float32)
    for ro in range(3):
        for co in range(3):
            off = ro * wp2 + co
            acc += jnp.dot(x_ref[0, off:off + m, :], w_ref[ro * 3 + co],
                           preferred_element_type=jnp.float32)
    y = jnp.maximum(acc + shift_ref[...], 0.0)                  # feature (m, 4*Cout)
    o_ref[0] = (jnp.dot(y.astype(jnp.bfloat16), wo_ref[...],
                        preferred_element_type=jnp.float32) + bo_ref[...])


def _call_deconv_offset(xflat, w9, shift, wo, bo, *, H, W):
    B, L, cin = xflat.shape
    M = H * (W + 2)
    n = wo.shape[-1]
    return pl.pallas_call(
        functools.partial(_deconv_offset_kernel, wp2=W + 2),
        out_shape=jax.ShapeDtypeStruct((B, M, n), jnp.float32),
        grid=(B,),
        in_specs=[
            pl.BlockSpec((1, L, cin), lambda b: (b, 0, 0)),
            pl.BlockSpec(w9.shape, lambda b: (0, 0, 0)),
            pl.BlockSpec(shift.shape, lambda b: (0, 0)),
            pl.BlockSpec(wo.shape, lambda b: (0, 0)),
            pl.BlockSpec(bo.shape, lambda b: (0, 0)),
        ],
        out_specs=pl.BlockSpec((1, M, n), lambda b: (b, 0, 0)),
        compiler_params=pltpu.CompilerParams(dimension_semantics=("parallel",)),
    )(xflat, w9, shift, wo, bo)


# ----------------------------------------------------------------------------
# Pallas kernel 3: offset2joint_softmax
#   one batch element per grid step; rows = joints, spatial P on lanes; img is
#   broadcast over joints in-kernel; exact softmax; single (J, 3) store.
# ----------------------------------------------------------------------------
def _o2j_kernel(vec_ref, ht_ref, img_ref, mesh_ref, o_ref, *, kernel_size):
    img = img_ref[0]                                            # (1, P)
    mask = (img < 0.99).astype(jnp.float32)                     # (1, P)
    ht = ht_ref[0] * mask                                       # (J, P)
    z = ht * 30.0
    z = z - jnp.max(z, axis=-1, keepdims=True)
    e = jnp.exp(z)
    norm = e / jnp.sum(e, axis=-1, keepdims=True)               # softmax over P
    dis = kernel_size - ht * kernel_size
    vx = vec_ref[0, 0] * mask
    vy = vec_ref[0, 1] * mask
    vz = vec_ref[0, 2] * mask
    sx = jnp.sum((vx * dis + mesh_ref[0:1, :]) * norm, axis=-1, keepdims=True)
    sy = jnp.sum((vy * dis + mesh_ref[1:2, :]) * norm, axis=-1, keepdims=True)
    sz = jnp.sum((vz * dis + img) * norm, axis=-1, keepdims=True)
    o_ref[0] = jnp.concatenate([sx, sy, sz], axis=-1)           # (J, 3)


def offset2joint_softmax(offset_field, img, kernel_size, jt_num):
    B, C4, Fh, Fw = offset_field.shape
    assert C4 == 4 * jt_num
    P = Fh * Fw
    # F.interpolate(img, size=[Fh, Fw]) default mode='nearest' for integer ratios.
    # TODO(synk): general (non-integer-ratio) nearest resize would need a gather.
    sh, sw = img.shape[2] // Fh, img.shape[3] // Fw
    img_p = img[:, :, ::sh, ::sw].reshape(B, 1, P).astype(jnp.float32)
    vec = (offset_field[:, :3 * jt_num]
           .reshape(B, jt_num, 3, P)
           .transpose(0, 2, 1, 3))                              # (B, 3, J, P)
    ht = offset_field[:, 3 * jt_num:].reshape(B, jt_num, P)     # (B, J, P)
    idx = (np.arange(Fh, dtype=np.float32) + 0.5) * (2.0 / Fh) - 1.0
    mesh = np.stack([np.broadcast_to(idx[None, :], (Fh, Fw)),   # x varies over cols
                     np.broadcast_to(idx[:, None], (Fh, Fw))],  # y varies over rows
                    axis=0).reshape(2, P)
    mesh = jnp.asarray(mesh)
    return pl.pallas_call(
        functools.partial(_o2j_kernel, kernel_size=float(kernel_size)),
        out_shape=jax.ShapeDtypeStruct((B, jt_num, 3), jnp.float32),
        grid=(B,),
        in_specs=[
            pl.BlockSpec((1, 3, jt_num, P), lambda b: (b, 0, 0, 0)),
            pl.BlockSpec((1, jt_num, P), lambda b: (b, 0, 0)),
            pl.BlockSpec((1, 1, P), lambda b: (b, 0, 0)),
            pl.BlockSpec((2, P), lambda b: (0, 0)),
        ],
        out_specs=pl.BlockSpec((1, jt_num, 3), lambda b: (b, 0, 0)),
        compiler_params=pltpu.CompilerParams(dimension_semantics=("parallel",)),
    )(vec, ht, img_p, mesh)


# ----------------------------------------------------------------------------
# Full head forward
# ----------------------------------------------------------------------------
def awr_forward(backbone_feature, img, params, *, jt_num, heatmap_kernel_size, eps=1e-5):
    B = backbone_feature.shape[0]
    H, W = backbone_feature.shape[2], backbone_feature.shape[3]
    xflat = _input_to_padded_flat(backbone_feature)             # (B, Lp, Cin) bf16
    deconvs = params["deconv"]
    n_out = 4 * jt_num
    offset_field = None
    for li, p in enumerate(deconvs):
        scale = p["gamma"] / jnp.sqrt(p["var"] + eps)
        shift = (p["beta"] - p["mean"] * scale).astype(jnp.float32)
        cout = p["w"].shape[1]
        w9 = _build_tap_weights(p["w"], scale).astype(jnp.bfloat16)   # (9, Cin, 4*Cout)
        shift4 = jnp.tile(shift[None, :], (1, 4))                     # (1, 4*Cout)
        if li < len(deconvs) - 1:
            y = _call_deconv(xflat, w9, shift4, H=H, W=W, out_dtype=jnp.bfloat16)
            xflat = _phase_to_padded_flat(y, B, H, W, cout)
            H, W = 2 * H, 2 * W
        else:
            wo1 = jnp.concatenate([params["wv"], params["ws"]], axis=0).T  # (Cout, 4J)
            wo = _block_diag4(wo1).astype(jnp.bfloat16)                    # (4*Cout, 4*4J)
            bo1 = jnp.concatenate([params["bv"], params["bs"]], axis=0)
            bo = jnp.tile(bo1[None, :], (1, 4)).astype(jnp.float32)        # (1, 4*4J)
            off = _call_deconv_offset(xflat, w9, shift4, wo, bo, H=H, W=W)
            off = off.reshape(B, H, W + 2, 2, 2, n_out)[:, :, :W]
            offset_field = (off.transpose(0, 5, 1, 3, 2, 4)
                               .reshape(B, n_out, 2 * H, 2 * W))           # NCHW
    jt_uvd = offset2joint_softmax(offset_field, img, heatmap_kernel_size, jt_num)
    return [offset_field, jt_uvd]


# ----------------------------------------------------------------------------
# Pure-JAX reference (matmul operands cast to bf16, f32 accumulation, to mirror
# the MXU operand precision of the Pallas path; elementwise math in f32).
# ----------------------------------------------------------------------------
def ref_forward(backbone_feature, img, params, *, jt_num, heatmap_kernel_size, eps=1e-5):
    x = backbone_feature
    for p in params["deconv"]:
        scale = p["gamma"] / jnp.sqrt(p["var"] + eps)
        shift = p["beta"] - p["mean"] * scale
        wt = jnp.flip(jnp.transpose(p["w"] * scale[None, :, None, None], (1, 0, 2, 3)),
                      axis=(2, 3))                              # (Cout, Cin, 4, 4)
        x = lax.conv_general_dilated(
            x.astype(jnp.bfloat16), wt.astype(jnp.bfloat16),
            window_strides=(1, 1), padding=((2, 2), (2, 2)), lhs_dilation=(2, 2),
            dimension_numbers=("NCHW", "OIHW", "NCHW"),
            preferred_element_type=jnp.float32)
        x = jnp.maximum(x + shift[None, :, None, None], 0.0)
    B, C, Fh, Fw = x.shape
    feat = x.transpose(0, 2, 3, 1).reshape(B * Fh * Fw, C).astype(jnp.bfloat16)
    vec = jnp.dot(feat, params["wv"].T.astype(jnp.bfloat16),
                  preferred_element_type=jnp.float32) + params["bv"]
    ht = jnp.dot(feat, params["ws"].T.astype(jnp.bfloat16),
                 preferred_element_type=jnp.float32) + params["bs"]
    offset = (jnp.concatenate([vec, ht], axis=-1)
              .reshape(B, Fh, Fw, 4 * jt_num).transpose(0, 3, 1, 2))
    # offset2joint_softmax
    P = Fh * Fw
    img_ds = img[:, :, ::img.shape[2] // Fh, ::img.shape[3] // Fw]
    vecr = offset[:, :3 * jt_num].reshape(B, jt_num, 3, P)
    htr = offset[:, 3 * jt_num:].reshape(B, jt_num, P)
    imgf = img_ds.reshape(B, 1, P)
    mask = (imgf < 0.99).astype(jnp.float32)
    idx = (jnp.arange(Fh, dtype=jnp.float32) + 0.5) * (2.0 / Fh) - 1.0
    mesh = jnp.stack([jnp.broadcast_to(idx[None, :], (Fh, Fw)),
                      jnp.broadcast_to(idx[:, None], (Fh, Fw))], 0).reshape(2, P)
    coords = jnp.concatenate([jnp.broadcast_to(mesh[None], (B, 2, P)), imgf], axis=1)
    vec_m = vecr * mask[:, :, None, :]
    ht_m = htr * mask
    norm = jax.nn.softmax(ht_m * 30.0, axis=-1)
    dis = heatmap_kernel_size - ht_m * heatmap_kernel_size
    jt = jnp.sum((vec_m * dis[:, :, None, :] + coords[:, None, :, :]) * norm[:, :, None, :],
                 axis=-1)
    return [offset, jt]


# ----------------------------------------------------------------------------
def make_params(key, c_in, deconv_filters, jt_num):
    params = {"deconv": []}
    cin = c_in
    for cout in deconv_filters:
        key, kw, kg, kb, km, kv = jax.random.split(key, 6)
        params["deconv"].append(dict(
            w=0.05 * jax.random.normal(kw, (cin, cout, 4, 4), jnp.float32),
            gamma=1.0 + 0.1 * jax.random.normal(kg, (cout,), jnp.float32),
            beta=0.05 * jax.random.normal(kb, (cout,), jnp.float32),
            mean=0.05 * jax.random.normal(km, (cout,), jnp.float32),
            var=0.5 + jax.random.uniform(kv, (cout,), jnp.float32),
        ))
        cin = cout
    key, kv_, kb1, ks_, kb2 = jax.random.split(key, 5)
    params["wv"] = 0.1 * jax.random.normal(kv_, (3 * jt_num, cin), jnp.float32)
    params["bv"] = 0.01 * jax.random.normal(kb1, (3 * jt_num,), jnp.float32)
    params["ws"] = 0.1 * jax.random.normal(ks_, (jt_num, cin), jnp.float32)
    params["bs"] = 0.01 * jax.random.normal(kb2, (jt_num,), jnp.float32)
    return params


if __name__ == "__main__":
    B, C_IN, H0, W0 = 2, 32, 4, 4
    DECONV_FILTERS = (32, 32, 32)          # 3 deconv layers: 4x4 -> 8 -> 16 -> 32
    JT_NUM = 4
    HEATMAP_KERNEL_SIZE = 0.4

    key = jax.random.PRNGKey(0)
    key, k1, k2, k3 = jax.random.split(key, 4)
    backbone_feature = jax.random.normal(k1, (B, C_IN, H0, W0), jnp.float32)
    img = jax.random.uniform(k2, (B, 1, 64, 64), jnp.float32, 0.0, 1.2)  # depth image
    params = make_params(k3, C_IN, DECONV_FILTERS, JT_NUM)

    fwd = jax.jit(functools.partial(awr_forward, jt_num=JT_NUM,
                                    heatmap_kernel_size=HEATMAP_KERNEL_SIZE))
    offset_field, jt_uvd = fwd(backbone_feature, img, params)
    jax.block_until_ready(offset_field)
    jax.block_until_ready(jt_uvd)

    ref_offset, ref_jt = ref_forward(
        backbone_feature, img, params,
        jt_num=JT_NUM, heatmap_kernel_size=HEATMAP_KERNEL_SIZE)

    assert offset_field.shape == (B, 4 * JT_NUM, 32, 32)
    assert jt_uvd.shape == (B, JT_NUM, 3)
    # bf16 matmul operands -> loosened tolerances (f32 accumulation everywhere)
    np.testing.assert_allclose(np.asarray(offset_field), np.asarray(ref_offset),
                               rtol=1e-2, atol=2e-2)
    np.testing.assert_allclose(np.asarray(jt_uvd), np.asarray(ref_jt),
                               rtol=2e-2, atol=2e-2)
    print("KERNEL_OK")
</pallas_src>

<mosaic_0001>
module attributes {stable_mosaic.version = 11 : i64} {
  func.func @_deconv_kernel(%arg0: i32, %arg1: memref<1x40x32xbf16, #tpu.memory_space<vmem>>, %arg2: memref<9x32x128xbf16, #tpu.memory_space<vmem>>, %arg3: memref<1x128xf32, #tpu.memory_space<vmem>>, %arg4: memref<1x24x128xbf16, #tpu.memory_space<vmem>>) attributes {dimension_semantics = [#tpu.dimension_semantics<parallel>], iteration_bounds = array<i64: 2>, scalar_prefetch = 0 : i64, scratch_operands = 0 : i64, tpu.core_type = #tpu.core_type<tc>, window_params = [{transform_indices = @transform_0, window_bounds = array<i64: 1, 40, 32>}, {pipeline_mode = #tpu.pipeline_mode<synchronous>, transform_indices = @transform_1, window_bounds = array<i64: 9, 32, 128>}, {pipeline_mode = #tpu.pipeline_mode<synchronous>, transform_indices = @transform_2, window_bounds = array<i64: 1, 128>}, {transform_indices = @transform_3, window_bounds = array<i64: 1, 24, 128>}]} {
    %cst = arith.constant 0.000000e+00 : f32
    %0 = vector.broadcast %cst : f32 to vector<24x128xf32>
    %c0 = arith.constant 0 : index
    %c0_0 = arith.constant 0 : index
    %c0_1 = arith.constant 0 : index
    %1 = vector.load %arg1[%c0, %c0_0, %c0_1] : memref<1x40x32xbf16, #tpu.memory_space<vmem>>, vector<1x24x32xbf16>
    %2 = vector.shape_cast %1 : vector<1x24x32xbf16> to vector<24x32xbf16>
    %c0_2 = arith.constant 0 : index
    %c0_3 = arith.constant 0 : index
    %c0_4 = arith.constant 0 : index
    %3 = vector.load %arg2[%c0_2, %c0_3, %c0_4] : memref<9x32x128xbf16, #tpu.memory_space<vmem>>, vector<1x32x128xbf16>
    %4 = vector.shape_cast %3 : vector<1x32x128xbf16> to vector<32x128xbf16>
    %cst_5 = arith.constant dense<0.000000e+00> : vector<24x128xf32>
    %5 = tpu.matmul %2, %4, %cst_5 {dimension_numbers = #tpu.dot_dimension_numbers<[1], [0], [0], [1], [0, 0, 1, 1], [], []>} : vector<24x32xbf16>, vector<32x128xbf16>, vector<24x128xf32> -> vector<24x128xf32>
    %6 = arith.addf %0, %5 : vector<24x128xf32>
    %c0_6 = arith.constant 0 : index
    %c1 = arith.constant 1 : index
    %c0_7 = arith.constant 0 : index
    %7 = vector.load %arg1[%c0_6, %c1, %c0_7] : memref<1x40x32xbf16, #tpu.memory_space<vmem>>, vector<1x24x32xbf16>
    %8 = vector.shape_cast %7 : vector<1x24x32xbf16> to vector<24x32xbf16>
    %c1_8 = arith.constant 1 : index
    %c0_9 = arith.constant 0 : index
    %c0_10 = arith.constant 0 : index
    %9 = vector.load %arg2[%c1_8, %c0_9, %c0_10] : memref<9x32x128xbf16, #tpu.memory_space<vmem>>, vector<1x32x128xbf16>
    %10 = vector.shape_cast %9 : vector<1x32x128xbf16> to vector<32x128xbf16>
    %cst_11 = arith.constant dense<0.000000e+00> : vector<24x128xf32>
    %11 = tpu.matmul %8, %10, %cst_11 {dimension_numbers = #tpu.dot_dimension_numbers<[1], [0], [0], [1], [0, 0, 1, 1], [], []>} : vector<24x32xbf16>, vector<32x128xbf16>, vector<24x128xf32> -> vector<24x128xf32>
    %12 = arith.addf %6, %11 : vector<24x128xf32>
    %c0_12 = arith.constant 0 : index
    %c2 = arith.constant 2 : index
    %c0_13 = arith.constant 0 : index
    %13 = vector.load %arg1[%c0_12, %c2, %c0_13] : memref<1x40x32xbf16, #tpu.memory_space<vmem>>, vector<1x24x32xbf16>
    %14 = vector.shape_cast %13 : vector<1x24x32xbf16> to vector<24x32xbf16>
    %c2_14 = arith.constant 2 : index
    %c0_15 = arith.constant 0 : index
    %c0_16 = arith.constant 0 : index
    %15 = vector.load %arg2[%c2_14, %c0_15, %c0_16] : memref<9x32x128xbf16, #tpu.memory_space<vmem>>, vector<1x32x128xbf16>
    %16 = vector.shape_cast %15 : vector<1x32x128xbf16> to vector<32x128xbf16>
    %cst_17 = arith.constant dense<0.000000e+00> : vector<24x128xf32>
    %17 = tpu.matmul %14, %16, %cst_17 {dimension_numbers = #tpu.dot_dimension_numbers<[1], [0], [0], [1], [0, 0, 1, 1], [], []>} : vector<24x32xbf16>, vector<32x128xbf16>, vector<24x128xf32> -> vector<24x128xf32>
    %18 = arith.addf %12, %17 : vector<24x128xf32>
    %c0_18 = arith.constant 0 : index
    %c6 = arith.constant 6 : index
    %c0_19 = arith.constant 0 : index
    %19 = vector.load %arg1[%c0_18, %c6, %c0_19] : memref<1x40x32xbf16, #tpu.memory_space<vmem>>, vector<1x24x32xbf16>
    %20 = vector.shape_cast %19 : vector<1x24x32xbf16> to vector<24x32xbf16>
    %c3 = arith.constant 3 : index
    %c0_20 = arith.constant 0 : index
    %c0_21 = arith.constant 0 : index
    %21 = vector.load %arg2[%c3, %c0_20, %c0_21] : memref<9x32x128xbf16, #tpu.memory_space<vmem>>, vector<1x32x128xbf16>
    %22 = vector.shape_cast %21 : vector<1x32x128xbf16> to vector<32x128xbf16>
    %cst_22 = arith.constant dense<0.000000e+00> : vector<24x128xf32>
    %23 = tpu.matmul %20, %22, %cst_22 {dimension_numbers = #tpu.dot_dimension_numbers<[1], [0], [0], [1], [0, 0, 1, 1], [], []>} : vector<24x32xbf16>, vector<32x128xbf16>, vector<24x128xf32> -> vector<24x128xf32>
    %24 = arith.addf %18, %23 : vector<24x128xf32>
    %c0_23 = arith.constant 0 : index
    %c7 = arith.constant 7 : index
    %c0_24 = arith.constant 0 : index
    %25 = vector.load %arg1[%c0_23, %c7, %c0_24] : memref<1x40x32xbf16, #tpu.memory_space<vmem>>, vector<1x24x32xbf16>
    %26 = vector.shape_cast %25 : vector<1x24x32xbf16> to vector<24x32xbf16>
    %c4 = arith.constant 4 : index
    %c0_25 = arith.constant 0 : index
    %c0_26 = arith.constant 0 : index
    %27 = vector.load %arg2[%c4, %c0_25, %c0_26] : memref<9x32x128xbf16, #tpu.memory_space<vmem>>, vector<1x32x128xbf16>
    %28 = vector.shape_cast %27 : vector<1x32x128xbf16> to vector<32x128xbf16>
    %cst_27 = arith.constant dense<0.000000e+00> : vector<24x128xf32>
    %29 = tpu.matmul %26, %28, %cst_27 {dimension_numbers = #tpu.dot_dimension_numbers<[1], [0], [0], [1], [0, 0, 1, 1], [], []>} : vector<24x32xbf16>, vector<32x128xbf16>, vector<24x128xf32> -> vector<24x128xf32>
    %30 = arith.addf %24, %29 : vector<24x128xf32>
    %c0_28 = arith.constant 0 : index
    %c8 = arith.constant 8 : index
    %c0_29 = arith.constant 0 : index
    %31 = vector.load %arg1[%c0_28, %c8, %c0_29] : memref<1x40x32xbf16, #tpu.memory_space<vmem>>, vector<1x24x32xbf16>
    %32 = vector.shape_cast %31 : vector<1x24x32xbf16> to vector<24x32xbf16>
    %c5 = arith.constant 5 : index
    %c0_30 = arith.constant 0 : index
    %c0_31 = arith.constant 0 : index
    %33 = vector.load %arg2[%c5, %c0_30, %c0_31] : memref<9x32x128xbf16, #tpu.memory_space<vmem>>, vector<1x32x128xbf16>
    %34 = vector.shape_cast %33 : vector<1x32x128xbf16> to vector<32x128xbf16>
    %cst_32 = arith.constant dense<0.000000e+00> : vector<24x128xf32>
    %35 = tpu.matmul %32, %34, %cst_32 {dimension_numbers = #tpu.dot_dimension_numbers<[1], [0], [0], [1], [0, 0, 1, 1], [], []>} : vector<24x32xbf16>, vector<32x128xbf16>, vector<24x128xf32> -> vector<24x128xf32>
    %36 = arith.addf %30, %35 : vector<24x128xf32>
    %c0_33 = arith.constant 0 : index
    %c12 = arith.constant 12 : index
    %c0_34 = arith.constant 0 : index
    %37 = vector.load %arg1[%c0_33, %c12, %c0_34] : memref<1x40x32xbf16, #tpu.memory_space<vmem>>, vector<1x24x32xbf16>
    %38 = vector.shape_cast %37 : vector<1x24x32xbf16> to vector<24x32xbf16>
    %c6_35 = arith.constant 6 : index
    %c0_36 = arith.constant 0 : index
    %c0_37 = arith.constant 0 : index
    %39 = vector.load %arg2[%c6_35, %c0_36, %c0_37] : memref<9x32x128xbf16, #tpu.memory_space<vmem>>, vector<1x32x128xbf16>
    %40 = vector.shape_cast %39 : vector<1x32x128xbf16> to vector<32x128xbf16>
    %cst_38 = arith.constant dense<0.000000e+00> : vector<24x128xf32>
    %41 = tpu.matmul %38, %40, %cst_38 {dimension_numbers = #tpu.dot_dimension_numbers<[1], [0], [0], [1], [0, 0, 1, 1], [], []>} : vector<24x32xbf16>, vector<32x128xbf16>, vector<24x128xf32> -> vector<24x128xf32>
    %42 = arith.addf %36, %41 : vector<24x128xf32>
    %c0_39 = arith.constant 0 : index
    %c13 = arith.constant 13 : index
    %c0_40 = arith.constant 0 : index
    %43 = vector.load %arg1[%c0_39, %c13, %c0_40] : memref<1x40x32xbf16, #tpu.memory_space<vmem>>, vector<1x24x32xbf16>
    %44 = vector.shape_cast %43 : vector<1x24x32xbf16> to vector<24x32xbf16>
    %c7_41 = arith.constant 7 : index
    %c0_42 = arith.constant 0 : index
    %c0_43 = arith.constant 0 : index
    %45 = vector.load %arg2[%c7_41, %c0_42, %c0_43] : memref<9x32x128xbf16, #tpu.memory_space<vmem>>, vector<1x32x128xbf16>
    %46 = vector.shape_cast %45 : vector<1x32x128xbf16> to vector<32x128xbf16>
    %cst_44 = arith.constant dense<0.000000e+00> : vector<24x128xf32>
    %47 = tpu.matmul %44, %46, %cst_44 {dimension_numbers = #tpu.dot_dimension_numbers<[1], [0], [0], [1], [0, 0, 1, 1], [], []>} : vector<24x32xbf16>, vector<32x128xbf16>, vector<24x128xf32> -> vector<24x128xf32>
    %48 = arith.addf %42, %47 : vector<24x128xf32>
    %c0_45 = arith.constant 0 : index
    %c14 = arith.constant 14 : index
    %c0_46 = arith.constant 0 : index
    %49 = vector.load %arg1[%c0_45, %c14, %c0_46] : memref<1x40x32xbf16, #tpu.memory_space<vmem>>, vector<1x24x32xbf16>
    %50 = vector.shape_cast %49 : vector<1x24x32xbf16> to vector<24x32xbf16>
    %c8_47 = arith.constant 8 : index
    %c0_48 = arith.constant 0 : index
    %c0_49 = arith.constant 0 : index
    %51 = vector.load %arg2[%c8_47, %c0_48, %c0_49] : memref<9x32x128xbf16, #tpu.memory_space<vmem>>, vector<1x32x128xbf16>
    %52 = vector.shape_cast %51 : vector<1x32x128xbf16> to vector<32x128xbf16>
    %cst_50 = arith.constant dense<0.000000e+00> : vector<24x128xf32>
    %53 = tpu.matmul %50, %52, %cst_50 {dimension_numbers = #tpu.dot_dimension_numbers<[1], [0], [0], [1], [0, 0, 1, 1], [], []>} : vector<24x32xbf16>, vector<32x128xbf16>, vector<24x128xf32> -> vector<24x128xf32>
    %54 = arith.addf %48, %53 : vector<24x128xf32>
    %c0_51 = arith.constant 0 : index
    %c0_52 = arith.constant 0 : index
    %55 = vector.load %arg3[%c0_51, %c0_52] : memref<1x128xf32, #tpu.memory_space<vmem>>, vector<1x128xf32>
    %56 = vector.broadcast %55 : vector<1x128xf32> to vector<24x128xf32>
    %57 = arith.addf %54, %56 : vector<24x128xf32>
    %cst_53 = arith.constant 0.000000e+00 : f32
    %58 = vector.broadcast %cst_53 : f32 to vector<24x128xf32>
    %59 = arith.maximumf %57, %58 : vector<24x128xf32>
    %60 = arith.truncf %59 : vector<24x128xf32> to vector<24x128xbf16>
    %c0_54 = arith.constant 0 : index
    %c0_55 = arith.constant 0 : index
    %c0_56 = arith.constant 0 : index
    %61 = vector.load %arg4[%c0_54, %c0_55, %c0_56] : memref<1x24x128xbf16, #tpu.memory_space<vmem>>, vector<1x24x128xbf16>
    %62 = vector.shape_cast %61 : vector<1x24x128xbf16> to vector<24x128xbf16>
    %63 = vector.shape_cast %60 : vector<24x128xbf16> to vector<1x24x128xbf16>
    tpu.vector_store %arg4[%c0_54, %c0_55, %c0_56], %63 {strides = array<i32>} : memref<1x24x128xbf16, #tpu.memory_space<vmem>>, vector<1x24x128xbf16>,
    return
  }
  func.func @transform_0(%arg0: i32) -> (i32, i32, i32) {
    %c0_i32 = arith.constant 0 : i32
    %c0_i32_0 = arith.constant 0 : i32
    %c0_i32_1 = arith.constant 0 : i32
    return %arg0, %c0_i32, %c0_i32_0 : i32, i32, i32
  }
  func.func @transform_1(%arg0: i32) -> (i32, i32, i32) {
    %c0_i32 = arith.constant 0 : i32
    %c0_i32_0 = arith.constant 0 : i32
    %c0_i32_1 = arith.constant 0 : i32
    %c0_i32_2 = arith.constant 0 : i32
    return %c0_i32, %c0_i32_0, %c0_i32_1 : i32, i32, i32
  }
  func.func @transform_2(%arg0: i32) -> (i32, i32) {
    %c0_i32 = arith.constant 0 : i32
    %c0_i32_0 = arith.constant 0 : i32
    %c0_i32_1 = arith.constant 0 : i32
    return %c0_i32, %c0_i32_0 : i32, i32
  }
  func.func @transform_3(%arg0: i32) -> (i32, i32, i32) {
    %c0_i32 = arith.constant 0 : i32
    %c0_i32_0 = arith.constant 0 : i32
    %c0_i32_1 = arith.constant 0 : i32
    return %arg0, %c0_i32, %c0_i32_0 : i32, i32, i32
  }
}

module attributes {stable_mosaic.version = 11 : i64} {
  func.func @_deconv_kernel(%arg0: i32, %arg1: memref<1x104x32xbf16, #tpu.memory_space<vmem>>, %arg2: memref<9x32x128xbf16, #tpu.memory_space<vmem>>, %arg3: memref<1x128xf32, #tpu.memory_space<vmem>>, %arg4: memref<1x80x128xbf16, #tpu.memory_space<vmem>>) attributes {dimension_semantics = [#tpu.dimension_semantics<parallel>], iteration_bounds = array<i64: 2>, scalar_prefetch = 0 : i64, scratch_operands = 0 : i64, tpu.core_type = #tpu.core_type<tc>, window_params = [{transform_indices = @transform_0, window_bounds = array<i64: 1, 104, 32>}, {pipeline_mode = #tpu.pipeline_mode<synchronous>, transform_indices = @transform_1, window_bounds = array<i64: 9, 32, 128>}, {pipeline_mode = #tpu.pipeline_mode<synchronous>, transform_indices = @transform_2, window_bounds = array<i64: 1, 128>}, {transform_indices = @transform_3, window_bounds = array<i64: 1, 80, 128>}]} {
    %cst = arith.constant 0.000000e+00 : f32
    %0 = vector.broadcast %cst : f32 to vector<80x128xf32>
    %c0 = arith.constant 0 : index
    %c0_0 = arith.constant 0 : index
    %c0_1 = arith.constant 0 : index
    %1 = vector.load %arg1[%c0, %c0_0, %c0_1] : memref<1x104x32xbf16, #tpu.memory_space<vmem>>, vector<1x80x32xbf16>
    %2 = vector.shape_cast %1 : vector<1x80x32xbf16> to vector<80x32xbf16>
    %c0_2 = arith.constant 0 : index
    %c0_3 = arith.constant 0 : index
    %c0_4 = arith.constant 0 : index
    %3 = vector.load %arg2[%c0_2, %c0_3, %c0_4] : memref<9x32x128xbf16, #tpu.memory_space<vmem>>, vector<1x32x128xbf16>
    %4 = vector.shape_cast %3 : vector<1x32x128xbf16> to vector<32x128xbf16>
    %cst_5 = arith.constant dense<0.000000e+00> : vector<80x128xf32>
    %5 = tpu.matmul %2, %4, %cst_5 {dimension_numbers = #tpu.dot_dimension_numbers<[1], [0], [0], [1], [0, 0, 1, 1], [], []>} : vector<80x32xbf16>, vector<32x128xbf16>, vector<80x128xf32> -> vector<80x128xf32>
    %6 = arith.addf %0, %5 : vector<80x128xf32>
    %c0_6 = arith.constant 0 : index
    %c1 = arith.constant 1 : index
    %c0_7 = arith.constant 0 : index
    %7 = vector.load %arg1[%c0_6, %c1, %c0_7] : memref<1x104x32xbf16, #tpu.memory_space<vmem>>, vector<1x80x32xbf16>
    %8 = vector.shape_cast %7 : vector<1x80x32xbf16> to vector<80x32xbf16>
    %c1_8 = arith.constant 1 : index
    %c0_9 = arith.constant 0 : index
    %c0_10 = arith.constant 0 : index
    %9 = vector.load %arg2[%c1_8, %c0_9, %c0_10] : memref<9x32x128xbf16, #tpu.memory_space<vmem>>, vector<1x32x128xbf16>
    %10 = vector.shape_cast %9 : vector<1x32x128xbf16> to vector<32x128xbf16>
    %cst_11 = arith.constant dense<0.000000e+00> : vector<80x128xf32>
    %11 = tpu.matmul %8, %10, %cst_11 {dimension_numbers = #tpu.dot_dimension_numbers<[1], [0], [0], [1], [0, 0, 1, 1], [], []>} : vector<80x32xbf16>, vector<32x128xbf16>, vector<80x128xf32> -> vector<80x128xf32>
    %12 = arith.addf %6, %11 : vector<80x128xf32>
    %c0_12 = arith.constant 0 : index
    %c2 = arith.constant 2 : index
    %c0_13 = arith.constant 0 : index
    %13 = vector.load %arg1[%c0_12, %c2, %c0_13] : memref<1x104x32xbf16, #tpu.memory_space<vmem>>, vector<1x80x32xbf16>
    %14 = vector.shape_cast %13 : vector<1x80x32xbf16> to vector<80x32xbf16>
    %c2_14 = arith.constant 2 : index
    %c0_15 = arith.constant 0 : index
    %c0_16 = arith.constant 0 : index
    %15 = vector.load %arg2[%c2_14, %c0_15, %c0_16] : memref<9x32x128xbf16, #tpu.memory_space<vmem>>, vector<1x32x128xbf16>
    %16 = vector.shape_cast %15 : vector<1x32x128xbf16> to vector<32x128xbf16>
    %cst_17 = arith.constant dense<0.000000e+00> : vector<80x128xf32>
    %17 = tpu.matmul %14, %16, %cst_17 {dimension_numbers = #tpu.dot_dimension_numbers<[1], [0], [0], [1], [0, 0, 1, 1], [], []>} : vector<80x32xbf16>, vector<32x128xbf16>, vector<80x128xf32> -> vector<80x128xf32>
    %18 = arith.addf %12, %17 : vector<80x128xf32>
    %c0_18 = arith.constant 0 : index
    %c10 = arith.constant 10 : index
    %c0_19 = arith.constant 0 : index
    %19 = vector.load %arg1[%c0_18, %c10, %c0_19] : memref<1x104x32xbf16, #tpu.memory_space<vmem>>, vector<1x80x32xbf16>
    %20 = vector.shape_cast %19 : vector<1x80x32xbf16> to vector<80x32xbf16>
    %c3 = arith.constant 3 : index
    %c0_20 = arith.constant 0 : index
    %c0_21 = arith.constant 0 : index
    %21 = vector.load %arg2[%c3, %c0_20, %c0_21] : memref<9x32x128xbf16, #tpu.memory_space<vmem>>, vector<1x32x128xbf16>
    %22 = vector.shape_cast %21 : vector<1x32x128xbf16> to vector<32x128xbf16>
    %cst_22 = arith.constant dense<0.000000e+00> : vector<80x128xf32>
    %23 = tpu.matmul %20, %22, %cst_22 {dimension_numbers = #tpu.dot_dimension_numbers<[1], [0], [0], [1], [0, 0, 1, 1], [], []>} : vector<80x32xbf16>, vector<32x128xbf16>, vector<80x128xf32> -> vector<80x128xf32>
    %24 = arith.addf %18, %23 : vector<80x128xf32>
    %c0_23 = arith.constant 0 : index
    %c11 = arith.constant 11 : index
    %c0_24 = arith.constant 0 : index
    %25 = vector.load %arg1[%c0_23, %c11, %c0_24] : memref<1x104x32xbf16, #tpu.memory_space<vmem>>, vector<1x80x32xbf16>
    %26 = vector.shape_cast %25 : vector<1x80x32xbf16> to vector<80x32xbf16>
    %c4 = arith.constant 4 : index
    %c0_25 = arith.constant 0 : index
    %c0_26 = arith.constant 0 : index
    %27 = vector.load %arg2[%c4, %c0_25, %c0_26] : memref<9x32x128xbf16, #tpu.memory_space<vmem>>, vector<1x32x128xbf16>
    %28 = vector.shape_cast %27 : vector<1x32x128xbf16> to vector<32x128xbf16>
    %cst_27 = arith.constant dense<0.000000e+00> : vector<80x128xf32>
    %29 = tpu.matmul %26, %28, %cst_27 {dimension_numbers = #tpu.dot_dimension_numbers<[1], [0], [0], [1], [0, 0, 1, 1], [], []>} : vector<80x32xbf16>, vector<32x128xbf16>, vector<80x128xf32> -> vector<80x128xf32>
    %30 = arith.addf %24, %29 : vector<80x128xf32>
    %c0_28 = arith.constant 0 : index
    %c12 = arith.constant 12 : index
    %c0_29 = arith.constant 0 : index
    %31 = vector.load %arg1[%c0_28, %c12, %c0_29] : memref<1x104x32xbf16, #tpu.memory_space<vmem>>, vector<1x80x32xbf16>
    %32 = vector.shape_cast %31 : vector<1x80x32xbf16> to vector<80x32xbf16>
    %c5 = arith.constant 5 : index
    %c0_30 = arith.constant 0 : index
    %c0_31 = arith.constant 0 : index
    %33 = vector.load %arg2[%c5, %c0_30, %c0_31] : memref<9x32x128xbf16, #tpu.memory_space<vmem>>, vector<1x32x128xbf16>
    %34 = vector.shape_cast %33 : vector<1x32x128xbf16> to vector<32x128xbf16>
    %cst_32 = arith.constant dense<0.000000e+00> : vector<80x128xf32>
    %35 = tpu.matmul %32, %34, %cst_32 {dimension_numbers = #tpu.dot_dimension_numbers<[1], [0], [0], [1], [0, 0, 1, 1], [], []>} : vector<80x32xbf16>, vector<32x128xbf16>, vector<80x128xf32> -> vector<80x128xf32>
    %36 = arith.addf %30, %35 : vector<80x128xf32>
    %c0_33 = arith.constant 0 : index
    %c20 = arith.constant 20 : index
    %c0_34 = arith.constant 0 : index
    %37 = vector.load %arg1[%c0_33, %c20, %c0_34] : memref<1x104x32xbf16, #tpu.memory_space<vmem>>, vector<1x80x32xbf16>
    %38 = vector.shape_cast %37 : vector<1x80x32xbf16> to vector<80x32xbf16>
    %c6 = arith.constant 6 : index
    %c0_35 = arith.constant 0 : index
    %c0_36 = arith.constant 0 : index
    %39 = vector.load %arg2[%c6, %c0_35, %c0_36] : memref<9x32x128xbf16, #tpu.memory_space<vmem>>, vector<1x32x128xbf16>
    %40 = vector.shape_cast %39 : vector<1x32x128xbf16> to vector<32x128xbf16>
    %cst_37 = arith.constant dense<0.000000e+00> : vector<80x128xf32>
    %41 = tpu.matmul %38, %40, %cst_37 {dimension_numbers = #tpu.dot_dimension_numbers<[1], [0], [0], [1], [0, 0, 1, 1], [], []>} : vector<80x32xbf16>, vector<32x128xbf16>, vector<80x128xf32> -> vector<80x128xf32>
    %42 = arith.addf %36, %41 : vector<80x128xf32>
    %c0_38 = arith.constant 0 : index
    %c21 = arith.constant 21 : index
    %c0_39 = arith.constant 0 : index
    %43 = vector.load %arg1[%c0_38, %c21, %c0_39] : memref<1x104x32xbf16, #tpu.memory_space<vmem>>, vector<1x80x32xbf16>
    %44 = vector.shape_cast %43 : vector<1x80x32xbf16> to vector<80x32xbf16>
    %c7 = arith.constant 7 : index
    %c0_40 = arith.constant 0 : index
    %c0_41 = arith.constant 0 : index
    %45 = vector.load %arg2[%c7, %c0_40, %c0_41] : memref<9x32x128xbf16, #tpu.memory_space<vmem>>, vector<1x32x128xbf16>
    %46 = vector.shape_cast %45 : vector<1x32x128xbf16> to vector<32x128xbf16>
    %cst_42 = arith.constant dense<0.000000e+00> : vector<80x128xf32>
    %47 = tpu.matmul %44, %46, %cst_42 {dimension_numbers = #tpu.dot_dimension_numbers<[1], [0], [0], [1], [0, 0, 1, 1], [], []>} : vector<80x32xbf16>, vector<32x128xbf16>, vector<80x128xf32> -> vector<80x128xf32>
    %48 = arith.addf %42, %47 : vector<80x128xf32>
    %c0_43 = arith.constant 0 : index
    %c22 = arith.constant 22 : index
    %c0_44 = arith.constant 0 : index
    %49 = vector.load %arg1[%c0_43, %c22, %c0_44] : memref<1x104x32xbf16, #tpu.memory_space<vmem>>, vector<1x80x32xbf16>
    %50 = vector.shape_cast %49 : vector<1x80x32xbf16> to vector<80x32xbf16>
    %c8 = arith.constant 8 : index
    %c0_45 = arith.constant 0 : index
    %c0_46 = arith.constant 0 : index
    %51 = vector.load %arg2[%c8, %c0_45, %c0_46] : memref<9x32x128xbf16, #tpu.memory_space<vmem>>, vector<1x32x128xbf16>
    %52 = vector.shape_cast %51 : vector<1x32x128xbf16> to vector<32x128xbf16>
    %cst_47 = arith.constant dense<0.000000e+00> : vector<80x128xf32>
    %53 = tpu.matmul %50, %52, %cst_47 {dimension_numbers = #tpu.dot_dimension_numbers<[1], [0], [0], [1], [0, 0, 1, 1], [], []>} : vector<80x32xbf16>, vector<32x128xbf16>, vector<80x128xf32> -> vector<80x128xf32>
    %54 = arith.addf %48, %53 : vector<80x128xf32>
    %c0_48 = arith.constant 0 : index
    %c0_49 = arith.constant 0 : index
    %55 = vector.load %arg3[%c0_48, %c0_49] : memref<1x128xf32, #tpu.memory_space<vmem>>, vector<1x128xf32>
    %56 = vector.broadcast %55 : vector<1x128xf32> to vector<80x128xf32>
    %57 = arith.addf %54, %56 : vector<80x128xf32>
    %cst_50 = arith.constant 0.000000e+00 : f32
    %58 = vector.broadcast %cst_50 : f32 to vector<80x128xf32>
    %59 = arith.maximumf %57, %58 : vector<80x128xf32>
    %60 = arith.truncf %59 : vector<80x128xf32> to vector<80x128xbf16>
    %c0_51 = arith.constant 0 : index
    %c0_52 = arith.constant 0 : index
    %c0_53 = arith.constant 0 : index
    %61 = vector.load %arg4[%c0_51, %c0_52, %c0_53] : memref<1x80x128xbf16, #tpu.memory_space<vmem>>, vector<1x80x128xbf16>
    %62 = vector.shape_cast %61 : vector<1x80x128xbf16> to vector<80x128xbf16>
    %63 = vector.shape_cast %60 : vector<80x128xbf16> to vector<1x80x128xbf16>
    tpu.vector_store %arg4[%c0_51, %c0_52, %c0_53], %63 {strides = array<i32>} : memref<1x80x128xbf16, #tpu.memory_space<vmem>>, vector<1x80x128xbf16>,
    return
  }
  func.func @transform_0(%arg0: i32) -> (i32, i32, i32) {
    %c0_i32 = arith.constant 0 : i32
    %c0_i32_0 = arith.constant 0 : i32
    %c0_i32_1 = arith.constant 0 : i32
    return %arg0, %c0_i32, %c0_i32_0 : i32, i32, i32
  }
  func.func @transform_1(%arg0: i32) -> (i32, i32, i32) {
    %c0_i32 = arith.constant 0 : i32
    %c0_i32_0 = arith.constant 0 : i32
    %c0_i32_1 = arith.constant 0 : i32
    %c0_i32_2 = arith.constant 0 : i32
    return %c0_i32, %c0_i32_0, %c0_i32_1 : i32, i32, i32
  }
  func.func @transform_2(%arg0: i32) -> (i32, i32) {
    %c0_i32 = arith.constant 0 : i32
    %c0_i32_0 = arith.constant 0 : i32
    %c0_i32_1 = arith.constant 0 : i32
    return %c0_i32, %c0_i32_0 : i32, i32
  }
  func.func @transform_3(%arg0: i32) -> (i32, i32, i32) {
    %c0_i32 = arith.constant 0 : i32
    %c0_i32_0 = arith.constant 0 : i32
    %c0_i32_1 = arith.constant 0 : i32
    return %arg0, %c0_i32, %c0_i32_0 : i32, i32, i32
  }
}

module attributes {stable_mosaic.version = 11 : i64} {
  func.func @_deconv_offset_kernel(%arg0: i32, %arg1: memref<1x328x32xbf16, #tpu.memory_space<vmem>>, %arg2: memref<9x32x128xbf16, #tpu.memory_space<vmem>>, %arg3: memref<1x128xf32, #tpu.memory_space<vmem>>, %arg4: memref<128x64xbf16, #tpu.memory_space<vmem>>, %arg5: memref<1x64xf32, #tpu.memory_space<vmem>>, %arg6: memref<1x288x64xf32, #tpu.memory_space<vmem>>) attributes {dimension_semantics = [#tpu.dimension_semantics<parallel>], iteration_bounds = array<i64: 2>, scalar_prefetch = 0 : i64, scratch_operands = 0 : i64, tpu.core_type = #tpu.core_type<tc>, window_params = [{transform_indices = @transform_0, window_bounds = array<i64: 1, 328, 32>}, {pipeline_mode = #tpu.pipeline_mode<synchronous>, transform_indices = @transform_1, window_bounds = array<i64: 9, 32, 128>}, {pipeline_mode = #tpu.pipeline_mode<synchronous>, transform_indices = @transform_2, window_bounds = array<i64: 1, 128>}, {pipeline_mode = #tpu.pipeline_mode<synchronous>, transform_indices = @transform_3, window_bounds = array<i64: 128, 64>}, {pipeline_mode = #tpu.pipeline_mode<synchronous>, transform_indices = @transform_4, window_bounds = array<i64: 1, 64>}, {transform_indices = @transform_5, window_bounds = array<i64: 1, 288, 64>}]} {
    %cst = arith.constant 0.000000e+00 : f32
    %0 = vector.broadcast %cst : f32 to vector<288x128xf32>
    %c0 = arith.constant 0 : index
    %c0_0 = arith.constant 0 : index
    %c0_1 = arith.constant 0 : index
    %1 = vector.load %arg1[%c0, %c0_0, %c0_1] : memref<1x328x32xbf16, #tpu.memory_space<vmem>>, vector<1x288x32xbf16>
    %2 = vector.shape_cast %1 : vector<1x288x32xbf16> to vector<288x32xbf16>
    %c0_2 = arith.constant 0 : index
    %c0_3 = arith.constant 0 : index
    %c0_4 = arith.constant 0 : index
    %3 = vector.load %arg2[%c0_2, %c0_3, %c0_4] : memref<9x32x128xbf16, #tpu.memory_space<vmem>>, vector<1x32x128xbf16>
    %4 = vector.shape_cast %3 : vector<1x32x128xbf16> to vector<32x128xbf16>
    %cst_5 = arith.constant dense<0.000000e+00> : vector<288x128xf32>
    %5 = tpu.matmul %2, %4, %cst_5 {dimension_numbers = #tpu.dot_dimension_numbers<[1], [0], [0], [1], [0, 0, 1, 1], [], []>} : vector<288x32xbf16>, vector<32x128xbf16>, vector<288x128xf32> -> vector<288x128xf32>
    %6 = arith.addf %0, %5 : vector<288x128xf32>
    %c0_6 = arith.constant 0 : index
    %c1 = arith.constant 1 : index
    %c0_7 = arith.constant 0 : index
    %7 = vector.load %arg1[%c0_6, %c1, %c0_7] : memref<1x328x32xbf16, #tpu.memory_space<vmem>>, vector<1x288x32xbf16>
    %8 = vector.shape_cast %7 : vector<1x288x32xbf16> to vector<288x32xbf16>
    %c1_8 = arith.constant 1 : index
    %c0_9 = arith.constant 0 : index
    %c0_10 = arith.constant 0 : index
    %9 = vector.load %arg2[%c1_8, %c0_9, %c0_10] : memref<9x32x128xbf16, #tpu.memory_space<vmem>>, vector<1x32x128xbf16>
    %10 = vector.shape_cast %9 : vector<1x32x128xbf16> to vector<32x128xbf16>
    %cst_11 = arith.constant dense<0.000000e+00> : vector<288x128xf32>
    %11 = tpu.matmul %8, %10, %cst_11 {dimension_numbers = #tpu.dot_dimension_numbers<[1], [0], [0], [1], [0, 0, 1, 1], [], []>} : vector<288x32xbf16>, vector<32x128xbf16>, vector<288x128xf32> -> vector<288x128xf32>
    %12 = arith.addf %6, %11 : vector<288x128xf32>
    %c0_12 = arith.constant 0 : index
    %c2 = arith.constant 2 : index
    %c0_13 = arith.constant 0 : index
    %13 = vector.load %arg1[%c0_12, %c2, %c0_13] : memref<1x328x32xbf16, #tpu.memory_space<vmem>>, vector<1x288x32xbf16>
    %14 = vector.shape_cast %13 : vector<1x288x32xbf16> to vector<288x32xbf16>
    %c2_14 = arith.constant 2 : index
    %c0_15 = arith.constant 0 : index
    %c0_16 = arith.constant 0 : index
    %15 = vector.load %arg2[%c2_14, %c0_15, %c0_16] : memref<9x32x128xbf16, #tpu.memory_space<vmem>>, vector<1x32x128xbf16>
    %16 = vector.shape_cast %15 : vector<1x32x128xbf16> to vector<32x128xbf16>
    %cst_17 = arith.constant dense<0.000000e+00> : vector<288x128xf32>
    %17 = tpu.matmul %14, %16, %cst_17 {dimension_numbers = #tpu.dot_dimension_numbers<[1], [0], [0], [1], [0, 0, 1, 1], [], []>} : vector<288x32xbf16>, vector<32x128xbf16>, vector<288x128xf32> -> vector<288x128xf32>
    %18 = arith.addf %12, %17 : vector<288x128xf32>
    %c0_18 = arith.constant 0 : index
    %c18 = arith.constant 18 : index
    %c0_19 = arith.constant 0 : index
    %19 = vector.load %arg1[%c0_18, %c18, %c0_19] : memref<1x328x32xbf16, #tpu.memory_space<vmem>>, vector<1x288x32xbf16>
    %20 = vector.shape_cast %19 : vector<1x288x32xbf16> to vector<288x32xbf16>
    %c3 = arith.constant 3 : index
    %c0_20 = arith.constant 0 : index
    %c0_21 = arith.constant 0 : index
    %21 = vector.load %arg2[%c3, %c0_20, %c0_21] : memref<9x32x128xbf16, #tpu.memory_space<vmem>>, vector<1x32x128xbf16>
    %22 = vector.shape_cast %21 : vector<1x32x128xbf16> to vector<32x128xbf16>
    %cst_22 = arith.constant dense<0.000000e+00> : vector<288x128xf32>
    %23 = tpu.matmul %20, %22, %cst_22 {dimension_numbers = #tpu.dot_dimension_numbers<[1], [0], [0], [1], [0, 0, 1, 1], [], []>} : vector<288x32xbf16>, vector<32x128xbf16>, vector<288x128xf32> -> vector<288x128xf32>
    %24 = arith.addf %18, %23 : vector<288x128xf32>
    %c0_23 = arith.constant 0 : index
    %c19 = arith.constant 19 : index
    %c0_24 = arith.constant 0 : index
    %25 = vector.load %arg1[%c0_23, %c19, %c0_24] : memref<1x328x32xbf16, #tpu.memory_space<vmem>>, vector<1x288x32xbf16>
    %26 = vector.shape_cast %25 : vector<1x288x32xbf16> to vector<288x32xbf16>
    %c4 = arith.constant 4 : index
    %c0_25 = arith.constant 0 : index
    %c0_26 = arith.constant 0 : index
    %27 = vector.load %arg2[%c4, %c0_25, %c0_26] : memref<9x32x128xbf16, #tpu.memory_space<vmem>>, vector<1x32x128xbf16>
    %28 = vector.shape_cast %27 : vector<1x32x128xbf16> to vector<32x128xbf16>
    %cst_27 = arith.constant dense<0.000000e+00> : vector<288x128xf32>
    %29 = tpu.matmul %26, %28, %cst_27 {dimension_numbers = #tpu.dot_dimension_numbers<[1], [0], [0], [1], [0, 0, 1, 1], [], []>} : vector<288x32xbf16>, vector<32x128xbf16>, vector<288x128xf32> -> vector<288x128xf32>
    %30 = arith.addf %24, %29 : vector<288x128xf32>
    %c0_28 = arith.constant 0 : index
    %c20 = arith.constant 20 : index
    %c0_29 = arith.constant 0 : index
    %31 = vector.load %arg1[%c0_28, %c20, %c0_29] : memref<1x328x32xbf16, #tpu.memory_space<vmem>>, vector<1x288x32xbf16>
    %32 = vector.shape_cast %31 : vector<1x288x32xbf16> to vector<288x32xbf16>
    %c5 = arith.constant 5 : index
    %c0_30 = arith.constant 0 : index
    %c0_31 = arith.constant 0 : index
    %33 = vector.load %arg2[%c5, %c0_30, %c0_31] : memref<9x32x128xbf16, #tpu.memory_space<vmem>>, vector<1x32x128xbf16>
    %34 = vector.shape_cast %33 : vector<1x32x128xbf16> to vector<32x128xbf16>
    %cst_32 = arith.constant dense<0.000000e+00> : vector<288x128xf32>
    %35 = tpu.matmul %32, %34, %cst_32 {dimension_numbers = #tpu.dot_dimension_numbers<[1], [0], [0], [1], [0, 0, 1, 1], [], []>} : vector<288x32xbf16>, vector<32x128xbf16>, vector<288x128xf32> -> vector<288x128xf32>
    %36 = arith.addf %30, %35 : vector<288x128xf32>
    %c0_33 = arith.constant 0 : index
    %c36 = arith.constant 36 : index
    %c0_34 = arith.constant 0 : index
    %37 = vector.load %arg1[%c0_33, %c36, %c0_34] : memref<1x328x32xbf16, #tpu.memory_space<vmem>>, vector<1x288x32xbf16>
    %38 = vector.shape_cast %37 : vector<1x288x32xbf16> to vector<288x32xbf16>
    %c6 = arith.constant 6 : index
    %c0_35 = arith.constant 0 : index
    %c0_36 = arith.constant 0 : index
    %39 = vector.load %arg2[%c6, %c0_35, %c0_36] : memref<9x32x128xbf16, #tpu.memory_space<vmem>>, vector<1x32x128xbf16>
    %40 = vector.shape_cast %39 : vector<1x32x128xbf16> to vector<32x128xbf16>
    %cst_37 = arith.constant dense<0.000000e+00> : vector<288x128xf32>
    %41 = tpu.matmul %38, %40, %cst_37 {dimension_numbers = #tpu.dot_dimension_numbers<[1], [0], [0], [1], [0, 0, 1, 1], [], []>} : vector<288x32xbf16>, vector<32x128xbf16>, vector<288x128xf32> -> vector<288x128xf32>
    %42 = arith.addf %36, %41 : vector<288x128xf32>
    %c0_38 = arith.constant 0 : index
    %c37 = arith.constant 37 : index
    %c0_39 = arith.constant 0 : index
    %43 = vector.load %arg1[%c0_38, %c37, %c0_39] : memref<1x328x32xbf16, #tpu.memory_space<vmem>>, vector<1x288x32xbf16>
    %44 = vector.shape_cast %43 : vector<1x288x32xbf16> to vector<288x32xbf16>
    %c7 = arith.constant 7 : index
    %c0_40 = arith.constant 0 : index
    %c0_41 = arith.constant 0 : index
    %45 = vector.load %arg2[%c7, %c0_40, %c0_41] : memref<9x32x128xbf16, #tpu.memory_space<vmem>>, vector<1x32x128xbf16>
    %46 = vector.shape_cast %45 : vector<1x32x128xbf16> to vector<32x128xbf16>
    %cst_42 = arith.constant dense<0.000000e+00> : vector<288x128xf32>
    %47 = tpu.matmul %44, %46, %cst_42 {dimension_numbers = #tpu.dot_dimension_numbers<[1], [0], [0], [1], [0, 0, 1, 1], [], []>} : vector<288x32xbf16>, vector<32x128xbf16>, vector<288x128xf32> -> vector<288x128xf32>
    %48 = arith.addf %42, %47 : vector<288x128xf32>
    %c0_43 = arith.constant 0 : index
    %c38 = arith.constant 38 : index
    %c0_44 = arith.constant 0 : index
    %49 = vector.load %arg1[%c0_43, %c38, %c0_44] : memref<1x328x32xbf16, #tpu.memory_space<vmem>>, vector<1x288x32xbf16>
    %50 = vector.shape_cast %49 : vector<1x288x32xbf16> to vector<288x32xbf16>
    %c8 = arith.constant 8 : index
    %c0_45 = arith.constant 0 : index
    %c0_46 = arith.constant 0 : index
    %51 = vector.load %arg2[%c8, %c0_45, %c0_46] : memref<9x32x128xbf16, #tpu.memory_space<vmem>>, vector<1x32x128xbf16>
    %52 = vector.shape_cast %51 : vector<1x32x128xbf16> to vector<32x128xbf16>
    %cst_47 = arith.constant dense<0.000000e+00> : vector<288x128xf32>
    %53 = tpu.matmul %50, %52, %cst_47 {dimension_numbers = #tpu.dot_dimension_numbers<[1], [0], [0], [1], [0, 0, 1, 1], [], []>} : vector<288x32xbf16>, vector<32x128xbf16>, vector<288x128xf32> -> vector<288x128xf32>
    %54 = arith.addf %48, %53 : vector<288x128xf32>
    %c0_48 = arith.constant 0 : index
    %c0_49 = arith.constant 0 : index
    %55 = vector.load %arg3[%c0_48, %c0_49] : memref<1x128xf32, #tpu.memory_space<vmem>>, vector<1x128xf32>
    %56 = vector.broadcast %55 : vector<1x128xf32> to vector<288x128xf32>
    %57 = arith.addf %54, %56 : vector<288x128xf32>
    %cst_50 = arith.constant 0.000000e+00 : f32
    %58 = vector.broadcast %cst_50 : f32 to vector<288x128xf32>
    %59 = arith.maximumf %57, %58 : vector<288x128xf32>
    %60 = arith.truncf %59 : vector<288x128xf32> to vector<288x128xbf16>
    %c0_51 = arith.constant 0 : index
    %c0_52 = arith.constant 0 : index
    %61 = vector.load %arg4[%c0_51, %c0_52] : memref<128x64xbf16, #tpu.memory_space<vmem>>, vector<128x64xbf16>
    %cst_53 = arith.constant dense<0.000000e+00> : vector<288x64xf32>
    %62 = tpu.matmul %60, %61, %cst_53 {dimension_numbers = #tpu.dot_dimension_numbers<[1], [0], [0], [1], [0, 0, 1, 1], [], []>} : vector<288x128xbf16>, vector<128x64xbf16>, vector<288x64xf32> -> vector<288x64xf32>
    %c0_54 = arith.constant 0 : index
    %c0_55 = arith.constant 0 : index
    %63 = vector.load %arg5[%c0_54, %c0_55] : memref<1x64xf32, #tpu.memory_space<vmem>>, vector<1x64xf32>
    %64 = vector.broadcast %63 : vector<1x64xf32> to vector<288x64xf32>
    %65 = arith.addf %62, %64 : vector<288x64xf32>
    %c0_56 = arith.constant 0 : index
    %c0_57 = arith.constant 0 : index
    %c0_58 = arith.constant 0 : index
    %66 = vector.load %arg6[%c0_56, %c0_57, %c0_58] : memref<1x288x64xf32, #tpu.memory_space<vmem>>, vector<1x288x64xf32>
    %67 = vector.shape_cast %66 : vector<1x288x64xf32> to vector<288x64xf32>
    %68 = vector.shape_cast %65 : vector<288x64xf32> to vector<1x288x64xf32>
    tpu.vector_store %arg6[%c0_56, %c0_57, %c0_58], %68 {strides = array<i32>} : memref<1x288x64xf32, #tpu.memory_space<vmem>>, vector<1x288x64xf32>,
    return
  }
  func.func @transform_0(%arg0: i32) -> (i32, i32, i32) {
    %c0_i32 = arith.constant 0 : i32
    %c0_i32_0 = arith.constant 0 : i32
    %c0_i32_1 = arith.constant 0 : i32
    return %arg0, %c0_i32, %c0_i32_0 : i32, i32, i32
  }
  func.func @transform_1(%arg0: i32) -> (i32, i32, i32) {
    %c0_i32 = arith.constant 0 : i32
    %c0_i32_0 = arith.constant 0 : i32
    %c0_i32_1 = arith.constant 0 : i32
    %c0_i32_2 = arith.constant 0 : i32
    return %c0_i32, %c0_i32_0, %c0_i32_1 : i32, i32, i32
  }
  func.func @transform_2(%arg0: i32) -> (i32, i32) {
    %c0_i32 = arith.constant 0 : i32
    %c0_i32_0 = arith.constant 0 : i32
    %c0_i32_1 = arith.constant 0 : i32
    return %c0_i32, %c0_i32_0 : i32, i32
  }
  func.func @transform_3(%arg0: i32) -> (i32, i32) {
    %c0_i32 = arith.constant 0 : i32
    %c0_i32_0 = arith.constant 0 : i32
    %c0_i32_1 = arith.constant 0 : i32
    return %c0_i32, %c0_i32_0 : i32, i32
  }
  func.func @transform_4(%arg0: i32) -> (i32, i32) {
    %c0_i32 = arith.constant 0 : i32
    %c0_i32_0 = arith.constant 0 : i32
    %c0_i32_1 = arith.constant 0 : i32
    return %c0_i32, %c0_i32_0 : i32, i32
  }
  func.func @transform_5(%arg0: i32) -> (i32, i32, i32) {
    %c0_i32 = arith.constant 0 : i32
    %c0_i32_0 = arith.constant 0 : i32
    %c0_i32_1 = arith.constant 0 : i32
    return %arg0, %c0_i32, %c0_i32_0 : i32, i32, i32
  }
}

module attributes {stable_mosaic.version = 11 : i64} {
  func.func @_o2j_kernel(%arg0: i32, %arg1: memref<1x3x4x1024xf32, #tpu.memory_space<vmem>>, %arg2: memref<1x4x1024xf32, #tpu.memory_space<vmem>>, %arg3: memref<1x1x1024xf32, #tpu.memory_space<vmem>>, %arg4: memref<2x1024xf32, #tpu.memory_space<vmem>>, %arg5: memref<1x4x3xf32, #tpu.memory_space<vmem>>) attributes {dimension_semantics = [#tpu.dimension_semantics<parallel>], iteration_bounds = array<i64: 2>, scalar_prefetch = 0 : i64, scratch_operands = 0 : i64, tpu.core_type = #tpu.core_type<tc>, window_params = [{transform_indices = @transform_0, window_bounds = array<i64: 1, 3, 4, 1024>}, {transform_indices = @transform_1, window_bounds = array<i64: 1, 4, 1024>}, {transform_indices = @transform_2, window_bounds = array<i64: 1, 1, 1024>}, {pipeline_mode = #tpu.pipeline_mode<synchronous>, transform_indices = @transform_3, window_bounds = array<i64: 2, 1024>}, {transform_indices = @transform_4, window_bounds = array<i64: 1, 4, 3>}]} {
    %c0 = arith.constant 0 : index
    %c0_0 = arith.constant 0 : index
    %c0_1 = arith.constant 0 : index
    %0 = vector.load %arg3[%c0, %c0_0, %c0_1] : memref<1x1x1024xf32, #tpu.memory_space<vmem>>, vector<1x1x1024xf32>
    %1 = vector.shape_cast %0 : vector<1x1x1024xf32> to vector<1x1024xf32>
    %cst = arith.constant 9.900000e-01 : f32
    %2 = vector.broadcast %cst : f32 to vector<1x1024xf32>
    %3 = arith.cmpf olt, %1, %2 : vector<1x1024xf32>
    %4 = arith.extui %3 : vector<1x1024xi1> to vector<1x1024xi32>
    %5 = arith.sitofp %4 : vector<1x1024xi32> to vector<1x1024xf32>
    %c0_2 = arith.constant 0 : index
    %c0_3 = arith.constant 0 : index
    %c0_4 = arith.constant 0 : index
    %6 = vector.load %arg2[%c0_2, %c0_3, %c0_4] : memref<1x4x1024xf32, #tpu.memory_space<vmem>>, vector<1x4x1024xf32>
    %7 = vector.shape_cast %6 : vector<1x4x1024xf32> to vector<4x1024xf32>
    %8 = vector.broadcast %5 : vector<1x1024xf32> to vector<4x1024xf32>
    %9 = arith.mulf %7, %8 : vector<4x1024xf32>
    %cst_5 = arith.constant 3.000000e+01 : f32
    %10 = vector.broadcast %cst_5 : f32 to vector<4x1024xf32>
    %11 = arith.mulf %9, %10 : vector<4x1024xf32>
    %cst_6 = arith.constant dense<0xFF800000> : vector<4xf32>
    %12 = vector.multi_reduction <maximumf>, %11, %cst_6 [1] : vector<4x1024xf32> to vector<4xf32>
    %13 = vector.shape_cast %12 : vector<4xf32> to vector<4x1xf32>
    %14 = vector.broadcast %13 : vector<4x1xf32> to vector<4x1024xf32>
    %15 = arith.subf %11, %14 : vector<4x1024xf32>
    %16 = math.exp %15 : vector<4x1024xf32>
    %cst_7 = arith.constant dense<0.000000e+00> : vector<4xf32>
    %17 = vector.multi_reduction <add>, %16, %cst_7 [1] : vector<4x1024xf32> to vector<4xf32>
    %18 = vector.shape_cast %17 : vector<4xf32> to vector<4x1xf32>
    %19 = vector.broadcast %18 : vector<4x1xf32> to vector<4x1024xf32>
    %20 = arith.divf %16, %19 : vector<4x1024xf32>
    %cst_8 = arith.constant 4.000000e-01 : f32
    %21 = vector.broadcast %cst_8 : f32 to vector<4x1024xf32>
    %22 = arith.mulf %9, %21 : vector<4x1024xf32>
    %cst_9 = arith.constant 4.000000e-01 : f32
    %23 = vector.broadcast %cst_9 : f32 to vector<4x1024xf32>
    %24 = arith.subf %23, %22 : vector<4x1024xf32>
    %c0_10 = arith.constant 0 : index
    %c0_11 = arith.constant 0 : index
    %c0_12 = arith.constant 0 : index
    %c0_13 = arith.constant 0 : index
    %25 = vector.load %arg1[%c0_10, %c0_11, %c0_12, %c0_13] : memref<1x3x4x1024xf32, #tpu.memory_space<vmem>>, vector<1x1x4x1024xf32>
    %26 = vector.shape_cast %25 : vector<1x1x4x1024xf32> to vector<4x1024xf32>
    %27 = vector.broadcast %5 : vector<1x1024xf32> to vector<4x1024xf32>
    %28 = arith.mulf %26, %27 : vector<4x1024xf32>
    %c0_14 = arith.constant 0 : index
    %c1 = arith.constant 1 : index
    %c0_15 = arith.constant 0 : index
    %c0_16 = arith.constant 0 : index
    %29 = vector.load %arg1[%c0_14, %c1, %c0_15, %c0_16] : memref<1x3x4x1024xf32, #tpu.memory_space<vmem>>, vector<1x1x4x1024xf32>
    %30 = vector.shape_cast %29 : vector<1x1x4x1024xf32> to vector<4x1024xf32>
    %31 = vector.broadcast %5 : vector<1x1024xf32> to vector<4x1024xf32>
    %32 = arith.mulf %30, %31 : vector<4x1024xf32>
    %c0_17 = arith.constant 0 : index
    %c2 = arith.constant 2 : index
    %c0_18 = arith.constant 0 : index
    %c0_19 = arith.constant 0 : index
    %33 = vector.load %arg1[%c0_17, %c2, %c0_18, %c0_19] : memref<1x3x4x1024xf32, #tpu.memory_space<vmem>>, vector<1x1x4x1024xf32>
    %34 = vector.shape_cast %33 : vector<1x1x4x1024xf32> to vector<4x1024xf32>
    %35 = vector.broadcast %5 : vector<1x1024xf32> to vector<4x1024xf32>
    %36 = arith.mulf %34, %35 : vector<4x1024xf32>
    %37 = arith.mulf %28, %24 : vector<4x1024xf32>
    %c0_20 = arith.constant 0 : index
    %c0_21 = arith.constant 0 : index
    %38 = vector.load %arg4[%c0_20, %c0_21] : memref<2x1024xf32, #tpu.memory_space<vmem>>, vector<1x1024xf32>
    %39 = vector.broadcast %38 : vector<1x1024xf32> to vector<4x1024xf32>
    %40 = arith.addf %37, %39 : vector<4x1024xf32>
    %41 = arith.mulf %40, %20 : vector<4x1024xf32>
    %cst_22 = arith.constant dense<0.000000e+00> : vector<4xf32>
    %42 = vector.multi_reduction <add>, %41, %cst_22 [1] : vector<4x1024xf32> to vector<4xf32>
    %43 = vector.shape_cast %42 : vector<4xf32> to vector<4x1xf32>
    %44 = arith.mulf %32, %24 : vector<4x1024xf32>
    %c1_23 = arith.constant 1 : index
    %c0_24 = arith.constant 0 : index
    %45 = vector.load %arg4[%c1_23, %c0_24] : memref<2x1024xf32, #tpu.memory_space<vmem>>, vector<1x1024xf32>
    %46 = vector.broadcast %45 : vector<1x1024xf32> to vector<4x1024xf32>
    %47 = arith.addf %44, %46 : vector<4x1024xf32>
    %48 = arith.mulf %47, %20 : vector<4x1024xf32>
    %cst_25 = arith.constant dense<0.000000e+00> : vector<4xf32>
    %49 = vector.multi_reduction <add>, %48, %cst_25 [1] : vector<4x1024xf32> to vector<4xf32>
    %50 = vector.shape_cast %49 : vector<4xf32> to vector<4x1xf32>
    %51 = arith.mulf %36, %24 : vector<4x1024xf32>
    %52 = vector.broadcast %1 : vector<1x1024xf32> to vector<4x1024xf32>
    %53 = arith.addf %51, %52 : vector<4x1024xf32>
    %54 = arith.mulf %53, %20 : vector<4x1024xf32>
    %cst_26 = arith.constant dense<0.000000e+00> : vector<4xf32>
    %55 = vector.multi_reduction <add>, %54, %cst_26 [1] : vector<4x1024xf32> to vector<4xf32>
    %56 = vector.shape_cast %55 : vector<4xf32> to vector<4x1xf32>
    %57 = tpu.concatenate %43, %50, %56 in 1 : vector<4x1xf32>, vector<4x1xf32>, vector<4x1xf32> -> vector<4x3xf32>
    %c0_27 = arith.constant 0 : index
    %c0_28 = arith.constant 0 : index
    %c0_29 = arith.constant 0 : index
    %58 = vector.load %arg5[%c0_27, %c0_28, %c0_29] : memref<1x4x3xf32, #tpu.memory_space<vmem>>, vector<1x4x3xf32>
    %59 = vector.shape_cast %58 : vector<1x4x3xf32> to vector<4x3xf32>
    %60 = vector.shape_cast %57 : vector<4x3xf32> to vector<1x4x3xf32>
    tpu.vector_store %arg5[%c0_27, %c0_28, %c0_29], %60 {strides = array<i32>} : memref<1x4x3xf32, #tpu.memory_space<vmem>>, vector<1x4x3xf32>,
    return
  }
  func.func @transform_0(%arg0: i32) -> (i32, i32, i32, i32) {
    %c0_i32 = arith.constant 0 : i32
    %c0_i32_0 = arith.constant 0 : i32
    %c0_i32_1 = arith.constant 0 : i32
    %c0_i32_2 = arith.constant 0 : i32
    return %arg0, %c0_i32, %c0_i32_0, %c0_i32_1 : i32, i32, i32, i32
  }
  func.func @transform_1(%arg0: i32) -> (i32, i32, i32) {
    %c0_i32 = arith.constant 0 : i32
    %c0_i32_0 = arith.constant 0 : i32
    %c0_i32_1 = arith.constant 0 : i32
    return %arg0, %c0_i32, %c0_i32_0 : i32, i32, i32
  }
  func.func @transform_2(%arg0: i32) -> (i32, i32, i32) {
    %c0_i32 = arith.constant 0 : i32
    %c0_i32_0 = arith.constant 0 : i32
    %c0_i32_1 = arith.constant 0 : i32
    return %arg0, %c0_i32, %c0_i32_0 : i32, i32, i32
  }
  func.func @transform_3(%arg0: i32) -> (i32, i32) {
    %c0_i32 = arith.constant 0 : i32
    %c0_i32_0 = arith.constant 0 : i32
    %c0_i32_1 = arith.constant 0 : i32
    return %c0_i32, %c0_i32_0 : i32, i32
  }
  func.func @transform_4(%arg0: i32) -> (i32, i32, i32) {
    %c0_i32 = arith.constant 0 : i32
    %c0_i32_0 = arith.constant 0 : i32
    %c0_i32_1 = arith.constant 0 : i32
    return %arg0, %c0_i32, %c0_i32_0 : i32, i32, i32
  }
}

</mosaic_0001>

<llo_original>
// kernel: awr_forward.4
$region0: #{awr_forward.4}
  #allocation0 [shape = 'u32[]', space=smem, size = 0x4, offset = 0x4, fixed_abs, tag = 'smem constant byte address 0x4 - core index']
  #allocation1 [shape = 'u32[144,128]{1,0:T(1,128)}', space=vmem, size = 0x12000, scoped, tag = 'internal scratch']
  %s0 = inlined_call_operand.vmem [shape: bf16[2,40,32], index: 0, kind: input, shape index: {}]
  %s1 = inlined_call_operand.vmem [shape: bf16[9,32,128], index: 1, kind: input, shape index: {}]
  %s2 = inlined_call_operand.vmem [shape: f32[1,128], index: 2, kind: input, shape index: {}]
  %s3 = inlined_call_operand.vmem [shape: bf16[2,24,128], index: 3, kind: output, shape index: {}]
  %s4 = sld [smem:[#allocation0]]
  $region45: #{awr_forward.4} parent=0
    _
  %s6 = ssub.s32 1, %s4
  %s7 = scalar_select 0, %s6, %s4
  loop: start=0, step=1, limit=4
  $region2: #{awr_forward.4} parent=0 // loop_pre_header
    _
  $region3: #{awr_forward.4} parent=0 // loop_header
    %s9 = sphi 0, %s13
    %p10 = scmp.ge.s32.totalorder %s9, 4
    %s19 = sphi 0, %s21
    %s22 = sphi 0, %s19
    %s23 = sphi 0, %s22
    %s39 = sphi 0, %s23
    %s43 = sphi 0, %s43
    %s45 = sphi 0, %s43
    %s46 = sphi 0, %s45
    %s60 = sphi 0, %s46
    %s64 = sphi 0, %s64
    %s66 = sphi 0, %s64
    %s67 = sphi 0, %s66
    %s81 = sphi 0, %s67
    %s87 = sphi 0, %s89
    %s90 = sphi 0, %s87
    %s91 = sphi 0, %s90
    %s107 = sphi 0, %s91
  $region4: #{awr_forward.4} parent=0 // loop_header_branch
    %12 = sbr.rel (%p10) target = $region8
  $region5: #{awr_forward.4} parent=0 // loop_body
    %s14 = ssub.s32 %s9, 1
    %s15 = ssub.s32 %s9, 2
    %s16 = sadd.s32 %s9, 1
    %s17 = ssub.s32 %s9, %s16
    %p18 = scmp.eq.s32.totalorder %s17, 0
    %s20 = sadd.s32 %s19, 1
    %s21 = scalar_select %p18, %s19, %s20
    %p24 = pneg %p18
    %p25 = scmp.eq.s32.totalorder %s9, 1
    %p26 = por %p24, %p25
    %p27 = scmp.ne.s32.totalorder %s19, %s22
    %p28 = scmp.eq.s32.totalorder %s9, 0
    %p29 = por %p27, %p28
    %p30 = scmp.ne.s32.totalorder %s19, %s22
    %p31 = scmp.eq.s32.totalorder %s14, 1
    %p32 = por %p30, %p31
    %p33 = scmp.ne.s32.totalorder %s22, %s23
    %p34 = scmp.eq.s32.totalorder %s14, 0
    %p35 = por %p33, %p34
    %p36 = scmp.ne.s32.totalorder %s22, %s23
    %p37 = scmp.eq.s32.totalorder %s15, 1
    %p38 = por %p36, %p37
    %p40 = scmp.ne.s32.totalorder %s23, %s39
    %p41 = scmp.eq.s32.totalorder %s15, 0
    %p42 = por %p40, %p41
    %s44 = sadd.s32 %s43, 1
    %p47 = scmp.eq.s32.totalorder %s9, 1
    %p48 = scmp.ne.s32.totalorder %s43, %s45
    %p49 = scmp.eq.s32.totalorder %s9, 0
    %p50 = por %p48, %p49
    %p51 = scmp.ne.s32.totalorder %s43, %s45
    %p52 = scmp.eq.s32.totalorder %s14, 1
    %p53 = por %p51, %p52
    %p54 = scmp.ne.s32.totalorder %s45, %s46
    %p55 = scmp.eq.s32.totalorder %s14, 0
    %p56 = por %p54, %p55
    %p57 = scmp.ne.s32.totalorder %s45, %s46
    %p58 = scmp.eq.s32.totalorder %s15, 1
    %p59 = por %p57, %p58
    %p61 = scmp.ne.s32.totalorder %s46, %s60
    %p62 = scmp.eq.s32.totalorder %s15, 0
    %p63 = por %p61, %p62
    %s65 = sadd.s32 %s64, 1
    %p68 = scmp.eq.s32.totalorder %s9, 1
    %p69 = scmp.ne.s32.totalorder %s64, %s66
    %p70 = scmp.eq.s32.totalorder %s9, 0
    %p71 = por %p69, %p70
    %p72 = scmp.ne.s32.totalorder %s64, %s66
    %p73 = scmp.eq.s32.totalorder %s14, 1
    %p74 = por %p72, %p73
    %p75 = scmp.ne.s32.totalorder %s66, %s67
    %p76 = scmp.eq.s32.totalorder %s14, 0
    %p77 = por %p75, %p76
    %p78 = scmp.ne.s32.totalorder %s66, %s67
    %p79 = scmp.eq.s32.totalorder %s15, 1
    %p80 = por %p78, %p79
    %p82 = scmp.ne.s32.totalorder %s67, %s81
    %p83 = scmp.eq.s32.totalorder %s15, 0
    %p84 = por %p82, %p83
    %s85 = ssub.s32 %s9, %s16
    %p86 = scmp.eq.s32.totalorder %s85, 0
    %s88 = sadd.s32 %s87, 1
    %s89 = scalar_select %p86, %s87, %s88
    %p92 = pneg %p86
    %p93 = scmp.eq.s32.totalorder %s9, 1
    %p94 = por %p92, %p93
    %p95 = scmp.ne.s32.totalorder %s87, %s90
    %p96 = scmp.eq.s32.totalorder %s9, 0
    %p97 = por %p95, %p96
    %p98 = scmp.ne.s32.totalorder %s87, %s90
    %p99 = scmp.eq.s32.totalorder %s14, 1
    %p100 = por %p98, %p99
    %p101 = scmp.ne.s32.totalorder %s90, %s91
    %p102 = scmp.eq.s32.totalorder %s14, 0
    %p103 = por %p101, %p102
    %p104 = scmp.ne.s32.totalorder %s90, %s91
    %p105 = scmp.eq.s32.totalorder %s15, 1
    %p106 = por %p104, %p105
    %p108 = scmp.ne.s32.totalorder %s91, %s107
    %p109 = scmp.eq.s32.totalorder %s15, 0
    %p110 = por %p108, %p109
    %p111 = scmp.le.s32.totalorder 1, %s9
    %p112 = scmp.lt.s32.totalorder %s9, 3
    %p113 = pnand %p111, %p112
    %p114 = pneg %p113
    // Predicated region
    $region9: #{awr_forward.4} parent=5 // pred_check
      _
    $region10: #{awr_forward.4} parent=5 // pred_check_branch
      %116 = sbr.rel (%p113) target = $region12
    $region11: #{awr_forward.4} parent=5 // pred_region
      %s117 = ssub.s32 %s9, 1
      // Predicated region
      $region13: #{awr_forward.4} parent=11 // pred_check
        %p118 = pneg %p56
      $region14: #{awr_forward.4} parent=11 // pred_check_branch
        %120 = sbr.rel (%p118) target = $region16
      $region15: #{awr_forward.4} parent=11 // pred_region
        _
      $region16: #{awr_forward.4} parent=11 // pred_fallthru
        _
      // Predicated region
      $region17: #{awr_forward.4} parent=11 // pred_check
        %p121 = pneg %p77
      $region18: #{awr_forward.4} parent=11 // pred_check_branch
        %123 = sbr.rel (%p121) target = $region20
      $region19: #{awr_forward.4} parent=11 // pred_region
        _
      $region20: #{awr_forward.4} parent=11 // pred_fallthru
        _
    $region12: #{awr_forward.4} parent=5 // pred_fallthru
      _
    %p124 = scmp.lt.s32.totalorder %s9, 2
    // Predicated region
    $region21: #{awr_forward.4} parent=5 // pred_check
      %p125 = pneg %p124
    $region22: #{awr_forward.4} parent=5 // pred_check_branch
      %127 = sbr.rel (%p125) target = $region24
    $region23: #{awr_forward.4} parent=5 // pred_region
      // Predicated region
      $region25: #{awr_forward.4} parent=23 // pred_check
        %p128 = pneg %p29
      $region26: #{awr_forward.4} parent=23 // pred_check_branch
        %130 = sbr.rel (%p128) target = $region28
      $region27: #{awr_forward.4} parent=23 // pred_region
        %p131 = scmp.lt.s32.totalorder %s9, 1
        %s132 = scalar_select %p131, %s9, 1
        %s133 = smul.addr %s132, 5
        %s134 = smul.addr %s133, 4
        %s135 = scalar_lea.vmem %s0, %s134
      $region28: #{awr_forward.4} parent=23 // pred_fallthru
        _
    $region24: #{awr_forward.4} parent=5 // pred_fallthru
      _
    %p136 = scmp.le.s32.totalorder 1, %s9
    %p137 = scmp.lt.s32.totalorder %s9, 3
    %p138 = pnand %p136, %p137
    %p139 = pneg %p138
    // Predicated region
    $region29: #{awr_forward.4} parent=5 // pred_check
      _
    $region30: #{awr_forward.4} parent=5 // pred_check_branch
      %141 = sbr.rel (%p138) target = $region32
    $region31: #{awr_forward.4} parent=5 // pred_region
      %s142 = ssub.s32 %s9, 1
      %p143 = scmp.lt.s32.totalorder %s14, 1
      %s144 = scalar_select %p143, %s14, 1
      %s145 = smul.addr %s144, 5
      %s146 = smul.addr %s145, 4
      %s147 = scalar_lea.vmem %s0, %s146
      %p148 = pneg %p35
      %p149 = pneg %p32
      %p150 = pneg %p56
      %p151 = pneg %p53
      %p152 = pneg %p77
      %p153 = pneg %p74
      %p154 = pneg %p103
      %p155 = pneg %p100
      %p156 = scmp.lt.s32.totalorder %s14, 1
      %s157 = scalar_select %p156, %s14, 1
      %s158 = smul.addr %s157, 3
      %s159 = smul.addr %s158, 4
      %s160 = scalar_lea.vmem %s3, %s159
      %p161 = scmp.lt.s32.totalorder %s14, 1
      %s162 = scalar_select %p161, %s14, 1
      %s163 = smul.addr %s162, 5
      %s164 = smul.addr %s163, 4
      %s165 = scalar_lea.vmem %s0, %s164
      %p166 = scmp.lt.s32.totalorder %s14, 1
      %s167 = scalar_select %p166, %s14, 1
      %s168 = smul.addr %s167, 3
      %s169 = smul.addr %s168, 4
      %s170 = scalar_lea.vmem %s3, %s169
      %v172 = vld [vmem:[%s165] sm:$0xf]
      %v173 = vld [vmem:[%s165 + $0x4] sm:$0xf]
      %v174 = vld [vmem:[%s165 + $0x8] sm:$0xf]
      %v175 = vld [vmem:[%s1] sm:$0xf]
      %v176 = vld [vmem:[%s1 + $0x4] sm:$0xf]
      %v177 = vld [vmem:[%s1 + $0x8] sm:$0xf]
      %v178 = vld [vmem:[%s1 + $0xc] sm:$0xf]
      %v179 = vld [vmem:[%s165 + $0xc] sm:$0x1]
      %s180 = scalar_lea.vmem %s1, 16
      %v181 = vld [vmem:[%s180] sm:$0xf]
      %v182 = vld [vmem:[%s180 + $0x4] sm:$0xf]
      %v183 = vld [vmem:[%s180 + $0x8] sm:$0xf]
      %v184 = vld [vmem:[%s180 + $0xc] sm:$0xf]
      %v189 = vunpack.c.l.b16 %v172
      %v190 = vunpack.c.l.b16 %v173
      %v191 = vunpack.c.l.b16 %v174
      %v192 = vunpack.c.l.b16 %v179
      %v193 = vpack.c.b16 %v190, %v189
      %v194 = vpack.c.b16 %v192, %v191
      %vm195 = vsmask.f32 7424
      %v197 = vshrl.u32 %v193, 16
      %v199 = vshll.u32 %v193, 16
      %v201 = vrot.slane %v199, 1
      %v202 = vor.u32 %v197, %v201
      %v204 = vshll.u32 %v194, 16
      %v206 = vrot.slane %v204, 1
      %v207 = vsel %vm195, %v202, %v206
      %v208 = vshrl.u32 %v194, 16
      %v210 = vor.u32 %v208, %v206
      %v215 = vunpack.c.l.b16 %v181
      %v216 = vunpack.c.l.b16 %v182
      %v217 = vunpack.c.l.b16 %v183
      %v218 = vunpack.c.l.b16 %v184
      %v219 = vpack.c.b16 %v216, %v215
      %v220 = vpack.c.b16 %v218, %v217
      %vm223 = vcmask 261120
      %v225 = vsel %vm223, %v207, 0
      %v228 = vsel %vm223, %v210, 0
      %230 = vmatprep.subr.bf16.mxu0 0
      %231 = vmatpush1.bf16.msra.mxu0 0
      %232 = vmatprep.subr.bf16.mxu0 0
      %233 = vmatpush1.bf16.msra.mxu0 0
      %234 = vmatprep.subr.bf16.mxu0 0
      %235 = vmatpush1.bf16.msra.mxu0 0
      %236 = vmatprep.subr.bf16.mxu0 0
      %237 = vmatpush1.bf16.msra.mxu0 0
      %238 = vmatprep.subr.bf16.mxu0 0
      %239 = vmatpush1.bf16.msra.mxu0 0
      %240 = vmatprep.subr.bf16.mxu0 0
      %241 = vmatpush1.bf16.msra.mxu0 0
      %242 = vmatprep.subr.bf16.mxu0 0
      %243 = vmatpush1.bf16.msra.mxu0 %v220
      %244 = vmatprep.subr.bf16.mxu0 0
      %245 = vmatpush1.bf16.msra.mxu0 %v219
      %246 = vmatprep.subr.bf16.mxu0 0
      %247 = vmatpush2.bf16.msra.mxu0 0
      %248 = vmatprep.subr.bf16.mxu0 0
      %249 = vmatpush2.bf16.msra.mxu0 0
      %250 = vmatprep.subr.bf16.mxu0 0
      %251 = vmatpush2.bf16.msra.mxu0 0
      %252 = vmatprep.subr.bf16.mxu0 0
      %253 = vmatpush2.bf16.msra.mxu0 0
      %254 = vmatprep.subr.bf16.mxu0 0
      %255 = vmatpush2.bf16.msra.mxu0 0
      %256 = vmatprep.subr.bf16.mxu0 0
      %257 = vmatpush2.bf16.msra.mxu0 0
      %258 = vmatprep.subr.bf16.mxu0 0
      %259 = vmatpush2.bf16.msra.mxu0 0
      %260 = vmatprep.subr.bf16.mxu0 0
      %261 = vmatpush2.bf16.msra.mxu0 0
      %262 = vmatprep.mubr.bf16.mxu0 0
      %263 = vmatmul.mubr.bf16.gmra.mxu0 %v225
      %v264 = vpop.f32.mrf.mxu0
      %v265 = vadd.f32 0.0, %v264
      %v266 = vpop.f32.mrf.mxu0
      %v267 = vpop.f32.mrf.mxu0
      %v268 = vadd.f32 0.0, %v267
      %v269 = vpop.f32.mrf.mxu0
      %270 = vmatprep.mubr.bf16.mxu0 0
      %271 = vmatmul.mubr.bf16.gmra.mxu0 %v228
      %v272 = vpop.f32.mrf.mxu0
      %v273 = vadd.f32 0.0, %v272
      %v274 = vpop.f32.mrf.mxu0
      %v275 = vpop.f32.mrf.mxu0
      %v276 = vpop.f32.mrf.mxu0
      %277 = vdwg.mxu0
      %v278 = vpack.c.b16 %v191, %v191
      %v283 = vunpack.c.l.b16 %v175
      %v284 = vunpack.c.l.b16 %v176
      %v285 = vunpack.c.l.b16 %v177
      %v286 = vunpack.c.l.b16 %v178
      %v287 = vpack.c.b16 %v284, %v283
      %v288 = vpack.c.b16 %v286, %v285
      %v291 = vsel %vm223, %v193, 0
      %v294 = vsel %vm223, %v278, 0
      %296 = vmatprep.subr.bf16.mxu0 0
      %297 = vmatpush1.bf16.msra.mxu0 0
      %298 = vmatprep.subr.bf16.mxu0 0
      %299 = vmatpush1.bf16.msra.mxu0 0
      %300 = vmatprep.subr.bf16.mxu0 0
      %301 = vmatpush1.bf16.msra.mxu0 0
      %302 = vmatprep.subr.bf16.mxu0 0
      %303 = vmatpush1.bf16.msra.mxu0 0
      %304 = vmatprep.subr.bf16.mxu0 0
      %305 = vmatpush1.bf16.msra.mxu0 0
      %306 = vmatprep.subr.bf16.mxu0 0
      %307 = vmatpush1.bf16.msra.mxu0 0
      %308 = vmatprep.subr.bf16.mxu0 0
      %309 = vmatpush1.bf16.msra.mxu0 %v288
      %310 = vmatprep.subr.bf16.mxu0 0
      %311 = vmatpush1.bf16.msra.mxu0 %v287
      %312 = vmatprep.subr.bf16.mxu0 0
      %313 = vmatpush2.bf16.msra.mxu0 0
      %314 = vmatprep.subr.bf16.mxu0 0
      %315 = vmatpush2.bf16.msra.mxu0 0
      %316 = vmatprep.subr.bf16.mxu0 0
      %317 = vmatpush2.bf16.msra.mxu0 0
      %318 = vmatprep.subr.bf16.mxu0 0
      %319 = vmatpush2.bf16.msra.mxu0 0
      %320 = vmatprep.subr.bf16.mxu0 0
      %321 = vmatpush2.bf16.msra.mxu0 0
      %322 = vmatprep.subr.bf16.mxu0 0
      %323 = vmatpush2.bf16.msra.mxu0 0
      %324 = vmatprep.subr.bf16.mxu0 0
      %325 = vmatpush2.bf16.msra.mxu0 0
      %326 = vmatprep.subr.bf16.mxu0 0
      %327 = vmatpush2.bf16.msra.mxu0 0
      %328 = vmatprep.mubr.bf16.mxu0 0
      %329 = vmatmul.mubr.bf16.gmra.mxu0 %v291
      %v330 = vpop.f32.mrf.mxu0
      %v331 = vadd.f32 %v265, %v330
      %v332 = vpop.f32.mrf.mxu0
      %v333 = vpop.f32.mrf.mxu0
      %v334 = vadd.f32 %v268, %v333
      %v335 = vpop.f32.mrf.mxu0
      %336 = vmatprep.mubr.bf16.mxu0 0
      %337 = vmatmul.mubr.bf16.gmra.mxu0 %v294
      %v338 = vpop.f32.mrf.mxu0
      %v339 = vadd.f32 %v273, %v338
      %v340 = vpop.f32.mrf.mxu0
      %v341 = vpop.f32.mrf.mxu0
      %v342 = vpop.f32.mrf.mxu0
      %343 = vdwg.mxu0
      %v344 = vld [vmem:[%s165] sm:$0xe]
      %s345 = scalar_lea.vmem %s1, 32
      %v346 = vld [vmem:[%s345] sm:$0xf]
      %v347 = vld [vmem:[%s345 + $0x4] sm:$0xf]
      %v348 = vld [vmem:[%s345 + $0x8] sm:$0xf]
      %v349 = vld [vmem:[%s345 + $0xc] sm:$0xf]
      %v351 = vunpack.c.l.b16 %v344
      %v352 = vpack.c.b16 %v190, %v351
      %vm353 = vcmask 1046528
      %v354 = vrot.slane %v352, 1
      %v355 = vrot.slane %v194, 1
      %v356 = vsel %vm353, %v354, %v355
      %v361 = vunpack.c.l.b16 %v346
      %v362 = vunpack.c.l.b16 %v347
      %v363 = vunpack.c.l.b16 %v348
      %v364 = vunpack.c.l.b16 %v349
      %v365 = vpack.c.b16 %v362, %v361
      %v366 = vpack.c.b16 %v364, %v363
      %v370 = vsel %vm223, %v356, 0
      %v373 = vsel %vm223, %v355, 0
      %375 = vmatprep.subr.bf16.mxu0 0
      %376 = vmatpush1.bf16.msra.mxu0 0
      %377 = vmatprep.subr.bf16.mxu0 0
      %378 = vmatpush1.bf16.msra.mxu0 0
      %379 = vmatprep.subr.bf16.mxu0 0
      %380 = vmatpush1.bf16.msra.mxu0 0
      %381 = vmatprep.subr.bf16.mxu0 0
      %382 = vmatpush1.bf16.msra.mxu0 0
      %383 = vmatprep.subr.bf16.mxu0 0
      %384 = vmatpush1.bf16.msra.mxu0 0
      %385 = vmatprep.subr.bf16.mxu0 0
      %386 = vmatpush1.bf16.msra.mxu0 0
      %387 = vmatprep.subr.bf16.mxu0 0
      %388 = vmatpush1.bf16.msra.mxu0 %v366
      %389 = vmatprep.subr.bf16.mxu0 0
      %390 = vmatpush1.bf16.msra.mxu0 %v365
      %391 = vmatprep.subr.bf16.mxu0 0
      %392 = vmatpush2.bf16.msra.mxu0 0
      %393 = vmatprep.subr.bf16.mxu0 0
      %394 = vmatpush2.bf16.msra.mxu0 0
      %395 = vmatprep.subr.bf16.mxu0 0
      %396 = vmatpush2.bf16.msra.mxu0 0
      %397 = vmatprep.subr.bf16.mxu0 0
      %398 = vmatpush2.bf16.msra.mxu0 0
      %399 = vmatprep.subr.bf16.mxu0 0
      %400 = vmatpush2.bf16.msra.mxu0 0
      %401 = vmatprep.subr.bf16.mxu0 0
      %402 = vmatpush2.bf16.msra.mxu0 0
      %403 = vmatprep.subr.bf16.mxu0 0
      %404 = vmatpush2.bf16.msra.mxu0 0
      %405 = vmatprep.subr.bf16.mxu0 0
      %406 = vmatpush2.bf16.msra.mxu0 0
      %407 = vmatprep.mubr.bf16.mxu0 0
      %408 = vmatmul.mubr.bf16.gmra.mxu0 %v370
      %v409 = vpop.f32.mrf.mxu0
      %v410 = vadd.f32 0.0, %v409
      %v411 = vpop.f32.mrf.mxu0
      %v412 = vpop.f32.mrf.mxu0
      %v413 = vadd.f32 0.0, %v412
      %v414 = vpop.f32.mrf.mxu0
      %415 = vmatprep.mubr.bf16.mxu0 0
      %416 = vmatmul.mubr.bf16.gmra.mxu0 %v373
      %v417 = vpop.f32.mrf.mxu0
      %v418 = vadd.f32 0.0, %v417
      %v419 = vpop.f32.mrf.mxu0
      %v420 = vpop.f32.mrf.mxu0
      %v421 = vpop.f32.mrf.mxu0
      %422 = vdwg.mxu0
      %v423 = vadd.f32 %v331, %v410
      %v424 = vadd.f32 %v334, %v413
      %v425 = vadd.f32 %v339, %v418
      %v426 = vld [vmem:[%s165] sm:$0x8]
      %v427 = vld [vmem:[%s165 + $0xc] sm:$0x7]
      %s428 = scalar_lea.vmem %s1, 48
      %v429 = vld [vmem:[%s428] sm:$0xf]
      %v430 = vld [vmem:[%s428 + $0x4] sm:$0xf]
      %v431 = vld [vmem:[%s428 + $0x8] sm:$0xf]
      %v432 = vld [vmem:[%s428 + $0xc] sm:$0xf]
      %v435 = vunpack.c.l.b16 %v426
      %v436 = vunpack.c.l.b16 %v427
      %v437 = vpack.c.b16 %v190, %v435
      %v438 = vpack.c.b16 %v436, %v191
      %vm439 = vcmask 1044480
      %v440 = vrot.slane %v437, 3
      %v441 = vrot.slane %v438, 3
      %v442 = vsel %vm439, %v440, %v441
      %v447 = vunpack.c.l.b16 %v429
      %v448 = vunpack.c.l.b16 %v430
      %v449 = vunpack.c.l.b16 %v431
      %v450 = vunpack.c.l.b16 %v432
      %v451 = vpack.c.b16 %v448, %v447
      %v452 = vpack.c.b16 %v450, %v449
      %v456 = vsel %vm223, %v442, 0
      %v459 = vsel %vm223, %v441, 0
      %461 = vmatprep.subr.bf16.mxu0 0
      %462 = vmatpush1.bf16.msra.mxu0 0
      %463 = vmatprep.subr.bf16.mxu0 0
      %464 = vmatpush1.bf16.msra.mxu0 0
      %465 = vmatprep.subr.bf16.mxu0 0
      %466 = vmatpush1.bf16.msra.mxu0 0
      %467 = vmatprep.subr.bf16.mxu0 0
      %468 = vmatpush1.bf16.msra.mxu0 0
      %469 = vmatprep.subr.bf16.mxu0 0
      %470 = vmatpush1.bf16.msra.mxu0 0
      %471 = vmatprep.subr.bf16.mxu0 0
      %472 = vmatpush1.bf16.msra.mxu0 0
      %473 = vmatprep.subr.bf16.mxu0 0
      %474 = vmatpush1.bf16.msra.mxu0 %v452
      %475 = vmatprep.subr.bf16.mxu0 0
      %476 = vmatpush1.bf16.msra.mxu0 %v451
      %477 = vmatprep.subr.bf16.mxu0 0
      %478 = vmatpush2.bf16.msra.mxu0 0
      %479 = vmatprep.subr.bf16.mxu0 0
      %480 = vmatpush2.bf16.msra.mxu0 0
      %481 = vmatprep.subr.bf16.mxu0 0
      %482 = vmatpush2.bf16.msra.mxu0 0
      %483 = vmatprep.subr.bf16.mxu0 0
      %484 = vmatpush2.bf16.msra.mxu0 0
      %485 = vmatprep.subr.bf16.mxu0 0
      %486 = vmatpush2.bf16.msra.mxu0 0
      %487 = vmatprep.subr.bf16.mxu0 0
      %488 = vmatpush2.bf16.msra.mxu0 0
      %489 = vmatprep.subr.bf16.mxu0 0
      %490 = vmatpush2.bf16.msra.mxu0 0
      %491 = vmatprep.subr.bf16.mxu0 0
      %492 = vmatpush2.bf16.msra.mxu0 0
      %493 = vmatprep.mubr.bf16.mxu0 0
      %494 = vmatmul.mubr.bf16.gmra.mxu0 %v456
      %v495 = vpop.f32.mrf.mxu0
      %v496 = vadd.f32 0.0, %v495
      %v497 = vpop.f32.mrf.mxu0
      %v498 = vpop.f32.mrf.mxu0
      %v499 = vadd.f32 0.0, %v498
      %v500 = vpop.f32.mrf.mxu0
      %501 = vmatprep.mubr.bf16.mxu0 0
      %502 = vmatmul.mubr.bf16.gmra.mxu0 %v459
      %v503 = vpop.f32.mrf.mxu0
      %v504 = vadd.f32 0.0, %v503
      %v505 = vpop.f32.mrf.mxu0
      %v506 = vpop.f32.mrf.mxu0
      %v507 = vpop.f32.mrf.mxu0
      %508 = vdwg.mxu0
      %v509 = vadd.f32 %v423, %v496
      %v510 = vadd.f32 %v424, %v499
      %v511 = vadd.f32 %v425, %v504
      %v512 = vld [vmem:[%s165 + $0xc] sm:$0xf]
      %s513 = scalar_lea.vmem %s1, 64
      %v514 = vld [vmem:[%s513] sm:$0xf]
      %v515 = vld [vmem:[%s513 + $0x4] sm:$0xf]
      %v516 = vld [vmem:[%s513 + $0x8] sm:$0xf]
      %v517 = vld [vmem:[%s513 + $0xc] sm:$0xf]
      %v519 = vunpack.c.l.b16 %v512
      %v520 = vpack.c.b16 %v519, %v191
      %vm521 = vsmask.f32 4352
      %v523 = vshrl.u32 %v437, 16
      %v525 = vrot.slane %v523, 3
      %v526 = vshll.u32 %v437, 16
      %v528 = vrot.slane %v526, 4
      %v529 = vor.u32 %v525, %v528
      %v531 = vshrl.u32 %v520, 16
      %v533 = vrot.slane %v531, 3
      %v534 = vshll.u32 %v520, 16
      %v536 = vrot.slane %v534, 4
      %v537 = vor.u32 %v533, %v536
      %v538 = vsel %vm521, %v529, %v537
      %v543 = vunpack.c.l.b16 %v514
      %v544 = vunpack.c.l.b16 %v515
      %v545 = vunpack.c.l.b16 %v516
      %v546 = vunpack.c.l.b16 %v517
      %v547 = vpack.c.b16 %v544, %v543
      %v548 = vpack.c.b16 %v546, %v545
      %v552 = vsel %vm223, %v538, 0
      %v555 = vsel %vm223, %v537, 0
      %557 = vmatprep.subr.bf16.mxu0 0
      %558 = vmatpush1.bf16.msra.mxu0 0
      %559 = vmatprep.subr.bf16.mxu0 0
      %560 = vmatpush1.bf16.msra.mxu0 0
      %561 = vmatprep.subr.bf16.mxu0 0
      %562 = vmatpush1.bf16.msra.mxu0 0
      %563 = vmatprep.subr.bf16.mxu0 0
      %564 = vmatpush1.bf16.msra.mxu0 0
      %565 = vmatprep.subr.bf16.mxu0 0
      %566 = vmatpush1.bf16.msra.mxu0 0
      %567 = vmatprep.subr.bf16.mxu0 0
      %568 = vmatpush1.bf16.msra.mxu0 0
      %569 = vmatprep.subr.bf16.mxu0 0
      %570 = vmatpush1.bf16.msra.mxu0 %v548
      %571 = vmatprep.subr.bf16.mxu0 0
      %572 = vmatpush1.bf16.msra.mxu0 %v547
      %573 = vmatprep.subr.bf16.mxu0 0
      %574 = vmatpush2.bf16.msra.mxu0 0
      %575 = vmatprep.subr.bf16.mxu0 0
      %576 = vmatpush2.bf16.msra.mxu0 0
      %577 = vmatprep.subr.bf16.mxu0 0
      %578 = vmatpush2.bf16.msra.mxu0 0
      %579 = vmatprep.subr.bf16.mxu0 0
      %580 = vmatpush2.bf16.msra.mxu0 0
      %581 = vmatprep.subr.bf16.mxu0 0
      %582 = vmatpush2.bf16.msra.mxu0 0
      %583 = vmatprep.subr.bf16.mxu0 0
      %584 = vmatpush2.bf16.msra.mxu0 0
      %585 = vmatprep.subr.bf16.mxu0 0
      %586 = vmatpush2.bf16.msra.mxu0 0
      %587 = vmatprep.subr.bf16.mxu0 0
      %588 = vmatpush2.bf16.msra.mxu0 0
      %589 = vmatprep.mubr.bf16.mxu0 0
      %590 = vmatmul.mubr.bf16.gmra.mxu0 %v552
      %v591 = vpop.f32.mrf.mxu0
      %v592 = vadd.f32 0.0, %v591
      %v593 = vpop.f32.mrf.mxu0
      %v594 = vpop.f32.mrf.mxu0
      %v595 = vadd.f32 0.0, %v594
      %v596 = vpop.f32.mrf.mxu0
      %597 = vmatprep.mubr.bf16.mxu0 0
      %598 = vmatmul.mubr.bf16.gmra.mxu0 %v555
      %v599 = vpop.f32.mrf.mxu0
      %v600 = vadd.f32 0.0, %v599
      %v601 = vpop.f32.mrf.mxu0
      %v602 = vpop.f32.mrf.mxu0
      %v603 = vpop.f32.mrf.mxu0
      %604 = vdwg.mxu0
      %v605 = vadd.f32 %v509, %v592
      %v606 = vadd.f32 %v510, %v595
      %v607 = vadd.f32 %v511, %v600
      %s608 = scalar_lea.vmem %s1, 80
      %v609 = vld [vmem:[%s608] sm:$0xf]
      %v610 = vld [vmem:[%s608 + $0x4] sm:$0xf]
      %v611 = vld [vmem:[%s608 + $0x8] sm:$0xf]
      %v612 = vld [vmem:[%s608 + $0xc] sm:$0xf]
      %v613 = vpack.c.b16 %v191, %v190
      %v614 = vpack.c.b16 %v519, %v519
      %v619 = vunpack.c.l.b16 %v609
      %v620 = vunpack.c.l.b16 %v610
      %v621 = vunpack.c.l.b16 %v611
      %v622 = vunpack.c.l.b16 %v612
      %v623 = vpack.c.b16 %v620, %v619
      %v624 = vpack.c.b16 %v622, %v621
      %v628 = vsel %vm223, %v613, 0
      %v631 = vsel %vm223, %v614, 0
      %633 = vmatprep.subr.bf16.mxu0 0
      %634 = vmatpush1.bf16.msra.mxu0 0
      %635 = vmatprep.subr.bf16.mxu0 0
      %636 = vmatpush1.bf16.msra.mxu0 0
      %637 = vmatprep.subr.bf16.mxu0 0
      %638 = vmatpush1.bf16.msra.mxu0 0
      %639 = vmatprep.subr.bf16.mxu0 0
      %640 = vmatpush1.bf16.msra.mxu0 0
      %641 = vmatprep.subr.bf16.mxu0 0
      %642 = vmatpush1.bf16.msra.mxu0 0
      %643 = vmatprep.subr.bf16.mxu0 0
      %644 = vmatpush1.bf16.msra.mxu0 0
      %645 = vmatprep.subr.bf16.mxu0 0
      %646 = vmatpush1.bf16.msra.mxu0 %v624
      %647 = vmatprep.subr.bf16.mxu0 0
      %648 = vmatpush1.bf16.msra.mxu0 %v623
      %649 = vmatprep.subr.bf16.mxu0 0
      %650 = vmatpush2.bf16.msra.mxu0 0
      %651 = vmatprep.subr.bf16.mxu0 0
      %652 = vmatpush2.bf16.msra.mxu0 0
      %653 = vmatprep.subr.bf16.mxu0 0
      %654 = vmatpush2.bf16.msra.mxu0 0
      %655 = vmatprep.subr.bf16.mxu0 0
      %656 = vmatpush2.bf16.msra.mxu0 0
      %657 = vmatprep.subr.bf16.mxu0 0
      %658 = vmatpush2.bf16.msra.mxu0 0
      %659 = vmatprep.subr.bf16.mxu0 0
      %660 = vmatpush2.bf16.msra.mxu0 0
      %661 = vmatprep.subr.bf16.mxu0 0
      %662 = vmatpush2.bf16.msra.mxu0 0
      %663 = vmatprep.subr.bf16.mxu0 0
      %664 = vmatpush2.bf16.msra.mxu0 0
      %665 = vmatprep.mubr.bf16.mxu0 0
      %666 = vmatmul.mubr.bf16.gmra.mxu0 %v628
      %v667 = vpop.f32.mrf.mxu0
      %v668 = vadd.f32 0.0, %v667
      %v669 = vpop.f32.mrf.mxu0
      %v670 = vpop.f32.mrf.mxu0
      %v671 = vadd.f32 0.0, %v670
      %v672 = vpop.f32.mrf.mxu0
      %673 = vmatprep.mubr.bf16.mxu0 0
      %674 = vmatmul.mubr.bf16.gmra.mxu0 %v631
      %v675 = vpop.f32.mrf.mxu0
      %v676 = vadd.f32 0.0, %v675
      %v677 = vpop.f32.mrf.mxu0
      %v678 = vpop.f32.mrf.mxu0
      %v679 = vpop.f32.mrf.mxu0
      %680 = vdwg.mxu0
      %v681 = vadd.f32 %v605, %v668
      %v682 = vadd.f32 %v606, %v671
      %v683 = vadd.f32 %v607, %v676
      %v684 = vld [vmem:[%s165 + $0x4] sm:$0xc]
      %v685 = vld [vmem:[%s165 + $0x8] sm:$0xf]
      %v686 = vld [vmem:[%s165 + $0xc] sm:$0xf]
      %v687 = vld [vmem:[%s165 + $0x10] sm:$0x3]
      %s688 = scalar_lea.vmem %s1, 96
      %v689 = vld [vmem:[%s688] sm:$0xf]
      %v690 = vld [vmem:[%s688 + $0x4] sm:$0xf]
      %v691 = vld [vmem:[%s688 + $0x8] sm:$0xf]
      %v692 = vld [vmem:[%s688 + $0xc] sm:$0xf]
      %v697 = vunpack.c.l.b16 %v684
      %v698 = vunpack.c.l.b16 %v685
      %v699 = vunpack.c.l.b16 %v686
      %v700 = vunpack.c.l.b16 %v687
      %v701 = vpack.c.b16 %v698, %v697
      %v702 = vpack.c.b16 %v700, %v699
      %vm703 = vcmask 1045504
      %v704 = vrot.slane %v701, 2
      %v705 = vrot.slane %v702, 2
      %v706 = vsel %vm703, %v704, %v705
      %v711 = vunpack.c.l.b16 %v689
      %v712 = vunpack.c.l.b16 %v690
      %v713 = vunpack.c.l.b16 %v691
      %v714 = vunpack.c.l.b16 %v692
      %v715 = vpack.c.b16 %v712, %v711
      %v716 = vpack.c.b16 %v714, %v713
      %v720 = vsel %vm223, %v706, 0
      %v723 = vsel %vm223, %v705, 0
      %725 = vmatprep.subr.bf16.mxu0 0
      %726 = vmatpush1.bf16.msra.mxu0 0
      %727 = vmatprep.subr.bf16.mxu0 0
      %728 = vmatpush1.bf16.msra.mxu0 0
      %729 = vmatprep.subr.bf16.mxu0 0
      %730 = vmatpush1.bf16.msra.mxu0 0
      %731 = vmatprep.subr.bf16.mxu0 0
      %732 = vmatpush1.bf16.msra.mxu0 0
      %733 = vmatprep.subr.bf16.mxu0 0
      %734 = vmatpush1.bf16.msra.mxu0 0
      %735 = vmatprep.subr.bf16.mxu0 0
      %736 = vmatpush1.bf16.msra.mxu0 0
      %737 = vmatprep.subr.bf16.mxu0 0
      %738 = vmatpush1.bf16.msra.mxu0 %v716
      %739 = vmatprep.subr.bf16.mxu0 0
      %740 = vmatpush1.bf16.msra.mxu0 %v715
      %741 = vmatprep.subr.bf16.mxu0 0
      %742 = vmatpush2.bf16.msra.mxu0 0
      %743 = vmatprep.subr.bf16.mxu0 0
      %744 = vmatpush2.bf16.msra.mxu0 0
      %745 = vmatprep.subr.bf16.mxu0 0
      %746 = vmatpush2.bf16.msra.mxu0 0
      %747 = vmatprep.subr.bf16.mxu0 0
      %748 = vmatpush2.bf16.msra.mxu0 0
      %749 = vmatprep.subr.bf16.mxu0 0
      %750 = vmatpush2.bf16.msra.mxu0 0
      %751 = vmatprep.subr.bf16.mxu0 0
      %752 = vmatpush2.bf16.msra.mxu0 0
      %753 = vmatprep.subr.bf16.mxu0 0
      %754 = vmatpush2.bf16.msra.mxu0 0
      %755 = vmatprep.subr.bf16.mxu0 0
      %756 = vmatpush2.bf16.msra.mxu0 0
      %757 = vmatprep.mubr.bf16.mxu0 0
      %758 = vmatmul.mubr.bf16.gmra.mxu0 %v720
      %v759 = vpop.f32.mrf.mxu0
      %v760 = vadd.f32 0.0, %v759
      %v761 = vpop.f32.mrf.mxu0
      %v762 = vpop.f32.mrf.mxu0
      %v763 = vadd.f32 0.0, %v762
      %v764 = vpop.f32.mrf.mxu0
      %765 = vmatprep.mubr.bf16.mxu0 0
      %766 = vmatmul.mubr.bf16.gmra.mxu0 %v723
      %v767 = vpop.f32.mrf.mxu0
      %v768 = vadd.f32 0.0, %v767
      %v769 = vpop.f32.mrf.mxu0
      %v770 = vpop.f32.mrf.mxu0
      %v771 = vpop.f32.mrf.mxu0
      %772 = vdwg.mxu0
      %v773 = vadd.f32 %v681, %v760
      %v774 = vadd.f32 %v682, %v763
      %v775 = vadd.f32 %v683, %v768
      %v776 = vld [vmem:[%s165 + $0x10] sm:$0x7]
      %s777 = scalar_lea.vmem %s1, 112
      %v778 = vld [vmem:[%s777] sm:$0xf]
      %v779 = vld [vmem:[%s777 + $0x4] sm:$0xf]
      %v780 = vld [vmem:[%s777 + $0x8] sm:$0xf]
      %v781 = vld [vmem:[%s777 + $0xc] sm:$0xf]
      %v783 = vunpack.c.l.b16 %v776
      %v784 = vpack.c.b16 %v783, %v699
      %vm785 = vsmask.f32 5376
      %v787 = vshrl.u32 %v701, 16
      %v789 = vrot.slane %v787, 2
      %v790 = vshll.u32 %v701, 16
      %v792 = vrot.slane %v790, 3
      %v793 = vor.u32 %v789, %v792
      %v795 = vshrl.u32 %v784, 16
      %v797 = vrot.slane %v795, 2
      %v798 = vshll.u32 %v784, 16
      %v800 = vrot.slane %v798, 3
      %v801 = vor.u32 %v797, %v800
      %v802 = vsel %vm785, %v793, %v801
      %v807 = vunpack.c.l.b16 %v778
      %v808 = vunpack.c.l.b16 %v779
      %v809 = vunpack.c.l.b16 %v780
      %v810 = vunpack.c.l.b16 %v781
      %v811 = vpack.c.b16 %v808, %v807
      %v812 = vpack.c.b16 %v810, %v809
      %v816 = vsel %vm223, %v802, 0
      %v819 = vsel %vm223, %v801, 0
      %821 = vmatprep.subr.bf16.mxu0 0
      %822 = vmatpush1.bf16.msra.mxu0 0
      %823 = vmatprep.subr.bf16.mxu0 0
      %824 = vmatpush1.bf16.msra.mxu0 0
      %825 = vmatprep.subr.bf16.mxu0 0
      %826 = vmatpush1.bf16.msra.mxu0 0
      %827 = vmatprep.subr.bf16.mxu0 0
      %828 = vmatpush1.bf16.msra.mxu0 0
      %829 = vmatprep.subr.bf16.mxu0 0
      %830 = vmatpush1.bf16.msra.mxu0 0
      %831 = vmatprep.subr.bf16.mxu0 0
      %832 = vmatpush1.bf16.msra.mxu0 0
      %833 = vmatprep.subr.bf16.mxu0 0
      %834 = vmatpush1.bf16.msra.mxu0 %v812
      %835 = vmatprep.subr.bf16.mxu0 0
      %836 = vmatpush1.bf16.msra.mxu0 %v811
      %837 = vmatprep.subr.bf16.mxu0 0
      %838 = vmatpush2.bf16.msra.mxu0 0
      %839 = vmatprep.subr.bf16.mxu0 0
      %840 = vmatpush2.bf16.msra.mxu0 0
      %841 = vmatprep.subr.bf16.mxu0 0
      %842 = vmatpush2.bf16.msra.mxu0 0
      %843 = vmatprep.subr.bf16.mxu0 0
      %844 = vmatpush2.bf16.msra.mxu0 0
      %845 = vmatprep.subr.bf16.mxu0 0
      %846 = vmatpush2.bf16.msra.mxu0 0
      %847 = vmatprep.subr.bf16.mxu0 0
      %848 = vmatpush2.bf16.msra.mxu0 0
      %849 = vmatprep.subr.bf16.mxu0 0
      %850 = vmatpush2.bf16.msra.mxu0 0
      %851 = vmatprep.subr.bf16.mxu0 0
      %852 = vmatpush2.bf16.msra.mxu0 0
      %853 = vmatprep.mubr.bf16.mxu0 0
      %854 = vmatmul.mubr.bf16.gmra.mxu0 %v816
      %v855 = vpop.f32.mrf.mxu0
      %v856 = vadd.f32 0.0, %v855
      %v857 = vpop.f32.mrf.mxu0
      %v858 = vpop.f32.mrf.mxu0
      %v859 = vadd.f32 0.0, %v858
      %v860 = vpop.f32.mrf.mxu0
      %861 = vmatprep.mubr.bf16.mxu0 0
      %862 = vmatmul.mubr.bf16.gmra.mxu0 %v819
      %v863 = vpop.f32.mrf.mxu0
      %v864 = vadd.f32 0.0, %v863
      %v865 = vpop.f32.mrf.mxu0
      %v866 = vpop.f32.mrf.mxu0
      %v867 = vpop.f32.mrf.mxu0
      %868 = vdwg.mxu0
      %v869 = vadd.f32 %v773, %v856
      %v870 = vadd.f32 %v774, %v859
      %v871 = vadd.f32 %v775, %v864
      %v872 = vld [vmem:[%s165 + $0x4] sm:$0x8]
      %s873 = scalar_lea.vmem %s1, 128
      %v874 = vld [vmem:[%s873] sm:$0xf]
      %v875 = vld [vmem:[%s873 + $0x4] sm:$0xf]
      %v876 = vld [vmem:[%s873 + $0x8] sm:$0xf]
      %v877 = vld [vmem:[%s873 + $0xc] sm:$0xf]
      %v879 = vunpack.c.l.b16 %v872
      %v880 = vpack.c.b16 %v698, %v879
      %v881 = vrot.slane %v880, 3
      %v882 = vrot.slane %v784, 3
      %v883 = vsel %vm439, %v881, %v882
      %v888 = vunpack.c.l.b16 %v874
      %v889 = vunpack.c.l.b16 %v875
      %v890 = vunpack.c.l.b16 %v876
      %v891 = vunpack.c.l.b16 %v877
      %v892 = vpack.c.b16 %v889, %v888
      %v893 = vpack.c.b16 %v891, %v890
      %v897 = vsel %vm223, %v883, 0
      %v900 = vsel %vm223, %v882, 0
      %902 = vmatprep.subr.bf16.mxu0 0
      %903 = vmatpush1.bf16.msra.mxu0 0
      %904 = vmatprep.subr.bf16.mxu0 0
      %905 = vmatpush1.bf16.msra.mxu0 0
      %906 = vmatprep.subr.bf16.mxu0 0
      %907 = vmatpush1.bf16.msra.mxu0 0
      %908 = vmatprep.subr.bf16.mxu0 0
      %909 = vmatpush1.bf16.msra.mxu0 0
      %910 = vmatprep.subr.bf16.mxu0 0
      %911 = vmatpush1.bf16.msra.mxu0 0
      %912 = vmatprep.subr.bf16.mxu0 0
      %913 = vmatpush1.bf16.msra.mxu0 0
      %914 = vmatprep.subr.bf16.mxu0 0
      %915 = vmatpush1.bf16.msra.mxu0 %v893
      %916 = vmatprep.subr.bf16.mxu0 0
      %917 = vmatpush1.bf16.msra.mxu0 %v892
      %918 = vmatprep.subr.bf16.mxu0 0
      %919 = vmatpush2.bf16.msra.mxu0 0
      %920 = vmatprep.subr.bf16.mxu0 0
      %921 = vmatpush2.bf16.msra.mxu0 0
      %922 = vmatprep.subr.bf16.mxu0 0
      %923 = vmatpush2.bf16.msra.mxu0 0
      %924 = vmatprep.subr.bf16.mxu0 0
      %925 = vmatpush2.bf16.msra.mxu0 0
      %926 = vmatprep.subr.bf16.mxu0 0
      %927 = vmatpush2.bf16.msra.mxu0 0
      %928 = vmatprep.subr.bf16.mxu0 0
      %929 = vmatpush2.bf16.msra.mxu0 0
      %930 = vmatprep.subr.bf16.mxu0 0
      %931 = vmatpush2.bf16.msra.mxu0 0
      %932 = vmatprep.subr.bf16.mxu0 0
      %933 = vmatpush2.bf16.msra.mxu0 0
      %934 = vmatprep.mubr.bf16.mxu0 0
      %935 = vmatmul.mubr.bf16.gmra.mxu0 %v897
      %v936 = vpop.f32.mrf.mxu0
      %v937 = vadd.f32 0.0, %v936
      %v938 = vpop.f32.mrf.mxu0
      %v939 = vpop.f32.mrf.mxu0
      %v940 = vadd.f32 0.0, %v939
      %v941 = vpop.f32.mrf.mxu0
      %942 = vmatprep.mubr.bf16.mxu0 0
      %943 = vmatmul.mubr.bf16.gmra.mxu0 %v900
      %v944 = vpop.f32.mrf.mxu0
      %v945 = vadd.f32 0.0, %v944
      %v946 = vpop.f32.mrf.mxu0
      %v947 = vpop.f32.mrf.mxu0
      %v948 = vpop.f32.mrf.mxu0
      %949 = vdwg.mxu0
      %v950 = vadd.f32 %v869, %v937
      %v951 = vadd.f32 %v870, %v940
      %v952 = vadd.f32 %v871, %v945
      %v953 = vld [vmem:[%s2] sm:$0x1]
      %v955 = vlaneseq
      %v956 = vshrl.u32 %v955, 7
      %v957 = vsub.s32 0, %v956
      %v958 = vrot.slane %v953, %v957
      %v960 = vadd.f32 %v950, %v958
      %v961 = vadd.f32 %v951, %v958
      %v962 = vadd.f32 %v952, %v958
      %v963 = vmax.f32 %v960, 0.0
      %v964 = vmax.f32 %v961, 0.0
      %v965 = vmax.f32 %v962, 0.0
      %v966 = vpack.c.bf16 %v964, %v963
      %v967 = vpack.c.bf16 %v965, %v965
      %v970 = vunpack.c.l.b16 %v966
      %v971 = vunpack.c.h.b16 %v966
      %v972 = vunpack.c.l.b16 %v967
      %v973 = vpack.c.b16 %v970, %v970
      %v974 = vpack.c.b16 %v971, %v971
      %v975 = vpack.c.b16 %v972, %v972
      %979 = vst [vmem:[%s170] sm:$0xf] %v973
      %980 = vst [vmem:[%s170 + $0x4] sm:$0xf] %v974
      %981 = vst [vmem:[%s170 + $0x8] sm:$0xf] %v975
      %p982 = scmp.lt.s32.totalorder %s14, 1
      %s983 = scalar_select %p982, %s14, 1
      %s984 = smul.addr %s983, 3
      %s985 = smul.addr %s984, 4
      %s986 = scalar_lea.vmem %s3, %s985
      // Predicated region
      $region33: #{awr_forward.4} parent=31 // pred_check
        %p987 = pneg %p100
      $region34: #{awr_forward.4} parent=31 // pred_check_branch
        %989 = sbr.rel (%p987) target = $region36
      $region35: #{awr_forward.4} parent=31 // pred_region
        _
      $region36: #{awr_forward.4} parent=31 // pred_fallthru
        _
    $region32: #{awr_forward.4} parent=5 // pred_fallthru
      _
    %p990 = scmp.le.s32.totalorder 2, %s9
    // Predicated region
    $region37: #{awr_forward.4} parent=5 // pred_check
      %p991 = pneg %p990
    $region38: #{awr_forward.4} parent=5 // pred_check_branch
      %993 = sbr.rel (%p991) target = $region40
    $region39: #{awr_forward.4} parent=5 // pred_region
      %s994 = ssub.s32 %s9, 2
      // Predicated region
      $region41: #{awr_forward.4} parent=39 // pred_check
        %p995 = pneg %p106
      $region42: #{awr_forward.4} parent=39 // pred_check_branch
        %997 = sbr.rel (%p995) target = $region44
      $region43: #{awr_forward.4} parent=39 // pred_region
        %p998 = scmp.lt.s32.totalorder %s15, 1
        %s999 = scalar_select %p998, %s15, 1
        %s1000 = smul.addr %s999, 3
        %s1001 = smul.addr %s1000, 4
        %s1002 = scalar_lea.vmem %s3, %s1001
      $region44: #{awr_forward.4} parent=39 // pred_fallthru
        _
    $region40: #{awr_forward.4} parent=5 // pred_fallthru
      _
  $region6: #{awr_forward.4} parent=0 // loop_footer
    %s13 = sadd.s32 1, %s9
  $region7: #{awr_forward.4} parent=0 // loop_footer_branch
    %8 = sbr.rel target = $region3
  $region8: #{awr_forward.4} parent=0 // loop_exit
    _

// kernel: awr_forward.5
$region0: #{awr_forward.5}
  #allocation0 [shape = 'u32[]', space=smem, size = 0x4, offset = 0x4, fixed_abs, tag = 'smem constant byte address 0x4 - core index']
  #allocation1 [shape = 'u32[144,128]{1,0:T(1,128)}', space=vmem, size = 0x12000, scoped, tag = 'internal scratch']
  %s0 = inlined_call_operand.vmem [shape: bf16[2,104,32], index: 0, kind: input, shape index: {}]
  %s1 = inlined_call_operand.vmem [shape: bf16[9,32,128], index: 1, kind: input, shape index: {}]
  %s2 = inlined_call_operand.vmem [shape: f32[1,128], index: 2, kind: input, shape index: {}]
  %s3 = inlined_call_operand.vmem [shape: bf16[2,80,128], index: 3, kind: output, shape index: {}]
  %s4 = sld [smem:[#allocation0]]
  $region45: #{awr_forward.5} parent=0
    _
  %s6 = ssub.s32 1, %s4
  %s7 = scalar_select 0, %s6, %s4
  loop: start=0, step=1, limit=4
  $region2: #{awr_forward.5} parent=0 // loop_pre_header
    _
  $region3: #{awr_forward.5} parent=0 // loop_header
    %s9 = sphi 0, %s13
    %p10 = scmp.ge.s32.totalorder %s9, 4
    %s19 = sphi 0, %s21
    %s22 = sphi 0, %s19
    %s23 = sphi 0, %s22
    %s39 = sphi 0, %s23
    %s43 = sphi 0, %s43
    %s45 = sphi 0, %s43
    %s46 = sphi 0, %s45
    %s60 = sphi 0, %s46
    %s64 = sphi 0, %s64
    %s66 = sphi 0, %s64
    %s67 = sphi 0, %s66
    %s81 = sphi 0, %s67
    %s87 = sphi 0, %s89
    %s90 = sphi 0, %s87
    %s91 = sphi 0, %s90
    %s107 = sphi 0, %s91
  $region4: #{awr_forward.5} parent=0 // loop_header_branch
    %12 = sbr.rel (%p10) target = $region8
  $region5: #{awr_forward.5} parent=0 // loop_body
    %s14 = ssub.s32 %s9, 1
    %s15 = ssub.s32 %s9, 2
    %s16 = sadd.s32 %s9, 1
    %s17 = ssub.s32 %s9, %s16
    %p18 = scmp.eq.s32.totalorder %s17, 0
    %s20 = sadd.s32 %s19, 1
    %s21 = scalar_select %p18, %s19, %s20
    %p24 = pneg %p18
    %p25 = scmp.eq.s32.totalorder %s9, 1
    %p26 = por %p24, %p25
    %p27 = scmp.ne.s32.totalorder %s19, %s22
    %p28 = scmp.eq.s32.totalorder %s9, 0
    %p29 = por %p27, %p28
    %p30 = scmp.ne.s32.totalorder %s19, %s22
    %p31 = scmp.eq.s32.totalorder %s14, 1
    %p32 = por %p30, %p31
    %p33 = scmp.ne.s32.totalorder %s22, %s23
    %p34 = scmp.eq.s32.totalorder %s14, 0
    %p35 = por %p33, %p34
    %p36 = scmp.ne.s32.totalorder %s22, %s23
    %p37 = scmp.eq.s32.totalorder %s15, 1
    %p38 = por %p36, %p37
    %p40 = scmp.ne.s32.totalorder %s23, %s39
    %p41 = scmp.eq.s32.totalorder %s15, 0
    %p42 = por %p40, %p41
    %s44 = sadd.s32 %s43, 1
    %p47 = scmp.eq.s32.totalorder %s9, 1
    %p48 = scmp.ne.s32.totalorder %s43, %s45
    %p49 = scmp.eq.s32.totalorder %s9, 0
    %p50 = por %p48, %p49
    %p51 = scmp.ne.s32.totalorder %s43, %s45
    %p52 = scmp.eq.s32.totalorder %s14, 1
    %p53 = por %p51, %p52
    %p54 = scmp.ne.s32.totalorder %s45, %s46
    %p55 = scmp.eq.s32.totalorder %s14, 0
    %p56 = por %p54, %p55
    %p57 = scmp.ne.s32.totalorder %s45, %s46
    %p58 = scmp.eq.s32.totalorder %s15, 1
    %p59 = por %p57, %p58
    %p61 = scmp.ne.s32.totalorder %s46, %s60
    %p62 = scmp.eq.s32.totalorder %s15, 0
    %p63 = por %p61, %p62
    %s65 = sadd.s32 %s64, 1
    %p68 = scmp.eq.s32.totalorder %s9, 1
    %p69 = scmp.ne.s32.totalorder %s64, %s66
    %p70 = scmp.eq.s32.totalorder %s9, 0
    %p71 = por %p69, %p70
    %p72 = scmp.ne.s32.totalorder %s64, %s66
    %p73 = scmp.eq.s32.totalorder %s14, 1
    %p74 = por %p72, %p73
    %p75 = scmp.ne.s32.totalorder %s66, %s67
    %p76 = scmp.eq.s32.totalorder %s14, 0
    %p77 = por %p75, %p76
    %p78 = scmp.ne.s32.totalorder %s66, %s67
    %p79 = scmp.eq.s32.totalorder %s15, 1
    %p80 = por %p78, %p79
    %p82 = scmp.ne.s32.totalorder %s67, %s81
    %p83 = scmp.eq.s32.totalorder %s15, 0
    %p84 = por %p82, %p83
    %s85 = ssub.s32 %s9, %s16
    %p86 = scmp.eq.s32.totalorder %s85, 0
    %s88 = sadd.s32 %s87, 1
    %s89 = scalar_select %p86, %s87, %s88
    %p92 = pneg %p86
    %p93 = scmp.eq.s32.totalorder %s9, 1
    %p94 = por %p92, %p93
    %p95 = scmp.ne.s32.totalorder %s87, %s90
    %p96 = scmp.eq.s32.totalorder %s9, 0
    %p97 = por %p95, %p96
    %p98 = scmp.ne.s32.totalorder %s87, %s90
    %p99 = scmp.eq.s32.totalorder %s14, 1
    %p100 = por %p98, %p99
    %p101 = scmp.ne.s32.totalorder %s90, %s91
    %p102 = scmp.eq.s32.totalorder %s14, 0
    %p103 = por %p101, %p102
    %p104 = scmp.ne.s32.totalorder %s90, %s91
    %p105 = scmp.eq.s32.totalorder %s15, 1
    %p106 = por %p104, %p105
    %p108 = scmp.ne.s32.totalorder %s91, %s107
    %p109 = scmp.eq.s32.totalorder %s15, 0
    %p110 = por %p108, %p109
    %p111 = scmp.le.s32.totalorder 1, %s9
    %p112 = scmp.lt.s32.totalorder %s9, 3
    %p113 = pnand %p111, %p112
    %p114 = pneg %p113
    // Predicated region
    $region9: #{awr_forward.5} parent=5 // pred_check
      _
    $region10: #{awr_forward.5} parent=5 // pred_check_branch
      %116 = sbr.rel (%p113) target = $region12
    $region11: #{awr_forward.5} parent=5 // pred_region
      %s117 = ssub.s32 %s9, 1
      // Predicated region
      $region13: #{awr_forward.5} parent=11 // pred_check
        %p118 = pneg %p56
      $region14: #{awr_forward.5} parent=11 // pred_check_branch
        %120 = sbr.rel (%p118) target = $region16
      $region15: #{awr_forward.5} parent=11 // pred_region
        _
      $region16: #{awr_forward.5} parent=11 // pred_fallthru
        _
      // Predicated region
      $region17: #{awr_forward.5} parent=11 // pred_check
        %p121 = pneg %p77
      $region18: #{awr_forward.5} parent=11 // pred_check_branch
        %123 = sbr.rel (%p121) target = $region20
      $region19: #{awr_forward.5} parent=11 // pred_region
        _
      $region20: #{awr_forward.5} parent=11 // pred_fallthru
        _
    $region12: #{awr_forward.5} parent=5 // pred_fallthru
      _
    %p124 = scmp.lt.s32.totalorder %s9, 2
    // Predicated region
    $region21: #{awr_forward.5} parent=5 // pred_check
      %p125 = pneg %p124
    $region22: #{awr_forward.5} parent=5 // pred_check_branch
      %127 = sbr.rel (%p125) target = $region24
    $region23: #{awr_forward.5} parent=5 // pred_region
      // Predicated region
      $region25: #{awr_forward.5} parent=23 // pred_check
        %p128 = pneg %p29
      $region26: #{awr_forward.5} parent=23 // pred_check_branch
        %130 = sbr.rel (%p128) target = $region28
      $region27: #{awr_forward.5} parent=23 // pred_region
        %p131 = scmp.lt.s32.totalorder %s9, 1
        %s132 = scalar_select %p131, %s9, 1
        %s133 = smul.addr %s132, 13
        %s134 = smul.addr %s133, 4
        %s135 = scalar_lea.vmem %s0, %s134
      $region28: #{awr_forward.5} parent=23 // pred_fallthru
        _
    $region24: #{awr_forward.5} parent=5 // pred_fallthru
      _
    %p136 = scmp.le.s32.totalorder 1, %s9
    %p137 = scmp.lt.s32.totalorder %s9, 3
    %p138 = pnand %p136, %p137
    %p139 = pneg %p138
    // Predicated region
    $region29: #{awr_forward.5} parent=5 // pred_check
      _
    $region30: #{awr_forward.5} parent=5 // pred_check_branch
      %141 = sbr.rel (%p138) target = $region32
    $region31: #{awr_forward.5} parent=5 // pred_region
      %s142 = ssub.s32 %s9, 1
      %p143 = scmp.lt.s32.totalorder %s14, 1
      %s144 = scalar_select %p143, %s14, 1
      %s145 = smul.addr %s144, 13
      %s146 = smul.addr %s145, 4
      %s147 = scalar_lea.vmem %s0, %s146
      %p148 = pneg %p35
      %p149 = pneg %p32
      %p150 = pneg %p56
      %p151 = pneg %p53
      %p152 = pneg %p77
      %p153 = pneg %p74
      %p154 = pneg %p103
      %p155 = pneg %p100
      %p156 = scmp.lt.s32.totalorder %s14, 1
      %s157 = scalar_select %p156, %s14, 1
      %s158 = smul.addr %s157, 10
      %s159 = smul.addr %s158, 4
      %s160 = scalar_lea.vmem %s3, %s159
      %p161 = scmp.lt.s32.totalorder %s14, 1
      %s162 = scalar_select %p161, %s14, 1
      %s163 = smul.addr %s162, 13
      %s164 = smul.addr %s163, 4
      %s165 = scalar_lea.vmem %s0, %s164
      %p166 = scmp.lt.s32.totalorder %s14, 1
      %s167 = scalar_select %p166, %s14, 1
      %s168 = smul.addr %s167, 10
      %s169 = smul.addr %s168, 4
      %s170 = scalar_lea.vmem %s3, %s169
      %v172 = vld [vmem:[%s165] sm:$0xf]
      %v173 = vld [vmem:[%s165 + $0x4] sm:$0xf]
      %v174 = vld [vmem:[%s165 + $0x8] sm:$0xf]
      %v175 = vld [vmem:[%s165 + $0xc] sm:$0xf]
      %v176 = vld [vmem:[%s165 + $0x10] sm:$0xf]
      %v177 = vld [vmem:[%s165 + $0x14] sm:$0xf]
      %v178 = vld [vmem:[%s165 + $0x18] sm:$0xf]
      %v179 = vld [vmem:[%s165 + $0x1c] sm:$0xf]
      %v180 = vld [vmem:[%s165 + $0x20] sm:$0xf]
      %v181 = vld [vmem:[%s165 + $0x24] sm:$0xf]
      %v182 = vld [vmem:[%s1] sm:$0xf]
      %v183 = vld [vmem:[%s1 + $0x4] sm:$0xf]
      %v184 = vld [vmem:[%s1 + $0x8] sm:$0xf]
      %v185 = vld [vmem:[%s1 + $0xc] sm:$0xf]
      %v186 = vld [vmem:[%s165 + $0x28] sm:$0x1]
      %s187 = scalar_lea.vmem %s1, 16
      %v188 = vld [vmem:[%s187] sm:$0xf]
      %v189 = vld [vmem:[%s187 + $0x4] sm:$0xf]
      %v190 = vld [vmem:[%s187 + $0x8] sm:$0xf]
      %v191 = vld [vmem:[%s187 + $0xc] sm:$0xf]
      %v203 = vunpack.c.l.b16 %v172
      %v204 = vunpack.c.l.b16 %v173
      %v205 = vunpack.c.l.b16 %v174
      %v206 = vunpack.c.l.b16 %v175
      %v207 = vunpack.c.l.b16 %v176
      %v208 = vunpack.c.l.b16 %v177
      %v209 = vunpack.c.l.b16 %v178
      %v210 = vunpack.c.l.b16 %v179
      %v211 = vunpack.c.l.b16 %v180
      %v212 = vunpack.c.l.b16 %v181
      %v213 = vunpack.c.l.b16 %v186
      %v214 = vpack.c.b16 %v204, %v203
      %v215 = vpack.c.b16 %v206, %v205
      %v216 = vpack.c.b16 %v208, %v207
      %v217 = vpack.c.b16 %v210, %v209
      %v218 = vpack.c.b16 %v212, %v211
      %v219 = vpack.c.b16 %v213, %v213
      %vm220 = vsmask.f32 7424
      %v222 = vshrl.u32 %v214, 16
      %v224 = vshll.u32 %v214, 16
      %v226 = vrot.slane %v224, 1
      %v227 = vor.u32 %v222, %v226
      %v229 = vshll.u32 %v215, 16
      %v231 = vrot.slane %v229, 1
      %v232 = vsel %vm220, %v227, %v231
      %v233 = vshrl.u32 %v215, 16
      %v235 = vor.u32 %v233, %v231
      %v237 = vshll.u32 %v216, 16
      %v239 = vrot.slane %v237, 1
      %v240 = vsel %vm220, %v235, %v239
      %v241 = vshrl.u32 %v216, 16
      %v243 = vor.u32 %v241, %v239
      %v245 = vshll.u32 %v217, 16
      %v247 = vrot.slane %v245, 1
      %v248 = vsel %vm220, %v243, %v247
      %v249 = vshrl.u32 %v217, 16
      %v251 = vor.u32 %v249, %v247
      %v253 = vshll.u32 %v218, 16
      %v255 = vrot.slane %v253, 1
      %v256 = vsel %vm220, %v251, %v255
      %v257 = vshrl.u32 %v218, 16
      %v259 = vor.u32 %v257, %v255
      %v261 = vshll.u32 %v219, 16
      %v263 = vrot.slane %v261, 1
      %v264 = vsel %vm220, %v259, %v263
      %v269 = vunpack.c.l.b16 %v188
      %v270 = vunpack.c.l.b16 %v189
      %v271 = vunpack.c.l.b16 %v190
      %v272 = vunpack.c.l.b16 %v191
      %v273 = vpack.c.b16 %v270, %v269
      %v274 = vpack.c.b16 %v272, %v271
      %vm277 = vcmask 261120
      %v279 = vsel %vm277, %v232, 0
      %v282 = vsel %vm277, %v240, 0
      %v285 = vsel %vm277, %v248, 0
      %v288 = vsel %vm277, %v256, 0
      %v291 = vsel %vm277, %v264, 0
      %293 = vmatprep.subr.bf16.mxu0 0
      %294 = vmatpush1.bf16.msra.mxu0 0
      %295 = vmatprep.subr.bf16.mxu0 0
      %296 = vmatpush1.bf16.msra.mxu0 0
      %297 = vmatprep.subr.bf16.mxu0 0
      %298 = vmatpush1.bf16.msra.mxu0 0
      %299 = vmatprep.subr.bf16.mxu0 0
      %300 = vmatpush1.bf16.msra.mxu0 0
      %301 = vmatprep.subr.bf16.mxu0 0
      %302 = vmatpush1.bf16.msra.mxu0 0
      %303 = vmatprep.subr.bf16.mxu0 0
      %304 = vmatpush1.bf16.msra.mxu0 0
      %305 = vmatprep.subr.bf16.mxu0 0
      %306 = vmatpush1.bf16.msra.mxu0 %v274
      %307 = vmatprep.subr.bf16.mxu0 0
      %308 = vmatpush1.bf16.msra.mxu0 %v273
      %309 = vmatprep.subr.bf16.mxu0 0
      %310 = vmatpush2.bf16.msra.mxu0 0
      %311 = vmatprep.subr.bf16.mxu0 0
      %312 = vmatpush2.bf16.msra.mxu0 0
      %313 = vmatprep.subr.bf16.mxu0 0
      %314 = vmatpush2.bf16.msra.mxu0 0
      %315 = vmatprep.subr.bf16.mxu0 0
      %316 = vmatpush2.bf16.msra.mxu0 0
      %317 = vmatprep.subr.bf16.mxu0 0
      %318 = vmatpush2.bf16.msra.mxu0 0
      %319 = vmatprep.subr.bf16.mxu0 0
      %320 = vmatpush2.bf16.msra.mxu0 0
      %321 = vmatprep.subr.bf16.mxu0 0
      %322 = vmatpush2.bf16.msra.mxu0 0
      %323 = vmatprep.subr.bf16.mxu0 0
      %324 = vmatpush2.bf16.msra.mxu0 0
      %325 = vmatprep.mubr.bf16.mxu0 0
      %326 = vmatmul.mubr.bf16.gmra.mxu0 %v279
      %v327 = vpop.f32.mrf.mxu0
      %v328 = vadd.f32 0.0, %v327
      %v329 = vpop.f32.mrf.mxu0
      %v330 = vpop.f32.mrf.mxu0
      %v331 = vadd.f32 0.0, %v330
      %v332 = vpop.f32.mrf.mxu0
      %333 = vmatprep.mubr.bf16.mxu0 0
      %334 = vmatmul.mubr.bf16.gmra.mxu0 %v282
      %v335 = vpop.f32.mrf.mxu0
      %v336 = vadd.f32 0.0, %v335
      %v337 = vpop.f32.mrf.mxu0
      %v338 = vpop.f32.mrf.mxu0
      %v339 = vadd.f32 0.0, %v338
      %v340 = vpop.f32.mrf.mxu0
      %341 = vmatprep.mubr.bf16.mxu0 0
      %342 = vmatmul.mubr.bf16.gmra.mxu0 %v285
      %v343 = vpop.f32.mrf.mxu0
      %v344 = vadd.f32 0.0, %v343
      %v345 = vpop.f32.mrf.mxu0
      %v346 = vpop.f32.mrf.mxu0
      %v347 = vadd.f32 0.0, %v346
      %v348 = vpop.f32.mrf.mxu0
      %349 = vmatprep.mubr.bf16.mxu0 0
      %350 = vmatmul.mubr.bf16.gmra.mxu0 %v288
      %v351 = vpop.f32.mrf.mxu0
      %v352 = vadd.f32 0.0, %v351
      %v353 = vpop.f32.mrf.mxu0
      %v354 = vpop.f32.mrf.mxu0
      %v355 = vadd.f32 0.0, %v354
      %v356 = vpop.f32.mrf.mxu0
      %357 = vmatprep.mubr.bf16.mxu0 0
      %358 = vmatmul.mubr.bf16.gmra.mxu0 %v291
      %v359 = vpop.f32.mrf.mxu0
      %v360 = vadd.f32 0.0, %v359
      %v361 = vpop.f32.mrf.mxu0
      %v362 = vpop.f32.mrf.mxu0
      %v363 = vadd.f32 0.0, %v362
      %v364 = vpop.f32.mrf.mxu0
      %365 = vdwg.mxu0
      %v370 = vunpack.c.l.b16 %v182
      %v371 = vunpack.c.l.b16 %v183
      %v372 = vunpack.c.l.b16 %v184
      %v373 = vunpack.c.l.b16 %v185
      %v374 = vpack.c.b16 %v371, %v370
      %v375 = vpack.c.b16 %v373, %v372
      %v378 = vsel %vm277, %v214, 0
      %v380 = vsel %vm277, %v215, 0
      %v382 = vsel %vm277, %v216, 0
      %v384 = vsel %vm277, %v217, 0
      %v386 = vsel %vm277, %v218, 0
      %388 = vmatprep.subr.bf16.mxu0 0
      %389 = vmatpush1.bf16.msra.mxu0 0
      %390 = vmatprep.subr.bf16.mxu0 0
      %391 = vmatpush1.bf16.msra.mxu0 0
      %392 = vmatprep.subr.bf16.mxu0 0
      %393 = vmatpush1.bf16.msra.mxu0 0
      %394 = vmatprep.subr.bf16.mxu0 0
      %395 = vmatpush1.bf16.msra.mxu0 0
      %396 = vmatprep.subr.bf16.mxu0 0
      %397 = vmatpush1.bf16.msra.mxu0 0
      %398 = vmatprep.subr.bf16.mxu0 0
      %399 = vmatpush1.bf16.msra.mxu0 0
      %400 = vmatprep.subr.bf16.mxu0 0
      %401 = vmatpush1.bf16.msra.mxu0 %v375
      %402 = vmatprep.subr.bf16.mxu0 0
      %403 = vmatpush1.bf16.msra.mxu0 %v374
      %404 = vmatprep.subr.bf16.mxu0 0
      %405 = vmatpush2.bf16.msra.mxu0 0
      %406 = vmatprep.subr.bf16.mxu0 0
      %407 = vmatpush2.bf16.msra.mxu0 0
      %408 = vmatprep.subr.bf16.mxu0 0
      %409 = vmatpush2.bf16.msra.mxu0 0
      %410 = vmatprep.subr.bf16.mxu0 0
      %411 = vmatpush2.bf16.msra.mxu0 0
      %412 = vmatprep.subr.bf16.mxu0 0
      %413 = vmatpush2.bf16.msra.mxu0 0
      %414 = vmatprep.subr.bf16.mxu0 0
      %415 = vmatpush2.bf16.msra.mxu0 0
      %416 = vmatprep.subr.bf16.mxu0 0
      %417 = vmatpush2.bf16.msra.mxu0 0
      %418 = vmatprep.subr.bf16.mxu0 0
      %419 = vmatpush2.bf16.msra.mxu0 0
      %420 = vmatprep.mubr.bf16.mxu0 0
      %421 = vmatmul.mubr.bf16.gmra.mxu0 %v378
      %v422 = vpop.f32.mrf.mxu0
      %v423 = vadd.f32 %v328, %v422
      %v424 = vpop.f32.mrf.mxu0
      %v425 = vpop.f32.mrf.mxu0
      %v426 = vadd.f32 %v331, %v425
      %v427 = vpop.f32.mrf.mxu0
      %428 = vmatprep.mubr.bf16.mxu0 0
      %429 = vmatmul.mubr.bf16.gmra.mxu0 %v380
      %v430 = vpop.f32.mrf.mxu0
      %v431 = vadd.f32 %v336, %v430
      %v432 = vpop.f32.mrf.mxu0
      %v433 = vpop.f32.mrf.mxu0
      %v434 = vadd.f32 %v339, %v433
      %v435 = vpop.f32.mrf.mxu0
      %436 = vmatprep.mubr.bf16.mxu0 0
      %437 = vmatmul.mubr.bf16.gmra.mxu0 %v382
      %v438 = vpop.f32.mrf.mxu0
      %v439 = vadd.f32 %v344, %v438
      %v440 = vpop.f32.mrf.mxu0
      %v441 = vpop.f32.mrf.mxu0
      %v442 = vadd.f32 %v347, %v441
      %v443 = vpop.f32.mrf.mxu0
      %444 = vmatprep.mubr.bf16.mxu0 0
      %445 = vmatmul.mubr.bf16.gmra.mxu0 %v384
      %v446 = vpop.f32.mrf.mxu0
      %v447 = vadd.f32 %v352, %v446
      %v448 = vpop.f32.mrf.mxu0
      %v449 = vpop.f32.mrf.mxu0
      %v450 = vadd.f32 %v355, %v449
      %v451 = vpop.f32.mrf.mxu0
      %452 = vmatprep.mubr.bf16.mxu0 0
      %453 = vmatmul.mubr.bf16.gmra.mxu0 %v386
      %v454 = vpop.f32.mrf.mxu0
      %v455 = vadd.f32 %v360, %v454
      %v456 = vpop.f32.mrf.mxu0
      %v457 = vpop.f32.mrf.mxu0
      %v458 = vadd.f32 %v363, %v457
      %v459 = vpop.f32.mrf.mxu0
      %460 = vdwg.mxu0
      %v461 = vld [vmem:[%s165] sm:$0xe]
      %s462 = scalar_lea.vmem %s1, 32
      %v463 = vld [vmem:[%s462] sm:$0xf]
      %v464 = vld [vmem:[%s462 + $0x4] sm:$0xf]
      %v465 = vld [vmem:[%s462 + $0x8] sm:$0xf]
      %v466 = vld [vmem:[%s462 + $0xc] sm:$0xf]
      %v468 = vunpack.c.l.b16 %v461
      %v469 = vpack.c.b16 %v204, %v468
      %vm470 = vcmask 1046528
      %v471 = vrot.slane %v469, 1
      %v472 = vrot.slane %v215, 1
      %v473 = vsel %vm470, %v471, %v472
      %v474 = vrot.slane %v216, 1
      %v475 = vsel %vm470, %v472, %v474
      %v476 = vrot.slane %v217, 1
      %v477 = vsel %vm470, %v474, %v476
      %v478 = vrot.slane %v218, 1
      %v479 = vsel %vm470, %v476, %v478
      %v480 = vrot.slane %v219, 1
      %v481 = vsel %vm470, %v478, %v480
      %v486 = vunpack.c.l.b16 %v463
      %v487 = vunpack.c.l.b16 %v464
      %v488 = vunpack.c.l.b16 %v465
      %v489 = vunpack.c.l.b16 %v466
      %v490 = vpack.c.b16 %v487, %v486
      %v491 = vpack.c.b16 %v489, %v488
      %v495 = vsel %vm277, %v473, 0
      %v498 = vsel %vm277, %v475, 0
      %v501 = vsel %vm277, %v477, 0
      %v504 = vsel %vm277, %v479, 0
      %v507 = vsel %vm277, %v481, 0
      %509 = vmatprep.subr.bf16.mxu0 0
      %510 = vmatpush1.bf16.msra.mxu0 0
      %511 = vmatprep.subr.bf16.mxu0 0
      %512 = vmatpush1.bf16.msra.mxu0 0
      %513 = vmatprep.subr.bf16.mxu0 0
      %514 = vmatpush1.bf16.msra.mxu0 0
      %515 = vmatprep.subr.bf16.mxu0 0
      %516 = vmatpush1.bf16.msra.mxu0 0
      %517 = vmatprep.subr.bf16.mxu0 0
      %518 = vmatpush1.bf16.msra.mxu0 0
      %519 = vmatprep.subr.bf16.mxu0 0
      %520 = vmatpush1.bf16.msra.mxu0 0
      %521 = vmatprep.subr.bf16.mxu0 0
      %522 = vmatpush1.bf16.msra.mxu0 %v491
      %523 = vmatprep.subr.bf16.mxu0 0
      %524 = vmatpush1.bf16.msra.mxu0 %v490
      %525 = vmatprep.subr.bf16.mxu0 0
      %526 = vmatpush2.bf16.msra.mxu0 0
      %527 = vmatprep.subr.bf16.mxu0 0
      %528 = vmatpush2.bf16.msra.mxu0 0
      %529 = vmatprep.subr.bf16.mxu0 0
      %530 = vmatpush2.bf16.msra.mxu0 0
      %531 = vmatprep.subr.bf16.mxu0 0
      %532 = vmatpush2.bf16.msra.mxu0 0
      %533 = vmatprep.subr.bf16.mxu0 0
      %534 = vmatpush2.bf16.msra.mxu0 0
      %535 = vmatprep.subr.bf16.mxu0 0
      %536 = vmatpush2.bf16.msra.mxu0 0
      %537 = vmatprep.subr.bf16.mxu0 0
      %538 = vmatpush2.bf16.msra.mxu0 0
      %539 = vmatprep.subr.bf16.mxu0 0
      %540 = vmatpush2.bf16.msra.mxu0 0
      %541 = vmatprep.mubr.bf16.mxu0 0
      %542 = vmatmul.mubr.bf16.gmra.mxu0 %v495
      %v543 = vpop.f32.mrf.mxu0
      %v544 = vadd.f32 0.0, %v543
      %v545 = vpop.f32.mrf.mxu0
      %v546 = vpop.f32.mrf.mxu0
      %v547 = vadd.f32 0.0, %v546
      %v548 = vpop.f32.mrf.mxu0
      %549 = vmatprep.mubr.bf16.mxu0 0
      %550 = vmatmul.mubr.bf16.gmra.mxu0 %v498
      %v551 = vpop.f32.mrf.mxu0
      %v552 = vadd.f32 0.0, %v551
      %v553 = vpop.f32.mrf.mxu0
      %v554 = vpop.f32.mrf.mxu0
      %v555 = vadd.f32 0.0, %v554
      %v556 = vpop.f32.mrf.mxu0
      %557 = vmatprep.mubr.bf16.mxu0 0
      %558 = vmatmul.mubr.bf16.gmra.mxu0 %v501
      %v559 = vpop.f32.mrf.mxu0
      %v560 = vadd.f32 0.0, %v559
      %v561 = vpop.f32.mrf.mxu0
      %v562 = vpop.f32.mrf.mxu0
      %v563 = vadd.f32 0.0, %v562
      %v564 = vpop.f32.mrf.mxu0
      %565 = vmatprep.mubr.bf16.mxu0 0
      %566 = vmatmul.mubr.bf16.gmra.mxu0 %v504
      %v567 = vpop.f32.mrf.mxu0
      %v568 = vadd.f32 0.0, %v567
      %v569 = vpop.f32.mrf.mxu0
      %v570 = vpop.f32.mrf.mxu0
      %v571 = vadd.f32 0.0, %v570
      %v572 = vpop.f32.mrf.mxu0
      %573 = vmatprep.mubr.bf16.mxu0 0
      %574 = vmatmul.mubr.bf16.gmra.mxu0 %v507
      %v575 = vpop.f32.mrf.mxu0
      %v576 = vadd.f32 0.0, %v575
      %v577 = vpop.f32.mrf.mxu0
      %v578 = vpop.f32.mrf.mxu0
      %v579 = vadd.f32 0.0, %v578
      %v580 = vpop.f32.mrf.mxu0
      %581 = vdwg.mxu0
      %v582 = vadd.f32 %v423, %v544
      %v583 = vadd.f32 %v426, %v547
      %v584 = vadd.f32 %v431, %v552
      %v585 = vadd.f32 %v434, %v555
      %v586 = vadd.f32 %v439, %v560
      %v587 = vadd.f32 %v442, %v563
      %v588 = vadd.f32 %v447, %v568
      %v589 = vadd.f32 %v450, %v571
      %v590 = vadd.f32 %v455, %v576
      %v591 = vadd.f32 %v458, %v579
      %v592 = vld [vmem:[%s165 + $0x4] sm:$0xe]
      %v593 = vld [vmem:[%s165 + $0x8] sm:$0xf]
      %v594 = vld [vmem:[%s165 + $0xc] sm:$0xf]
      %v595 = vld [vmem:[%s165 + $0x10] sm:$0xf]
      %v596 = vld [vmem:[%s165 + $0x14] sm:$0xf]
      %v597 = vld [vmem:[%s165 + $0x18] sm:$0xf]
      %v598 = vld [vmem:[%s165 + $0x1c] sm:$0xf]
      %v599 = vld [vmem:[%s165 + $0x20] sm:$0xf]
      %v600 = vld [vmem:[%s165 + $0x24] sm:$0xf]
      %v601 = vld [vmem:[%s165 + $0x28] sm:$0xf]
      %v602 = vld [vmem:[%s165 + $0x2c] sm:$0x1]
      %s603 = scalar_lea.vmem %s1, 48
      %v604 = vld [vmem:[%s603] sm:$0xf]
      %v605 = vld [vmem:[%s603 + $0x4] sm:$0xf]
      %v606 = vld [vmem:[%s603 + $0x8] sm:$0xf]
      %v607 = vld [vmem:[%s603 + $0xc] sm:$0xf]
      %v619 = vunpack.c.l.b16 %v592
      %v620 = vunpack.c.l.b16 %v593
      %v621 = vunpack.c.l.b16 %v594
      %v622 = vunpack.c.l.b16 %v595
      %v623 = vunpack.c.l.b16 %v596
      %v624 = vunpack.c.l.b16 %v597
      %v625 = vunpack.c.l.b16 %v598
      %v626 = vunpack.c.l.b16 %v599
      %v627 = vunpack.c.l.b16 %v600
      %v628 = vunpack.c.l.b16 %v601
      %v629 = vunpack.c.l.b16 %v602
      %v630 = vpack.c.b16 %v620, %v619
      %v631 = vpack.c.b16 %v622, %v621
      %v632 = vpack.c.b16 %v624, %v623
      %v633 = vpack.c.b16 %v626, %v625
      %v634 = vpack.c.b16 %v628, %v627
      %v635 = vpack.c.b16 %v629, %v629
      %v636 = vrot.slane %v630, 1
      %v637 = vrot.slane %v631, 1
      %v638 = vsel %vm470, %v636, %v637
      %v639 = vrot.slane %v632, 1
      %v640 = vsel %vm470, %v637, %v639
      %v641 = vrot.slane %v633, 1
      %v642 = vsel %vm470, %v639, %v641
      %v643 = vrot.slane %v634, 1
      %v644 = vsel %vm470, %v641, %v643
      %v645 = vrot.slane %v635, 1
      %v646 = vsel %vm470, %v643, %v645
      %v651 = vunpack.c.l.b16 %v604
      %v652 = vunpack.c.l.b16 %v605
      %v653 = vunpack.c.l.b16 %v606
      %v654 = vunpack.c.l.b16 %v607
      %v655 = vpack.c.b16 %v652, %v651
      %v656 = vpack.c.b16 %v654, %v653
      %v660 = vsel %vm277, %v638, 0
      %v663 = vsel %vm277, %v640, 0
      %v666 = vsel %vm277, %v642, 0
      %v669 = vsel %vm277, %v644, 0
      %v672 = vsel %vm277, %v646, 0
      %674 = vmatprep.subr.bf16.mxu0 0
      %675 = vmatpush1.bf16.msra.mxu0 0
      %676 = vmatprep.subr.bf16.mxu0 0
      %677 = vmatpush1.bf16.msra.mxu0 0
      %678 = vmatprep.subr.bf16.mxu0 0
      %679 = vmatpush1.bf16.msra.mxu0 0
      %680 = vmatprep.subr.bf16.mxu0 0
      %681 = vmatpush1.bf16.msra.mxu0 0
      %682 = vmatprep.subr.bf16.mxu0 0
      %683 = vmatpush1.bf16.msra.mxu0 0
      %684 = vmatprep.subr.bf16.mxu0 0
      %685 = vmatpush1.bf16.msra.mxu0 0
      %686 = vmatprep.subr.bf16.mxu0 0
      %687 = vmatpush1.bf16.msra.mxu0 %v656
      %688 = vmatprep.subr.bf16.mxu0 0
      %689 = vmatpush1.bf16.msra.mxu0 %v655
      %690 = vmatprep.subr.bf16.mxu0 0
      %691 = vmatpush2.bf16.msra.mxu0 0
      %692 = vmatprep.subr.bf16.mxu0 0
      %693 = vmatpush2.bf16.msra.mxu0 0
      %694 = vmatprep.subr.bf16.mxu0 0
      %695 = vmatpush2.bf16.msra.mxu0 0
      %696 = vmatprep.subr.bf16.mxu0 0
      %697 = vmatpush2.bf16.msra.mxu0 0
      %698 = vmatprep.subr.bf16.mxu0 0
      %699 = vmatpush2.bf16.msra.mxu0 0
      %700 = vmatprep.subr.bf16.mxu0 0
      %701 = vmatpush2.bf16.msra.mxu0 0
      %702 = vmatprep.subr.bf16.mxu0 0
      %703 = vmatpush2.bf16.msra.mxu0 0
      %704 = vmatprep.subr.bf16.mxu0 0
      %705 = vmatpush2.bf16.msra.mxu0 0
      %706 = vmatprep.mubr.bf16.mxu0 0
      %707 = vmatmul.mubr.bf16.gmra.mxu0 %v660
      %v708 = vpop.f32.mrf.mxu0
      %v709 = vadd.f32 0.0, %v708
      %v710 = vpop.f32.mrf.mxu0
      %v711 = vpop.f32.mrf.mxu0
      %v712 = vadd.f32 0.0, %v711
      %v713 = vpop.f32.mrf.mxu0
      %714 = vmatprep.mubr.bf16.mxu0 0
      %715 = vmatmul.mubr.bf16.gmra.mxu0 %v663
      %v716 = vpop.f32.mrf.mxu0
      %v717 = vadd.f32 0.0, %v716
      %v718 = vpop.f32.mrf.mxu0
      %v719 = vpop.f32.mrf.mxu0
      %v720 = vadd.f32 0.0, %v719
      %v721 = vpop.f32.mrf.mxu0
      %722 = vmatprep.mubr.bf16.mxu0 0
      %723 = vmatmul.mubr.bf16.gmra.mxu0 %v666
      %v724 = vpop.f32.mrf.mxu0
      %v725 = vadd.f32 0.0, %v724
      %v726 = vpop.f32.mrf.mxu0
      %v727 = vpop.f32.mrf.mxu0
      %v728 = vadd.f32 0.0, %v727
      %v729 = vpop.f32.mrf.mxu0
      %730 = vmatprep.mubr.bf16.mxu0 0
      %731 = vmatmul.mubr.bf16.gmra.mxu0 %v669
      %v732 = vpop.f32.mrf.mxu0
      %v733 = vadd.f32 0.0, %v732
      %v734 = vpop.f32.mrf.mxu0
      %v735 = vpop.f32.mrf.mxu0
      %v736 = vadd.f32 0.0, %v735
      %v737 = vpop.f32.mrf.mxu0
      %738 = vmatprep.mubr.bf16.mxu0 0
      %739 = vmatmul.mubr.bf16.gmra.mxu0 %v672
      %v740 = vpop.f32.mrf.mxu0
      %v741 = vadd.f32 0.0, %v740
      %v742 = vpop.f32.mrf.mxu0
      %v743 = vpop.f32.mrf.mxu0
      %v744 = vadd.f32 0.0, %v743
      %v745 = vpop.f32.mrf.mxu0
      %746 = vdwg.mxu0
      %v747 = vadd.f32 %v582, %v709
      %v748 = vadd.f32 %v583, %v712
      %v749 = vadd.f32 %v584, %v717
      %v750 = vadd.f32 %v585, %v720
      %v751 = vadd.f32 %v586, %v725
      %v752 = vadd.f32 %v587, %v728
      %v753 = vadd.f32 %v588, %v733
      %v754 = vadd.f32 %v589, %v736
      %v755 = vadd.f32 %v590, %v741
      %v756 = vadd.f32 %v591, %v744
      %v757 = vld [vmem:[%s165 + $0x2c] sm:$0x3]
      %s758 = scalar_lea.vmem %s1, 64
      %v759 = vld [vmem:[%s758] sm:$0xf]
      %v760 = vld [vmem:[%s758 + $0x4] sm:$0xf]
      %v761 = vld [vmem:[%s758 + $0x8] sm:$0xf]
      %v762 = vld [vmem:[%s758 + $0xc] sm:$0xf]
      %v764 = vunpack.c.l.b16 %v757
      %v765 = vpack.c.b16 %v764, %v764
      %vm766 = vsmask.f32 6400
      %v768 = vshrl.u32 %v630, 16
      %v770 = vrot.slane %v768, 1
      %v771 = vshll.u32 %v630, 16
      %v773 = vrot.slane %v771, 2
      %v774 = vor.u32 %v770, %v773
      %v776 = vshrl.u32 %v631, 16
      %v778 = vrot.slane %v776, 1
      %v779 = vshll.u32 %v631, 16
      %v781 = vrot.slane %v779, 2
      %v782 = vor.u32 %v778, %v781
      %v783 = vsel %vm766, %v774, %v782
      %v785 = vshrl.u32 %v632, 16
      %v787 = vrot.slane %v785, 1
      %v788 = vshll.u32 %v632, 16
      %v790 = vrot.slane %v788, 2
      %v791 = vor.u32 %v787, %v790
      %v792 = vsel %vm766, %v782, %v791
      %v794 = vshrl.u32 %v633, 16
      %v796 = vrot.slane %v794, 1
      %v797 = vshll.u32 %v633, 16
      %v799 = vrot.slane %v797, 2
      %v800 = vor.u32 %v796, %v799
      %v801 = vsel %vm766, %v791, %v800
      %v803 = vshrl.u32 %v634, 16
      %v805 = vrot.slane %v803, 1
      %v806 = vshll.u32 %v634, 16
      %v808 = vrot.slane %v806, 2
      %v809 = vor.u32 %v805, %v808
      %v810 = vsel %vm766, %v800, %v809
      %v812 = vshrl.u32 %v765, 16
      %v814 = vrot.slane %v812, 1
      %v815 = vshll.u32 %v765, 16
      %v817 = vrot.slane %v815, 2
      %v818 = vor.u32 %v814, %v817
      %v819 = vsel %vm766, %v809, %v818
      %v824 = vunpack.c.l.b16 %v759
      %v825 = vunpack.c.l.b16 %v760
      %v826 = vunpack.c.l.b16 %v761
      %v827 = vunpack.c.l.b16 %v762
      %v828 = vpack.c.b16 %v825, %v824
      %v829 = vpack.c.b16 %v827, %v826
      %v833 = vsel %vm277, %v783, 0
      %v836 = vsel %vm277, %v792, 0
      %v839 = vsel %vm277, %v801, 0
      %v842 = vsel %vm277, %v810, 0
      %v845 = vsel %vm277, %v819, 0
      %847 = vmatprep.subr.bf16.mxu0 0
      %848 = vmatpush1.bf16.msra.mxu0 0
      %849 = vmatprep.subr.bf16.mxu0 0
      %850 = vmatpush1.bf16.msra.mxu0 0
      %851 = vmatprep.subr.bf16.mxu0 0
      %852 = vmatpush1.bf16.msra.mxu0 0
      %853 = vmatprep.subr.bf16.mxu0 0
      %854 = vmatpush1.bf16.msra.mxu0 0
      %855 = vmatprep.subr.bf16.mxu0 0
      %856 = vmatpush1.bf16.msra.mxu0 0
      %857 = vmatprep.subr.bf16.mxu0 0
      %858 = vmatpush1.bf16.msra.mxu0 0
      %859 = vmatprep.subr.bf16.mxu0 0
      %860 = vmatpush1.bf16.msra.mxu0 %v829
      %861 = vmatprep.subr.bf16.mxu0 0
      %862 = vmatpush1.bf16.msra.mxu0 %v828
      %863 = vmatprep.subr.bf16.mxu0 0
      %864 = vmatpush2.bf16.msra.mxu0 0
      %865 = vmatprep.subr.bf16.mxu0 0
      %866 = vmatpush2.bf16.msra.mxu0 0
      %867 = vmatprep.subr.bf16.mxu0 0
      %868 = vmatpush2.bf16.msra.mxu0 0
      %869 = vmatprep.subr.bf16.mxu0 0
      %870 = vmatpush2.bf16.msra.mxu0 0
      %871 = vmatprep.subr.bf16.mxu0 0
      %872 = vmatpush2.bf16.msra.mxu0 0
      %873 = vmatprep.subr.bf16.mxu0 0
      %874 = vmatpush2.bf16.msra.mxu0 0
      %875 = vmatprep.subr.bf16.mxu0 0
      %876 = vmatpush2.bf16.msra.mxu0 0
      %877 = vmatprep.subr.bf16.mxu0 0
      %878 = vmatpush2.bf16.msra.mxu0 0
      %879 = vmatprep.mubr.bf16.mxu0 0
      %880 = vmatmul.mubr.bf16.gmra.mxu0 %v833
      %v881 = vpop.f32.mrf.mxu0
      %v882 = vadd.f32 0.0, %v881
      %v883 = vpop.f32.mrf.mxu0
      %v884 = vpop.f32.mrf.mxu0
      %v885 = vadd.f32 0.0, %v884
      %v886 = vpop.f32.mrf.mxu0
      %887 = vmatprep.mubr.bf16.mxu0 0
      %888 = vmatmul.mubr.bf16.gmra.mxu0 %v836
      %v889 = vpop.f32.mrf.mxu0
      %v890 = vadd.f32 0.0, %v889
      %v891 = vpop.f32.mrf.mxu0
      %v892 = vpop.f32.mrf.mxu0
      %v893 = vadd.f32 0.0, %v892
      %v894 = vpop.f32.mrf.mxu0
      %895 = vmatprep.mubr.bf16.mxu0 0
      %896 = vmatmul.mubr.bf16.gmra.mxu0 %v839
      %v897 = vpop.f32.mrf.mxu0
      %v898 = vadd.f32 0.0, %v897
      %v899 = vpop.f32.mrf.mxu0
      %v900 = vpop.f32.mrf.mxu0
      %v901 = vadd.f32 0.0, %v900
      %v902 = vpop.f32.mrf.mxu0
      %903 = vmatprep.mubr.bf16.mxu0 0
      %904 = vmatmul.mubr.bf16.gmra.mxu0 %v842
      %v905 = vpop.f32.mrf.mxu0
      %v906 = vadd.f32 0.0, %v905
      %v907 = vpop.f32.mrf.mxu0
      %v908 = vpop.f32.mrf.mxu0
      %v909 = vadd.f32 0.0, %v908
      %v910 = vpop.f32.mrf.mxu0
      %911 = vmatprep.mubr.bf16.mxu0 0
      %912 = vmatmul.mubr.bf16.gmra.mxu0 %v845
      %v913 = vpop.f32.mrf.mxu0
      %v914 = vadd.f32 0.0, %v913
      %v915 = vpop.f32.mrf.mxu0
      %v916 = vpop.f32.mrf.mxu0
      %v917 = vadd.f32 0.0, %v916
      %v918 = vpop.f32.mrf.mxu0
      %919 = vdwg.mxu0
      %v920 = vadd.f32 %v747, %v882
      %v921 = vadd.f32 %v748, %v885
      %v922 = vadd.f32 %v749, %v890
      %v923 = vadd.f32 %v750, %v893
      %v924 = vadd.f32 %v751, %v898
      %v925 = vadd.f32 %v752, %v901
      %v926 = vadd.f32 %v753, %v906
      %v927 = vadd.f32 %v754, %v909
      %v928 = vadd.f32 %v755, %v914
      %v929 = vadd.f32 %v756, %v917
      %v930 = vld [vmem:[%s165 + $0x4] sm:$0xc]
      %s931 = scalar_lea.vmem %s1, 80
      %v932 = vld [vmem:[%s931] sm:$0xf]
      %v933 = vld [vmem:[%s931 + $0x4] sm:$0xf]
      %v934 = vld [vmem:[%s931 + $0x8] sm:$0xf]
      %v935 = vld [vmem:[%s931 + $0xc] sm:$0xf]
      %v937 = vunpack.c.l.b16 %v930
      %v938 = vpack.c.b16 %v620, %v937
      %vm939 = vcmask 1045504
      %v940 = vrot.slane %v938, 2
      %v941 = vrot.slane %v631, 2
      %v942 = vsel %vm939, %v940, %v941
      %v943 = vrot.slane %v632, 2
      %v944 = vsel %vm939, %v941, %v943
      %v945 = vrot.slane %v633, 2
      %v946 = vsel %vm939, %v943, %v945
      %v947 = vrot.slane %v634, 2
      %v948 = vsel %vm939, %v945, %v947
      %v949 = vrot.slane %v765, 2
      %v950 = vsel %vm939, %v947, %v949
      %v955 = vunpack.c.l.b16 %v932
      %v956 = vunpack.c.l.b16 %v933
      %v957 = vunpack.c.l.b16 %v934
      %v958 = vunpack.c.l.b16 %v935
      %v959 = vpack.c.b16 %v956, %v955
      %v960 = vpack.c.b16 %v958, %v957
      %v964 = vsel %vm277, %v942, 0
      %v967 = vsel %vm277, %v944, 0
      %v970 = vsel %vm277, %v946, 0
      %v973 = vsel %vm277, %v948, 0
      %v976 = vsel %vm277, %v950, 0
      %978 = vmatprep.subr.bf16.mxu0 0
      %979 = vmatpush1.bf16.msra.mxu0 0
      %980 = vmatprep.subr.bf16.mxu0 0
      %981 = vmatpush1.bf16.msra.mxu0 0
      %982 = vmatprep.subr.bf16.mxu0 0
      %983 = vmatpush1.bf16.msra.mxu0 0
      %984 = vmatprep.subr.bf16.mxu0 0
      %985 = vmatpush1.bf16.msra.mxu0 0
      %986 = vmatprep.subr.bf16.mxu0 0
      %987 = vmatpush1.bf16.msra.mxu0 0
      %988 = vmatprep.subr.bf16.mxu0 0
      %989 = vmatpush1.bf16.msra.mxu0 0
      %990 = vmatprep.subr.bf16.mxu0 0
      %991 = vmatpush1.bf16.msra.mxu0 %v960
      %992 = vmatprep.subr.bf16.mxu0 0
      %993 = vmatpush1.bf16.msra.mxu0 %v959
      %994 = vmatprep.subr.bf16.mxu0 0
      %995 = vmatpush2.bf16.msra.mxu0 0
      %996 = vmatprep.subr.bf16.mxu0 0
      %997 = vmatpush2.bf16.msra.mxu0 0
      %998 = vmatprep.subr.bf16.mxu0 0
      %999 = vmatpush2.bf16.msra.mxu0 0
      %1000 = vmatprep.subr.bf16.mxu0 0
      %1001 = vmatpush2.bf16.msra.mxu0 0
      %1002 = vmatprep.subr.bf16.mxu0 0
      %1003 = vmatpush2.bf16.msra.mxu0 0
      %1004 = vmatprep.subr.bf16.mxu0 0
      %1005 = vmatpush2.bf16.msra.mxu0 0
      %1006 = vmatprep.subr.bf16.mxu0 0
      %1007 = vmatpush2.bf16.msra.mxu0 0
      %1008 = vmatprep.subr.bf16.mxu0 0
      %1009 = vmatpush2.bf16.msra.mxu0 0
      %1010 = vmatprep.mubr.bf16.mxu0 0
      %1011 = vmatmul.mubr.bf16.gmra.mxu0 %v964
      %v1012 = vpop.f32.mrf.mxu0
      %v1013 = vadd.f32 0.0, %v1012
      %v1014 = vpop.f32.mrf.mxu0
      %v1015 = vpop.f32.mrf.mxu0
      %v1016 = vadd.f32 0.0, %v1015
      %v1017 = vpop.f32.mrf.mxu0
      %1018 = vmatprep.mubr.bf16.mxu0 0
      %1019 = vmatmul.mubr.bf16.gmra.mxu0 %v967
      %v1020 = vpop.f32.mrf.mxu0
      %v1021 = vadd.f32 0.0, %v1020
      %v1022 = vpop.f32.mrf.mxu0
      %v1023 = vpop.f32.mrf.mxu0
      %v1024 = vadd.f32 0.0, %v1023
      %v1025 = vpop.f32.mrf.mxu0
      %1026 = vmatprep.mubr.bf16.mxu0 0
      %1027 = vmatmul.mubr.bf16.gmra.mxu0 %v970
      %v1028 = vpop.f32.mrf.mxu0
      %v1029 = vadd.f32 0.0, %v1028
      %v1030 = vpop.f32.mrf.mxu0
      %v1031 = vpop.f32.mrf.mxu0
      %v1032 = vadd.f32 0.0, %v1031
      %v1033 = vpop.f32.mrf.mxu0
      %1034 = vmatprep.mubr.bf16.mxu0 0
      %1035 = vmatmul.mubr.bf16.gmra.mxu0 %v973
      %v1036 = vpop.f32.mrf.mxu0
      %v1037 = vadd.f32 0.0, %v1036
      %v1038 = vpop.f32.mrf.mxu0
      %v1039 = vpop.f32.mrf.mxu0
      %v1040 = vadd.f32 0.0, %v1039
      %v1041 = vpop.f32.mrf.mxu0
      %1042 = vmatprep.mubr.bf16.mxu0 0
      %1043 = vmatmul.mubr.bf16.gmra.mxu0 %v976
      %v1044 = vpop.f32.mrf.mxu0
      %v1045 = vadd.f32 0.0, %v1044
      %v1046 = vpop.f32.mrf.mxu0
      %v1047 = vpop.f32.mrf.mxu0
      %v1048 = vadd.f32 0.0, %v1047
      %v1049 = vpop.f32.mrf.mxu0
      %1050 = vdwg.mxu0
      %v1051 = vadd.f32 %v920, %v1013
      %v1052 = vadd.f32 %v921, %v1016
      %v1053 = vadd.f32 %v922, %v1021
      %v1054 = vadd.f32 %v923, %v1024
      %v1055 = vadd.f32 %v924, %v1029
      %v1056 = vadd.f32 %v925, %v1032
      %v1057 = vadd.f32 %v926, %v1037
      %v1058 = vadd.f32 %v927, %v1040
      %v1059 = vadd.f32 %v928, %v1045
      %v1060 = vadd.f32 %v929, %v1048
      %v1061 = vld [vmem:[%s165 + $0x8] sm:$0xc]
      %v1062 = vld [vmem:[%s165 + $0xc] sm:$0xf]
      %v1063 = vld [vmem:[%s165 + $0x10] sm:$0xf]
      %v1064 = vld [vmem:[%s165 + $0x14] sm:$0xf]
      %v1065 = vld [vmem:[%s165 + $0x18] sm:$0xf]
      %v1066 = vld [vmem:[%s165 + $0x1c] sm:$0xf]
      %v1067 = vld [vmem:[%s165 + $0x20] sm:$0xf]
      %v1068 = vld [vmem:[%s165 + $0x24] sm:$0xf]
      %v1069 = vld [vmem:[%s165 + $0x28] sm:$0xf]
      %v1070 = vld [vmem:[%s165 + $0x2c] sm:$0xf]
      %v1071 = vld [vmem:[%s165 + $0x30] sm:$0x3]
      %s1072 = scalar_lea.vmem %s1, 96
      %v1073 = vld [vmem:[%s1072] sm:$0xf]
      %v1074 = vld [vmem:[%s1072 + $0x4] sm:$0xf]
      %v1075 = vld [vmem:[%s1072 + $0x8] sm:$0xf]
      %v1076 = vld [vmem:[%s1072 + $0xc] sm:$0xf]
      %v1088 = vunpack.c.l.b16 %v1061
      %v1089 = vunpack.c.l.b16 %v1062
      %v1090 = vunpack.c.l.b16 %v1063
      %v1091 = vunpack.c.l.b16 %v1064
      %v1092 = vunpack.c.l.b16 %v1065
      %v1093 = vunpack.c.l.b16 %v1066
      %v1094 = vunpack.c.l.b16 %v1067
      %v1095 = vunpack.c.l.b16 %v1068
      %v1096 = vunpack.c.l.b16 %v1069
      %v1097 = vunpack.c.l.b16 %v1070
      %v1098 = vunpack.c.l.b16 %v1071
      %v1099 = vpack.c.b16 %v1089, %v1088
      %v1100 = vpack.c.b16 %v1091, %v1090
      %v1101 = vpack.c.b16 %v1093, %v1092
      %v1102 = vpack.c.b16 %v1095, %v1094
      %v1103 = vpack.c.b16 %v1097, %v1096
      %v1104 = vpack.c.b16 %v1098, %v1098
      %v1105 = vrot.slane %v1099, 2
      %v1106 = vrot.slane %v1100, 2
      %v1107 = vsel %vm939, %v1105, %v1106
      %v1108 = vrot.slane %v1101, 2
      %v1109 = vsel %vm939, %v1106, %v1108
      %v1110 = vrot.slane %v1102, 2
      %v1111 = vsel %vm939, %v1108, %v1110
      %v1112 = vrot.slane %v1103, 2
      %v1113 = vsel %vm939, %v1110, %v1112
      %v1114 = vrot.slane %v1104, 2
      %v1115 = vsel %vm939, %v1112, %v1114
      %v1120 = vunpack.c.l.b16 %v1073
      %v1121 = vunpack.c.l.b16 %v1074
      %v1122 = vunpack.c.l.b16 %v1075
      %v1123 = vunpack.c.l.b16 %v1076
      %v1124 = vpack.c.b16 %v1121, %v1120
      %v1125 = vpack.c.b16 %v1123, %v1122
      %v1129 = vsel %vm277, %v1107, 0
      %v1132 = vsel %vm277, %v1109, 0
      %v1135 = vsel %vm277, %v1111, 0
      %v1138 = vsel %vm277, %v1113, 0
      %v1141 = vsel %vm277, %v1115, 0
      %1143 = vmatprep.subr.bf16.mxu0 0
      %1144 = vmatpush1.bf16.msra.mxu0 0
      %1145 = vmatprep.subr.bf16.mxu0 0
      %1146 = vmatpush1.bf16.msra.mxu0 0
      %1147 = vmatprep.subr.bf16.mxu0 0
      %1148 = vmatpush1.bf16.msra.mxu0 0
      %1149 = vmatprep.subr.bf16.mxu0 0
      %1150 = vmatpush1.bf16.msra.mxu0 0
      %1151 = vmatprep.subr.bf16.mxu0 0
      %1152 = vmatpush1.bf16.msra.mxu0 0
      %1153 = vmatprep.subr.bf16.mxu0 0
      %1154 = vmatpush1.bf16.msra.mxu0 0
      %1155 = vmatprep.subr.bf16.mxu0 0
      %1156 = vmatpush1.bf16.msra.mxu0 %v1125
      %1157 = vmatprep.subr.bf16.mxu0 0
      %1158 = vmatpush1.bf16.msra.mxu0 %v1124
      %1159 = vmatprep.subr.bf16.mxu0 0
      %1160 = vmatpush2.bf16.msra.mxu0 0
      %1161 = vmatprep.subr.bf16.mxu0 0
      %1162 = vmatpush2.bf16.msra.mxu0 0
      %1163 = vmatprep.subr.bf16.mxu0 0
      %1164 = vmatpush2.bf16.msra.mxu0 0
      %1165 = vmatprep.subr.bf16.mxu0 0
      %1166 = vmatpush2.bf16.msra.mxu0 0
      %1167 = vmatprep.subr.bf16.mxu0 0
      %1168 = vmatpush2.bf16.msra.mxu0 0
      %1169 = vmatprep.subr.bf16.mxu0 0
      %1170 = vmatpush2.bf16.msra.mxu0 0
      %1171 = vmatprep.subr.bf16.mxu0 0
      %1172 = vmatpush2.bf16.msra.mxu0 0
      %1173 = vmatprep.subr.bf16.mxu0 0
      %1174 = vmatpush2.bf16.msra.mxu0 0
      %1175 = vmatprep.mubr.bf16.mxu0 0
      %1176 = vmatmul.mubr.bf16.gmra.mxu0 %v1129
      %v1177 = vpop.f32.mrf.mxu0
      %v1178 = vadd.f32 0.0, %v1177
      %v1179 = vpop.f32.mrf.mxu0
      %v1180 = vpop.f32.mrf.mxu0
      %v1181 = vadd.f32 0.0, %v1180
      %v1182 = vpop.f32.mrf.mxu0
      %1183 = vmatprep.mubr.bf16.mxu0 0
      %1184 = vmatmul.mubr.bf16.gmra.mxu0 %v1132
      %v1185 = vpop.f32.mrf.mxu0
      %v1186 = vadd.f32 0.0, %v1185
      %v1187 = vpop.f32.mrf.mxu0
      %v1188 = vpop.f32.mrf.mxu0
      %v1189 = vadd.f32 0.0, %v1188
      %v1190 = vpop.f32.mrf.mxu0
      %1191 = vmatprep.mubr.bf16.mxu0 0
      %1192 = vmatmul.mubr.bf16.gmra.mxu0 %v1135
      %v1193 = vpop.f32.mrf.mxu0
      %v1194 = vadd.f32 0.0, %v1193
      %v1195 = vpop.f32.mrf.mxu0
      %v1196 = vpop.f32.mrf.mxu0
      %v1197 = vadd.f32 0.0, %v1196
      %v1198 = vpop.f32.mrf.mxu0
      %1199 = vmatprep.mubr.bf16.mxu0 0
      %1200 = vmatmul.mubr.bf16.gmra.mxu0 %v1138
      %v1201 = vpop.f32.mrf.mxu0
      %v1202 = vadd.f32 0.0, %v1201
      %v1203 = vpop.f32.mrf.mxu0
      %v1204 = vpop.f32.mrf.mxu0
      %v1205 = vadd.f32 0.0, %v1204
      %v1206 = vpop.f32.mrf.mxu0
      %1207 = vmatprep.mubr.bf16.mxu0 0
      %1208 = vmatmul.mubr.bf16.gmra.mxu0 %v1141
      %v1209 = vpop.f32.mrf.mxu0
      %v1210 = vadd.f32 0.0, %v1209
      %v1211 = vpop.f32.mrf.mxu0
      %v1212 = vpop.f32.mrf.mxu0
      %v1213 = vadd.f32 0.0, %v1212
      %v1214 = vpop.f32.mrf.mxu0
      %1215 = vdwg.mxu0
      %v1216 = vadd.f32 %v1051, %v1178
      %v1217 = vadd.f32 %v1052, %v1181
      %v1218 = vadd.f32 %v1053, %v1186
      %v1219 = vadd.f32 %v1054, %v1189
      %v1220 = vadd.f32 %v1055, %v1194
      %v1221 = vadd.f32 %v1056, %v1197
      %v1222 = vadd.f32 %v1057, %v1202
      %v1223 = vadd.f32 %v1058, %v1205
      %v1224 = vadd.f32 %v1059, %v1210
      %v1225 = vadd.f32 %v1060, %v1213
      %v1226 = vld [vmem:[%s165 + $0x30] sm:$0x7]
      %s1227 = scalar_lea.vmem %s1, 112
      %v1228 = vld [vmem:[%s1227] sm:$0xf]
      %v1229 = vld [vmem:[%s1227 + $0x4] sm:$0xf]
      %v1230 = vld [vmem:[%s1227 + $0x8] sm:$0xf]
      %v1231 = vld [vmem:[%s1227 + $0xc] sm:$0xf]
      %v1233 = vunpack.c.l.b16 %v1226
      %v1234 = vpack.c.b16 %v1233, %v1233
      %vm1235 = vsmask.f32 5376
      %v1237 = vshrl.u32 %v1099, 16
      %v1239 = vrot.slane %v1237, 2
      %v1240 = vshll.u32 %v1099, 16
      %v1242 = vrot.slane %v1240, 3
      %v1243 = vor.u32 %v1239, %v1242
      %v1245 = vshrl.u32 %v1100, 16
      %v1247 = vrot.slane %v1245, 2
      %v1248 = vshll.u32 %v1100, 16
      %v1250 = vrot.slane %v1248, 3
      %v1251 = vor.u32 %v1247, %v1250
      %v1252 = vsel %vm1235, %v1243, %v1251
      %v1254 = vshrl.u32 %v1101, 16
      %v1256 = vrot.slane %v1254, 2
      %v1257 = vshll.u32 %v1101, 16
      %v1259 = vrot.slane %v1257, 3
      %v1260 = vor.u32 %v1256, %v1259
      %v1261 = vsel %vm1235, %v1251, %v1260
      %v1263 = vshrl.u32 %v1102, 16
      %v1265 = vrot.slane %v1263, 2
      %v1266 = vshll.u32 %v1102, 16
      %v1268 = vrot.slane %v1266, 3
      %v1269 = vor.u32 %v1265, %v1268
      %v1270 = vsel %vm1235, %v1260, %v1269
      %v1272 = vshrl.u32 %v1103, 16
      %v1274 = vrot.slane %v1272, 2
      %v1275 = vshll.u32 %v1103, 16
      %v1277 = vrot.slane %v1275, 3
      %v1278 = vor.u32 %v1274, %v1277
      %v1279 = vsel %vm1235, %v1269, %v1278
      %v1281 = vshrl.u32 %v1234, 16
      %v1283 = vrot.slane %v1281, 2
      %v1284 = vshll.u32 %v1234, 16
      %v1286 = vrot.slane %v1284, 3
      %v1287 = vor.u32 %v1283, %v1286
      %v1288 = vsel %vm1235, %v1278, %v1287
      %v1293 = vunpack.c.l.b16 %v1228
      %v1294 = vunpack.c.l.b16 %v1229
      %v1295 = vunpack.c.l.b16 %v1230
      %v1296 = vunpack.c.l.b16 %v1231
      %v1297 = vpack.c.b16 %v1294, %v1293
      %v1298 = vpack.c.b16 %v1296, %v1295
      %v1302 = vsel %vm277, %v1252, 0
      %v1305 = vsel %vm277, %v1261, 0
      %v1308 = vsel %vm277, %v1270, 0
      %v1311 = vsel %vm277, %v1279, 0
      %v1314 = vsel %vm277, %v1288, 0
      %1316 = vmatprep.subr.bf16.mxu0 0
      %1317 = vmatpush1.bf16.msra.mxu0 0
      %1318 = vmatprep.subr.bf16.mxu0 0
      %1319 = vmatpush1.bf16.msra.mxu0 0
      %1320 = vmatprep.subr.bf16.mxu0 0
      %1321 = vmatpush1.bf16.msra.mxu0 0
      %1322 = vmatprep.subr.bf16.mxu0 0
      %1323 = vmatpush1.bf16.msra.mxu0 0
      %1324 = vmatprep.subr.bf16.mxu0 0
      %1325 = vmatpush1.bf16.msra.mxu0 0
      %1326 = vmatprep.subr.bf16.mxu0 0
      %1327 = vmatpush1.bf16.msra.mxu0 0
      %1328 = vmatprep.subr.bf16.mxu0 0
      %1329 = vmatpush1.bf16.msra.mxu0 %v1298
      %1330 = vmatprep.subr.bf16.mxu0 0
      %1331 = vmatpush1.bf16.msra.mxu0 %v1297
      %1332 = vmatprep.subr.bf16.mxu0 0
      %1333 = vmatpush2.bf16.msra.mxu0 0
      %1334 = vmatprep.subr.bf16.mxu0 0
      %1335 = vmatpush2.bf16.msra.mxu0 0
      %1336 = vmatprep.subr.bf16.mxu0 0
      %1337 = vmatpush2.bf16.msra.mxu0 0
      %1338 = vmatprep.subr.bf16.mxu0 0
      %1339 = vmatpush2.bf16.msra.mxu0 0
      %1340 = vmatprep.subr.bf16.mxu0 0
      %1341 = vmatpush2.bf16.msra.mxu0 0
      %1342 = vmatprep.subr.bf16.mxu0 0
      %1343 = vmatpush2.bf16.msra.mxu0 0
      %1344 = vmatprep.subr.bf16.mxu0 0
      %1345 = vmatpush2.bf16.msra.mxu0 0
      %1346 = vmatprep.subr.bf16.mxu0 0
      %1347 = vmatpush2.bf16.msra.mxu0 0
      %1348 = vmatprep.mubr.bf16.mxu0 0
      %1349 = vmatmul.mubr.bf16.gmra.mxu0 %v1302
      %v1350 = vpop.f32.mrf.mxu0
      %v1351 = vadd.f32 0.0, %v1350
      %v1352 = vpop.f32.mrf.mxu0
      %v1353 = vpop.f32.mrf.mxu0
      %v1354 = vadd.f32 0.0, %v1353
      %v1355 = vpop.f32.mrf.mxu0
      %1356 = vmatprep.mubr.bf16.mxu0 0
      %1357 = vmatmul.mubr.bf16.gmra.mxu0 %v1305
      %v1358 = vpop.f32.mrf.mxu0
      %v1359 = vadd.f32 0.0, %v1358
      %v1360 = vpop.f32.mrf.mxu0
      %v1361 = vpop.f32.mrf.mxu0
      %v1362 = vadd.f32 0.0, %v1361
      %v1363 = vpop.f32.mrf.mxu0
      %1364 = vmatprep.mubr.bf16.mxu0 0
      %1365 = vmatmul.mubr.bf16.gmra.mxu0 %v1308
      %v1366 = vpop.f32.mrf.mxu0
      %v1367 = vadd.f32 0.0, %v1366
      %v1368 = vpop.f32.mrf.mxu0
      %v1369 = vpop.f32.mrf.mxu0
      %v1370 = vadd.f32 0.0, %v1369
      %v1371 = vpop.f32.mrf.mxu0
      %1372 = vmatprep.mubr.bf16.mxu0 0
      %1373 = vmatmul.mubr.bf16.gmra.mxu0 %v1311
      %v1374 = vpop.f32.mrf.mxu0
      %v1375 = vadd.f32 0.0, %v1374
      %v1376 = vpop.f32.mrf.mxu0
      %v1377 = vpop.f32.mrf.mxu0
      %v1378 = vadd.f32 0.0, %v1377
      %v1379 = vpop.f32.mrf.mxu0
      %1380 = vmatprep.mubr.bf16.mxu0 0
      %1381 = vmatmul.mubr.bf16.gmra.mxu0 %v1314
      %v1382 = vpop.f32.mrf.mxu0
      %v1383 = vadd.f32 0.0, %v1382
      %v1384 = vpop.f32.mrf.mxu0
      %v1385 = vpop.f32.mrf.mxu0
      %v1386 = vadd.f32 0.0, %v1385
      %v1387 = vpop.f32.mrf.mxu0
      %1388 = vdwg.mxu0
      %v1389 = vadd.f32 %v1216, %v1351
      %v1390 = vadd.f32 %v1217, %v1354
      %v1391 = vadd.f32 %v1218, %v1359
      %v1392 = vadd.f32 %v1219, %v1362
      %v1393 = vadd.f32 %v1220, %v1367
      %v1394 = vadd.f32 %v1221, %v1370
      %v1395 = vadd.f32 %v1222, %v1375
      %v1396 = vadd.f32 %v1223, %v1378
      %v1397 = vadd.f32 %v1224, %v1383
      %v1398 = vadd.f32 %v1225, %v1386
      %v1399 = vld [vmem:[%s165 + $0x8] sm:$0x8]
      %s1400 = scalar_lea.vmem %s1, 128
      %v1401 = vld [vmem:[%s1400] sm:$0xf]
      %v1402 = vld [vmem:[%s1400 + $0x4] sm:$0xf]
      %v1403 = vld [vmem:[%s1400 + $0x8] sm:$0xf]
      %v1404 = vld [vmem:[%s1400 + $0xc] sm:$0xf]
      %v1406 = vunpack.c.l.b16 %v1399
      %v1407 = vpack.c.b16 %v1089, %v1406
      %vm1408 = vcmask 1044480
      %v1409 = vrot.slane %v1407, 3
      %v1410 = vrot.slane %v1100, 3
      %v1411 = vsel %vm1408, %v1409, %v1410
      %v1412 = vrot.slane %v1101, 3
      %v1413 = vsel %vm1408, %v1410, %v1412
      %v1414 = vrot.slane %v1102, 3
      %v1415 = vsel %vm1408, %v1412, %v1414
      %v1416 = vrot.slane %v1103, 3
      %v1417 = vsel %vm1408, %v1414, %v1416
      %v1418 = vrot.slane %v1234, 3
      %v1419 = vsel %vm1408, %v1416, %v1418
      %v1424 = vunpack.c.l.b16 %v1401
      %v1425 = vunpack.c.l.b16 %v1402
      %v1426 = vunpack.c.l.b16 %v1403
      %v1427 = vunpack.c.l.b16 %v1404
      %v1428 = vpack.c.b16 %v1425, %v1424
      %v1429 = vpack.c.b16 %v1427, %v1426
      %v1433 = vsel %vm277, %v1411, 0
      %v1436 = vsel %vm277, %v1413, 0
      %v1439 = vsel %vm277, %v1415, 0
      %v1442 = vsel %vm277, %v1417, 0
      %v1445 = vsel %vm277, %v1419, 0
      %1447 = vmatprep.subr.bf16.mxu0 0
      %1448 = vmatpush1.bf16.msra.mxu0 0
      %1449 = vmatprep.subr.bf16.mxu0 0
      %1450 = vmatpush1.bf16.msra.mxu0 0
      %1451 = vmatprep.subr.bf16.mxu0 0
      %1452 = vmatpush1.bf16.msra.mxu0 0
      %1453 = vmatprep.subr.bf16.mxu0 0
      %1454 = vmatpush1.bf16.msra.mxu0 0
      %1455 = vmatprep.subr.bf16.mxu0 0
      %1456 = vmatpush1.bf16.msra.mxu0 0
      %1457 = vmatprep.subr.bf16.mxu0 0
      %1458 = vmatpush1.bf16.msra.mxu0 0
      %1459 = vmatprep.subr.bf16.mxu0 0
      %1460 = vmatpush1.bf16.msra.mxu0 %v1429
      %1461 = vmatprep.subr.bf16.mxu0 0
      %1462 = vmatpush1.bf16.msra.mxu0 %v1428
      %1463 = vmatprep.subr.bf16.mxu0 0
      %1464 = vmatpush2.bf16.msra.mxu0 0
      %1465 = vmatprep.subr.bf16.mxu0 0
      %1466 = vmatpush2.bf16.msra.mxu0 0
      %1467 = vmatprep.subr.bf16.mxu0 0
      %1468 = vmatpush2.bf16.msra.mxu0 0
      %1469 = vmatprep.subr.bf16.mxu0 0
      %1470 = vmatpush2.bf16.msra.mxu0 0
      %1471 = vmatprep.subr.bf16.mxu0 0
      %1472 = vmatpush2.bf16.msra.mxu0 0
      %1473 = vmatprep.subr.bf16.mxu0 0
      %1474 = vmatpush2.bf16.msra.mxu0 0
      %1475 = vmatprep.subr.bf16.mxu0 0
      %1476 = vmatpush2.bf16.msra.mxu0 0
      %1477 = vmatprep.subr.bf16.mxu0 0
      %1478 = vmatpush2.bf16.msra.mxu0 0
      %1479 = vmatprep.mubr.bf16.mxu0 0
      %1480 = vmatmul.mubr.bf16.gmra.mxu0 %v1433
      %v1481 = vpop.f32.mrf.mxu0
      %v1482 = vadd.f32 0.0, %v1481
      %v1483 = vpop.f32.mrf.mxu0
      %v1484 = vpop.f32.mrf.mxu0
      %v1485 = vadd.f32 0.0, %v1484
      %v1486 = vpop.f32.mrf.mxu0
      %1487 = vmatprep.mubr.bf16.mxu0 0
      %1488 = vmatmul.mubr.bf16.gmra.mxu0 %v1436
      %v1489 = vpop.f32.mrf.mxu0
      %v1490 = vadd.f32 0.0, %v1489
      %v1491 = vpop.f32.mrf.mxu0
      %v1492 = vpop.f32.mrf.mxu0
      %v1493 = vadd.f32 0.0, %v1492
      %v1494 = vpop.f32.mrf.mxu0
      %1495 = vmatprep.mubr.bf16.mxu0 0
      %1496 = vmatmul.mubr.bf16.gmra.mxu0 %v1439
      %v1497 = vpop.f32.mrf.mxu0
      %v1498 = vadd.f32 0.0, %v1497
      %v1499 = vpop.f32.mrf.mxu0
      %v1500 = vpop.f32.mrf.mxu0
      %v1501 = vadd.f32 0.0, %v1500
      %v1502 = vpop.f32.mrf.mxu0
      %1503 = vmatprep.mubr.bf16.mxu0 0
      %1504 = vmatmul.mubr.bf16.gmra.mxu0 %v1442
      %v1505 = vpop.f32.mrf.mxu0
      %v1506 = vadd.f32 0.0, %v1505
      %v1507 = vpop.f32.mrf.mxu0
      %v1508 = vpop.f32.mrf.mxu0
      %v1509 = vadd.f32 0.0, %v1508
      %v1510 = vpop.f32.mrf.mxu0
      %1511 = vmatprep.mubr.bf16.mxu0 0
      %1512 = vmatmul.mubr.bf16.gmra.mxu0 %v1445
      %v1513 = vpop.f32.mrf.mxu0
      %v1514 = vadd.f32 0.0, %v1513
      %v1515 = vpop.f32.mrf.mxu0
      %v1516 = vpop.f32.mrf.mxu0
      %v1517 = vadd.f32 0.0, %v1516
      %v1518 = vpop.f32.mrf.mxu0
      %1519 = vdwg.mxu0
      %v1520 = vadd.f32 %v1389, %v1482
      %v1521 = vadd.f32 %v1390, %v1485
      %v1522 = vadd.f32 %v1391, %v1490
      %v1523 = vadd.f32 %v1392, %v1493
      %v1524 = vadd.f32 %v1393, %v1498
      %v1525 = vadd.f32 %v1394, %v1501
      %v1526 = vadd.f32 %v1395, %v1506
      %v1527 = vadd.f32 %v1396, %v1509
      %v1528 = vadd.f32 %v1397, %v1514
      %v1529 = vadd.f32 %v1398, %v1517
      %v1530 = vld [vmem:[%s2] sm:$0x1]
      %v1532 = vlaneseq
      %v1533 = vshrl.u32 %v1532, 7
      %v1534 = vsub.s32 0, %v1533
      %v1535 = vrot.slane %v1530, %v1534
      %v1537 = vadd.f32 %v1520, %v1535
      %v1538 = vadd.f32 %v1521, %v1535
      %v1539 = vadd.f32 %v1522, %v1535
      %v1540 = vadd.f32 %v1523, %v1535
      %v1541 = vadd.f32 %v1524, %v1535
      %v1542 = vadd.f32 %v1525, %v1535
      %v1543 = vadd.f32 %v1526, %v1535
      %v1544 = vadd.f32 %v1527, %v1535
      %v1545 = vadd.f32 %v1528, %v1535
      %v1546 = vadd.f32 %v1529, %v1535
      %v1547 = vmax.f32 %v1537, 0.0
      %v1548 = vmax.f32 %v1538, 0.0
      %v1549 = vmax.f32 %v1539, 0.0
      %v1550 = vmax.f32 %v1540, 0.0
      %v1551 = vmax.f32 %v1541, 0.0
      %v1552 = vmax.f32 %v1542, 0.0
      %v1553 = vmax.f32 %v1543, 0.0
      %v1554 = vmax.f32 %v1544, 0.0
      %v1555 = vmax.f32 %v1545, 0.0
      %v1556 = vmax.f32 %v1546, 0.0
      %v1557 = vpack.c.bf16 %v1548, %v1547
      %v1558 = vpack.c.bf16 %v1550, %v1549
      %v1559 = vpack.c.bf16 %v1552, %v1551
      %v1560 = vpack.c.bf16 %v1554, %v1553
      %v1561 = vpack.c.bf16 %v1556, %v1555
      %v1567 = vunpack.c.l.b16 %v1557
      %v1568 = vunpack.c.h.b16 %v1557
      %v1569 = vunpack.c.l.b16 %v1558
      %v1570 = vunpack.c.h.b16 %v1558
      %v1571 = vunpack.c.l.b16 %v1559
      %v1572 = vunpack.c.h.b16 %v1559
      %v1573 = vunpack.c.l.b16 %v1560
      %v1574 = vunpack.c.h.b16 %v1560
      %v1575 = vunpack.c.l.b16 %v1561
      %v1576 = vunpack.c.h.b16 %v1561
      %v1577 = vpack.c.b16 %v1567, %v1567
      %v1578 = vpack.c.b16 %v1568, %v1568
      %v1579 = vpack.c.b16 %v1569, %v1569
      %v1580 = vpack.c.b16 %v1570, %v1570
      %v1581 = vpack.c.b16 %v1571, %v1571
      %v1582 = vpack.c.b16 %v1572, %v1572
      %v1583 = vpack.c.b16 %v1573, %v1573
      %v1584 = vpack.c.b16 %v1574, %v1574
      %v1585 = vpack.c.b16 %v1575, %v1575
      %v1586 = vpack.c.b16 %v1576, %v1576
      %1597 = vst [vmem:[%s170] sm:$0xf] %v1577
      %1598 = vst [vmem:[%s170 + $0x4] sm:$0xf] %v1578
      %1599 = vst [vmem:[%s170 + $0x8] sm:$0xf] %v1579
      %1600 = vst [vmem:[%s170 + $0xc] sm:$0xf] %v1580
      %1601 = vst [vmem:[%s170 + $0x10] sm:$0xf] %v1581
      %1602 = vst [vmem:[%s170 + $0x14] sm:$0xf] %v1582
      %1603 = vst [vmem:[%s170 + $0x18] sm:$0xf] %v1583
      %1604 = vst [vmem:[%s170 + $0x1c] sm:$0xf] %v1584
      %1605 = vst [vmem:[%s170 + $0x20] sm:$0xf] %v1585
      %1606 = vst [vmem:[%s170 + $0x24] sm:$0xf] %v1586
      %p1607 = scmp.lt.s32.totalorder %s14, 1
      %s1608 = scalar_select %p1607, %s14, 1
      %s1609 = smul.addr %s1608, 10
      %s1610 = smul.addr %s1609, 4
      %s1611 = scalar_lea.vmem %s3, %s1610
      // Predicated region
      $region33: #{awr_forward.5} parent=31 // pred_check
        %p1612 = pneg %p100
      $region34: #{awr_forward.5} parent=31 // pred_check_branch
        %1614 = sbr.rel (%p1612) target = $region36
      $region35: #{awr_forward.5} parent=31 // pred_region
        _
      $region36: #{awr_forward.5} parent=31 // pred_fallthru
        _
    $region32: #{awr_forward.5} parent=5 // pred_fallthru
      _
    %p1615 = scmp.le.s32.totalorder 2, %s9
    // Predicated region
    $region37: #{awr_forward.5} parent=5 // pred_check
      %p1616 = pneg %p1615
    $region38: #{awr_forward.5} parent=5 // pred_check_branch
      %1618 = sbr.rel (%p1616) target = $region40
    $region39: #{awr_forward.5} parent=5 // pred_region
      %s1619 = ssub.s32 %s9, 2
      // Predicated region
      $region41: #{awr_forward.5} parent=39 // pred_check
        %p1620 = pneg %p106
      $region42: #{awr_forward.5} parent=39 // pred_check_branch
        %1622 = sbr.rel (%p1620) target = $region44
      $region43: #{awr_forward.5} parent=39 // pred_region
        %p1623 = scmp.lt.s32.totalorder %s15, 1
        %s1624 = scalar_select %p1623, %s15, 1
        %s1625 = smul.addr %s1624, 10
        %s1626 = smul.addr %s1625, 4
        %s1627 = scalar_lea.vmem %s3, %s1626
      $region44: #{awr_forward.5} parent=39 // pred_fallthru
        _
    $region40: #{awr_forward.5} parent=5 // pred_fallthru
      _
  $region6: #{awr_forward.5} parent=0 // loop_footer
    %s13 = sadd.s32 1, %s9
  $region7: #{awr_forward.5} parent=0 // loop_footer_branch
    %8 = sbr.rel target = $region3
  $region8: #{awr_forward.5} parent=0 // loop_exit
    _

// kernel: awr_forward.6
$region0: #{awr_forward.6}
  #allocation0 [shape = 'u32[]', space=smem, size = 0x4, offset = 0x4, fixed_abs, tag = 'smem constant byte address 0x4 - core index']
  #allocation1 [shape = 'u32[144,128]{1,0:T(1,128)}', space=vmem, size = 0x12000, scoped, tag = 'internal scratch']
  %s0 = inlined_call_operand.vmem [shape: bf16[2,328,32], index: 0, kind: input, shape index: {}]
  %s1 = inlined_call_operand.vmem [shape: bf16[9,32,128], index: 1, kind: input, shape index: {}]
  %s2 = inlined_call_operand.vmem [shape: f32[1,128], index: 2, kind: input, shape index: {}]
  %s3 = inlined_call_operand.vmem [shape: bf16[128,64], index: 3, kind: input, shape index: {}]
  %s4 = inlined_call_operand.vmem [shape: f32[1,64], index: 4, kind: input, shape index: {}]
  %s5 = inlined_call_operand.vmem [shape: f32[2,288,64], index: 5, kind: output, shape index: {}]
  %s6 = sld [smem:[#allocation0]]
  $region53: #{awr_forward.6} parent=0
    _
  %s8 = ssub.s32 1, %s6
  %s9 = scalar_select 0, %s8, %s6
  loop: start=0, step=1, limit=4
  $region2: #{awr_forward.6} parent=0 // loop_pre_header
    _
  $region3: #{awr_forward.6} parent=0 // loop_header
    %s11 = sphi 0, %s15
    %p12 = scmp.ge.s32.totalorder %s11, 4
    %s21 = sphi 0, %s23
    %s24 = sphi 0, %s21
    %s25 = sphi 0, %s24
    %s41 = sphi 0, %s25
    %s45 = sphi 0, %s45
    %s47 = sphi 0, %s45
    %s48 = sphi 0, %s47
    %s62 = sphi 0, %s48
    %s66 = sphi 0, %s66
    %s68 = sphi 0, %s66
    %s69 = sphi 0, %s68
    %s83 = sphi 0, %s69
    %s87 = sphi 0, %s87
    %s89 = sphi 0, %s87
    %s90 = sphi 0, %s89
    %s104 = sphi 0, %s90
    %s108 = sphi 0, %s108
    %s110 = sphi 0, %s108
    %s111 = sphi 0, %s110
    %s125 = sphi 0, %s111
    %s131 = sphi 0, %s133
    %s134 = sphi 0, %s131
    %s135 = sphi 0, %s134
    %s151 = sphi 0, %s135
  $region4: #{awr_forward.6} parent=0 // loop_header_branch
    %14 = sbr.rel (%p12) target = $region8
  $region5: #{awr_forward.6} parent=0 // loop_body
    %s16 = ssub.s32 %s11, 1
    %s17 = ssub.s32 %s11, 2
    %s18 = sadd.s32 %s11, 1
    %s19 = ssub.s32 %s11, %s18
    %p20 = scmp.eq.s32.totalorder %s19, 0
    %s22 = sadd.s32 %s21, 1
    %s23 = scalar_select %p20, %s21, %s22
    %p26 = pneg %p20
    %p27 = scmp.eq.s32.totalorder %s11, 1
    %p28 = por %p26, %p27
    %p29 = scmp.ne.s32.totalorder %s21, %s24
    %p30 = scmp.eq.s32.totalorder %s11, 0
    %p31 = por %p29, %p30
    %p32 = scmp.ne.s32.totalorder %s21, %s24
    %p33 = scmp.eq.s32.totalorder %s16, 1
    %p34 = por %p32, %p33
    %p35 = scmp.ne.s32.totalorder %s24, %s25
    %p36 = scmp.eq.s32.totalorder %s16, 0
    %p37 = por %p35, %p36
    %p38 = scmp.ne.s32.totalorder %s24, %s25
    %p39 = scmp.eq.s32.totalorder %s17, 1
    %p40 = por %p38, %p39
    %p42 = scmp.ne.s32.totalorder %s25, %s41
    %p43 = scmp.eq.s32.totalorder %s17, 0
    %p44 = por %p42, %p43
    %s46 = sadd.s32 %s45, 1
    %p49 = scmp.eq.s32.totalorder %s11, 1
    %p50 = scmp.ne.s32.totalorder %s45, %s47
    %p51 = scmp.eq.s32.totalorder %s11, 0
    %p52 = por %p50, %p51
    %p53 = scmp.ne.s32.totalorder %s45, %s47
    %p54 = scmp.eq.s32.totalorder %s16, 1
    %p55 = por %p53, %p54
    %p56 = scmp.ne.s32.totalorder %s47, %s48
    %p57 = scmp.eq.s32.totalorder %s16, 0
    %p58 = por %p56, %p57
    %p59 = scmp.ne.s32.totalorder %s47, %s48
    %p60 = scmp.eq.s32.totalorder %s17, 1
    %p61 = por %p59, %p60
    %p63 = scmp.ne.s32.totalorder %s48, %s62
    %p64 = scmp.eq.s32.totalorder %s17, 0
    %p65 = por %p63, %p64
    %s67 = sadd.s32 %s66, 1
    %p70 = scmp.eq.s32.totalorder %s11, 1
    %p71 = scmp.ne.s32.totalorder %s66, %s68
    %p72 = scmp.eq.s32.totalorder %s11, 0
    %p73 = por %p71, %p72
    %p74 = scmp.ne.s32.totalorder %s66, %s68
    %p75 = scmp.eq.s32.totalorder %s16, 1
    %p76 = por %p74, %p75
    %p77 = scmp.ne.s32.totalorder %s68, %s69
    %p78 = scmp.eq.s32.totalorder %s16, 0
    %p79 = por %p77, %p78
    %p80 = scmp.ne.s32.totalorder %s68, %s69
    %p81 = scmp.eq.s32.totalorder %s17, 1
    %p82 = por %p80, %p81
    %p84 = scmp.ne.s32.totalorder %s69, %s83
    %p85 = scmp.eq.s32.totalorder %s17, 0
    %p86 = por %p84, %p85
    %s88 = sadd.s32 %s87, 1
    %p91 = scmp.eq.s32.totalorder %s11, 1
    %p92 = scmp.ne.s32.totalorder %s87, %s89
    %p93 = scmp.eq.s32.totalorder %s11, 0
    %p94 = por %p92, %p93
    %p95 = scmp.ne.s32.totalorder %s87, %s89
    %p96 = scmp.eq.s32.totalorder %s16, 1
    %p97 = por %p95, %p96
    %p98 = scmp.ne.s32.totalorder %s89, %s90
    %p99 = scmp.eq.s32.totalorder %s16, 0
    %p100 = por %p98, %p99
    %p101 = scmp.ne.s32.totalorder %s89, %s90
    %p102 = scmp.eq.s32.totalorder %s17, 1
    %p103 = por %p101, %p102
    %p105 = scmp.ne.s32.totalorder %s90, %s104
    %p106 = scmp.eq.s32.totalorder %s17, 0
    %p107 = por %p105, %p106
    %s109 = sadd.s32 %s108, 1
    %p112 = scmp.eq.s32.totalorder %s11, 1
    %p113 = scmp.ne.s32.totalorder %s108, %s110
    %p114 = scmp.eq.s32.totalorder %s11, 0
    %p115 = por %p113, %p114
    %p116 = scmp.ne.s32.totalorder %s108, %s110
    %p117 = scmp.eq.s32.totalorder %s16, 1
    %p118 = por %p116, %p117
    %p119 = scmp.ne.s32.totalorder %s110, %s111
    %p120 = scmp.eq.s32.totalorder %s16, 0
    %p121 = por %p119, %p120
    %p122 = scmp.ne.s32.totalorder %s110, %s111
    %p123 = scmp.eq.s32.totalorder %s17, 1
    %p124 = por %p122, %p123
    %p126 = scmp.ne.s32.totalorder %s111, %s125
    %p127 = scmp.eq.s32.totalorder %s17, 0
    %p128 = por %p126, %p127
    %s129 = ssub.s32 %s11, %s18
    %p130 = scmp.eq.s32.totalorder %s129, 0
    %s132 = sadd.s32 %s131, 1
    %s133 = scalar_select %p130, %s131, %s132
    %p136 = pneg %p130
    %p137 = scmp.eq.s32.totalorder %s11, 1
    %p138 = por %p136, %p137
    %p139 = scmp.ne.s32.totalorder %s131, %s134
    %p140 = scmp.eq.s32.totalorder %s11, 0
    %p141 = por %p139, %p140
    %p142 = scmp.ne.s32.totalorder %s131, %s134
    %p143 = scmp.eq.s32.totalorder %s16, 1
    %p144 = por %p142, %p143
    %p145 = scmp.ne.s32.totalorder %s134, %s135
    %p146 = scmp.eq.s32.totalorder %s16, 0
    %p147 = por %p145, %p146
    %p148 = scmp.ne.s32.totalorder %s134, %s135
    %p149 = scmp.eq.s32.totalorder %s17, 1
    %p150 = por %p148, %p149
    %p152 = scmp.ne.s32.totalorder %s135, %s151
    %p153 = scmp.eq.s32.totalorder %s17, 0
    %p154 = por %p152, %p153
    %p155 = scmp.le.s32.totalorder 1, %s11
    %p156 = scmp.lt.s32.totalorder %s11, 3
    %p157 = pnand %p155, %p156
    %p158 = pneg %p157
    // Predicated region
    $region9: #{awr_forward.6} parent=5 // pred_check
      _
    $region10: #{awr_forward.6} parent=5 // pred_check_branch
      %160 = sbr.rel (%p157) target = $region12
    $region11: #{awr_forward.6} parent=5 // pred_region
      %s161 = ssub.s32 %s11, 1
      // Predicated region
      $region13: #{awr_forward.6} parent=11 // pred_check
        %p162 = pneg %p58
      $region14: #{awr_forward.6} parent=11 // pred_check_branch
        %164 = sbr.rel (%p162) target = $region16
      $region15: #{awr_forward.6} parent=11 // pred_region
        _
      $region16: #{awr_forward.6} parent=11 // pred_fallthru
        _
      // Predicated region
      $region17: #{awr_forward.6} parent=11 // pred_check
        %p165 = pneg %p79
      $region18: #{awr_forward.6} parent=11 // pred_check_branch
        %167 = sbr.rel (%p165) target = $region20
      $region19: #{awr_forward.6} parent=11 // pred_region
        _
      $region20: #{awr_forward.6} parent=11 // pred_fallthru
        _
      // Predicated region
      $region21: #{awr_forward.6} parent=11 // pred_check
        %p168 = pneg %p100
      $region22: #{awr_forward.6} parent=11 // pred_check_branch
        %170 = sbr.rel (%p168) target = $region24
      $region23: #{awr_forward.6} parent=11 // pred_region
        _
      $region24: #{awr_forward.6} parent=11 // pred_fallthru
        _
      // Predicated region
      $region25: #{awr_forward.6} parent=11 // pred_check
        %p171 = pneg %p121
      $region26: #{awr_forward.6} parent=11 // pred_check_branch
        %173 = sbr.rel (%p171) target = $region28
      $region27: #{awr_forward.6} parent=11 // pred_region
        _
      $region28: #{awr_forward.6} parent=11 // pred_fallthru
        _
    $region12: #{awr_forward.6} parent=5 // pred_fallthru
      _
    %p174 = scmp.lt.s32.totalorder %s11, 2
    // Predicated region
    $region29: #{awr_forward.6} parent=5 // pred_check
      %p175 = pneg %p174
    $region30: #{awr_forward.6} parent=5 // pred_check_branch
      %177 = sbr.rel (%p175) target = $region32
    $region31: #{awr_forward.6} parent=5 // pred_region
      // Predicated region
      $region33: #{awr_forward.6} parent=31 // pred_check
        %p178 = pneg %p31
      $region34: #{awr_forward.6} parent=31 // pred_check_branch
        %180 = sbr.rel (%p178) target = $region36
      $region35: #{awr_forward.6} parent=31 // pred_region
        %p181 = scmp.lt.s32.totalorder %s11, 1
        %s182 = scalar_select %p181, %s11, 1
        %s183 = smul.addr %s182, 41
        %s184 = smul.addr %s183, 4
        %s185 = scalar_lea.vmem %s0, %s184
      $region36: #{awr_forward.6} parent=31 // pred_fallthru
        _
    $region32: #{awr_forward.6} parent=5 // pred_fallthru
      _
    %p186 = scmp.le.s32.totalorder 1, %s11
    %p187 = scmp.lt.s32.totalorder %s11, 3
    %p188 = pnand %p186, %p187
    %p189 = pneg %p188
    // Predicated region
    $region37: #{awr_forward.6} parent=5 // pred_check
      _
    $region38: #{awr_forward.6} parent=5 // pred_check_branch
      %191 = sbr.rel (%p188) target = $region40
    $region39: #{awr_forward.6} parent=5 // pred_region
      %s192 = ssub.s32 %s11, 1
      %p193 = scmp.lt.s32.totalorder %s16, 1
      %s194 = scalar_select %p193, %s16, 1
      %s195 = smul.addr %s194, 41
      %s196 = smul.addr %s195, 4
      %s197 = scalar_lea.vmem %s0, %s196
      %p198 = pneg %p37
      %p199 = pneg %p34
      %p200 = pneg %p58
      %p201 = pneg %p55
      %p202 = pneg %p79
      %p203 = pneg %p76
      %p204 = pneg %p100
      %p205 = pneg %p97
      %p206 = pneg %p121
      %p207 = pneg %p118
      %p208 = pneg %p147
      %p209 = pneg %p144
      %p210 = scmp.lt.s32.totalorder %s16, 1
      %s211 = scalar_select %p210, %s16, 1
      %s212 = smul.addr %s211, 36
      %s213 = smul.addr %s212, 8
      %s214 = scalar_lea.vmem %s5, %s213
      %p215 = scmp.lt.s32.totalorder %s16, 1
      %s216 = scalar_select %p215, %s16, 1
      %s217 = smul.addr %s216, 41
      %s218 = smul.addr %s217, 4
      %s219 = scalar_lea.vmem %s0, %s218
      %p220 = scmp.lt.s32.totalorder %s16, 1
      %s221 = scalar_select %p220, %s16, 1
      %s222 = smul.addr %s221, 36
      %s223 = smul.addr %s222, 8
      %s224 = scalar_lea.vmem %s5, %s223
      %v226 = vld [vmem:[%s219] sm:$0xf]
      %v227 = vld [vmem:[%s219 + $0x4] sm:$0xf]
      %v228 = vld [vmem:[%s219 + $0x8] sm:$0xf]
      %v229 = vld [vmem:[%s219 + $0xc] sm:$0xf]
      %v230 = vld [vmem:[%s219 + $0x10] sm:$0xf]
      %v231 = vld [vmem:[%s219 + $0x14] sm:$0xf]
      %v232 = vld [vmem:[%s219 + $0x18] sm:$0xf]
      %v233 = vld [vmem:[%s219 + $0x1c] sm:$0xf]
      %v234 = vld [vmem:[%s219 + $0x20] sm:$0xf]
      %v235 = vld [vmem:[%s219 + $0x24] sm:$0xf]
      %v236 = vld [vmem:[%s219 + $0x28] sm:$0xf]
      %v237 = vld [vmem:[%s219 + $0x2c] sm:$0xf]
      %v238 = vld [vmem:[%s219 + $0x30] sm:$0xf]
      %v239 = vld [vmem:[%s219 + $0x34] sm:$0xf]
      %v240 = vld [vmem:[%s219 + $0x38] sm:$0xf]
      %v241 = vld [vmem:[%s219 + $0x3c] sm:$0xf]
      %v242 = vld [vmem:[%s219 + $0x40] sm:$0xf]
      %v243 = vld [vmem:[%s219 + $0x44] sm:$0xf]
      %v244 = vld [vmem:[%s219 + $0x48] sm:$0xf]
      %v245 = vld [vmem:[%s219 + $0x4c] sm:$0xf]
      %v246 = vld [vmem:[%s219 + $0x50] sm:$0xf]
      %v247 = vld [vmem:[%s219 + $0x54] sm:$0xf]
      %v248 = vld [vmem:[%s219 + $0x58] sm:$0xf]
      %v249 = vld [vmem:[%s219 + $0x5c] sm:$0xf]
      %v250 = vld [vmem:[%s219 + $0x60] sm:$0xf]
      %v251 = vld [vmem:[%s219 + $0x64] sm:$0xf]
      %v252 = vld [vmem:[%s219 + $0x68] sm:$0xf]
      %v253 = vld [vmem:[%s219 + $0x6c] sm:$0xf]
      %v254 = vld [vmem:[%s219 + $0x70] sm:$0xf]
      %v255 = vld [vmem:[%s219 + $0x74] sm:$0xf]
      %v256 = vld [vmem:[%s219 + $0x78] sm:$0xf]
      %v257 = vld [vmem:[%s219 + $0x7c] sm:$0xf]
      %v258 = vld [vmem:[%s219 + $0x80] sm:$0xf]
      %v259 = vld [vmem:[%s219 + $0x84] sm:$0xf]
      %v260 = vld [vmem:[%s219 + $0x88] sm:$0xf]
      %v261 = vld [vmem:[%s219 + $0x8c] sm:$0xf]
      %v262 = vld [vmem:[%s1] sm:$0xf]
      %v263 = vld [vmem:[%s1 + $0x4] sm:$0xf]
      %v264 = vld [vmem:[%s1 + $0x8] sm:$0xf]
      %v265 = vld [vmem:[%s1 + $0xc] sm:$0xf]
      %v266 = vld [vmem:[%s219 + $0x90] sm:$0x1]
      %s267 = scalar_lea.vmem %s1, 16
      %v268 = vld [vmem:[%s267] sm:$0xf]
      %v269 = vld [vmem:[%s267 + $0x4] sm:$0xf]
      %v270 = vld [vmem:[%s267 + $0x8] sm:$0xf]
      %v271 = vld [vmem:[%s267 + $0xc] sm:$0xf]
      %v309 = vunpack.c.l.b16 %v226
      %v310 = vunpack.c.l.b16 %v227
      %v311 = vunpack.c.l.b16 %v228
      %v312 = vunpack.c.l.b16 %v229
      %v313 = vunpack.c.l.b16 %v230
      %v314 = vunpack.c.l.b16 %v231
      %v315 = vunpack.c.l.b16 %v232
      %v316 = vunpack.c.l.b16 %v233
      %v317 = vunpack.c.l.b16 %v234
      %v318 = vunpack.c.l.b16 %v235
      %v319 = vunpack.c.l.b16 %v236
      %v320 = vunpack.c.l.b16 %v237
      %v321 = vunpack.c.l.b16 %v238
      %v322 = vunpack.c.l.b16 %v239
      %v323 = vunpack.c.l.b16 %v240
      %v324 = vunpack.c.l.b16 %v241
      %v325 = vunpack.c.l.b16 %v242
      %v326 = vunpack.c.l.b16 %v243
      %v327 = vunpack.c.l.b16 %v244
      %v328 = vunpack.c.l.b16 %v245
      %v329 = vunpack.c.l.b16 %v246
      %v330 = vunpack.c.l.b16 %v247
      %v331 = vunpack.c.l.b16 %v248
      %v332 = vunpack.c.l.b16 %v249
      %v333 = vunpack.c.l.b16 %v250
      %v334 = vunpack.c.l.b16 %v251
      %v335 = vunpack.c.l.b16 %v252
      %v336 = vunpack.c.l.b16 %v253
      %v337 = vunpack.c.l.b16 %v254
      %v338 = vunpack.c.l.b16 %v255
      %v339 = vunpack.c.l.b16 %v256
      %v340 = vunpack.c.l.b16 %v257
      %v341 = vunpack.c.l.b16 %v258
      %v342 = vunpack.c.l.b16 %v259
      %v343 = vunpack.c.l.b16 %v260
      %v344 = vunpack.c.l.b16 %v261
      %v345 = vunpack.c.l.b16 %v266
      %v346 = vpack.c.b16 %v310, %v309
      %v347 = vpack.c.b16 %v312, %v311
      %v348 = vpack.c.b16 %v314, %v313
      %v349 = vpack.c.b16 %v316, %v315
      %v350 = vpack.c.b16 %v318, %v317
      %v351 = vpack.c.b16 %v320, %v319
      %v352 = vpack.c.b16 %v322, %v321
      %v353 = vpack.c.b16 %v324, %v323
      %v354 = vpack.c.b16 %v326, %v325
      %v355 = vpack.c.b16 %v328, %v327
      %v356 = vpack.c.b16 %v330, %v329
      %v357 = vpack.c.b16 %v332, %v331
      %v358 = vpack.c.b16 %v334, %v333
      %v359 = vpack.c.b16 %v336, %v335
      %v360 = vpack.c.b16 %v338, %v337
      %v361 = vpack.c.b16 %v340, %v339
      %v362 = vpack.c.b16 %v342, %v341
      %v363 = vpack.c.b16 %v344, %v343
      %v364 = vpack.c.b16 %v345, %v345
      %vm365 = vsmask.f32 7424
      %v367 = vshrl.u32 %v346, 16
      %v369 = vshll.u32 %v346, 16
      %v371 = vrot.slane %v369, 1
      %v372 = vor.u32 %v367, %v371
      %v374 = vshll.u32 %v347, 16
      %v376 = vrot.slane %v374, 1
      %v377 = vsel %vm365, %v372, %v376
      %v378 = vshrl.u32 %v347, 16
      %v380 = vor.u32 %v378, %v376
      %v382 = vshll.u32 %v348, 16
      %v384 = vrot.slane %v382, 1
      %v385 = vsel %vm365, %v380, %v384
      %v386 = vshrl.u32 %v348, 16
      %v388 = vor.u32 %v386, %v384
      %v390 = vshll.u32 %v349, 16
      %v392 = vrot.slane %v390, 1
      %v393 = vsel %vm365, %v388, %v392
      %v394 = vshrl.u32 %v349, 16
      %v396 = vor.u32 %v394, %v392
      %v398 = vshll.u32 %v350, 16
      %v400 = vrot.slane %v398, 1
      %v401 = vsel %vm365, %v396, %v400
      %v402 = vshrl.u32 %v350, 16
      %v404 = vor.u32 %v402, %v400
      %v406 = vshll.u32 %v351, 16
      %v408 = vrot.slane %v406, 1
      %v409 = vsel %vm365, %v404, %v408
      %v410 = vshrl.u32 %v351, 16
      %v412 = vor.u32 %v410, %v408
      %v414 = vshll.u32 %v352, 16
      %v416 = vrot.slane %v414, 1
      %v417 = vsel %vm365, %v412, %v416
      %v418 = vshrl.u32 %v352, 16
      %v420 = vor.u32 %v418, %v416
      %v422 = vshll.u32 %v353, 16
      %v424 = vrot.slane %v422, 1
      %v425 = vsel %vm365, %v420, %v424
      %v426 = vshrl.u32 %v353, 16
      %v428 = vor.u32 %v426, %v424
      %v430 = vshll.u32 %v354, 16
      %v432 = vrot.slane %v430, 1
      %v433 = vsel %vm365, %v428, %v432
      %v434 = vshrl.u32 %v354, 16
      %v436 = vor.u32 %v434, %v432
      %v438 = vshll.u32 %v355, 16
      %v440 = vrot.slane %v438, 1
      %v441 = vsel %vm365, %v436, %v440
      %v442 = vshrl.u32 %v355, 16
      %v444 = vor.u32 %v442, %v440
      %v446 = vshll.u32 %v356, 16
      %v448 = vrot.slane %v446, 1
      %v449 = vsel %vm365, %v444, %v448
      %v450 = vshrl.u32 %v356, 16
      %v452 = vor.u32 %v450, %v448
      %v454 = vshll.u32 %v357, 16
      %v456 = vrot.slane %v454, 1
      %v457 = vsel %vm365, %v452, %v456
      %v458 = vshrl.u32 %v357, 16
      %v460 = vor.u32 %v458, %v456
      %v462 = vshll.u32 %v358, 16
      %v464 = vrot.slane %v462, 1
      %v465 = vsel %vm365, %v460, %v464
      %v466 = vshrl.u32 %v358, 16
      %v468 = vor.u32 %v466, %v464
      %v470 = vshll.u32 %v359, 16
      %v472 = vrot.slane %v470, 1
      %v473 = vsel %vm365, %v468, %v472
      %v474 = vshrl.u32 %v359, 16
      %v476 = vor.u32 %v474, %v472
      %v478 = vshll.u32 %v360, 16
      %v480 = vrot.slane %v478, 1
      %v481 = vsel %vm365, %v476, %v480
      %v482 = vshrl.u32 %v360, 16
      %v484 = vor.u32 %v482, %v480
      %v486 = vshll.u32 %v361, 16
      %v488 = vrot.slane %v486, 1
      %v489 = vsel %vm365, %v484, %v488
      %v490 = vshrl.u32 %v361, 16
      %v492 = vor.u32 %v490, %v488
      %v494 = vshll.u32 %v362, 16
      %v496 = vrot.slane %v494, 1
      %v497 = vsel %vm365, %v492, %v496
      %v498 = vshrl.u32 %v362, 16
      %v500 = vor.u32 %v498, %v496
      %v502 = vshll.u32 %v363, 16
      %v504 = vrot.slane %v502, 1
      %v505 = vsel %vm365, %v500, %v504
      %v506 = vshrl.u32 %v363, 16
      %v508 = vor.u32 %v506, %v504
      %v510 = vshll.u32 %v364, 16
      %v512 = vrot.slane %v510, 1
      %v513 = vsel %vm365, %v508, %v512
      %v518 = vunpack.c.l.b16 %v268
      %v519 = vunpack.c.l.b16 %v269
      %v520 = vunpack.c.l.b16 %v270
      %v521 = vunpack.c.l.b16 %v271
      %v522 = vpack.c.b16 %v519, %v518
      %v523 = vpack.c.b16 %v521, %v520
      %vm526 = vcmask 261120
      %v528 = vsel %vm526, %v377, 0
      %v531 = vsel %vm526, %v385, 0
      %v534 = vsel %vm526, %v393, 0
      %v537 = vsel %vm526, %v401, 0
      %v540 = vsel %vm526, %v409, 0
      %v543 = vsel %vm526, %v417, 0
      %v546 = vsel %vm526, %v425, 0
      %v549 = vsel %vm526, %v433, 0
      %v552 = vsel %vm526, %v441, 0
      %v555 = vsel %vm526, %v449, 0
      %v558 = vsel %vm526, %v457, 0
      %v561 = vsel %vm526, %v465, 0
      %v564 = vsel %vm526, %v473, 0
      %v567 = vsel %vm526, %v481, 0
      %v570 = vsel %vm526, %v489, 0
      %v573 = vsel %vm526, %v497, 0
      %v576 = vsel %vm526, %v505, 0
      %v579 = vsel %vm526, %v513, 0
      %581 = vmatprep.subr.bf16.mxu0 0
      %582 = vmatpush1.bf16.msra.mxu0 0
      %583 = vmatprep.subr.bf16.mxu0 0
      %584 = vmatpush1.bf16.msra.mxu0 0
      %585 = vmatprep.subr.bf16.mxu0 0
      %586 = vmatpush1.bf16.msra.mxu0 0
      %587 = vmatprep.subr.bf16.mxu0 0
      %588 = vmatpush1.bf16.msra.mxu0 0
      %589 = vmatprep.subr.bf16.mxu0 0
      %590 = vmatpush1.bf16.msra.mxu0 0
      %591 = vmatprep.subr.bf16.mxu0 0
      %592 = vmatpush1.bf16.msra.mxu0 0
      %593 = vmatprep.subr.bf16.mxu0 0
      %594 = vmatpush1.bf16.msra.mxu0 %v523
      %595 = vmatprep.subr.bf16.mxu0 0
      %596 = vmatpush1.bf16.msra.mxu0 %v522
      %597 = vmatprep.subr.bf16.mxu0 0
      %598 = vmatpush2.bf16.msra.mxu0 0
      %599 = vmatprep.subr.bf16.mxu0 0
      %600 = vmatpush2.bf16.msra.mxu0 0
      %601 = vmatprep.subr.bf16.mxu0 0
      %602 = vmatpush2.bf16.msra.mxu0 0
      %603 = vmatprep.subr.bf16.mxu0 0
      %604 = vmatpush2.bf16.msra.mxu0 0
      %605 = vmatprep.subr.bf16.mxu0 0
      %606 = vmatpush2.bf16.msra.mxu0 0
      %607 = vmatprep.subr.bf16.mxu0 0
      %608 = vmatpush2.bf16.msra.mxu0 0
      %609 = vmatprep.subr.bf16.mxu0 0
      %610 = vmatpush2.bf16.msra.mxu0 0
      %611 = vmatprep.subr.bf16.mxu0 0
      %612 = vmatpush2.bf16.msra.mxu0 0
      %613 = vmatprep.mubr.bf16.mxu0 0
      %614 = vmatmul.mubr.bf16.gmra.mxu0 %v528
      %v615 = vpop.f32.mrf.mxu0
      %v616 = vadd.f32 0.0, %v615
      %v617 = vpop.f32.mrf.mxu0
      %v618 = vpop.f32.mrf.mxu0
      %v619 = vadd.f32 0.0, %v618
      %v620 = vpop.f32.mrf.mxu0
      %621 = vmatprep.mubr.bf16.mxu0 0
      %622 = vmatmul.mubr.bf16.gmra.mxu0 %v531
      %v623 = vpop.f32.mrf.mxu0
      %v624 = vadd.f32 0.0, %v623
      %v625 = vpop.f32.mrf.mxu0
      %v626 = vpop.f32.mrf.mxu0
      %v627 = vadd.f32 0.0, %v626
      %v628 = vpop.f32.mrf.mxu0
      %629 = vmatprep.mubr.bf16.mxu0 0
      %630 = vmatmul.mubr.bf16.gmra.mxu0 %v534
      %v631 = vpop.f32.mrf.mxu0
      %v632 = vadd.f32 0.0, %v631
      %v633 = vpop.f32.mrf.mxu0
      %v634 = vpop.f32.mrf.mxu0
      %v635 = vadd.f32 0.0, %v634
      %v636 = vpop.f32.mrf.mxu0
      %637 = vmatprep.mubr.bf16.mxu0 0
      %638 = vmatmul.mubr.bf16.gmra.mxu0 %v537
      %v639 = vpop.f32.mrf.mxu0
      %v640 = vadd.f32 0.0, %v639
      %v641 = vpop.f32.mrf.mxu0
      %v642 = vpop.f32.mrf.mxu0
      %v643 = vadd.f32 0.0, %v642
      %v644 = vpop.f32.mrf.mxu0
      %645 = vmatprep.mubr.bf16.mxu0 0
      %646 = vmatmul.mubr.bf16.gmra.mxu0 %v540
      %v647 = vpop.f32.mrf.mxu0
      %v648 = vadd.f32 0.0, %v647
      %v649 = vpop.f32.mrf.mxu0
      %v650 = vpop.f32.mrf.mxu0
      %v651 = vadd.f32 0.0, %v650
      %v652 = vpop.f32.mrf.mxu0
      %653 = vmatprep.mubr.bf16.mxu0 0
      %654 = vmatmul.mubr.bf16.gmra.mxu0 %v543
      %v655 = vpop.f32.mrf.mxu0
      %v656 = vadd.f32 0.0, %v655
      %v657 = vpop.f32.mrf.mxu0
      %v658 = vpop.f32.mrf.mxu0
      %v659 = vadd.f32 0.0, %v658
      %v660 = vpop.f32.mrf.mxu0
      %661 = vmatprep.mubr.bf16.mxu0 0
      %662 = vmatmul.mubr.bf16.gmra.mxu0 %v546
      %v663 = vpop.f32.mrf.mxu0
      %v664 = vadd.f32 0.0, %v663
      %v665 = vpop.f32.mrf.mxu0
      %v666 = vpop.f32.mrf.mxu0
      %v667 = vadd.f32 0.0, %v666
      %v668 = vpop.f32.mrf.mxu0
      %669 = vmatprep.mubr.bf16.mxu0 0
      %670 = vmatmul.mubr.bf16.gmra.mxu0 %v549
      %v671 = vpop.f32.mrf.mxu0
      %v672 = vadd.f32 0.0, %v671
      %v673 = vpop.f32.mrf.mxu0
      %v674 = vpop.f32.mrf.mxu0
      %v675 = vadd.f32 0.0, %v674
      %v676 = vpop.f32.mrf.mxu0
      %677 = vmatprep.mubr.bf16.mxu0 0
      %678 = vmatmul.mubr.bf16.gmra.mxu0 %v552
      %v679 = vpop.f32.mrf.mxu0
      %v680 = vadd.f32 0.0, %v679
      %v681 = vpop.f32.mrf.mxu0
      %v682 = vpop.f32.mrf.mxu0
      %v683 = vadd.f32 0.0, %v682
      %v684 = vpop.f32.mrf.mxu0
      %685 = vmatprep.mubr.bf16.mxu0 0
      %686 = vmatmul.mubr.bf16.gmra.mxu0 %v555
      %v687 = vpop.f32.mrf.mxu0
      %v688 = vadd.f32 0.0, %v687
      %v689 = vpop.f32.mrf.mxu0
      %v690 = vpop.f32.mrf.mxu0
      %v691 = vadd.f32 0.0, %v690
      %v692 = vpop.f32.mrf.mxu0
      %693 = vmatprep.mubr.bf16.mxu0 0
      %694 = vmatmul.mubr.bf16.gmra.mxu0 %v558
      %v695 = vpop.f32.mrf.mxu0
      %v696 = vadd.f32 0.0, %v695
      %v697 = vpop.f32.mrf.mxu0
      %v698 = vpop.f32.mrf.mxu0
      %v699 = vadd.f32 0.0, %v698
      %v700 = vpop.f32.mrf.mxu0
      %701 = vmatprep.mubr.bf16.mxu0 0
      %702 = vmatmul.mubr.bf16.gmra.mxu0 %v561
      %v703 = vpop.f32.mrf.mxu0
      %v704 = vadd.f32 0.0, %v703
      %v705 = vpop.f32.mrf.mxu0
      %v706 = vpop.f32.mrf.mxu0
      %v707 = vadd.f32 0.0, %v706
      %v708 = vpop.f32.mrf.mxu0
      %709 = vmatprep.mubr.bf16.mxu0 0
      %710 = vmatmul.mubr.bf16.gmra.mxu0 %v564
      %v711 = vpop.f32.mrf.mxu0
      %v712 = vadd.f32 0.0, %v711
      %v713 = vpop.f32.mrf.mxu0
      %v714 = vpop.f32.mrf.mxu0
      %v715 = vadd.f32 0.0, %v714
      %v716 = vpop.f32.mrf.mxu0
      %717 = vmatprep.mubr.bf16.mxu0 0
      %718 = vmatmul.mubr.bf16.gmra.mxu0 %v567
      %v719 = vpop.f32.mrf.mxu0
      %v720 = vadd.f32 0.0, %v719
      %v721 = vpop.f32.mrf.mxu0
      %v722 = vpop.f32.mrf.mxu0
      %v723 = vadd.f32 0.0, %v722
      %v724 = vpop.f32.mrf.mxu0
      %725 = vmatprep.mubr.bf16.mxu0 0
      %726 = vmatmul.mubr.bf16.gmra.mxu0 %v570
      %v727 = vpop.f32.mrf.mxu0
      %v728 = vadd.f32 0.0, %v727
      %v729 = vpop.f32.mrf.mxu0
      %v730 = vpop.f32.mrf.mxu0
      %v731 = vadd.f32 0.0, %v730
      %v732 = vpop.f32.mrf.mxu0
      %733 = vmatprep.mubr.bf16.mxu0 0
      %734 = vmatmul.mubr.bf16.gmra.mxu0 %v573
      %v735 = vpop.f32.mrf.mxu0
      %v736 = vadd.f32 0.0, %v735
      %v737 = vpop.f32.mrf.mxu0
      %v738 = vpop.f32.mrf.mxu0
      %v739 = vadd.f32 0.0, %v738
      %v740 = vpop.f32.mrf.mxu0
      %741 = vmatprep.mubr.bf16.mxu0 0
      %742 = vmatmul.mubr.bf16.gmra.mxu0 %v576
      %v743 = vpop.f32.mrf.mxu0
      %v744 = vadd.f32 0.0, %v743
      %v745 = vpop.f32.mrf.mxu0
      %v746 = vpop.f32.mrf.mxu0
      %v747 = vadd.f32 0.0, %v746
      %v748 = vpop.f32.mrf.mxu0
      %749 = vmatprep.mubr.bf16.mxu0 0
      %750 = vmatmul.mubr.bf16.gmra.mxu0 %v579
      %v751 = vpop.f32.mrf.mxu0
      %v752 = vadd.f32 0.0, %v751
      %v753 = vpop.f32.mrf.mxu0
      %v754 = vpop.f32.mrf.mxu0
      %v755 = vadd.f32 0.0, %v754
      %v756 = vpop.f32.mrf.mxu0
      %757 = vdwg.mxu0
      %v762 = vunpack.c.l.b16 %v262
      %v763 = vunpack.c.l.b16 %v263
      %v764 = vunpack.c.l.b16 %v264
      %v765 = vunpack.c.l.b16 %v265
      %v766 = vpack.c.b16 %v763, %v762
      %v767 = vpack.c.b16 %v765, %v764
      %v770 = vsel %vm526, %v346, 0
      %v772 = vsel %vm526, %v347, 0
      %v774 = vsel %vm526, %v348, 0
      %v776 = vsel %vm526, %v349, 0
      %v778 = vsel %vm526, %v350, 0
      %v780 = vsel %vm526, %v351, 0
      %v782 = vsel %vm526, %v352, 0
      %v784 = vsel %vm526, %v353, 0
      %v786 = vsel %vm526, %v354, 0
      %v788 = vsel %vm526, %v355, 0
      %v790 = vsel %vm526, %v356, 0
      %v792 = vsel %vm526, %v357, 0
      %v794 = vsel %vm526, %v358, 0
      %v796 = vsel %vm526, %v359, 0
      %v798 = vsel %vm526, %v360, 0
      %v800 = vsel %vm526, %v361, 0
      %v802 = vsel %vm526, %v362, 0
      %v804 = vsel %vm526, %v363, 0
      %806 = vmatprep.subr.bf16.mxu0 0
      %807 = vmatpush1.bf16.msra.mxu0 0
      %808 = vmatprep.subr.bf16.mxu0 0
      %809 = vmatpush1.bf16.msra.mxu0 0
      %810 = vmatprep.subr.bf16.mxu0 0
      %811 = vmatpush1.bf16.msra.mxu0 0
      %812 = vmatprep.subr.bf16.mxu0 0
      %813 = vmatpush1.bf16.msra.mxu0 0
      %814 = vmatprep.subr.bf16.mxu0 0
      %815 = vmatpush1.bf16.msra.mxu0 0
      %816 = vmatprep.subr.bf16.mxu0 0
      %817 = vmatpush1.bf16.msra.mxu0 0
      %818 = vmatprep.subr.bf16.mxu0 0
      %819 = vmatpush1.bf16.msra.mxu0 %v767
      %820 = vmatprep.subr.bf16.mxu0 0
      %821 = vmatpush1.bf16.msra.mxu0 %v766
      %822 = vmatprep.subr.bf16.mxu0 0
      %823 = vmatpush2.bf16.msra.mxu0 0
      %824 = vmatprep.subr.bf16.mxu0 0
      %825 = vmatpush2.bf16.msra.mxu0 0
      %826 = vmatprep.subr.bf16.mxu0 0
      %827 = vmatpush2.bf16.msra.mxu0 0
      %828 = vmatprep.subr.bf16.mxu0 0
      %829 = vmatpush2.bf16.msra.mxu0 0
      %830 = vmatprep.subr.bf16.mxu0 0
      %831 = vmatpush2.bf16.msra.mxu0 0
      %832 = vmatprep.subr.bf16.mxu0 0
      %833 = vmatpush2.bf16.msra.mxu0 0
      %834 = vmatprep.subr.bf16.mxu0 0
      %835 = vmatpush2.bf16.msra.mxu0 0
      %836 = vmatprep.subr.bf16.mxu0 0
      %837 = vmatpush2.bf16.msra.mxu0 0
      %838 = vmatprep.mubr.bf16.mxu0 0
      %839 = vmatmul.mubr.bf16.gmra.mxu0 %v770
      %v840 = vpop.f32.mrf.mxu0
      %v841 = vadd.f32 %v616, %v840
      %v842 = vpop.f32.mrf.mxu0
      %v843 = vpop.f32.mrf.mxu0
      %v844 = vadd.f32 %v619, %v843
      %v845 = vpop.f32.mrf.mxu0
      %846 = vmatprep.mubr.bf16.mxu0 0
      %847 = vmatmul.mubr.bf16.gmra.mxu0 %v772
      %v848 = vpop.f32.mrf.mxu0
      %v849 = vadd.f32 %v624, %v848
      %v850 = vpop.f32.mrf.mxu0
      %v851 = vpop.f32.mrf.mxu0
      %v852 = vadd.f32 %v627, %v851
      %v853 = vpop.f32.mrf.mxu0
      %854 = vmatprep.mubr.bf16.mxu0 0
      %855 = vmatmul.mubr.bf16.gmra.mxu0 %v774
      %v856 = vpop.f32.mrf.mxu0
      %v857 = vadd.f32 %v632, %v856
      %v858 = vpop.f32.mrf.mxu0
      %v859 = vpop.f32.mrf.mxu0
      %v860 = vadd.f32 %v635, %v859
      %v861 = vpop.f32.mrf.mxu0
      %862 = vmatprep.mubr.bf16.mxu0 0
      %863 = vmatmul.mubr.bf16.gmra.mxu0 %v776
      %v864 = vpop.f32.mrf.mxu0
      %v865 = vadd.f32 %v640, %v864
      %v866 = vpop.f32.mrf.mxu0
      %v867 = vpop.f32.mrf.mxu0
      %v868 = vadd.f32 %v643, %v867
      %v869 = vpop.f32.mrf.mxu0
      %870 = vmatprep.mubr.bf16.mxu0 0
      %871 = vmatmul.mubr.bf16.gmra.mxu0 %v778
      %v872 = vpop.f32.mrf.mxu0
      %v873 = vadd.f32 %v648, %v872
      %v874 = vpop.f32.mrf.mxu0
      %v875 = vpop.f32.mrf.mxu0
      %v876 = vadd.f32 %v651, %v875
      %v877 = vpop.f32.mrf.mxu0
      %878 = vmatprep.mubr.bf16.mxu0 0
      %879 = vmatmul.mubr.bf16.gmra.mxu0 %v780
      %v880 = vpop.f32.mrf.mxu0
      %v881 = vadd.f32 %v656, %v880
      %v882 = vpop.f32.mrf.mxu0
      %v883 = vpop.f32.mrf.mxu0
      %v884 = vadd.f32 %v659, %v883
      %v885 = vpop.f32.mrf.mxu0
      %886 = vmatprep.mubr.bf16.mxu0 0
      %887 = vmatmul.mubr.bf16.gmra.mxu0 %v782
      %v888 = vpop.f32.mrf.mxu0
      %v889 = vadd.f32 %v664, %v888
      %v890 = vpop.f32.mrf.mxu0
      %v891 = vpop.f32.mrf.mxu0
      %v892 = vadd.f32 %v667, %v891
      %v893 = vpop.f32.mrf.mxu0
      %894 = vmatprep.mubr.bf16.mxu0 0
      %895 = vmatmul.mubr.bf16.gmra.mxu0 %v784
      %v896 = vpop.f32.mrf.mxu0
      %v897 = vadd.f32 %v672, %v896
      %v898 = vpop.f32.mrf.mxu0
      %v899 = vpop.f32.mrf.mxu0
      %v900 = vadd.f32 %v675, %v899
      %v901 = vpop.f32.mrf.mxu0
      %902 = vmatprep.mubr.bf16.mxu0 0
      %903 = vmatmul.mubr.bf16.gmra.mxu0 %v786
      %v904 = vpop.f32.mrf.mxu0
      %v905 = vadd.f32 %v680, %v904
      %v906 = vpop.f32.mrf.mxu0
      %v907 = vpop.f32.mrf.mxu0
      %v908 = vadd.f32 %v683, %v907
      %v909 = vpop.f32.mrf.mxu0
      %910 = vmatprep.mubr.bf16.mxu0 0
      %911 = vmatmul.mubr.bf16.gmra.mxu0 %v788
      %v912 = vpop.f32.mrf.mxu0
      %v913 = vadd.f32 %v688, %v912
      %v914 = vpop.f32.mrf.mxu0
      %v915 = vpop.f32.mrf.mxu0
      %v916 = vadd.f32 %v691, %v915
      %v917 = vpop.f32.mrf.mxu0
      %918 = vmatprep.mubr.bf16.mxu0 0
      %919 = vmatmul.mubr.bf16.gmra.mxu0 %v790
      %v920 = vpop.f32.mrf.mxu0
      %v921 = vadd.f32 %v696, %v920
      %v922 = vpop.f32.mrf.mxu0
      %v923 = vpop.f32.mrf.mxu0
      %v924 = vadd.f32 %v699, %v923
      %v925 = vpop.f32.mrf.mxu0
      %926 = vmatprep.mubr.bf16.mxu0 0
      %927 = vmatmul.mubr.bf16.gmra.mxu0 %v792
      %v928 = vpop.f32.mrf.mxu0
      %v929 = vadd.f32 %v704, %v928
      %v930 = vpop.f32.mrf.mxu0
      %v931 = vpop.f32.mrf.mxu0
      %v932 = vadd.f32 %v707, %v931
      %v933 = vpop.f32.mrf.mxu0
      %934 = vmatprep.mubr.bf16.mxu0 0
      %935 = vmatmul.mubr.bf16.gmra.mxu0 %v794
      %v936 = vpop.f32.mrf.mxu0
      %v937 = vadd.f32 %v712, %v936
      %v938 = vpop.f32.mrf.mxu0
      %v939 = vpop.f32.mrf.mxu0
      %v940 = vadd.f32 %v715, %v939
      %v941 = vpop.f32.mrf.mxu0
      %942 = vmatprep.mubr.bf16.mxu0 0
      %943 = vmatmul.mubr.bf16.gmra.mxu0 %v796
      %v944 = vpop.f32.mrf.mxu0
      %v945 = vadd.f32 %v720, %v944
      %v946 = vpop.f32.mrf.mxu0
      %v947 = vpop.f32.mrf.mxu0
      %v948 = vadd.f32 %v723, %v947
      %v949 = vpop.f32.mrf.mxu0
      %950 = vmatprep.mubr.bf16.mxu0 0
      %951 = vmatmul.mubr.bf16.gmra.mxu0 %v798
      %v952 = vpop.f32.mrf.mxu0
      %v953 = vadd.f32 %v728, %v952
      %v954 = vpop.f32.mrf.mxu0
      %v955 = vpop.f32.mrf.mxu0
      %v956 = vadd.f32 %v731, %v955
      %v957 = vpop.f32.mrf.mxu0
      %958 = vmatprep.mubr.bf16.mxu0 0
      %959 = vmatmul.mubr.bf16.gmra.mxu0 %v800
      %v960 = vpop.f32.mrf.mxu0
      %v961 = vadd.f32 %v736, %v960
      %v962 = vpop.f32.mrf.mxu0
      %v963 = vpop.f32.mrf.mxu0
      %v964 = vadd.f32 %v739, %v963
      %v965 = vpop.f32.mrf.mxu0
      %966 = vmatprep.mubr.bf16.mxu0 0
      %967 = vmatmul.mubr.bf16.gmra.mxu0 %v802
      %v968 = vpop.f32.mrf.mxu0
      %v969 = vadd.f32 %v744, %v968
      %v970 = vpop.f32.mrf.mxu0
      %v971 = vpop.f32.mrf.mxu0
      %v972 = vadd.f32 %v747, %v971
      %v973 = vpop.f32.mrf.mxu0
      %974 = vmatprep.mubr.bf16.mxu0 0
      %975 = vmatmul.mubr.bf16.gmra.mxu0 %v804
      %v976 = vpop.f32.mrf.mxu0
      %v977 = vadd.f32 %v752, %v976
      %v978 = vpop.f32.mrf.mxu0
      %v979 = vpop.f32.mrf.mxu0
      %v980 = vadd.f32 %v755, %v979
      %v981 = vpop.f32.mrf.mxu0
      %982 = vdwg.mxu0
      %v983 = vld [vmem:[%s219] sm:$0xe]
      %s984 = scalar_lea.vmem %s1, 32
      %v985 = vld [vmem:[%s984] sm:$0xf]
      %v986 = vld [vmem:[%s984 + $0x4] sm:$0xf]
      %v987 = vld [vmem:[%s984 + $0x8] sm:$0xf]
      %v988 = vld [vmem:[%s984 + $0xc] sm:$0xf]
      %v990 = vunpack.c.l.b16 %v983
      %v991 = vpack.c.b16 %v310, %v990
      %vm992 = vcmask 1046528
      %v993 = vrot.slane %v991, 1
      %v994 = vrot.slane %v347, 1
      %v995 = vsel %vm992, %v993, %v994
      %v996 = vrot.slane %v348, 1
      %v997 = vsel %vm992, %v994, %v996
      %v998 = vrot.slane %v349, 1
      %v999 = vsel %vm992, %v996, %v998
      %v1000 = vrot.slane %v350, 1
      %v1001 = vsel %vm992, %v998, %v1000
      %v1002 = vrot.slane %v351, 1
      %v1003 = vsel %vm992, %v1000, %v1002
      %v1004 = vrot.slane %v352, 1
      %v1005 = vsel %vm992, %v1002, %v1004
      %v1006 = vrot.slane %v353, 1
      %v1007 = vsel %vm992, %v1004, %v1006
      %v1008 = vrot.slane %v354, 1
      %v1009 = vsel %vm992, %v1006, %v1008
      %v1010 = vrot.slane %v355, 1
      %v1011 = vsel %vm992, %v1008, %v1010
      %v1012 = vrot.slane %v356, 1
      %v1013 = vsel %vm992, %v1010, %v1012
      %v1014 = vrot.slane %v357, 1
      %v1015 = vsel %vm992, %v1012, %v1014
      %v1016 = vrot.slane %v358, 1
      %v1017 = vsel %vm992, %v1014, %v1016
      %v1018 = vrot.slane %v359, 1
      %v1019 = vsel %vm992, %v1016, %v1018
      %v1020 = vrot.slane %v360, 1
      %v1021 = vsel %vm992, %v1018, %v1020
      %v1022 = vrot.slane %v361, 1
      %v1023 = vsel %vm992, %v1020, %v1022
      %v1024 = vrot.slane %v362, 1
      %v1025 = vsel %vm992, %v1022, %v1024
      %v1026 = vrot.slane %v363, 1
      %v1027 = vsel %vm992, %v1024, %v1026
      %v1028 = vrot.slane %v364, 1
      %v1029 = vsel %vm992, %v1026, %v1028
      %v1034 = vunpack.c.l.b16 %v985
      %v1035 = vunpack.c.l.b16 %v986
      %v1036 = vunpack.c.l.b16 %v987
      %v1037 = vunpack.c.l.b16 %v988
      %v1038 = vpack.c.b16 %v1035, %v1034
      %v1039 = vpack.c.b16 %v1037, %v1036
      %v1043 = vsel %vm526, %v995, 0
      %v1046 = vsel %vm526, %v997, 0
      %v1049 = vsel %vm526, %v999, 0
      %v1052 = vsel %vm526, %v1001, 0
      %v1055 = vsel %vm526, %v1003, 0
      %v1058 = vsel %vm526, %v1005, 0
      %v1061 = vsel %vm526, %v1007, 0
      %v1064 = vsel %vm526, %v1009, 0
      %v1067 = vsel %vm526, %v1011, 0
      %v1070 = vsel %vm526, %v1013, 0
      %v1073 = vsel %vm526, %v1015, 0
      %v1076 = vsel %vm526, %v1017, 0
      %v1079 = vsel %vm526, %v1019, 0
      %v1082 = vsel %vm526, %v1021, 0
      %v1085 = vsel %vm526, %v1023, 0
      %v1088 = vsel %vm526, %v1025, 0
      %v1091 = vsel %vm526, %v1027, 0
      %v1094 = vsel %vm526, %v1029, 0
      %1096 = vmatprep.subr.bf16.mxu0 0
      %1097 = vmatpush1.bf16.msra.mxu0 0
      %1098 = vmatprep.subr.bf16.mxu0 0
      %1099 = vmatpush1.bf16.msra.mxu0 0
      %1100 = vmatprep.subr.bf16.mxu0 0
      %1101 = vmatpush1.bf16.msra.mxu0 0
      %1102 = vmatprep.subr.bf16.mxu0 0
      %1103 = vmatpush1.bf16.msra.mxu0 0
      %1104 = vmatprep.subr.bf16.mxu0 0
      %1105 = vmatpush1.bf16.msra.mxu0 0
      %1106 = vmatprep.subr.bf16.mxu0 0
      %1107 = vmatpush1.bf16.msra.mxu0 0
      %1108 = vmatprep.subr.bf16.mxu0 0
      %1109 = vmatpush1.bf16.msra.mxu0 %v1039
      %1110 = vmatprep.subr.bf16.mxu0 0
      %1111 = vmatpush1.bf16.msra.mxu0 %v1038
      %1112 = vmatprep.subr.bf16.mxu0 0
      %1113 = vmatpush2.bf16.msra.mxu0 0
      %1114 = vmatprep.subr.bf16.mxu0 0
      %1115 = vmatpush2.bf16.msra.mxu0 0
      %1116 = vmatprep.subr.bf16.mxu0 0
      %1117 = vmatpush2.bf16.msra.mxu0 0
      %1118 = vmatprep.subr.bf16.mxu0 0
      %1119 = vmatpush2.bf16.msra.mxu0 0
      %1120 = vmatprep.subr.bf16.mxu0 0
      %1121 = vmatpush2.bf16.msra.mxu0 0
      %1122 = vmatprep.subr.bf16.mxu0 0
      %1123 = vmatpush2.bf16.msra.mxu0 0
      %1124 = vmatprep.subr.bf16.mxu0 0
      %1125 = vmatpush2.bf16.msra.mxu0 0
      %1126 = vmatprep.subr.bf16.mxu0 0
      %1127 = vmatpush2.bf16.msra.mxu0 0
      %1128 = vmatprep.mubr.bf16.mxu0 0
      %1129 = vmatmul.mubr.bf16.gmra.mxu0 %v1043
      %v1130 = vpop.f32.mrf.mxu0
      %v1131 = vadd.f32 0.0, %v1130
      %v1132 = vpop.f32.mrf.mxu0
      %v1133 = vpop.f32.mrf.mxu0
      %v1134 = vadd.f32 0.0, %v1133
      %v1135 = vpop.f32.mrf.mxu0
      %1136 = vmatprep.mubr.bf16.mxu0 0
      %1137 = vmatmul.mubr.bf16.gmra.mxu0 %v1046
      %v1138 = vpop.f32.mrf.mxu0
      %v1139 = vadd.f32 0.0, %v1138
      %v1140 = vpop.f32.mrf.mxu0
      %v1141 = vpop.f32.mrf.mxu0
      %v1142 = vadd.f32 0.0, %v1141
      %v1143 = vpop.f32.mrf.mxu0
      %1144 = vmatprep.mubr.bf16.mxu0 0
      %1145 = vmatmul.mubr.bf16.gmra.mxu0 %v1049
      %v1146 = vpop.f32.mrf.mxu0
      %v1147 = vadd.f32 0.0, %v1146
      %v1148 = vpop.f32.mrf.mxu0
      %v1149 = vpop.f32.mrf.mxu0
      %v1150 = vadd.f32 0.0, %v1149
      %v1151 = vpop.f32.mrf.mxu0
      %1152 = vmatprep.mubr.bf16.mxu0 0
      %1153 = vmatmul.mubr.bf16.gmra.mxu0 %v1052
      %v1154 = vpop.f32.mrf.mxu0
      %v1155 = vadd.f32 0.0, %v1154
      %v1156 = vpop.f32.mrf.mxu0
      %v1157 = vpop.f32.mrf.mxu0
      %v1158 = vadd.f32 0.0, %v1157
      %v1159 = vpop.f32.mrf.mxu0
      %1160 = vmatprep.mubr.bf16.mxu0 0
      %1161 = vmatmul.mubr.bf16.gmra.mxu0 %v1055
      %v1162 = vpop.f32.mrf.mxu0
      %v1163 = vadd.f32 0.0, %v1162
      %v1164 = vpop.f32.mrf.mxu0
      %v1165 = vpop.f32.mrf.mxu0
      %v1166 = vadd.f32 0.0, %v1165
      %v1167 = vpop.f32.mrf.mxu0
      %1168 = vmatprep.mubr.bf16.mxu0 0
      %1169 = vmatmul.mubr.bf16.gmra.mxu0 %v1058
      %v1170 = vpop.f32.mrf.mxu0
      %v1171 = vadd.f32 0.0, %v1170
      %v1172 = vpop.f32.mrf.mxu0
      %v1173 = vpop.f32.mrf.mxu0
      %v1174 = vadd.f32 0.0, %v1173
      %v1175 = vpop.f32.mrf.mxu0
      %1176 = vmatprep.mubr.bf16.mxu0 0
      %1177 = vmatmul.mubr.bf16.gmra.mxu0 %v1061
      %v1178 = vpop.f32.mrf.mxu0
      %v1179 = vadd.f32 0.0, %v1178
      %v1180 = vpop.f32.mrf.mxu0
      %v1181 = vpop.f32.mrf.mxu0
      %v1182 = vadd.f32 0.0, %v1181
      %v1183 = vpop.f32.mrf.mxu0
      %1184 = vmatprep.mubr.bf16.mxu0 0
      %1185 = vmatmul.mubr.bf16.gmra.mxu0 %v1064
      %v1186 = vpop.f32.mrf.mxu0
      %v1187 = vadd.f32 0.0, %v1186
      %v1188 = vpop.f32.mrf.mxu0
      %v1189 = vpop.f32.mrf.mxu0
      %v1190 = vadd.f32 0.0, %v1189
      %v1191 = vpop.f32.mrf.mxu0
      %1192 = vmatprep.mubr.bf16.mxu0 0
      %1193 = vmatmul.mubr.bf16.gmra.mxu0 %v1067
      %v1194 = vpop.f32.mrf.mxu0
      %v1195 = vadd.f32 0.0, %v1194
      %v1196 = vpop.f32.mrf.mxu0
      %v1197 = vpop.f32.mrf.mxu0
      %v1198 = vadd.f32 0.0, %v1197
      %v1199 = vpop.f32.mrf.mxu0
      %1200 = vmatprep.mubr.bf16.mxu0 0
      %1201 = vmatmul.mubr.bf16.gmra.mxu0 %v1070
      %v1202 = vpop.f32.mrf.mxu0
      %v1203 = vadd.f32 0.0, %v1202
      %v1204 = vpop.f32.mrf.mxu0
      %v1205 = vpop.f32.mrf.mxu0
      %v1206 = vadd.f32 0.0, %v1205
      %v1207 = vpop.f32.mrf.mxu0
      %1208 = vmatprep.mubr.bf16.mxu0 0
      %1209 = vmatmul.mubr.bf16.gmra.mxu0 %v1073
      %v1210 = vpop.f32.mrf.mxu0
      %v1211 = vadd.f32 0.0, %v1210
      %v1212 = vpop.f32.mrf.mxu0
      %v1213 = vpop.f32.mrf.mxu0
      %v1214 = vadd.f32 0.0, %v1213
      %v1215 = vpop.f32.mrf.mxu0
      %1216 = vmatprep.mubr.bf16.mxu0 0
      %1217 = vmatmul.mubr.bf16.gmra.mxu0 %v1076
      %v1218 = vpop.f32.mrf.mxu0
      %v1219 = vadd.f32 0.0, %v1218
      %v1220 = vpop.f32.mrf.mxu0
      %v1221 = vpop.f32.mrf.mxu0
      %v1222 = vadd.f32 0.0, %v1221
      %v1223 = vpop.f32.mrf.mxu0
      %1224 = vmatprep.mubr.bf16.mxu0 0
      %1225 = vmatmul.mubr.bf16.gmra.mxu0 %v1079
      %v1226 = vpop.f32.mrf.mxu0
      %v1227 = vadd.f32 0.0, %v1226
      %v1228 = vpop.f32.mrf.mxu0
      %v1229 = vpop.f32.mrf.mxu0
      %v1230 = vadd.f32 0.0, %v1229
      %v1231 = vpop.f32.mrf.mxu0
      %1232 = vmatprep.mubr.bf16.mxu0 0
      %1233 = vmatmul.mubr.bf16.gmra.mxu0 %v1082
      %v1234 = vpop.f32.mrf.mxu0
      %v1235 = vadd.f32 0.0, %v1234
      %v1236 = vpop.f32.mrf.mxu0
      %v1237 = vpop.f32.mrf.mxu0
      %v1238 = vadd.f32 0.0, %v1237
      %v1239 = vpop.f32.mrf.mxu0
      %1240 = vmatprep.mubr.bf16.mxu0 0
      %1241 = vmatmul.mubr.bf16.gmra.mxu0 %v1085
      %v1242 = vpop.f32.mrf.mxu0
      %v1243 = vadd.f32 0.0, %v1242
      %v1244 = vpop.f32.mrf.mxu0
      %v1245 = vpop.f32.mrf.mxu0
      %v1246 = vadd.f32 0.0, %v1245
      %v1247 = vpop.f32.mrf.mxu0
      %1248 = vmatprep.mubr.bf16.mxu0 0
      %1249 = vmatmul.mubr.bf16.gmra.mxu0 %v1088
      %v1250 = vpop.f32.mrf.mxu0
      %v1251 = vadd.f32 0.0, %v1250
      %v1252 = vpop.f32.mrf.mxu0
      %v1253 = vpop.f32.mrf.mxu0
      %v1254 = vadd.f32 0.0, %v1253
      %v1255 = vpop.f32.mrf.mxu0
      %1256 = vmatprep.mubr.bf16.mxu0 0
      %1257 = vmatmul.mubr.bf16.gmra.mxu0 %v1091
      %v1258 = vpop.f32.mrf.mxu0
      %v1259 = vadd.f32 0.0, %v1258
      %v1260 = vpop.f32.mrf.mxu0
      %v1261 = vpop.f32.mrf.mxu0
      %v1262 = vadd.f32 0.0, %v1261
      %v1263 = vpop.f32.mrf.mxu0
      %1264 = vmatprep.mubr.bf16.mxu0 0
      %1265 = vmatmul.mubr.bf16.gmra.mxu0 %v1094
      %v1266 = vpop.f32.mrf.mxu0
      %v1267 = vadd.f32 0.0, %v1266
      %v1268 = vpop.f32.mrf.mxu0
      %v1269 = vpop.f32.mrf.mxu0
      %v1270 = vadd.f32 0.0, %v1269
      %v1271 = vpop.f32.mrf.mxu0
      %1272 = vdwg.mxu0
      %v1273 = vadd.f32 %v841, %v1131
      %v1274 = vadd.f32 %v844, %v1134
      %v1275 = vadd.f32 %v849, %v1139
      %v1276 = vadd.f32 %v852, %v1142
      %v1277 = vadd.f32 %v857, %v1147
      %v1278 = vadd.f32 %v860, %v1150
      %v1279 = vadd.f32 %v865, %v1155
      %v1280 = vadd.f32 %v868, %v1158
      %v1281 = vadd.f32 %v873, %v1163
      %v1282 = vadd.f32 %v876, %v1166
      %v1283 = vadd.f32 %v881, %v1171
      %v1284 = vadd.f32 %v884, %v1174
      %v1285 = vadd.f32 %v889, %v1179
      %v1286 = vadd.f32 %v892, %v1182
      %v1287 = vadd.f32 %v897, %v1187
      %v1288 = vadd.f32 %v900, %v1190
      %v1289 = vadd.f32 %v905, %v1195
      %v1290 = vadd.f32 %v908, %v1198
      %v1291 = vadd.f32 %v913, %v1203
      %v1292 = vadd.f32 %v916, %v1206
      %v1293 = vadd.f32 %v921, %v1211
      %v1294 = vadd.f32 %v924, %v1214
      %v1295 = vadd.f32 %v929, %v1219
      %v1296 = vadd.f32 %v932, %v1222
      %v1297 = vadd.f32 %v937, %v1227
      %v1298 = vadd.f32 %v940, %v1230
      %v1299 = vadd.f32 %v945, %v1235
      %v1300 = vadd.f32 %v948, %v1238
      %v1301 = vadd.f32 %v953, %v1243
      %v1302 = vadd.f32 %v956, %v1246
      %v1303 = vadd.f32 %v961, %v1251
      %v1304 = vadd.f32 %v964, %v1254
      %v1305 = vadd.f32 %v969, %v1259
      %v1306 = vadd.f32 %v972, %v1262
      %v1307 = vadd.f32 %v977, %v1267
      %v1308 = vadd.f32 %v980, %v1270
      %v1309 = vld [vmem:[%s219 + $0x8] sm:$0xe]
      %v1310 = vld [vmem:[%s219 + $0xc] sm:$0xf]
      %v1311 = vld [vmem:[%s219 + $0x10] sm:$0xf]
      %v1312 = vld [vmem:[%s219 + $0x14] sm:$0xf]
      %v1313 = vld [vmem:[%s219 + $0x18] sm:$0xf]
      %v1314 = vld [vmem:[%s219 + $0x1c] sm:$0xf]
      %v1315 = vld [vmem:[%s219 + $0x20] sm:$0xf]
      %v1316 = vld [vmem:[%s219 + $0x24] sm:$0xf]
      %v1317 = vld [vmem:[%s219 + $0x28] sm:$0xf]
      %v1318 = vld [vmem:[%s219 + $0x2c] sm:$0xf]
      %v1319 = vld [vmem:[%s219 + $0x30] sm:$0xf]
      %v1320 = vld [vmem:[%s219 + $0x34] sm:$0xf]
      %v1321 = vld [vmem:[%s219 + $0x38] sm:$0xf]
      %v1322 = vld [vmem:[%s219 + $0x3c] sm:$0xf]
      %v1323 = vld [vmem:[%s219 + $0x40] sm:$0xf]
      %v1324 = vld [vmem:[%s219 + $0x44] sm:$0xf]
      %v1325 = vld [vmem:[%s219 + $0x48] sm:$0xf]
      %v1326 = vld [vmem:[%s219 + $0x4c] sm:$0xf]
      %v1327 = vld [vmem:[%s219 + $0x50] sm:$0xf]
      %v1328 = vld [vmem:[%s219 + $0x54] sm:$0xf]
      %v1329 = vld [vmem:[%s219 + $0x58] sm:$0xf]
      %v1330 = vld [vmem:[%s219 + $0x5c] sm:$0xf]
      %v1331 = vld [vmem:[%s219 + $0x60] sm:$0xf]
      %v1332 = vld [vmem:[%s219 + $0x64] sm:$0xf]
      %v1333 = vld [vmem:[%s219 + $0x68] sm:$0xf]
      %v1334 = vld [vmem:[%s219 + $0x6c] sm:$0xf]
      %v1335 = vld [vmem:[%s219 + $0x70] sm:$0xf]
      %v1336 = vld [vmem:[%s219 + $0x74] sm:$0xf]
      %v1337 = vld [vmem:[%s219 + $0x78] sm:$0xf]
      %v1338 = vld [vmem:[%s219 + $0x7c] sm:$0xf]
      %v1339 = vld [vmem:[%s219 + $0x80] sm:$0xf]
      %v1340 = vld [vmem:[%s219 + $0x84] sm:$0xf]
      %v1341 = vld [vmem:[%s219 + $0x88] sm:$0xf]
      %v1342 = vld [vmem:[%s219 + $0x8c] sm:$0xf]
      %v1343 = vld [vmem:[%s219 + $0x90] sm:$0xf]
      %v1344 = vld [vmem:[%s219 + $0x94] sm:$0xf]
      %v1345 = vld [vmem:[%s219 + $0x98] sm:$0x1]
      %s1346 = scalar_lea.vmem %s1, 48
      %v1347 = vld [vmem:[%s1346] sm:$0xf]
      %v1348 = vld [vmem:[%s1346 + $0x4] sm:$0xf]
      %v1349 = vld [vmem:[%s1346 + $0x8] sm:$0xf]
      %v1350 = vld [vmem:[%s1346 + $0xc] sm:$0xf]
      %v1388 = vunpack.c.l.b16 %v1309
      %v1389 = vunpack.c.l.b16 %v1310
      %v1390 = vunpack.c.l.b16 %v1311
      %v1391 = vunpack.c.l.b16 %v1312
      %v1392 = vunpack.c.l.b16 %v1313
      %v1393 = vunpack.c.l.b16 %v1314
      %v1394 = vunpack.c.l.b16 %v1315
      %v1395 = vunpack.c.l.b16 %v1316
      %v1396 = vunpack.c.l.b16 %v1317
      %v1397 = vunpack.c.l.b16 %v1318
      %v1398 = vunpack.c.l.b16 %v1319
      %v1399 = vunpack.c.l.b16 %v1320
      %v1400 = vunpack.c.l.b16 %v1321
      %v1401 = vunpack.c.l.b16 %v1322
      %v1402 = vunpack.c.l.b16 %v1323
      %v1403 = vunpack.c.l.b16 %v1324
      %v1404 = vunpack.c.l.b16 %v1325
      %v1405 = vunpack.c.l.b16 %v1326
      %v1406 = vunpack.c.l.b16 %v1327
      %v1407 = vunpack.c.l.b16 %v1328
      %v1408 = vunpack.c.l.b16 %v1329
      %v1409 = vunpack.c.l.b16 %v1330
      %v1410 = vunpack.c.l.b16 %v1331
      %v1411 = vunpack.c.l.b16 %v1332
      %v1412 = vunpack.c.l.b16 %v1333
      %v1413 = vunpack.c.l.b16 %v1334
      %v1414 = vunpack.c.l.b16 %v1335
      %v1415 = vunpack.c.l.b16 %v1336
      %v1416 = vunpack.c.l.b16 %v1337
      %v1417 = vunpack.c.l.b16 %v1338
      %v1418 = vunpack.c.l.b16 %v1339
      %v1419 = vunpack.c.l.b16 %v1340
      %v1420 = vunpack.c.l.b16 %v1341
      %v1421 = vunpack.c.l.b16 %v1342
      %v1422 = vunpack.c.l.b16 %v1343
      %v1423 = vunpack.c.l.b16 %v1344
      %v1424 = vunpack.c.l.b16 %v1345
      %v1425 = vpack.c.b16 %v1389, %v1388
      %v1426 = vpack.c.b16 %v1391, %v1390
      %v1427 = vpack.c.b16 %v1393, %v1392
      %v1428 = vpack.c.b16 %v1395, %v1394
      %v1429 = vpack.c.b16 %v1397, %v1396
      %v1430 = vpack.c.b16 %v1399, %v1398
      %v1431 = vpack.c.b16 %v1401, %v1400
      %v1432 = vpack.c.b16 %v1403, %v1402
      %v1433 = vpack.c.b16 %v1405, %v1404
      %v1434 = vpack.c.b16 %v1407, %v1406
      %v1435 = vpack.c.b16 %v1409, %v1408
      %v1436 = vpack.c.b16 %v1411, %v1410
      %v1437 = vpack.c.b16 %v1413, %v1412
      %v1438 = vpack.c.b16 %v1415, %v1414
      %v1439 = vpack.c.b16 %v1417, %v1416
      %v1440 = vpack.c.b16 %v1419, %v1418
      %v1441 = vpack.c.b16 %v1421, %v1420
      %v1442 = vpack.c.b16 %v1423, %v1422
      %v1443 = vpack.c.b16 %v1424, %v1424
      %v1444 = vrot.slane %v1425, 1
      %v1445 = vrot.slane %v1426, 1
      %v1446 = vsel %vm992, %v1444, %v1445
      %v1447 = vrot.slane %v1427, 1
      %v1448 = vsel %vm992, %v1445, %v1447
      %v1449 = vrot.slane %v1428, 1
      %v1450 = vsel %vm992, %v1447, %v1449
      %v1451 = vrot.slane %v1429, 1
      %v1452 = vsel %vm992, %v1449, %v1451
      %v1453 = vrot.slane %v1430, 1
      %v1454 = vsel %vm992, %v1451, %v1453
      %v1455 = vrot.slane %v1431, 1
      %v1456 = vsel %vm992, %v1453, %v1455
      %v1457 = vrot.slane %v1432, 1
      %v1458 = vsel %vm992, %v1455, %v1457
      %v1459 = vrot.slane %v1433, 1
      %v1460 = vsel %vm992, %v1457, %v1459
      %v1461 = vrot.slane %v1434, 1
      %v1462 = vsel %vm992, %v1459, %v1461
      %v1463 = vrot.slane %v1435, 1
      %v1464 = vsel %vm992, %v1461, %v1463
      %v1465 = vrot.slane %v1436, 1
      %v1466 = vsel %vm992, %v1463, %v1465
      %v1467 = vrot.slane %v1437, 1
      %v1468 = vsel %vm992, %v1465, %v1467
      %v1469 = vrot.slane %v1438, 1
      %v1470 = vsel %vm992, %v1467, %v1469
      %v1471 = vrot.slane %v1439, 1
      %v1472 = vsel %vm992, %v1469, %v1471
      %v1473 = vrot.slane %v1440, 1
      %v1474 = vsel %vm992, %v1471, %v1473
      %v1475 = vrot.slane %v1441, 1
      %v1476 = vsel %vm992, %v1473, %v1475
      %v1477 = vrot.slane %v1442, 1
      %v1478 = vsel %vm992, %v1475, %v1477
      %v1479 = vrot.slane %v1443, 1
      %v1480 = vsel %vm992, %v1477, %v1479
      %v1485 = vunpack.c.l.b16 %v1347
      %v1486 = vunpack.c.l.b16 %v1348
      %v1487 = vunpack.c.l.b16 %v1349
      %v1488 = vunpack.c.l.b16 %v1350
      %v1489 = vpack.c.b16 %v1486, %v1485
      %v1490 = vpack.c.b16 %v1488, %v1487
      %v1494 = vsel %vm526, %v1446, 0
      %v1497 = vsel %vm526, %v1448, 0
      %v1500 = vsel %vm526, %v1450, 0
      %v1503 = vsel %vm526, %v1452, 0
      %v1506 = vsel %vm526, %v1454, 0
      %v1509 = vsel %vm526, %v1456, 0
      %v1512 = vsel %vm526, %v1458, 0
      %v1515 = vsel %vm526, %v1460, 0
      %v1518 = vsel %vm526, %v1462, 0
      %v1521 = vsel %vm526, %v1464, 0
      %v1524 = vsel %vm526, %v1466, 0
      %v1527 = vsel %vm526, %v1468, 0
      %v1530 = vsel %vm526, %v1470, 0
      %v1533 = vsel %vm526, %v1472, 0
      %v1536 = vsel %vm526, %v1474, 0
      %v1539 = vsel %vm526, %v1476, 0
      %v1542 = vsel %vm526, %v1478, 0
      %v1545 = vsel %vm526, %v1480, 0
      %1547 = vmatprep.subr.bf16.mxu0 0
      %1548 = vmatpush1.bf16.msra.mxu0 0
      %1549 = vmatprep.subr.bf16.mxu0 0
      %1550 = vmatpush1.bf16.msra.mxu0 0
      %1551 = vmatprep.subr.bf16.mxu0 0
      %1552 = vmatpush1.bf16.msra.mxu0 0
      %1553 = vmatprep.subr.bf16.mxu0 0
      %1554 = vmatpush1.bf16.msra.mxu0 0
      %1555 = vmatprep.subr.bf16.mxu0 0
      %1556 = vmatpush1.bf16.msra.mxu0 0
      %1557 = vmatprep.subr.bf16.mxu0 0
      %1558 = vmatpush1.bf16.msra.mxu0 0
      %1559 = vmatprep.subr.bf16.mxu0 0
      %1560 = vmatpush1.bf16.msra.mxu0 %v1490
      %1561 = vmatprep.subr.bf16.mxu0 0
      %1562 = vmatpush1.bf16.msra.mxu0 %v1489
      %1563 = vmatprep.subr.bf16.mxu0 0
      %1564 = vmatpush2.bf16.msra.mxu0 0
      %1565 = vmatprep.subr.bf16.mxu0 0
      %1566 = vmatpush2.bf16.msra.mxu0 0
      %1567 = vmatprep.subr.bf16.mxu0 0
      %1568 = vmatpush2.bf16.msra.mxu0 0
      %1569 = vmatprep.subr.bf16.mxu0 0
      %1570 = vmatpush2.bf16.msra.mxu0 0
      %1571 = vmatprep.subr.bf16.mxu0 0
      %1572 = vmatpush2.bf16.msra.mxu0 0
      %1573 = vmatprep.subr.bf16.mxu0 0
      %1574 = vmatpush2.bf16.msra.mxu0 0
      %1575 = vmatprep.subr.bf16.mxu0 0
      %1576 = vmatpush2.bf16.msra.mxu0 0
      %1577 = vmatprep.subr.bf16.mxu0 0
      %1578 = vmatpush2.bf16.msra.mxu0 0
      %1579 = vmatprep.mubr.bf16.mxu0 0
      %1580 = vmatmul.mubr.bf16.gmra.mxu0 %v1494
      %v1581 = vpop.f32.mrf.mxu0
      %v1582 = vadd.f32 0.0, %v1581
      %v1583 = vpop.f32.mrf.mxu0
      %v1584 = vpop.f32.mrf.mxu0
      %v1585 = vadd.f32 0.0, %v1584
      %v1586 = vpop.f32.mrf.mxu0
      %1587 = vmatprep.mubr.bf16.mxu0 0
      %1588 = vmatmul.mubr.bf16.gmra.mxu0 %v1497
      %v1589 = vpop.f32.mrf.mxu0
      %v1590 = vadd.f32 0.0, %v1589
      %v1591 = vpop.f32.mrf.mxu0
      %v1592 = vpop.f32.mrf.mxu0
      %v1593 = vadd.f32 0.0, %v1592
      %v1594 = vpop.f32.mrf.mxu0
      %1595 = vmatprep.mubr.bf16.mxu0 0
      %1596 = vmatmul.mubr.bf16.gmra.mxu0 %v1500
      %v1597 = vpop.f32.mrf.mxu0
      %v1598 = vadd.f32 0.0, %v1597
      %v1599 = vpop.f32.mrf.mxu0
      %v1600 = vpop.f32.mrf.mxu0
      %v1601 = vadd.f32 0.0, %v1600
      %v1602 = vpop.f32.mrf.mxu0
      %1603 = vmatprep.mubr.bf16.mxu0 0
      %1604 = vmatmul.mubr.bf16.gmra.mxu0 %v1503
      %v1605 = vpop.f32.mrf.mxu0
      %v1606 = vadd.f32 0.0, %v1605
      %v1607 = vpop.f32.mrf.mxu0
      %v1608 = vpop.f32.mrf.mxu0
      %v1609 = vadd.f32 0.0, %v1608
      %v1610 = vpop.f32.mrf.mxu0
      %1611 = vmatprep.mubr.bf16.mxu0 0
      %1612 = vmatmul.mubr.bf16.gmra.mxu0 %v1506
      %v1613 = vpop.f32.mrf.mxu0
      %v1614 = vadd.f32 0.0, %v1613
      %v1615 = vpop.f32.mrf.mxu0
      %v1616 = vpop.f32.mrf.mxu0
      %v1617 = vadd.f32 0.0, %v1616
      %v1618 = vpop.f32.mrf.mxu0
      %1619 = vmatprep.mubr.bf16.mxu0 0
      %1620 = vmatmul.mubr.bf16.gmra.mxu0 %v1509
      %v1621 = vpop.f32.mrf.mxu0
      %v1622 = vadd.f32 0.0, %v1621
      %v1623 = vpop.f32.mrf.mxu0
      %v1624 = vpop.f32.mrf.mxu0
      %v1625 = vadd.f32 0.0, %v1624
      %v1626 = vpop.f32.mrf.mxu0
      %1627 = vmatprep.mubr.bf16.mxu0 0
      %1628 = vmatmul.mubr.bf16.gmra.mxu0 %v1512
      %v1629 = vpop.f32.mrf.mxu0
      %v1630 = vadd.f32 0.0, %v1629
      %v1631 = vpop.f32.mrf.mxu0
      %v1632 = vpop.f32.mrf.mxu0
      %v1633 = vadd.f32 0.0, %v1632
      %v1634 = vpop.f32.mrf.mxu0
      %1635 = vmatprep.mubr.bf16.mxu0 0
      %1636 = vmatmul.mubr.bf16.gmra.mxu0 %v1515
      %v1637 = vpop.f32.mrf.mxu0
      %v1638 = vadd.f32 0.0, %v1637
      %v1639 = vpop.f32.mrf.mxu0
      %v1640 = vpop.f32.mrf.mxu0
      %v1641 = vadd.f32 0.0, %v1640
      %v1642 = vpop.f32.mrf.mxu0
      %1643 = vmatprep.mubr.bf16.mxu0 0
      %1644 = vmatmul.mubr.bf16.gmra.mxu0 %v1518
      %v1645 = vpop.f32.mrf.mxu0
      %v1646 = vadd.f32 0.0, %v1645
      %v1647 = vpop.f32.mrf.mxu0
      %v1648 = vpop.f32.mrf.mxu0
      %v1649 = vadd.f32 0.0, %v1648
      %v1650 = vpop.f32.mrf.mxu0
      %1651 = vmatprep.mubr.bf16.mxu0 0
      %1652 = vmatmul.mubr.bf16.gmra.mxu0 %v1521
      %v1653 = vpop.f32.mrf.mxu0
      %v1654 = vadd.f32 0.0, %v1653
      %v1655 = vpop.f32.mrf.mxu0
      %v1656 = vpop.f32.mrf.mxu0
      %v1657 = vadd.f32 0.0, %v1656
      %v1658 = vpop.f32.mrf.mxu0
      %1659 = vmatprep.mubr.bf16.mxu0 0
      %1660 = vmatmul.mubr.bf16.gmra.mxu0 %v1524
      %v1661 = vpop.f32.mrf.mxu0
      %v1662 = vadd.f32 0.0, %v1661
      %v1663 = vpop.f32.mrf.mxu0
      %v1664 = vpop.f32.mrf.mxu0
      %v1665 = vadd.f32 0.0, %v1664
      %v1666 = vpop.f32.mrf.mxu0
      %1667 = vmatprep.mubr.bf16.mxu0 0
      %1668 = vmatmul.mubr.bf16.gmra.mxu0 %v1527
      %v1669 = vpop.f32.mrf.mxu0
      %v1670 = vadd.f32 0.0, %v1669
      %v1671 = vpop.f32.mrf.mxu0
      %v1672 = vpop.f32.mrf.mxu0
      %v1673 = vadd.f32 0.0, %v1672
      %v1674 = vpop.f32.mrf.mxu0
      %1675 = vmatprep.mubr.bf16.mxu0 0
      %1676 = vmatmul.mubr.bf16.gmra.mxu0 %v1530
      %v1677 = vpop.f32.mrf.mxu0
      %v1678 = vadd.f32 0.0, %v1677
      %v1679 = vpop.f32.mrf.mxu0
      %v1680 = vpop.f32.mrf.mxu0
      %v1681 = vadd.f32 0.0, %v1680
      %v1682 = vpop.f32.mrf.mxu0
      %1683 = vmatprep.mubr.bf16.mxu0 0
      %1684 = vmatmul.mubr.bf16.gmra.mxu0 %v1533
      %v1685 = vpop.f32.mrf.mxu0
      %v1686 = vadd.f32 0.0, %v1685
      %v1687 = vpop.f32.mrf.mxu0
      %v1688 = vpop.f32.mrf.mxu0
      %v1689 = vadd.f32 0.0, %v1688
      %v1690 = vpop.f32.mrf.mxu0
      %1691 = vmatprep.mubr.bf16.mxu0 0
      %1692 = vmatmul.mubr.bf16.gmra.mxu0 %v1536
      %v1693 = vpop.f32.mrf.mxu0
      %v1694 = vadd.f32 0.0, %v1693
      %v1695 = vpop.f32.mrf.mxu0
      %v1696 = vpop.f32.mrf.mxu0
      %v1697 = vadd.f32 0.0, %v1696
      %v1698 = vpop.f32.mrf.mxu0
      %1699 = vmatprep.mubr.bf16.mxu0 0
      %1700 = vmatmul.mubr.bf16.gmra.mxu0 %v1539
      %v1701 = vpop.f32.mrf.mxu0
      %v1702 = vadd.f32 0.0, %v1701
      %v1703 = vpop.f32.mrf.mxu0
      %v1704 = vpop.f32.mrf.mxu0
      %v1705 = vadd.f32 0.0, %v1704
      %v1706 = vpop.f32.mrf.mxu0
      %1707 = vmatprep.mubr.bf16.mxu0 0
      %1708 = vmatmul.mubr.bf16.gmra.mxu0 %v1542
      %v1709 = vpop.f32.mrf.mxu0
      %v1710 = vadd.f32 0.0, %v1709
      %v1711 = vpop.f32.mrf.mxu0
      %v1712 = vpop.f32.mrf.mxu0
      %v1713 = vadd.f32 0.0, %v1712
      %v1714 = vpop.f32.mrf.mxu0
      %1715 = vmatprep.mubr.bf16.mxu0 0
      %1716 = vmatmul.mubr.bf16.gmra.mxu0 %v1545
      %v1717 = vpop.f32.mrf.mxu0
      %v1718 = vadd.f32 0.0, %v1717
      %v1719 = vpop.f32.mrf.mxu0
      %v1720 = vpop.f32.mrf.mxu0
      %v1721 = vadd.f32 0.0, %v1720
      %v1722 = vpop.f32.mrf.mxu0
      %1723 = vdwg.mxu0
      %v1724 = vadd.f32 %v1273, %v1582
      %v1725 = vadd.f32 %v1274, %v1585
      %v1726 = vadd.f32 %v1275, %v1590
      %v1727 = vadd.f32 %v1276, %v1593
      %v1728 = vadd.f32 %v1277, %v1598
      %v1729 = vadd.f32 %v1278, %v1601
      %v1730 = vadd.f32 %v1279, %v1606
      %v1731 = vadd.f32 %v1280, %v1609
      %v1732 = vadd.f32 %v1281, %v1614
      %v1733 = vadd.f32 %v1282, %v1617
      %v1734 = vadd.f32 %v1283, %v1622
      %v1735 = vadd.f32 %v1284, %v1625
      %v1736 = vadd.f32 %v1285, %v1630
      %v1737 = vadd.f32 %v1286, %v1633
      %v1738 = vadd.f32 %v1287, %v1638
      %v1739 = vadd.f32 %v1288, %v1641
      %v1740 = vadd.f32 %v1289, %v1646
      %v1741 = vadd.f32 %v1290, %v1649
      %v1742 = vadd.f32 %v1291, %v1654
      %v1743 = vadd.f32 %v1292, %v1657
      %v1744 = vadd.f32 %v1293, %v1662
      %v1745 = vadd.f32 %v1294, %v1665
      %v1746 = vadd.f32 %v1295, %v1670
      %v1747 = vadd.f32 %v1296, %v1673
      %v1748 = vadd.f32 %v1297, %v1678
      %v1749 = vadd.f32 %v1298, %v1681
      %v1750 = vadd.f32 %v1299, %v1686
      %v1751 = vadd.f32 %v1300, %v1689
      %v1752 = vadd.f32 %v1301, %v1694
      %v1753 = vadd.f32 %v1302, %v1697
      %v1754 = vadd.f32 %v1303, %v1702
      %v1755 = vadd.f32 %v1304, %v1705
      %v1756 = vadd.f32 %v1305, %v1710
      %v1757 = vadd.f32 %v1306, %v1713
      %v1758 = vadd.f32 %v1307, %v1718
      %v1759 = vadd.f32 %v1308, %v1721
      %v1760 = vld [vmem:[%s219 + $0x98] sm:$0x3]
      %s1761 = scalar_lea.vmem %s1, 64
      %v1762 = vld [vmem:[%s1761] sm:$0xf]
      %v1763 = vld [vmem:[%s1761 + $0x4] sm:$0xf]
      %v1764 = vld [vmem:[%s1761 + $0x8] sm:$0xf]
      %v1765 = vld [vmem:[%s1761 + $0xc] sm:$0xf]
      %v1767 = vunpack.c.l.b16 %v1760
      %v1768 = vpack.c.b16 %v1767, %v1767
      %vm1769 = vsmask.f32 6400
      %v1771 = vshrl.u32 %v1425, 16
      %v1773 = vrot.slane %v1771, 1
      %v1774 = vshll.u32 %v1425, 16
      %v1776 = vrot.slane %v1774, 2
      %v1777 = vor.u32 %v1773, %v1776
      %v1779 = vshrl.u32 %v1426, 16
      %v1781 = vrot.slane %v1779, 1
      %v1782 = vshll.u32 %v1426, 16
      %v1784 = vrot.slane %v1782, 2
      %v1785 = vor.u32 %v1781, %v1784
      %v1786 = vsel %vm1769, %v1777, %v1785
      %v1788 = vshrl.u32 %v1427, 16
      %v1790 = vrot.slane %v1788, 1
      %v1791 = vshll.u32 %v1427, 16
      %v1793 = vrot.slane %v1791, 2
      %v1794 = vor.u32 %v1790, %v1793
      %v1795 = vsel %vm1769, %v1785, %v1794
      %v1797 = vshrl.u32 %v1428, 16
      %v1799 = vrot.slane %v1797, 1
      %v1800 = vshll.u32 %v1428, 16
      %v1802 = vrot.slane %v1800, 2
      %v1803 = vor.u32 %v1799, %v1802
      %v1804 = vsel %vm1769, %v1794, %v1803
      %v1806 = vshrl.u32 %v1429, 16
      %v1808 = vrot.slane %v1806, 1
      %v1809 = vshll.u32 %v1429, 16
      %v1811 = vrot.slane %v1809, 2
      %v1812 = vor.u32 %v1808, %v1811
      %v1813 = vsel %vm1769, %v1803, %v1812
      %v1815 = vshrl.u32 %v1430, 16
      %v1817 = vrot.slane %v1815, 1
      %v1818 = vshll.u32 %v1430, 16
      %v1820 = vrot.slane %v1818, 2
      %v1821 = vor.u32 %v1817, %v1820
      %v1822 = vsel %vm1769, %v1812, %v1821
      %v1824 = vshrl.u32 %v1431, 16
      %v1826 = vrot.slane %v1824, 1
      %v1827 = vshll.u32 %v1431, 16
      %v1829 = vrot.slane %v1827, 2
      %v1830 = vor.u32 %v1826, %v1829
      %v1831 = vsel %vm1769, %v1821, %v1830
      %v1833 = vshrl.u32 %v1432, 16
      %v1835 = vrot.slane %v1833, 1
      %v1836 = vshll.u32 %v1432, 16
      %v1838 = vrot.slane %v1836, 2
      %v1839 = vor.u32 %v1835, %v1838
      %v1840 = vsel %vm1769, %v1830, %v1839
      %v1842 = vshrl.u32 %v1433, 16
      %v1844 = vrot.slane %v1842, 1
      %v1845 = vshll.u32 %v1433, 16
      %v1847 = vrot.slane %v1845, 2
      %v1848 = vor.u32 %v1844, %v1847
      %v1849 = vsel %vm1769, %v1839, %v1848
      %v1851 = vshrl.u32 %v1434, 16
      %v1853 = vrot.slane %v1851, 1
      %v1854 = vshll.u32 %v1434, 16
      %v1856 = vrot.slane %v1854, 2
      %v1857 = vor.u32 %v1853, %v1856
      %v1858 = vsel %vm1769, %v1848, %v1857
      %v1860 = vshrl.u32 %v1435, 16
      %v1862 = vrot.slane %v1860, 1
      %v1863 = vshll.u32 %v1435, 16
      %v1865 = vrot.slane %v1863, 2
      %v1866 = vor.u32 %v1862, %v1865
      %v1867 = vsel %vm1769, %v1857, %v1866
      %v1869 = vshrl.u32 %v1436, 16
      %v1871 = vrot.slane %v1869, 1
      %v1872 = vshll.u32 %v1436, 16
      %v1874 = vrot.slane %v1872, 2
      %v1875 = vor.u32 %v1871, %v1874
      %v1876 = vsel %vm1769, %v1866, %v1875
      %v1878 = vshrl.u32 %v1437, 16
      %v1880 = vrot.slane %v1878, 1
      %v1881 = vshll.u32 %v1437, 16
      %v1883 = vrot.slane %v1881, 2
      %v1884 = vor.u32 %v1880, %v1883
      %v1885 = vsel %vm1769, %v1875, %v1884
      %v1887 = vshrl.u32 %v1438, 16
      %v1889 = vrot.slane %v1887, 1
      %v1890 = vshll.u32 %v1438, 16
      %v1892 = vrot.slane %v1890, 2
      %v1893 = vor.u32 %v1889, %v1892
      %v1894 = vsel %vm1769, %v1884, %v1893
      %v1896 = vshrl.u32 %v1439, 16
      %v1898 = vrot.slane %v1896, 1
      %v1899 = vshll.u32 %v1439, 16
      %v1901 = vrot.slane %v1899, 2
      %v1902 = vor.u32 %v1898, %v1901
      %v1903 = vsel %vm1769, %v1893, %v1902
      %v1905 = vshrl.u32 %v1440, 16
      %v1907 = vrot.slane %v1905, 1
      %v1908 = vshll.u32 %v1440, 16
      %v1910 = vrot.slane %v1908, 2
      %v1911 = vor.u32 %v1907, %v1910
      %v1912 = vsel %vm1769, %v1902, %v1911
      %v1914 = vshrl.u32 %v1441, 16
      %v1916 = vrot.slane %v1914, 1
      %v1917 = vshll.u32 %v1441, 16
      %v1919 = vrot.slane %v1917, 2
      %v1920 = vor.u32 %v1916, %v1919
      %v1921 = vsel %vm1769, %v1911, %v1920
      %v1923 = vshrl.u32 %v1442, 16
      %v1925 = vrot.slane %v1923, 1
      %v1926 = vshll.u32 %v1442, 16
      %v1928 = vrot.slane %v1926, 2
      %v1929 = vor.u32 %v1925, %v1928
      %v1930 = vsel %vm1769, %v1920, %v1929
      %v1932 = vshrl.u32 %v1768, 16
      %v1934 = vrot.slane %v1932, 1
      %v1935 = vshll.u32 %v1768, 16
      %v1937 = vrot.slane %v1935, 2
      %v1938 = vor.u32 %v1934, %v1937
      %v1939 = vsel %vm1769, %v1929, %v1938
      %v1944 = vunpack.c.l.b16 %v1762
      %v1945 = vunpack.c.l.b16 %v1763
      %v1946 = vunpack.c.l.b16 %v1764
      %v1947 = vunpack.c.l.b16 %v1765
      %v1948 = vpack.c.b16 %v1945, %v1944
      %v1949 = vpack.c.b16 %v1947, %v1946
      %v1953 = vsel %vm526, %v1786, 0
      %v1956 = vsel %vm526, %v1795, 0
      %v1959 = vsel %vm526, %v1804, 0
      %v1962 = vsel %vm526, %v1813, 0
      %v1965 = vsel %vm526, %v1822, 0
      %v1968 = vsel %vm526, %v1831, 0
      %v1971 = vsel %vm526, %v1840, 0
      %v1974 = vsel %vm526, %v1849, 0
      %v1977 = vsel %vm526, %v1858, 0
      %v1980 = vsel %vm526, %v1867, 0
      %v1983 = vsel %vm526, %v1876, 0
      %v1986 = vsel %vm526, %v1885, 0
      %v1989 = vsel %vm526, %v1894, 0
      %v1992 = vsel %vm526, %v1903, 0
      %v1995 = vsel %vm526, %v1912, 0
      %v1998 = vsel %vm526, %v1921, 0
      %v2001 = vsel %vm526, %v1930, 0
      %v2004 = vsel %vm526, %v1939, 0
      %2006 = vmatprep.subr.bf16.mxu0 0
      %2007 = vmatpush1.bf16.msra.mxu0 0
      %2008 = vmatprep.subr.bf16.mxu0 0
      %2009 = vmatpush1.bf16.msra.mxu0 0
      %2010 = vmatprep.subr.bf16.mxu0 0
      %2011 = vmatpush1.bf16.msra.mxu0 0
      %2012 = vmatprep.subr.bf16.mxu0 0
      %2013 = vmatpush1.bf16.msra.mxu0 0
      %2014 = vmatprep.subr.bf16.mxu0 0
      %2015 = vmatpush1.bf16.msra.mxu0 0
      %2016 = vmatprep.subr.bf16.mxu0 0
      %2017 = vmatpush1.bf16.msra.mxu0 0
      %2018 = vmatprep.subr.bf16.mxu0 0
      %2019 = vmatpush1.bf16.msra.mxu0 %v1949
      %2020 = vmatprep.subr.bf16.mxu0 0
      %2021 = vmatpush1.bf16.msra.mxu0 %v1948
      %2022 = vmatprep.subr.bf16.mxu0 0
      %2023 = vmatpush2.bf16.msra.mxu0 0
      %2024 = vmatprep.subr.bf16.mxu0 0
      %2025 = vmatpush2.bf16.msra.mxu0 0
      %2026 = vmatprep.subr.bf16.mxu0 0
      %2027 = vmatpush2.bf16.msra.mxu0 0
      %2028 = vmatprep.subr.bf16.mxu0 0
      %2029 = vmatpush2.bf16.msra.mxu0 0
      %2030 = vmatprep.subr.bf16.mxu0 0
      %2031 = vmatpush2.bf16.msra.mxu0 0
      %2032 = vmatprep.subr.bf16.mxu0 0
      %2033 = vmatpush2.bf16.msra.mxu0 0
      %2034 = vmatprep.subr.bf16.mxu0 0
      %2035 = vmatpush2.bf16.msra.mxu0 0
      %2036 = vmatprep.subr.bf16.mxu0 0
      %2037 = vmatpush2.bf16.msra.mxu0 0
      %2038 = vmatprep.mubr.bf16.mxu0 0
      %2039 = vmatmul.mubr.bf16.gmra.mxu0 %v1953
      %v2040 = vpop.f32.mrf.mxu0
      %v2041 = vadd.f32 0.0, %v2040
      %v2042 = vpop.f32.mrf.mxu0
      %v2043 = vpop.f32.mrf.mxu0
      %v2044 = vadd.f32 0.0, %v2043
      %v2045 = vpop.f32.mrf.mxu0
      %2046 = vmatprep.mubr.bf16.mxu0 0
      %2047 = vmatmul.mubr.bf16.gmra.mxu0 %v1956
      %v2048 = vpop.f32.mrf.mxu0
      %v2049 = vadd.f32 0.0, %v2048
      %v2050 = vpop.f32.mrf.mxu0
      %v2051 = vpop.f32.mrf.mxu0
      %v2052 = vadd.f32 0.0, %v2051
      %v2053 = vpop.f32.mrf.mxu0
      %2054 = vmatprep.mubr.bf16.mxu0 0
      %2055 = vmatmul.mubr.bf16.gmra.mxu0 %v1959
      %v2056 = vpop.f32.mrf.mxu0
      %v2057 = vadd.f32 0.0, %v2056
      %v2058 = vpop.f32.mrf.mxu0
      %v2059 = vpop.f32.mrf.mxu0
      %v2060 = vadd.f32 0.0, %v2059
      %v2061 = vpop.f32.mrf.mxu0
      %2062 = vmatprep.mubr.bf16.mxu0 0
      %2063 = vmatmul.mubr.bf16.gmra.mxu0 %v1962
      %v2064 = vpop.f32.mrf.mxu0
      %v2065 = vadd.f32 0.0, %v2064
      %v2066 = vpop.f32.mrf.mxu0
      %v2067 = vpop.f32.mrf.mxu0
      %v2068 = vadd.f32 0.0, %v2067
      %v2069 = vpop.f32.mrf.mxu0
      %2070 = vmatprep.mubr.bf16.mxu0 0
      %2071 = vmatmul.mubr.bf16.gmra.mxu0 %v1965
      %v2072 = vpop.f32.mrf.mxu0
      %v2073 = vadd.f32 0.0, %v2072
      %v2074 = vpop.f32.mrf.mxu0
      %v2075 = vpop.f32.mrf.mxu0
      %v2076 = vadd.f32 0.0, %v2075
      %v2077 = vpop.f32.mrf.mxu0
      %2078 = vmatprep.mubr.bf16.mxu0 0
      %2079 = vmatmul.mubr.bf16.gmra.mxu0 %v1968
      %v2080 = vpop.f32.mrf.mxu0
      %v2081 = vadd.f32 0.0, %v2080
      %v2082 = vpop.f32.mrf.mxu0
      %v2083 = vpop.f32.mrf.mxu0
      %v2084 = vadd.f32 0.0, %v2083
      %v2085 = vpop.f32.mrf.mxu0
      %2086 = vmatprep.mubr.bf16.mxu0 0
      %2087 = vmatmul.mubr.bf16.gmra.mxu0 %v1971
      %v2088 = vpop.f32.mrf.mxu0
      %v2089 = vadd.f32 0.0, %v2088
      %v2090 = vpop.f32.mrf.mxu0
      %v2091 = vpop.f32.mrf.mxu0
      %v2092 = vadd.f32 0.0, %v2091
      %v2093 = vpop.f32.mrf.mxu0
      %2094 = vmatprep.mubr.bf16.mxu0 0
      %2095 = vmatmul.mubr.bf16.gmra.mxu0 %v1974
      %v2096 = vpop.f32.mrf.mxu0
      %v2097 = vadd.f32 0.0, %v2096
      %v2098 = vpop.f32.mrf.mxu0
      %v2099 = vpop.f32.mrf.mxu0
      %v2100 = vadd.f32 0.0, %v2099
      %v2101 = vpop.f32.mrf.mxu0
      %2102 = vmatprep.mubr.bf16.mxu0 0
      %2103 = vmatmul.mubr.bf16.gmra.mxu0 %v1977
      %v2104 = vpop.f32.mrf.mxu0
      %v2105 = vadd.f32 0.0, %v2104
      %v2106 = vpop.f32.mrf.mxu0
      %v2107 = vpop.f32.mrf.mxu0
      %v2108 = vadd.f32 0.0, %v2107
      %v2109 = vpop.f32.mrf.mxu0
      %2110 = vmatprep.mubr.bf16.mxu0 0
      %2111 = vmatmul.mubr.bf16.gmra.mxu0 %v1980
      %v2112 = vpop.f32.mrf.mxu0
      %v2113 = vadd.f32 0.0, %v2112
      %v2114 = vpop.f32.mrf.mxu0
      %v2115 = vpop.f32.mrf.mxu0
      %v2116 = vadd.f32 0.0, %v2115
      %v2117 = vpop.f32.mrf.mxu0
      %2118 = vmatprep.mubr.bf16.mxu0 0
      %2119 = vmatmul.mubr.bf16.gmra.mxu0 %v1983
      %v2120 = vpop.f32.mrf.mxu0
      %v2121 = vadd.f32 0.0, %v2120
      %v2122 = vpop.f32.mrf.mxu0
      %v2123 = vpop.f32.mrf.mxu0
      %v2124 = vadd.f32 0.0, %v2123
      %v2125 = vpop.f32.mrf.mxu0
      %2126 = vmatprep.mubr.bf16.mxu0 0
      %2127 = vmatmul.mubr.bf16.gmra.mxu0 %v1986
      %v2128 = vpop.f32.mrf.mxu0
      %v2129 = vadd.f32 0.0, %v2128
      %v2130 = vpop.f32.mrf.mxu0
      %v2131 = vpop.f32.mrf.mxu0
      %v2132 = vadd.f32 0.0, %v2131
      %v2133 = vpop.f32.mrf.mxu0
      %2134 = vmatprep.mubr.bf16.mxu0 0
      %2135 = vmatmul.mubr.bf16.gmra.mxu0 %v1989
      %v2136 = vpop.f32.mrf.mxu0
      %v2137 = vadd.f32 0.0, %v2136
      %v2138 = vpop.f32.mrf.mxu0
      %v2139 = vpop.f32.mrf.mxu0
      %v2140 = vadd.f32 0.0, %v2139
      %v2141 = vpop.f32.mrf.mxu0
      %2142 = vmatprep.mubr.bf16.mxu0 0
      %2143 = vmatmul.mubr.bf16.gmra.mxu0 %v1992
      %v2144 = vpop.f32.mrf.mxu0
      %v2145 = vadd.f32 0.0, %v2144
      %v2146 = vpop.f32.mrf.mxu0
      %v2147 = vpop.f32.mrf.mxu0
      %v2148 = vadd.f32 0.0, %v2147
      %v2149 = vpop.f32.mrf.mxu0
      %2150 = vmatprep.mubr.bf16.mxu0 0
      %2151 = vmatmul.mubr.bf16.gmra.mxu0 %v1995
      %v2152 = vpop.f32.mrf.mxu0
      %v2153 = vadd.f32 0.0, %v2152
      %v2154 = vpop.f32.mrf.mxu0
      %v2155 = vpop.f32.mrf.mxu0
      %v2156 = vadd.f32 0.0, %v2155
      %v2157 = vpop.f32.mrf.mxu0
      %2158 = vmatprep.mubr.bf16.mxu0 0
      %2159 = vmatmul.mubr.bf16.gmra.mxu0 %v1998
      %v2160 = vpop.f32.mrf.mxu0
      %v2161 = vadd.f32 0.0, %v2160
      %v2162 = vpop.f32.mrf.mxu0
      %v2163 = vpop.f32.mrf.mxu0
      %v2164 = vadd.f32 0.0, %v2163
      %v2165 = vpop.f32.mrf.mxu0
      %2166 = vmatprep.mubr.bf16.mxu0 0
      %2167 = vmatmul.mubr.bf16.gmra.mxu0 %v2001
      %v2168 = vpop.f32.mrf.mxu0
      %v2169 = vadd.f32 0.0, %v2168
      %v2170 = vpop.f32.mrf.mxu0
      %v2171 = vpop.f32.mrf.mxu0
      %v2172 = vadd.f32 0.0, %v2171
      %v2173 = vpop.f32.mrf.mxu0
      %2174 = vmatprep.mubr.bf16.mxu0 0
      %2175 = vmatmul.mubr.bf16.gmra.mxu0 %v2004
      %v2176 = vpop.f32.mrf.mxu0
      %v2177 = vadd.f32 0.0, %v2176
      %v2178 = vpop.f32.mrf.mxu0
      %v2179 = vpop.f32.mrf.mxu0
      %v2180 = vadd.f32 0.0, %v2179
      %v2181 = vpop.f32.mrf.mxu0
      %2182 = vdwg.mxu0
      %v2183 = vadd.f32 %v1724, %v2041
      %v2184 = vadd.f32 %v1725, %v2044
      %v2185 = vadd.f32 %v1726, %v2049
      %v2186 = vadd.f32 %v1727, %v2052
      %v2187 = vadd.f32 %v1728, %v2057
      %v2188 = vadd.f32 %v1729, %v2060
      %v2189 = vadd.f32 %v1730, %v2065
      %v2190 = vadd.f32 %v1731, %v2068
      %v2191 = vadd.f32 %v1732, %v2073
      %v2192 = vadd.f32 %v1733, %v2076
      %v2193 = vadd.f32 %v1734, %v2081
      %v2194 = vadd.f32 %v1735, %v2084
      %v2195 = vadd.f32 %v1736, %v2089
      %v2196 = vadd.f32 %v1737, %v2092
      %v2197 = vadd.f32 %v1738, %v2097
      %v2198 = vadd.f32 %v1739, %v2100
      %v2199 = vadd.f32 %v1740, %v2105
      %v2200 = vadd.f32 %v1741, %v2108
      %v2201 = vadd.f32 %v1742, %v2113
      %v2202 = vadd.f32 %v1743, %v2116
      %v2203 = vadd.f32 %v1744, %v2121
      %v2204 = vadd.f32 %v1745, %v2124
      %v2205 = vadd.f32 %v1746, %v2129
      %v2206 = vadd.f32 %v1747, %v2132
      %v2207 = vadd.f32 %v1748, %v2137
      %v2208 = vadd.f32 %v1749, %v2140
      %v2209 = vadd.f32 %v1750, %v2145
      %v2210 = vadd.f32 %v1751, %v2148
      %v2211 = vadd.f32 %v1752, %v2153
      %v2212 = vadd.f32 %v1753, %v2156
      %v2213 = vadd.f32 %v1754, %v2161
      %v2214 = vadd.f32 %v1755, %v2164
      %v2215 = vadd.f32 %v1756, %v2169
      %v2216 = vadd.f32 %v1757, %v2172
      %v2217 = vadd.f32 %v1758, %v2177
      %v2218 = vadd.f32 %v1759, %v2180
      %v2219 = vld [vmem:[%s219 + $0x8] sm:$0xc]
      %s2220 = scalar_lea.vmem %s1, 80
      %v2221 = vld [vmem:[%s2220] sm:$0xf]
      %v2222 = vld [vmem:[%s2220 + $0x4] sm:$0xf]
      %v2223 = vld [vmem:[%s2220 + $0x8] sm:$0xf]
      %v2224 = vld [vmem:[%s2220 + $0xc] sm:$0xf]
      %v2226 = vunpack.c.l.b16 %v2219
      %v2227 = vpack.c.b16 %v1389, %v2226
      %vm2228 = vcmask 1045504
      %v2229 = vrot.slane %v2227, 2
      %v2230 = vrot.slane %v1426, 2
      %v2231 = vsel %vm2228, %v2229, %v2230
      %v2232 = vrot.slane %v1427, 2
      %v2233 = vsel %vm2228, %v2230, %v2232
      %v2234 = vrot.slane %v1428, 2
      %v2235 = vsel %vm2228, %v2232, %v2234
      %v2236 = vrot.slane %v1429, 2
      %v2237 = vsel %vm2228, %v2234, %v2236
      %v2238 = vrot.slane %v1430, 2
      %v2239 = vsel %vm2228, %v2236, %v2238
      %v2240 = vrot.slane %v1431, 2
      %v2241 = vsel %vm2228, %v2238, %v2240
      %v2242 = vrot.slane %v1432, 2
      %v2243 = vsel %vm2228, %v2240, %v2242
      %v2244 = vrot.slane %v1433, 2
      %v2245 = vsel %vm2228, %v2242, %v2244
      %v2246 = vrot.slane %v1434, 2
      %v2247 = vsel %vm2228, %v2244, %v2246
      %v2248 = vrot.slane %v1435, 2
      %v2249 = vsel %vm2228, %v2246, %v2248
      %v2250 = vrot.slane %v1436, 2
      %v2251 = vsel %vm2228, %v2248, %v2250
      %v2252 = vrot.slane %v1437, 2
      %v2253 = vsel %vm2228, %v2250, %v2252
      %v2254 = vrot.slane %v1438, 2
      %v2255 = vsel %vm2228, %v2252, %v2254
      %v2256 = vrot.slane %v1439, 2
      %v2257 = vsel %vm2228, %v2254, %v2256
      %v2258 = vrot.slane %v1440, 2
      %v2259 = vsel %vm2228, %v2256, %v2258
      %v2260 = vrot.slane %v1441, 2
      %v2261 = vsel %vm2228, %v2258, %v2260
      %v2262 = vrot.slane %v1442, 2
      %v2263 = vsel %vm2228, %v2260, %v2262
      %v2264 = vrot.slane %v1768, 2
      %v2265 = vsel %vm2228, %v2262, %v2264
      %v2270 = vunpack.c.l.b16 %v2221
      %v2271 = vunpack.c.l.b16 %v2222
      %v2272 = vunpack.c.l.b16 %v2223
      %v2273 = vunpack.c.l.b16 %v2224
      %v2274 = vpack.c.b16 %v2271, %v2270
      %v2275 = vpack.c.b16 %v2273, %v2272
      %v2279 = vsel %vm526, %v2231, 0
      %v2282 = vsel %vm526, %v2233, 0
      %v2285 = vsel %vm526, %v2235, 0
      %v2288 = vsel %vm526, %v2237, 0
      %v2291 = vsel %vm526, %v2239, 0
      %v2294 = vsel %vm526, %v2241, 0
      %v2297 = vsel %vm526, %v2243, 0
      %v2300 = vsel %vm526, %v2245, 0
      %v2303 = vsel %vm526, %v2247, 0
      %v2306 = vsel %vm526, %v2249, 0
      %v2309 = vsel %vm526, %v2251, 0
      %v2312 = vsel %vm526, %v2253, 0
      %v2315 = vsel %vm526, %v2255, 0
      %v2318 = vsel %vm526, %v2257, 0
      %v2321 = vsel %vm526, %v2259, 0
      %v2324 = vsel %vm526, %v2261, 0
      %v2327 = vsel %vm526, %v2263, 0
      %v2330 = vsel %vm526, %v2265, 0
      %2332 = vmatprep.subr.bf16.mxu0 0
      %2333 = vmatpush1.bf16.msra.mxu0 0
      %2334 = vmatprep.subr.bf16.mxu0 0
      %2335 = vmatpush1.bf16.msra.mxu0 0
      %2336 = vmatprep.subr.bf16.mxu0 0
      %2337 = vmatpush1.bf16.msra.mxu0 0
      %2338 = vmatprep.subr.bf16.mxu0 0
      %2339 = vmatpush1.bf16.msra.mxu0 0
      %2340 = vmatprep.subr.bf16.mxu0 0
      %2341 = vmatpush1.bf16.msra.mxu0 0
      %2342 = vmatprep.subr.bf16.mxu0 0
      %2343 = vmatpush1.bf16.msra.mxu0 0
      %2344 = vmatprep.subr.bf16.mxu0 0
      %2345 = vmatpush1.bf16.msra.mxu0 %v2275
      %2346 = vmatprep.subr.bf16.mxu0 0
      %2347 = vmatpush1.bf16.msra.mxu0 %v2274
      %2348 = vmatprep.subr.bf16.mxu0 0
      %2349 = vmatpush2.bf16.msra.mxu0 0
      %2350 = vmatprep.subr.bf16.mxu0 0
      %2351 = vmatpush2.bf16.msra.mxu0 0
      %2352 = vmatprep.subr.bf16.mxu0 0
      %2353 = vmatpush2.bf16.msra.mxu0 0
      %2354 = vmatprep.subr.bf16.mxu0 0
      %2355 = vmatpush2.bf16.msra.mxu0 0
      %2356 = vmatprep.subr.bf16.mxu0 0
      %2357 = vmatpush2.bf16.msra.mxu0 0
      %2358 = vmatprep.subr.bf16.mxu0 0
      %2359 = vmatpush2.bf16.msra.mxu0 0
      %2360 = vmatprep.subr.bf16.mxu0 0
      %2361 = vmatpush2.bf16.msra.mxu0 0
      %2362 = vmatprep.subr.bf16.mxu0 0
      %2363 = vmatpush2.bf16.msra.mxu0 0
      %2364 = vmatprep.mubr.bf16.mxu0 0
      %2365 = vmatmul.mubr.bf16.gmra.mxu0 %v2279
      %v2366 = vpop.f32.mrf.mxu0
      %v2367 = vadd.f32 0.0, %v2366
      %v2368 = vpop.f32.mrf.mxu0
      %v2369 = vpop.f32.mrf.mxu0
      %v2370 = vadd.f32 0.0, %v2369
      %v2371 = vpop.f32.mrf.mxu0
      %2372 = vmatprep.mubr.bf16.mxu0 0
      %2373 = vmatmul.mubr.bf16.gmra.mxu0 %v2282
      %v2374 = vpop.f32.mrf.mxu0
      %v2375 = vadd.f32 0.0, %v2374
      %v2376 = vpop.f32.mrf.mxu0
      %v2377 = vpop.f32.mrf.mxu0
      %v2378 = vadd.f32 0.0, %v2377
      %v2379 = vpop.f32.mrf.mxu0
      %2380 = vmatprep.mubr.bf16.mxu0 0
      %2381 = vmatmul.mubr.bf16.gmra.mxu0 %v2285
      %v2382 = vpop.f32.mrf.mxu0
      %v2383 = vadd.f32 0.0, %v2382
      %v2384 = vpop.f32.mrf.mxu0
      %v2385 = vpop.f32.mrf.mxu0
      %v2386 = vadd.f32 0.0, %v2385
      %v2387 = vpop.f32.mrf.mxu0
      %2388 = vmatprep.mubr.bf16.mxu0 0
      %2389 = vmatmul.mubr.bf16.gmra.mxu0 %v2288
      %v2390 = vpop.f32.mrf.mxu0
      %v2391 = vadd.f32 0.0, %v2390
      %v2392 = vpop.f32.mrf.mxu0
      %v2393 = vpop.f32.mrf.mxu0
      %v2394 = vadd.f32 0.0, %v2393
      %v2395 = vpop.f32.mrf.mxu0
      %2396 = vmatprep.mubr.bf16.mxu0 0
      %2397 = vmatmul.mubr.bf16.gmra.mxu0 %v2291
      %v2398 = vpop.f32.mrf.mxu0
      %v2399 = vadd.f32 0.0, %v2398
      %v2400 = vpop.f32.mrf.mxu0
      %v2401 = vpop.f32.mrf.mxu0
      %v2402 = vadd.f32 0.0, %v2401
      %v2403 = vpop.f32.mrf.mxu0
      %2404 = vmatprep.mubr.bf16.mxu0 0
      %2405 = vmatmul.mubr.bf16.gmra.mxu0 %v2294
      %v2406 = vpop.f32.mrf.mxu0
      %v2407 = vadd.f32 0.0, %v2406
      %v2408 = vpop.f32.mrf.mxu0
      %v2409 = vpop.f32.mrf.mxu0
      %v2410 = vadd.f32 0.0, %v2409
      %v2411 = vpop.f32.mrf.mxu0
      %2412 = vmatprep.mubr.bf16.mxu0 0
      %2413 = vmatmul.mubr.bf16.gmra.mxu0 %v2297
      %v2414 = vpop.f32.mrf.mxu0
      %v2415 = vadd.f32 0.0, %v2414
      %v2416 = vpop.f32.mrf.mxu0
      %v2417 = vpop.f32.mrf.mxu0
      %v2418 = vadd.f32 0.0, %v2417
      %v2419 = vpop.f32.mrf.mxu0
      %2420 = vmatprep.mubr.bf16.mxu0 0
      %2421 = vmatmul.mubr.bf16.gmra.mxu0 %v2300
      %v2422 = vpop.f32.mrf.mxu0
      %v2423 = vadd.f32 0.0, %v2422
      %v2424 = vpop.f32.mrf.mxu0
      %v2425 = vpop.f32.mrf.mxu0
      %v2426 = vadd.f32 0.0, %v2425
      %v2427 = vpop.f32.mrf.mxu0
      %2428 = vmatprep.mubr.bf16.mxu0 0
      %2429 = vmatmul.mubr.bf16.gmra.mxu0 %v2303
      %v2430 = vpop.f32.mrf.mxu0
      %v2431 = vadd.f32 0.0, %v2430
      %v2432 = vpop.f32.mrf.mxu0
      %v2433 = vpop.f32.mrf.mxu0
      %v2434 = vadd.f32 0.0, %v2433
      %v2435 = vpop.f32.mrf.mxu0
      %2436 = vmatprep.mubr.bf16.mxu0 0
      %2437 = vmatmul.mubr.bf16.gmra.mxu0 %v2306
      %v2438 = vpop.f32.mrf.mxu0
      %v2439 = vadd.f32 0.0, %v2438
      %v2440 = vpop.f32.mrf.mxu0
      %v2441 = vpop.f32.mrf.mxu0
      %v2442 = vadd.f32 0.0, %v2441
      %v2443 = vpop.f32.mrf.mxu0
      %2444 = vmatprep.mubr.bf16.mxu0 0
      %2445 = vmatmul.mubr.bf16.gmra.mxu0 %v2309
      %v2446 = vpop.f32.mrf.mxu0
      %v2447 = vadd.f32 0.0, %v2446
      %v2448 = vpop.f32.mrf.mxu0
      %v2449 = vpop.f32.mrf.mxu0
      %v2450 = vadd.f32 0.0, %v2449
      %v2451 = vpop.f32.mrf.mxu0
      %2452 = vmatprep.mubr.bf16.mxu0 0
      %2453 = vmatmul.mubr.bf16.gmra.mxu0 %v2312
      %v2454 = vpop.f32.mrf.mxu0
      %v2455 = vadd.f32 0.0, %v2454
      %v2456 = vpop.f32.mrf.mxu0
      %v2457 = vpop.f32.mrf.mxu0
      %v2458 = vadd.f32 0.0, %v2457
      %v2459 = vpop.f32.mrf.mxu0
      %2460 = vmatprep.mubr.bf16.mxu0 0
      %2461 = vmatmul.mubr.bf16.gmra.mxu0 %v2315
      %v2462 = vpop.f32.mrf.mxu0
      %v2463 = vadd.f32 0.0, %v2462
      %v2464 = vpop.f32.mrf.mxu0
      %v2465 = vpop.f32.mrf.mxu0
      %v2466 = vadd.f32 0.0, %v2465
      %v2467 = vpop.f32.mrf.mxu0
      %2468 = vmatprep.mubr.bf16.mxu0 0
      %2469 = vmatmul.mubr.bf16.gmra.mxu0 %v2318
      %v2470 = vpop.f32.mrf.mxu0
      %v2471 = vadd.f32 0.0, %v2470
      %v2472 = vpop.f32.mrf.mxu0
      %v2473 = vpop.f32.mrf.mxu0
      %v2474 = vadd.f32 0.0, %v2473
      %v2475 = vpop.f32.mrf.mxu0
      %2476 = vmatprep.mubr.bf16.mxu0 0
      %2477 = vmatmul.mubr.bf16.gmra.mxu0 %v2321
      %v2478 = vpop.f32.mrf.mxu0
      %v2479 = vadd.f32 0.0, %v2478
      %v2480 = vpop.f32.mrf.mxu0
      %v2481 = vpop.f32.mrf.mxu0
      %v2482 = vadd.f32 0.0, %v2481
      %v2483 = vpop.f32.mrf.mxu0
      %2484 = vmatprep.mubr.bf16.mxu0 0
      %2485 = vmatmul.mubr.bf16.gmra.mxu0 %v2324
      %v2486 = vpop.f32.mrf.mxu0
      %v2487 = vadd.f32 0.0, %v2486
      %v2488 = vpop.f32.mrf.mxu0
      %v2489 = vpop.f32.mrf.mxu0
      %v2490 = vadd.f32 0.0, %v2489
      %v2491 = vpop.f32.mrf.mxu0
      %2492 = vmatprep.mubr.bf16.mxu0 0
      %2493 = vmatmul.mubr.bf16.gmra.mxu0 %v2327
      %v2494 = vpop.f32.mrf.mxu0
      %v2495 = vadd.f32 0.0, %v2494
      %v2496 = vpop.f32.mrf.mxu0
      %v2497 = vpop.f32.mrf.mxu0
      %v2498 = vadd.f32 0.0, %v2497
      %v2499 = vpop.f32.mrf.mxu0
      %2500 = vmatprep.mubr.bf16.mxu0 0
      %2501 = vmatmul.mubr.bf16.gmra.mxu0 %v2330
      %v2502 = vpop.f32.mrf.mxu0
      %v2503 = vadd.f32 0.0, %v2502
      %v2504 = vpop.f32.mrf.mxu0
      %v2505 = vpop.f32.mrf.mxu0
      %v2506 = vadd.f32 0.0, %v2505
      %v2507 = vpop.f32.mrf.mxu0
      %2508 = vdwg.mxu0
      %v2509 = vadd.f32 %v2183, %v2367
      %v2510 = vadd.f32 %v2184, %v2370
      %v2511 = vadd.f32 %v2185, %v2375
      %v2512 = vadd.f32 %v2186, %v2378
      %v2513 = vadd.f32 %v2187, %v2383
      %v2514 = vadd.f32 %v2188, %v2386
      %v2515 = vadd.f32 %v2189, %v2391
      %v2516 = vadd.f32 %v2190, %v2394
      %v2517 = vadd.f32 %v2191, %v2399
      %v2518 = vadd.f32 %v2192, %v2402
      %v2519 = vadd.f32 %v2193, %v2407
      %v2520 = vadd.f32 %v2194, %v2410
      %v2521 = vadd.f32 %v2195, %v2415
      %v2522 = vadd.f32 %v2196, %v2418
      %v2523 = vadd.f32 %v2197, %v2423
      %v2524 = vadd.f32 %v2198, %v2426
      %v2525 = vadd.f32 %v2199, %v2431
      %v2526 = vadd.f32 %v2200, %v2434
      %v2527 = vadd.f32 %v2201, %v2439
      %v2528 = vadd.f32 %v2202, %v2442
      %v2529 = vadd.f32 %v2203, %v2447
      %v2530 = vadd.f32 %v2204, %v2450
      %v2531 = vadd.f32 %v2205, %v2455
      %v2532 = vadd.f32 %v2206, %v2458
      %v2533 = vadd.f32 %v2207, %v2463
      %v2534 = vadd.f32 %v2208, %v2466
      %v2535 = vadd.f32 %v2209, %v2471
      %v2536 = vadd.f32 %v2210, %v2474
      %v2537 = vadd.f32 %v2211, %v2479
      %v2538 = vadd.f32 %v2212, %v2482
      %v2539 = vadd.f32 %v2213, %v2487
      %v2540 = vadd.f32 %v2214, %v2490
      %v2541 = vadd.f32 %v2215, %v2495
      %v2542 = vadd.f32 %v2216, %v2498
      %v2543 = vadd.f32 %v2217, %v2503
      %v2544 = vadd.f32 %v2218, %v2506
      %v2545 = vld [vmem:[%s219 + $0x10] sm:$0xc]
      %v2546 = vld [vmem:[%s219 + $0x14] sm:$0xf]
      %v2547 = vld [vmem:[%s219 + $0x18] sm:$0xf]
      %v2548 = vld [vmem:[%s219 + $0x1c] sm:$0xf]
      %v2549 = vld [vmem:[%s219 + $0x20] sm:$0xf]
      %v2550 = vld [vmem:[%s219 + $0x24] sm:$0xf]
      %v2551 = vld [vmem:[%s219 + $0x28] sm:$0xf]
      %v2552 = vld [vmem:[%s219 + $0x2c] sm:$0xf]
      %v2553 = vld [vmem:[%s219 + $0x30] sm:$0xf]
      %v2554 = vld [vmem:[%s219 + $0x34] sm:$0xf]
      %v2555 = vld [vmem:[%s219 + $0x38] sm:$0xf]
      %v2556 = vld [vmem:[%s219 + $0x3c] sm:$0xf]
      %v2557 = vld [vmem:[%s219 + $0x40] sm:$0xf]
      %v2558 = vld [vmem:[%s219 + $0x44] sm:$0xf]
      %v2559 = vld [vmem:[%s219 + $0x48] sm:$0xf]
      %v2560 = vld [vmem:[%s219 + $0x4c] sm:$0xf]
      %v2561 = vld [vmem:[%s219 + $0x50] sm:$0xf]
      %v2562 = vld [vmem:[%s219 + $0x54] sm:$0xf]
      %v2563 = vld [vmem:[%s219 + $0x58] sm:$0xf]
      %v2564 = vld [vmem:[%s219 + $0x5c] sm:$0xf]
      %v2565 = vld [vmem:[%s219 + $0x60] sm:$0xf]
      %v2566 = vld [vmem:[%s219 + $0x64] sm:$0xf]
      %v2567 = vld [vmem:[%s219 + $0x68] sm:$0xf]
      %v2568 = vld [vmem:[%s219 + $0x6c] sm:$0xf]
      %v2569 = vld [vmem:[%s219 + $0x70] sm:$0xf]
      %v2570 = vld [vmem:[%s219 + $0x74] sm:$0xf]
      %v2571 = vld [vmem:[%s219 + $0x78] sm:$0xf]
      %v2572 = vld [vmem:[%s219 + $0x7c] sm:$0xf]
      %v2573 = vld [vmem:[%s219 + $0x80] sm:$0xf]
      %v2574 = vld [vmem:[%s219 + $0x84] sm:$0xf]
      %v2575 = vld [vmem:[%s219 + $0x88] sm:$0xf]
      %v2576 = vld [vmem:[%s219 + $0x8c] sm:$0xf]
      %v2577 = vld [vmem:[%s219 + $0x90] sm:$0xf]
      %v2578 = vld [vmem:[%s219 + $0x94] sm:$0xf]
      %v2579 = vld [vmem:[%s219 + $0x98] sm:$0xf]
      %v2580 = vld [vmem:[%s219 + $0x9c] sm:$0xf]
      %v2581 = vld [vmem:[%s219 + $0xa0] sm:$0x3]
      %s2582 = scalar_lea.vmem %s1, 96
      %v2583 = vld [vmem:[%s2582] sm:$0xf]
      %v2584 = vld [vmem:[%s2582 + $0x4] sm:$0xf]
      %v2585 = vld [vmem:[%s2582 + $0x8] sm:$0xf]
      %v2586 = vld [vmem:[%s2582 + $0xc] sm:$0xf]
      %v2624 = vunpack.c.l.b16 %v2545
      %v2625 = vunpack.c.l.b16 %v2546
      %v2626 = vunpack.c.l.b16 %v2547
      %v2627 = vunpack.c.l.b16 %v2548
      %v2628 = vunpack.c.l.b16 %v2549
      %v2629 = vunpack.c.l.b16 %v2550
      %v2630 = vunpack.c.l.b16 %v2551
      %v2631 = vunpack.c.l.b16 %v2552
      %v2632 = vunpack.c.l.b16 %v2553
      %v2633 = vunpack.c.l.b16 %v2554
      %v2634 = vunpack.c.l.b16 %v2555
      %v2635 = vunpack.c.l.b16 %v2556
      %v2636 = vunpack.c.l.b16 %v2557
      %v2637 = vunpack.c.l.b16 %v2558
      %v2638 = vunpack.c.l.b16 %v2559
      %v2639 = vunpack.c.l.b16 %v2560
      %v2640 = vunpack.c.l.b16 %v2561
      %v2641 = vunpack.c.l.b16 %v2562
      %v2642 = vunpack.c.l.b16 %v2563
      %v2643 = vunpack.c.l.b16 %v2564
      %v2644 = vunpack.c.l.b16 %v2565
      %v2645 = vunpack.c.l.b16 %v2566
      %v2646 = vunpack.c.l.b16 %v2567
      %v2647 = vunpack.c.l.b16 %v2568
      %v2648 = vunpack.c.l.b16 %v2569
      %v2649 = vunpack.c.l.b16 %v2570
      %v2650 = vunpack.c.l.b16 %v2571
      %v2651 = vunpack.c.l.b16 %v2572
      %v2652 = vunpack.c.l.b16 %v2573
      %v2653 = vunpack.c.l.b16 %v2574
      %v2654 = vunpack.c.l.b16 %v2575
      %v2655 = vunpack.c.l.b16 %v2576
      %v2656 = vunpack.c.l.b16 %v2577
      %v2657 = vunpack.c.l.b16 %v2578
      %v2658 = vunpack.c.l.b16 %v2579
      %v2659 = vunpack.c.l.b16 %v2580
      %v2660 = vunpack.c.l.b16 %v2581
      %v2661 = vpack.c.b16 %v2625, %v2624
      %v2662 = vpack.c.b16 %v2627, %v2626
      %v2663 = vpack.c.b16 %v2629, %v2628
      %v2664 = vpack.c.b16 %v2631, %v2630
      %v2665 = vpack.c.b16 %v2633, %v2632
      %v2666 = vpack.c.b16 %v2635, %v2634
      %v2667 = vpack.c.b16 %v2637, %v2636
      %v2668 = vpack.c.b16 %v2639, %v2638
      %v2669 = vpack.c.b16 %v2641, %v2640
      %v2670 = vpack.c.b16 %v2643, %v2642
      %v2671 = vpack.c.b16 %v2645, %v2644
      %v2672 = vpack.c.b16 %v2647, %v2646
      %v2673 = vpack.c.b16 %v2649, %v2648
      %v2674 = vpack.c.b16 %v2651, %v2650
      %v2675 = vpack.c.b16 %v2653, %v2652
      %v2676 = vpack.c.b16 %v2655, %v2654
      %v2677 = vpack.c.b16 %v2657, %v2656
      %v2678 = vpack.c.b16 %v2659, %v2658
      %v2679 = vpack.c.b16 %v2660, %v2660
      %v2680 = vrot.slane %v2661, 2
      %v2681 = vrot.slane %v2662, 2
      %v2682 = vsel %vm2228, %v2680, %v2681
      %v2683 = vrot.slane %v2663, 2
      %v2684 = vsel %vm2228, %v2681, %v2683
      %v2685 = vrot.slane %v2664, 2
      %v2686 = vsel %vm2228, %v2683, %v2685
      %v2687 = vrot.slane %v2665, 2
      %v2688 = vsel %vm2228, %v2685, %v2687
      %v2689 = vrot.slane %v2666, 2
      %v2690 = vsel %vm2228, %v2687, %v2689
      %v2691 = vrot.slane %v2667, 2
      %v2692 = vsel %vm2228, %v2689, %v2691
      %v2693 = vrot.slane %v2668, 2
      %v2694 = vsel %vm2228, %v2691, %v2693
      %v2695 = vrot.slane %v2669, 2
      %v2696 = vsel %vm2228, %v2693, %v2695
      %v2697 = vrot.slane %v2670, 2
      %v2698 = vsel %vm2228, %v2695, %v2697
      %v2699 = vrot.slane %v2671, 2
      %v2700 = vsel %vm2228, %v2697, %v2699
      %v2701 = vrot.slane %v2672, 2
      %v2702 = vsel %vm2228, %v2699, %v2701
      %v2703 = vrot.slane %v2673, 2
      %v2704 = vsel %vm2228, %v2701, %v2703
      %v2705 = vrot.slane %v2674, 2
      %v2706 = vsel %vm2228, %v2703, %v2705
      %v2707 = vrot.slane %v2675, 2
      %v2708 = vsel %vm2228, %v2705, %v2707
      %v2709 = vrot.slane %v2676, 2
      %v2710 = vsel %vm2228, %v2707, %v2709
      %v2711 = vrot.slane %v2677, 2
      %v2712 = vsel %vm2228, %v2709, %v2711
      %v2713 = vrot.slane %v2678, 2
      %v2714 = vsel %vm2228, %v2711, %v2713
      %v2715 = vrot.slane %v2679, 2
      %v2716 = vsel %vm2228, %v2713, %v2715
      %v2721 = vunpack.c.l.b16 %v2583
      %v2722 = vunpack.c.l.b16 %v2584
      %v2723 = vunpack.c.l.b16 %v2585
      %v2724 = vunpack.c.l.b16 %v2586
      %v2725 = vpack.c.b16 %v2722, %v2721
      %v2726 = vpack.c.b16 %v2724, %v2723
      %v2730 = vsel %vm526, %v2682, 0
      %v2733 = vsel %vm526, %v2684, 0
      %v2736 = vsel %vm526, %v2686, 0
      %v2739 = vsel %vm526, %v2688, 0
      %v2742 = vsel %vm526, %v2690, 0
      %v2745 = vsel %vm526, %v2692, 0
      %v2748 = vsel %vm526, %v2694, 0
      %v2751 = vsel %vm526, %v2696, 0
      %v2754 = vsel %vm526, %v2698, 0
      %v2757 = vsel %vm526, %v2700, 0
      %v2760 = vsel %vm526, %v2702, 0
      %v2763 = vsel %vm526, %v2704, 0
      %v2766 = vsel %vm526, %v2706, 0
      %v2769 = vsel %vm526, %v2708, 0
      %v2772 = vsel %vm526, %v2710, 0
      %v2775 = vsel %vm526, %v2712, 0
      %v2778 = vsel %vm526, %v2714, 0
      %v2781 = vsel %vm526, %v2716, 0
      %2783 = vmatprep.subr.bf16.mxu0 0
      %2784 = vmatpush1.bf16.msra.mxu0 0
      %2785 = vmatprep.subr.bf16.mxu0 0
      %2786 = vmatpush1.bf16.msra.mxu0 0
      %2787 = vmatprep.subr.bf16.mxu0 0
      %2788 = vmatpush1.bf16.msra.mxu0 0
      %2789 = vmatprep.subr.bf16.mxu0 0
      %2790 = vmatpush1.bf16.msra.mxu0 0
      %2791 = vmatprep.subr.bf16.mxu0 0
      %2792 = vmatpush1.bf16.msra.mxu0 0
      %2793 = vmatprep.subr.bf16.mxu0 0
      %2794 = vmatpush1.bf16.msra.mxu0 0
      %2795 = vmatprep.subr.bf16.mxu0 0
      %2796 = vmatpush1.bf16.msra.mxu0 %v2726
      %2797 = vmatprep.subr.bf16.mxu0 0
      %2798 = vmatpush1.bf16.msra.mxu0 %v2725
      %2799 = vmatprep.subr.bf16.mxu0 0
      %2800 = vmatpush2.bf16.msra.mxu0 0
      %2801 = vmatprep.subr.bf16.mxu0 0
      %2802 = vmatpush2.bf16.msra.mxu0 0
      %2803 = vmatprep.subr.bf16.mxu0 0
      %2804 = vmatpush2.bf16.msra.mxu0 0
      %2805 = vmatprep.subr.bf16.mxu0 0
      %2806 = vmatpush2.bf16.msra.mxu0 0
      %2807 = vmatprep.subr.bf16.mxu0 0
      %2808 = vmatpush2.bf16.msra.mxu0 0
      %2809 = vmatprep.subr.bf16.mxu0 0
      %2810 = vmatpush2.bf16.msra.mxu0 0
      %2811 = vmatprep.subr.bf16.mxu0 0
      %2812 = vmatpush2.bf16.msra.mxu0 0
      %2813 = vmatprep.subr.bf16.mxu0 0
      %2814 = vmatpush2.bf16.msra.mxu0 0
      %2815 = vmatprep.mubr.bf16.mxu0 0
      %2816 = vmatmul.mubr.bf16.gmra.mxu0 %v2730
      %v2817 = vpop.f32.mrf.mxu0
      %v2818 = vadd.f32 0.0, %v2817
      %v2819 = vpop.f32.mrf.mxu0
      %v2820 = vpop.f32.mrf.mxu0
      %v2821 = vadd.f32 0.0, %v2820
      %v2822 = vpop.f32.mrf.mxu0
      %2823 = vmatprep.mubr.bf16.mxu0 0
      %2824 = vmatmul.mubr.bf16.gmra.mxu0 %v2733
      %v2825 = vpop.f32.mrf.mxu0
      %v2826 = vadd.f32 0.0, %v2825
      %v2827 = vpop.f32.mrf.mxu0
      %v2828 = vpop.f32.mrf.mxu0
      %v2829 = vadd.f32 0.0, %v2828
      %v2830 = vpop.f32.mrf.mxu0
      %2831 = vmatprep.mubr.bf16.mxu0 0
      %2832 = vmatmul.mubr.bf16.gmra.mxu0 %v2736
      %v2833 = vpop.f32.mrf.mxu0
      %v2834 = vadd.f32 0.0, %v2833
      %v2835 = vpop.f32.mrf.mxu0
      %v2836 = vpop.f32.mrf.mxu0
      %v2837 = vadd.f32 0.0, %v2836
      %v2838 = vpop.f32.mrf.mxu0
      %2839 = vmatprep.mubr.bf16.mxu0 0
      %2840 = vmatmul.mubr.bf16.gmra.mxu0 %v2739
      %v2841 = vpop.f32.mrf.mxu0
      %v2842 = vadd.f32 0.0, %v2841
      %v2843 = vpop.f32.mrf.mxu0
      %v2844 = vpop.f32.mrf.mxu0
      %v2845 = vadd.f32 0.0, %v2844
      %v2846 = vpop.f32.mrf.mxu0
      %2847 = vmatprep.mubr.bf16.mxu0 0
      %2848 = vmatmul.mubr.bf16.gmra.mxu0 %v2742
      %v2849 = vpop.f32.mrf.mxu0
      %v2850 = vadd.f32 0.0, %v2849
      %v2851 = vpop.f32.mrf.mxu0
      %v2852 = vpop.f32.mrf.mxu0
      %v2853 = vadd.f32 0.0, %v2852
      %v2854 = vpop.f32.mrf.mxu0
      %2855 = vmatprep.mubr.bf16.mxu0 0
      %2856 = vmatmul.mubr.bf16.gmra.mxu0 %v2745
      %v2857 = vpop.f32.mrf.mxu0
      %v2858 = vadd.f32 0.0, %v2857
      %v2859 = vpop.f32.mrf.mxu0
      %v2860 = vpop.f32.mrf.mxu0
      %v2861 = vadd.f32 0.0, %v2860
      %v2862 = vpop.f32.mrf.mxu0
      %2863 = vmatprep.mubr.bf16.mxu0 0
      %2864 = vmatmul.mubr.bf16.gmra.mxu0 %v2748
      %v2865 = vpop.f32.mrf.mxu0
      %v2866 = vadd.f32 0.0, %v2865
      %v2867 = vpop.f32.mrf.mxu0
      %v2868 = vpop.f32.mrf.mxu0
      %v2869 = vadd.f32 0.0, %v2868
      %v2870 = vpop.f32.mrf.mxu0
      %2871 = vmatprep.mubr.bf16.mxu0 0
      %2872 = vmatmul.mubr.bf16.gmra.mxu0 %v2751
      %v2873 = vpop.f32.mrf.mxu0
      %v2874 = vadd.f32 0.0, %v2873
      %v2875 = vpop.f32.mrf.mxu0
      %v2876 = vpop.f32.mrf.mxu0
      %v2877 = vadd.f32 0.0, %v2876
      %v2878 = vpop.f32.mrf.mxu0
      %2879 = vmatprep.mubr.bf16.mxu0 0
      %2880 = vmatmul.mubr.bf16.gmra.mxu0 %v2754
      %v2881 = vpop.f32.mrf.mxu0
      %v2882 = vadd.f32 0.0, %v2881
      %v2883 = vpop.f32.mrf.mxu0
      %v2884 = vpop.f32.mrf.mxu0
      %v2885 = vadd.f32 0.0, %v2884
      %v2886 = vpop.f32.mrf.mxu0
      %2887 = vmatprep.mubr.bf16.mxu0 0
      %2888 = vmatmul.mubr.bf16.gmra.mxu0 %v2757
      %v2889 = vpop.f32.mrf.mxu0
      %v2890 = vadd.f32 0.0, %v2889
      %v2891 = vpop.f32.mrf.mxu0
      %v2892 = vpop.f32.mrf.mxu0
      %v2893 = vadd.f32 0.0, %v2892
      %v2894 = vpop.f32.mrf.mxu0
      %2895 = vmatprep.mubr.bf16.mxu0 0
      %2896 = vmatmul.mubr.bf16.gmra.mxu0 %v2760
      %v2897 = vpop.f32.mrf.mxu0
      %v2898 = vadd.f32 0.0, %v2897
      %v2899 = vpop.f32.mrf.mxu0
      %v2900 = vpop.f32.mrf.mxu0
      %v2901 = vadd.f32 0.0, %v2900
      %v2902 = vpop.f32.mrf.mxu0
      %2903 = vmatprep.mubr.bf16.mxu0 0
      %2904 = vmatmul.mubr.bf16.gmra.mxu0 %v2763
      %v2905 = vpop.f32.mrf.mxu0
      %v2906 = vadd.f32 0.0, %v2905
      %v2907 = vpop.f32.mrf.mxu0
      %v2908 = vpop.f32.mrf.mxu0
      %v2909 = vadd.f32 0.0, %v2908
      %v2910 = vpop.f32.mrf.mxu0
      %2911 = vmatprep.mubr.bf16.mxu0 0
      %2912 = vmatmul.mubr.bf16.gmra.mxu0 %v2766
      %v2913 = vpop.f32.mrf.mxu0
      %v2914 = vadd.f32 0.0, %v2913
      %v2915 = vpop.f32.mrf.mxu0
      %v2916 = vpop.f32.mrf.mxu0
      %v2917 = vadd.f32 0.0, %v2916
      %v2918 = vpop.f32.mrf.mxu0
      %2919 = vmatprep.mubr.bf16.mxu0 0
      %2920 = vmatmul.mubr.bf16.gmra.mxu0 %v2769
      %v2921 = vpop.f32.mrf.mxu0
      %v2922 = vadd.f32 0.0, %v2921
      %v2923 = vpop.f32.mrf.mxu0
      %v2924 = vpop.f32.mrf.mxu0
      %v2925 = vadd.f32 0.0, %v2924
      %v2926 = vpop.f32.mrf.mxu0
      %2927 = vmatprep.mubr.bf16.mxu0 0
      %2928 = vmatmul.mubr.bf16.gmra.mxu0 %v2772
      %v2929 = vpop.f32.mrf.mxu0
      %v2930 = vadd.f32 0.0, %v2929
      %v2931 = vpop.f32.mrf.mxu0
      %v2932 = vpop.f32.mrf.mxu0
      %v2933 = vadd.f32 0.0, %v2932
      %v2934 = vpop.f32.mrf.mxu0
      %2935 = vmatprep.mubr.bf16.mxu0 0
      %2936 = vmatmul.mubr.bf16.gmra.mxu0 %v2775
      %v2937 = vpop.f32.mrf.mxu0
      %v2938 = vadd.f32 0.0, %v2937
      %v2939 = vpop.f32.mrf.mxu0
      %v2940 = vpop.f32.mrf.mxu0
      %v2941 = vadd.f32 0.0, %v2940
      %v2942 = vpop.f32.mrf.mxu0
      %2943 = vmatprep.mubr.bf16.mxu0 0
      %2944 = vmatmul.mubr.bf16.gmra.mxu0 %v2778
      %v2945 = vpop.f32.mrf.mxu0
      %v2946 = vadd.f32 0.0, %v2945
      %v2947 = vpop.f32.mrf.mxu0
      %v2948 = vpop.f32.mrf.mxu0
      %v2949 = vadd.f32 0.0, %v2948
      %v2950 = vpop.f32.mrf.mxu0
      %2951 = vmatprep.mubr.bf16.mxu0 0
      %2952 = vmatmul.mubr.bf16.gmra.mxu0 %v2781
      %v2953 = vpop.f32.mrf.mxu0
      %v2954 = vadd.f32 0.0, %v2953
      %v2955 = vpop.f32.mrf.mxu0
      %v2956 = vpop.f32.mrf.mxu0
      %v2957 = vadd.f32 0.0, %v2956
      %v2958 = vpop.f32.mrf.mxu0
      %2959 = vdwg.mxu0
      %v2960 = vadd.f32 %v2509, %v2818
      %v2961 = vadd.f32 %v2510, %v2821
      %v2962 = vadd.f32 %v2511, %v2826
      %v2963 = vadd.f32 %v2512, %v2829
      %v2964 = vadd.f32 %v2513, %v2834
      %v2965 = vadd.f32 %v2514, %v2837
      %v2966 = vadd.f32 %v2515, %v2842
      %v2967 = vadd.f32 %v2516, %v2845
      %v2968 = vadd.f32 %v2517, %v2850
      %v2969 = vadd.f32 %v2518, %v2853
      %v2970 = vadd.f32 %v2519, %v2858
      %v2971 = vadd.f32 %v2520, %v2861
      %v2972 = vadd.f32 %v2521, %v2866
      %v2973 = vadd.f32 %v2522, %v2869
      %v2974 = vadd.f32 %v2523, %v2874
      %v2975 = vadd.f32 %v2524, %v2877
      %v2976 = vadd.f32 %v2525, %v2882
      %v2977 = vadd.f32 %v2526, %v2885
      %v2978 = vadd.f32 %v2527, %v2890
      %v2979 = vadd.f32 %v2528, %v2893
      %v2980 = vadd.f32 %v2529, %v2898
      %v2981 = vadd.f32 %v2530, %v2901
      %v2982 = vadd.f32 %v2531, %v2906
      %v2983 = vadd.f32 %v2532, %v2909
      %v2984 = vadd.f32 %v2533, %v2914
      %v2985 = vadd.f32 %v2534, %v2917
      %v2986 = vadd.f32 %v2535, %v2922
      %v2987 = vadd.f32 %v2536, %v2925
      %v2988 = vadd.f32 %v2537, %v2930
      %v2989 = vadd.f32 %v2538, %v2933
      %v2990 = vadd.f32 %v2539, %v2938
      %v2991 = vadd.f32 %v2540, %v2941
      %v2992 = vadd.f32 %v2541, %v2946
      %v2993 = vadd.f32 %v2542, %v2949
      %v2994 = vadd.f32 %v2543, %v2954
      %v2995 = vadd.f32 %v2544, %v2957
      %v2996 = vld [vmem:[%s219 + $0xa0] sm:$0x7]
      %s2997 = scalar_lea.vmem %s1, 112
      %v2998 = vld [vmem:[%s2997] sm:$0xf]
      %v2999 = vld [vmem:[%s2997 + $0x4] sm:$0xf]
      %v3000 = vld [vmem:[%s2997 + $0x8] sm:$0xf]
      %v3001 = vld [vmem:[%s2997 + $0xc] sm:$0xf]
      %v3003 = vunpack.c.l.b16 %v2996
      %v3004 = vpack.c.b16 %v3003, %v3003
      %vm3005 = vsmask.f32 5376
      %v3007 = vshrl.u32 %v2661, 16
      %v3009 = vrot.slane %v3007, 2
      %v3010 = vshll.u32 %v2661, 16
      %v3012 = vrot.slane %v3010, 3
      %v3013 = vor.u32 %v3009, %v3012
      %v3015 = vshrl.u32 %v2662, 16
      %v3017 = vrot.slane %v3015, 2
      %v3018 = vshll.u32 %v2662, 16
      %v3020 = vrot.slane %v3018, 3
      %v3021 = vor.u32 %v3017, %v3020
      %v3022 = vsel %vm3005, %v3013, %v3021
      %v3024 = vshrl.u32 %v2663, 16
      %v3026 = vrot.slane %v3024, 2
      %v3027 = vshll.u32 %v2663, 16
      %v3029 = vrot.slane %v3027, 3
      %v3030 = vor.u32 %v3026, %v3029
      %v3031 = vsel %vm3005, %v3021, %v3030
      %v3033 = vshrl.u32 %v2664, 16
      %v3035 = vrot.slane %v3033, 2
      %v3036 = vshll.u32 %v2664, 16
      %v3038 = vrot.slane %v3036, 3
      %v3039 = vor.u32 %v3035, %v3038
      %v3040 = vsel %vm3005, %v3030, %v3039
      %v3042 = vshrl.u32 %v2665, 16
      %v3044 = vrot.slane %v3042, 2
      %v3045 = vshll.u32 %v2665, 16
      %v3047 = vrot.slane %v3045, 3
      %v3048 = vor.u32 %v3044, %v3047
      %v3049 = vsel %vm3005, %v3039, %v3048
      %v3051 = vshrl.u32 %v2666, 16
      %v3053 = vrot.slane %v3051, 2
      %v3054 = vshll.u32 %v2666, 16
      %v3056 = vrot.slane %v3054, 3
      %v3057 = vor.u32 %v3053, %v3056
      %v3058 = vsel %vm3005, %v3048, %v3057
      %v3060 = vshrl.u32 %v2667, 16
      %v3062 = vrot.slane %v3060, 2
      %v3063 = vshll.u32 %v2667, 16
      %v3065 = vrot.slane %v3063, 3
      %v3066 = vor.u32 %v3062, %v3065
      %v3067 = vsel %vm3005, %v3057, %v3066
      %v3069 = vshrl.u32 %v2668, 16
      %v3071 = vrot.slane %v3069, 2
      %v3072 = vshll.u32 %v2668, 16
      %v3074 = vrot.slane %v3072, 3
      %v3075 = vor.u32 %v3071, %v3074
      %v3076 = vsel %vm3005, %v3066, %v3075
      %v3078 = vshrl.u32 %v2669, 16
      %v3080 = vrot.slane %v3078, 2
      %v3081 = vshll.u32 %v2669, 16
      %v3083 = vrot.slane %v3081, 3
      %v3084 = vor.u32 %v3080, %v3083
      %v3085 = vsel %vm3005, %v3075, %v3084
      %v3087 = vshrl.u32 %v2670, 16
      %v3089 = vrot.slane %v3087, 2
      %v3090 = vshll.u32 %v2670, 16
      %v3092 = vrot.slane %v3090, 3
      %v3093 = vor.u32 %v3089, %v3092
      %v3094 = vsel %vm3005, %v3084, %v3093
      %v3096 = vshrl.u32 %v2671, 16
      %v3098 = vrot.slane %v3096, 2
      %v3099 = vshll.u32 %v2671, 16
      %v3101 = vrot.slane %v3099, 3
      %v3102 = vor.u32 %v3098, %v3101
      %v3103 = vsel %vm3005, %v3093, %v3102
      %v3105 = vshrl.u32 %v2672, 16
      %v3107 = vrot.slane %v3105, 2
      %v3108 = vshll.u32 %v2672, 16
      %v3110 = vrot.slane %v3108, 3
      %v3111 = vor.u32 %v3107, %v3110
      %v3112 = vsel %vm3005, %v3102, %v3111
      %v3114 = vshrl.u32 %v2673, 16
      %v3116 = vrot.slane %v3114, 2
      %v3117 = vshll.u32 %v2673, 16
      %v3119 = vrot.slane %v3117, 3
      %v3120 = vor.u32 %v3116, %v3119
      %v3121 = vsel %vm3005, %v3111, %v3120
      %v3123 = vshrl.u32 %v2674, 16
      %v3125 = vrot.slane %v3123, 2
      %v3126 = vshll.u32 %v2674, 16
      %v3128 = vrot.slane %v3126, 3
      %v3129 = vor.u32 %v3125, %v3128
      %v3130 = vsel %vm3005, %v3120, %v3129
      %v3132 = vshrl.u32 %v2675, 16
      %v3134 = vrot.slane %v3132, 2
      %v3135 = vshll.u32 %v2675, 16
      %v3137 = vrot.slane %v3135, 3
      %v3138 = vor.u32 %v3134, %v3137
      %v3139 = vsel %vm3005, %v3129, %v3138
      %v3141 = vshrl.u32 %v2676, 16
      %v3143 = vrot.slane %v3141, 2
      %v3144 = vshll.u32 %v2676, 16
      %v3146 = vrot.slane %v3144, 3
      %v3147 = vor.u32 %v3143, %v3146
      %v3148 = vsel %vm3005, %v3138, %v3147
      %v3150 = vshrl.u32 %v2677, 16
      %v3152 = vrot.slane %v3150, 2
      %v3153 = vshll.u32 %v2677, 16
      %v3155 = vrot.slane %v3153, 3
      %v3156 = vor.u32 %v3152, %v3155
      %v3157 = vsel %vm3005, %v3147, %v3156
      %v3159 = vshrl.u32 %v2678, 16
      %v3161 = vrot.slane %v3159, 2
      %v3162 = vshll.u32 %v2678, 16
      %v3164 = vrot.slane %v3162, 3
      %v3165 = vor.u32 %v3161, %v3164
      %v3166 = vsel %vm3005, %v3156, %v3165
      %v3168 = vshrl.u32 %v3004, 16
      %v3170 = vrot.slane %v3168, 2
      %v3171 = vshll.u32 %v3004, 16
      %v3173 = vrot.slane %v3171, 3
      %v3174 = vor.u32 %v3170, %v3173
      %v3175 = vsel %vm3005, %v3165, %v3174
      %v3180 = vunpack.c.l.b16 %v2998
      %v3181 = vunpack.c.l.b16 %v2999
      %v3182 = vunpack.c.l.b16 %v3000
      %v3183 = vunpack.c.l.b16 %v3001
      %v3184 = vpack.c.b16 %v3181, %v3180
      %v3185 = vpack.c.b16 %v3183, %v3182
      %v3189 = vsel %vm526, %v3022, 0
      %v3192 = vsel %vm526, %v3031, 0
      %v3195 = vsel %vm526, %v3040, 0
      %v3198 = vsel %vm526, %v3049, 0
      %v3201 = vsel %vm526, %v3058, 0
      %v3204 = vsel %vm526, %v3067, 0
      %v3207 = vsel %vm526, %v3076, 0
      %v3210 = vsel %vm526, %v3085, 0
      %v3213 = vsel %vm526, %v3094, 0
      %v3216 = vsel %vm526, %v3103, 0
      %v3219 = vsel %vm526, %v3112, 0
      %v3222 = vsel %vm526, %v3121, 0
      %v3225 = vsel %vm526, %v3130, 0
      %v3228 = vsel %vm526, %v3139, 0
      %v3231 = vsel %vm526, %v3148, 0
      %v3234 = vsel %vm526, %v3157, 0
      %v3237 = vsel %vm526, %v3166, 0
      %v3240 = vsel %vm526, %v3175, 0
      %3242 = vmatprep.subr.bf16.mxu0 0
      %3243 = vmatpush1.bf16.msra.mxu0 0
      %3244 = vmatprep.subr.bf16.mxu0 0
      %3245 = vmatpush1.bf16.msra.mxu0 0
      %3246 = vmatprep.subr.bf16.mxu0 0
      %3247 = vmatpush1.bf16.msra.mxu0 0
      %3248 = vmatprep.subr.bf16.mxu0 0
      %3249 = vmatpush1.bf16.msra.mxu0 0
      %3250 = vmatprep.subr.bf16.mxu0 0
      %3251 = vmatpush1.bf16.msra.mxu0 0
      %3252 = vmatprep.subr.bf16.mxu0 0
      %3253 = vmatpush1.bf16.msra.mxu0 0
      %3254 = vmatprep.subr.bf16.mxu0 0
      %3255 = vmatpush1.bf16.msra.mxu0 %v3185
      %3256 = vmatprep.subr.bf16.mxu0 0
      %3257 = vmatpush1.bf16.msra.mxu0 %v3184
      %3258 = vmatprep.subr.bf16.mxu0 0
      %3259 = vmatpush2.bf16.msra.mxu0 0
      %3260 = vmatprep.subr.bf16.mxu0 0
      %3261 = vmatpush2.bf16.msra.mxu0 0
      %3262 = vmatprep.subr.bf16.mxu0 0
      %3263 = vmatpush2.bf16.msra.mxu0 0
      %3264 = vmatprep.subr.bf16.mxu0 0
      %3265 = vmatpush2.bf16.msra.mxu0 0
      %3266 = vmatprep.subr.bf16.mxu0 0
      %3267 = vmatpush2.bf16.msra.mxu0 0
      %3268 = vmatprep.subr.bf16.mxu0 0
      %3269 = vmatpush2.bf16.msra.mxu0 0
      %3270 = vmatprep.subr.bf16.mxu0 0
      %3271 = vmatpush2.bf16.msra.mxu0 0
      %3272 = vmatprep.subr.bf16.mxu0 0
      %3273 = vmatpush2.bf16.msra.mxu0 0
      %3274 = vmatprep.mubr.bf16.mxu0 0
      %3275 = vmatmul.mubr.bf16.gmra.mxu0 %v3189
      %v3276 = vpop.f32.mrf.mxu0
      %v3277 = vadd.f32 0.0, %v3276
      %v3278 = vpop.f32.mrf.mxu0
      %v3279 = vpop.f32.mrf.mxu0
      %v3280 = vadd.f32 0.0, %v3279
      %v3281 = vpop.f32.mrf.mxu0
      %3282 = vmatprep.mubr.bf16.mxu0 0
      %3283 = vmatmul.mubr.bf16.gmra.mxu0 %v3192
      %v3284 = vpop.f32.mrf.mxu0
      %v3285 = vadd.f32 0.0, %v3284
      %v3286 = vpop.f32.mrf.mxu0
      %v3287 = vpop.f32.mrf.mxu0
      %v3288 = vadd.f32 0.0, %v3287
      %v3289 = vpop.f32.mrf.mxu0
      %3290 = vmatprep.mubr.bf16.mxu0 0
      %3291 = vmatmul.mubr.bf16.gmra.mxu0 %v3195
      %v3292 = vpop.f32.mrf.mxu0
      %v3293 = vadd.f32 0.0, %v3292
      %v3294 = vpop.f32.mrf.mxu0
      %v3295 = vpop.f32.mrf.mxu0
      %v3296 = vadd.f32 0.0, %v3295
      %v3297 = vpop.f32.mrf.mxu0
      %3298 = vmatprep.mubr.bf16.mxu0 0
      %3299 = vmatmul.mubr.bf16.gmra.mxu0 %v3198
      %v3300 = vpop.f32.mrf.mxu0
      %v3301 = vadd.f32 0.0, %v3300
      %v3302 = vpop.f32.mrf.mxu0
      %v3303 = vpop.f32.mrf.mxu0
      %v3304 = vadd.f32 0.0, %v3303
      %v3305 = vpop.f32.mrf.mxu0
      %3306 = vmatprep.mubr.bf16.mxu0 0
      %3307 = vmatmul.mubr.bf16.gmra.mxu0 %v3201
      %v3308 = vpop.f32.mrf.mxu0
      %v3309 = vadd.f32 0.0, %v3308
      %v3310 = vpop.f32.mrf.mxu0
      %v3311 = vpop.f32.mrf.mxu0
      %v3312 = vadd.f32 0.0, %v3311
      %v3313 = vpop.f32.mrf.mxu0
      %3314 = vmatprep.mubr.bf16.mxu0 0
      %3315 = vmatmul.mubr.bf16.gmra.mxu0 %v3204
      %v3316 = vpop.f32.mrf.mxu0
      %v3317 = vadd.f32 0.0, %v3316
      %v3318 = vpop.f32.mrf.mxu0
      %v3319 = vpop.f32.mrf.mxu0
      %v3320 = vadd.f32 0.0, %v3319
      %v3321 = vpop.f32.mrf.mxu0
      %3322 = vmatprep.mubr.bf16.mxu0 0
      %3323 = vmatmul.mubr.bf16.gmra.mxu0 %v3207
      %v3324 = vpop.f32.mrf.mxu0
      %v3325 = vadd.f32 0.0, %v3324
      %v3326 = vpop.f32.mrf.mxu0
      %v3327 = vpop.f32.mrf.mxu0
      %v3328 = vadd.f32 0.0, %v3327
      %v3329 = vpop.f32.mrf.mxu0
      %3330 = vmatprep.mubr.bf16.mxu0 0
      %3331 = vmatmul.mubr.bf16.gmra.mxu0 %v3210
      %v3332 = vpop.f32.mrf.mxu0
      %v3333 = vadd.f32 0.0, %v3332
      %v3334 = vpop.f32.mrf.mxu0
      %v3335 = vpop.f32.mrf.mxu0
      %v3336 = vadd.f32 0.0, %v3335
      %v3337 = vpop.f32.mrf.mxu0
      %3338 = vmatprep.mubr.bf16.mxu0 0
      %3339 = vmatmul.mubr.bf16.gmra.mxu0 %v3213
      %v3340 = vpop.f32.mrf.mxu0
      %v3341 = vadd.f32 0.0, %v3340
      %v3342 = vpop.f32.mrf.mxu0
      %v3343 = vpop.f32.mrf.mxu0
      %v3344 = vadd.f32 0.0, %v3343
      %v3345 = vpop.f32.mrf.mxu0
      %3346 = vmatprep.mubr.bf16.mxu0 0
      %3347 = vmatmul.mubr.bf16.gmra.mxu0 %v3216
      %v3348 = vpop.f32.mrf.mxu0
      %v3349 = vadd.f32 0.0, %v3348
      %v3350 = vpop.f32.mrf.mxu0
      %v3351 = vpop.f32.mrf.mxu0
      %v3352 = vadd.f32 0.0, %v3351
      %v3353 = vpop.f32.mrf.mxu0
      %3354 = vmatprep.mubr.bf16.mxu0 0
      %3355 = vmatmul.mubr.bf16.gmra.mxu0 %v3219
      %v3356 = vpop.f32.mrf.mxu0
      %v3357 = vadd.f32 0.0, %v3356
      %v3358 = vpop.f32.mrf.mxu0
      %v3359 = vpop.f32.mrf.mxu0
      %v3360 = vadd.f32 0.0, %v3359
      %v3361 = vpop.f32.mrf.mxu0
      %3362 = vmatprep.mubr.bf16.mxu0 0
      %3363 = vmatmul.mubr.bf16.gmra.mxu0 %v3222
      %v3364 = vpop.f32.mrf.mxu0
      %v3365 = vadd.f32 0.0, %v3364
      %v3366 = vpop.f32.mrf.mxu0
      %v3367 = vpop.f32.mrf.mxu0
      %v3368 = vadd.f32 0.0, %v3367
      %v3369 = vpop.f32.mrf.mxu0
      %3370 = vmatprep.mubr.bf16.mxu0 0
      %3371 = vmatmul.mubr.bf16.gmra.mxu0 %v3225
      %v3372 = vpop.f32.mrf.mxu0
      %v3373 = vadd.f32 0.0, %v3372
      %v3374 = vpop.f32.mrf.mxu0
      %v3375 = vpop.f32.mrf.mxu0
      %v3376 = vadd.f32 0.0, %v3375
      %v3377 = vpop.f32.mrf.mxu0
      %3378 = vmatprep.mubr.bf16.mxu0 0
      %3379 = vmatmul.mubr.bf16.gmra.mxu0 %v3228
      %v3380 = vpop.f32.mrf.mxu0
      %v3381 = vadd.f32 0.0, %v3380
      %v3382 = vpop.f32.mrf.mxu0
      %v3383 = vpop.f32.mrf.mxu0
      %v3384 = vadd.f32 0.0, %v3383
      %v3385 = vpop.f32.mrf.mxu0
      %3386 = vmatprep.mubr.bf16.mxu0 0
      %3387 = vmatmul.mubr.bf16.gmra.mxu0 %v3231
      %v3388 = vpop.f32.mrf.mxu0
      %v3389 = vadd.f32 0.0, %v3388
      %v3390 = vpop.f32.mrf.mxu0
      %v3391 = vpop.f32.mrf.mxu0
      %v3392 = vadd.f32 0.0, %v3391
      %v3393 = vpop.f32.mrf.mxu0
      %3394 = vmatprep.mubr.bf16.mxu0 0
      %3395 = vmatmul.mubr.bf16.gmra.mxu0 %v3234
      %v3396 = vpop.f32.mrf.mxu0
      %v3397 = vadd.f32 0.0, %v3396
      %v3398 = vpop.f32.mrf.mxu0
      %v3399 = vpop.f32.mrf.mxu0
      %v3400 = vadd.f32 0.0, %v3399
      %v3401 = vpop.f32.mrf.mxu0
      %3402 = vmatprep.mubr.bf16.mxu0 0
      %3403 = vmatmul.mubr.bf16.gmra.mxu0 %v3237
      %v3404 = vpop.f32.mrf.mxu0
      %v3405 = vadd.f32 0.0, %v3404
      %v3406 = vpop.f32.mrf.mxu0
      %v3407 = vpop.f32.mrf.mxu0
      %v3408 = vadd.f32 0.0, %v3407
      %v3409 = vpop.f32.mrf.mxu0
      %3410 = vmatprep.mubr.bf16.mxu0 0
      %3411 = vmatmul.mubr.bf16.gmra.mxu0 %v3240
      %v3412 = vpop.f32.mrf.mxu0
      %v3413 = vadd.f32 0.0, %v3412
      %v3414 = vpop.f32.mrf.mxu0
      %v3415 = vpop.f32.mrf.mxu0
      %v3416 = vadd.f32 0.0, %v3415
      %v3417 = vpop.f32.mrf.mxu0
      %3418 = vdwg.mxu0
      %v3419 = vadd.f32 %v2960, %v3277
      %v3420 = vadd.f32 %v2961, %v3280
      %v3421 = vadd.f32 %v2962, %v3285
      %v3422 = vadd.f32 %v2963, %v3288
      %v3423 = vadd.f32 %v2964, %v3293
      %v3424 = vadd.f32 %v2965, %v3296
      %v3425 = vadd.f32 %v2966, %v3301
      %v3426 = vadd.f32 %v2967, %v3304
      %v3427 = vadd.f32 %v2968, %v3309
      %v3428 = vadd.f32 %v2969, %v3312
      %v3429 = vadd.f32 %v2970, %v3317
      %v3430 = vadd.f32 %v2971, %v3320
      %v3431 = vadd.f32 %v2972, %v3325
      %v3432 = vadd.f32 %v2973, %v3328
      %v3433 = vadd.f32 %v2974, %v3333
      %v3434 = vadd.f32 %v2975, %v3336
      %v3435 = vadd.f32 %v2976, %v3341
      %v3436 = vadd.f32 %v2977, %v3344
      %v3437 = vadd.f32 %v2978, %v3349
      %v3438 = vadd.f32 %v2979, %v3352
      %v3439 = vadd.f32 %v2980, %v3357
      %v3440 = vadd.f32 %v2981, %v3360
      %v3441 = vadd.f32 %v2982, %v3365
      %v3442 = vadd.f32 %v2983, %v3368
      %v3443 = vadd.f32 %v2984, %v3373
      %v3444 = vadd.f32 %v2985, %v3376
      %v3445 = vadd.f32 %v2986, %v3381
      %v3446 = vadd.f32 %v2987, %v3384
      %v3447 = vadd.f32 %v2988, %v3389
      %v3448 = vadd.f32 %v2989, %v3392
      %v3449 = vadd.f32 %v2990, %v3397
      %v3450 = vadd.f32 %v2991, %v3400
      %v3451 = vadd.f32 %v2992, %v3405
      %v3452 = vadd.f32 %v2993, %v3408
      %v3453 = vadd.f32 %v2994, %v3413
      %v3454 = vadd.f32 %v2995, %v3416
      %v3455 = vld [vmem:[%s219 + $0x10] sm:$0x8]
      %s3456 = scalar_lea.vmem %s1, 128
      %v3457 = vld [vmem:[%s3456] sm:$0xf]
      %v3458 = vld [vmem:[%s3456 + $0x4] sm:$0xf]
      %v3459 = vld [vmem:[%s3456 + $0x8] sm:$0xf]
      %v3460 = vld [vmem:[%s3456 + $0xc] sm:$0xf]
      %v3462 = vunpack.c.l.b16 %v3455
      %v3463 = vpack.c.b16 %v2625, %v3462
      %vm3464 = vcmask 1044480
      %v3465 = vrot.slane %v3463, 3
      %v3466 = vrot.slane %v2662, 3
      %v3467 = vsel %vm3464, %v3465, %v3466
      %v3468 = vrot.slane %v2663, 3
      %v3469 = vsel %vm3464, %v3466, %v3468
      %v3470 = vrot.slane %v2664, 3
      %v3471 = vsel %vm3464, %v3468, %v3470
      %v3472 = vrot.slane %v2665, 3
      %v3473 = vsel %vm3464, %v3470, %v3472
      %v3474 = vrot.slane %v2666, 3
      %v3475 = vsel %vm3464, %v3472, %v3474
      %v3476 = vrot.slane %v2667, 3
      %v3477 = vsel %vm3464, %v3474, %v3476
      %v3478 = vrot.slane %v2668, 3
      %v3479 = vsel %vm3464, %v3476, %v3478
      %v3480 = vrot.slane %v2669, 3
      %v3481 = vsel %vm3464, %v3478, %v3480
      %v3482 = vrot.slane %v2670, 3
      %v3483 = vsel %vm3464, %v3480, %v3482
      %v3484 = vrot.slane %v2671, 3
      %v3485 = vsel %vm3464, %v3482, %v3484
      %v3486 = vrot.slane %v2672, 3
      %v3487 = vsel %vm3464, %v3484, %v3486
      %v3488 = vrot.slane %v2673, 3
      %v3489 = vsel %vm3464, %v3486, %v3488
      %v3490 = vrot.slane %v2674, 3
      %v3491 = vsel %vm3464, %v3488, %v3490
      %v3492 = vrot.slane %v2675, 3
      %v3493 = vsel %vm3464, %v3490, %v3492
      %v3494 = vrot.slane %v2676, 3
      %v3495 = vsel %vm3464, %v3492, %v3494
      %v3496 = vrot.slane %v2677, 3
      %v3497 = vsel %vm3464, %v3494, %v3496
      %v3498 = vrot.slane %v2678, 3
      %v3499 = vsel %vm3464, %v3496, %v3498
      %v3500 = vrot.slane %v3004, 3
      %v3501 = vsel %vm3464, %v3498, %v3500
      %v3506 = vunpack.c.l.b16 %v3457
      %v3507 = vunpack.c.l.b16 %v3458
      %v3508 = vunpack.c.l.b16 %v3459
      %v3509 = vunpack.c.l.b16 %v3460
      %v3510 = vpack.c.b16 %v3507, %v3506
      %v3511 = vpack.c.b16 %v3509, %v3508
      %v3515 = vsel %vm526, %v3467, 0
      %v3518 = vsel %vm526, %v3469, 0
      %v3521 = vsel %vm526, %v3471, 0
      %v3524 = vsel %vm526, %v3473, 0
      %v3527 = vsel %vm526, %v3475, 0
      %v3530 = vsel %vm526, %v3477, 0
      %v3533 = vsel %vm526, %v3479, 0
      %v3536 = vsel %vm526, %v3481, 0
      %v3539 = vsel %vm526, %v3483, 0
      %v3542 = vsel %vm526, %v3485, 0
      %v3545 = vsel %vm526, %v3487, 0
      %v3548 = vsel %vm526, %v3489, 0
      %v3551 = vsel %vm526, %v3491, 0
      %v3554 = vsel %vm526, %v3493, 0
      %v3557 = vsel %vm526, %v3495, 0
      %v3560 = vsel %vm526, %v3497, 0
      %v3563 = vsel %vm526, %v3499, 0
      %v3566 = vsel %vm526, %v3501, 0
      %3568 = vmatprep.subr.bf16.mxu0 0
      %3569 = vmatpush1.bf16.msra.mxu0 0
      %3570 = vmatprep.subr.bf16.mxu0 0
      %3571 = vmatpush1.bf16.msra.mxu0 0
      %3572 = vmatprep.subr.bf16.mxu0 0
      %3573 = vmatpush1.bf16.msra.mxu0 0
      %3574 = vmatprep.subr.bf16.mxu0 0
      %3575 = vmatpush1.bf16.msra.mxu0 0
      %3576 = vmatprep.subr.bf16.mxu0 0
      %3577 = vmatpush1.bf16.msra.mxu0 0
      %3578 = vmatprep.subr.bf16.mxu0 0
      %3579 = vmatpush1.bf16.msra.mxu0 0
      %3580 = vmatprep.subr.bf16.mxu0 0
      %3581 = vmatpush1.bf16.msra.mxu0 %v3511
      %3582 = vmatprep.subr.bf16.mxu0 0
      %3583 = vmatpush1.bf16.msra.mxu0 %v3510
      %3584 = vmatprep.subr.bf16.mxu0 0
      %3585 = vmatpush2.bf16.msra.mxu0 0
      %3586 = vmatprep.subr.bf16.mxu0 0
      %3587 = vmatpush2.bf16.msra.mxu0 0
      %3588 = vmatprep.subr.bf16.mxu0 0
      %3589 = vmatpush2.bf16.msra.mxu0 0
      %3590 = vmatprep.subr.bf16.mxu0 0
      %3591 = vmatpush2.bf16.msra.mxu0 0
      %3592 = vmatprep.subr.bf16.mxu0 0
      %3593 = vmatpush2.bf16.msra.mxu0 0
      %3594 = vmatprep.subr.bf16.mxu0 0
      %3595 = vmatpush2.bf16.msra.mxu0 0
      %3596 = vmatprep.subr.bf16.mxu0 0
      %3597 = vmatpush2.bf16.msra.mxu0 0
      %3598 = vmatprep.subr.bf16.mxu0 0
      %3599 = vmatpush2.bf16.msra.mxu0 0
      %3600 = vmatprep.mubr.bf16.mxu0 0
      %3601 = vmatmul.mubr.bf16.gmra.mxu0 %v3515
      %v3602 = vpop.f32.mrf.mxu0
      %v3603 = vadd.f32 0.0, %v3602
      %v3604 = vpop.f32.mrf.mxu0
      %v3605 = vpop.f32.mrf.mxu0
      %v3606 = vadd.f32 0.0, %v3605
      %v3607 = vpop.f32.mrf.mxu0
      %3608 = vmatprep.mubr.bf16.mxu0 0
      %3609 = vmatmul.mubr.bf16.gmra.mxu0 %v3518
      %v3610 = vpop.f32.mrf.mxu0
      %v3611 = vadd.f32 0.0, %v3610
      %v3612 = vpop.f32.mrf.mxu0
      %v3613 = vpop.f32.mrf.mxu0
      %v3614 = vadd.f32 0.0, %v3613
      %v3615 = vpop.f32.mrf.mxu0
      %3616 = vmatprep.mubr.bf16.mxu0 0
      %3617 = vmatmul.mubr.bf16.gmra.mxu0 %v3521
      %v3618 = vpop.f32.mrf.mxu0
      %v3619 = vadd.f32 0.0, %v3618
      %v3620 = vpop.f32.mrf.mxu0
      %v3621 = vpop.f32.mrf.mxu0
      %v3622 = vadd.f32 0.0, %v3621
      %v3623 = vpop.f32.mrf.mxu0
      %3624 = vmatprep.mubr.bf16.mxu0 0
      %3625 = vmatmul.mubr.bf16.gmra.mxu0 %v3524
      %v3626 = vpop.f32.mrf.mxu0
      %v3627 = vadd.f32 0.0, %v3626
      %v3628 = vpop.f32.mrf.mxu0
      %v3629 = vpop.f32.mrf.mxu0
      %v3630 = vadd.f32 0.0, %v3629
      %v3631 = vpop.f32.mrf.mxu0
      %3632 = vmatprep.mubr.bf16.mxu0 0
      %3633 = vmatmul.mubr.bf16.gmra.mxu0 %v3527
      %v3634 = vpop.f32.mrf.mxu0
      %v3635 = vadd.f32 0.0, %v3634
      %v3636 = vpop.f32.mrf.mxu0
      %v3637 = vpop.f32.mrf.mxu0
      %v3638 = vadd.f32 0.0, %v3637
      %v3639 = vpop.f32.mrf.mxu0
      %3640 = vmatprep.mubr.bf16.mxu0 0
      %3641 = vmatmul.mubr.bf16.gmra.mxu0 %v3530
      %v3642 = vpop.f32.mrf.mxu0
      %v3643 = vadd.f32 0.0, %v3642
      %v3644 = vpop.f32.mrf.mxu0
      %v3645 = vpop.f32.mrf.mxu0
      %v3646 = vadd.f32 0.0, %v3645
      %v3647 = vpop.f32.mrf.mxu0
      %3648 = vmatprep.mubr.bf16.mxu0 0
      %3649 = vmatmul.mubr.bf16.gmra.mxu0 %v3533
      %v3650 = vpop.f32.mrf.mxu0
      %v3651 = vadd.f32 0.0, %v3650
      %v3652 = vpop.f32.mrf.mxu0
      %v3653 = vpop.f32.mrf.mxu0
      %v3654 = vadd.f32 0.0, %v3653
      %v3655 = vpop.f32.mrf.mxu0
      %3656 = vmatprep.mubr.bf16.mxu0 0
      %3657 = vmatmul.mubr.bf16.gmra.mxu0 %v3536
      %v3658 = vpop.f32.mrf.mxu0
      %v3659 = vadd.f32 0.0, %v3658
      %v3660 = vpop.f32.mrf.mxu0
      %v3661 = vpop.f32.mrf.mxu0
      %v3662 = vadd.f32 0.0, %v3661
      %v3663 = vpop.f32.mrf.mxu0
      %3664 = vmatprep.mubr.bf16.mxu0 0
      %3665 = vmatmul.mubr.bf16.gmra.mxu0 %v3539
      %v3666 = vpop.f32.mrf.mxu0
      %v3667 = vadd.f32 0.0, %v3666
      %v3668 = vpop.f32.mrf.mxu0
      %v3669 = vpop.f32.mrf.mxu0
      %v3670 = vadd.f32 0.0, %v3669
      %v3671 = vpop.f32.mrf.mxu0
      %3672 = vmatprep.mubr.bf16.mxu0 0
      %3673 = vmatmul.mubr.bf16.gmra.mxu0 %v3542
      %v3674 = vpop.f32.mrf.mxu0
      %v3675 = vadd.f32 0.0, %v3674
      %v3676 = vpop.f32.mrf.mxu0
      %v3677 = vpop.f32.mrf.mxu0
      %v3678 = vadd.f32 0.0, %v3677
      %v3679 = vpop.f32.mrf.mxu0
      %3680 = vmatprep.mubr.bf16.mxu0 0
      %3681 = vmatmul.mubr.bf16.gmra.mxu0 %v3545
      %v3682 = vpop.f32.mrf.mxu0
      %v3683 = vadd.f32 0.0, %v3682
      %v3684 = vpop.f32.mrf.mxu0
      %v3685 = vpop.f32.mrf.mxu0
      %v3686 = vadd.f32 0.0, %v3685
      %v3687 = vpop.f32.mrf.mxu0
      %3688 = vmatprep.mubr.bf16.mxu0 0
      %3689 = vmatmul.mubr.bf16.gmra.mxu0 %v3548
      %v3690 = vpop.f32.mrf.mxu0
      %v3691 = vadd.f32 0.0, %v3690
      %v3692 = vpop.f32.mrf.mxu0
      %v3693 = vpop.f32.mrf.mxu0
      %v3694 = vadd.f32 0.0, %v3693
      %v3695 = vpop.f32.mrf.mxu0
      %3696 = vmatprep.mubr.bf16.mxu0 0
      %3697 = vmatmul.mubr.bf16.gmra.mxu0 %v3551
      %v3698 = vpop.f32.mrf.mxu0
      %v3699 = vadd.f32 0.0, %v3698
      %v3700 = vpop.f32.mrf.mxu0
      %v3701 = vpop.f32.mrf.mxu0
      %v3702 = vadd.f32 0.0, %v3701
      %v3703 = vpop.f32.mrf.mxu0
      %3704 = vmatprep.mubr.bf16.mxu0 0
      %3705 = vmatmul.mubr.bf16.gmra.mxu0 %v3554
      %v3706 = vpop.f32.mrf.mxu0
      %v3707 = vadd.f32 0.0, %v3706
      %v3708 = vpop.f32.mrf.mxu0
      %v3709 = vpop.f32.mrf.mxu0
      %v3710 = vadd.f32 0.0, %v3709
      %v3711 = vpop.f32.mrf.mxu0
      %3712 = vmatprep.mubr.bf16.mxu0 0
      %3713 = vmatmul.mubr.bf16.gmra.mxu0 %v3557
      %v3714 = vpop.f32.mrf.mxu0
      %v3715 = vadd.f32 0.0, %v3714
      %v3716 = vpop.f32.mrf.mxu0
      %v3717 = vpop.f32.mrf.mxu0
      %v3718 = vadd.f32 0.0, %v3717
      %v3719 = vpop.f32.mrf.mxu0
      %3720 = vmatprep.mubr.bf16.mxu0 0
      %3721 = vmatmul.mubr.bf16.gmra.mxu0 %v3560
      %v3722 = vpop.f32.mrf.mxu0
      %v3723 = vadd.f32 0.0, %v3722
      %v3724 = vpop.f32.mrf.mxu0
      %v3725 = vpop.f32.mrf.mxu0
      %v3726 = vadd.f32 0.0, %v3725
      %v3727 = vpop.f32.mrf.mxu0
      %3728 = vmatprep.mubr.bf16.mxu0 0
      %3729 = vmatmul.mubr.bf16.gmra.mxu0 %v3563
      %v3730 = vpop.f32.mrf.mxu0
      %v3731 = vadd.f32 0.0, %v3730
      %v3732 = vpop.f32.mrf.mxu0
      %v3733 = vpop.f32.mrf.mxu0
      %v3734 = vadd.f32 0.0, %v3733
      %v3735 = vpop.f32.mrf.mxu0
      %3736 = vmatprep.mubr.bf16.mxu0 0
      %3737 = vmatmul.mubr.bf16.gmra.mxu0 %v3566
      %v3738 = vpop.f32.mrf.mxu0
      %v3739 = vadd.f32 0.0, %v3738
      %v3740 = vpop.f32.mrf.mxu0
      %v3741 = vpop.f32.mrf.mxu0
      %v3742 = vadd.f32 0.0, %v3741
      %v3743 = vpop.f32.mrf.mxu0
      %3744 = vdwg.mxu0
      %v3745 = vadd.f32 %v3419, %v3603
      %v3746 = vadd.f32 %v3420, %v3606
      %v3747 = vadd.f32 %v3421, %v3611
      %v3748 = vadd.f32 %v3422, %v3614
      %v3749 = vadd.f32 %v3423, %v3619
      %v3750 = vadd.f32 %v3424, %v3622
      %v3751 = vadd.f32 %v3425, %v3627
      %v3752 = vadd.f32 %v3426, %v3630
      %v3753 = vadd.f32 %v3427, %v3635
      %v3754 = vadd.f32 %v3428, %v3638
      %v3755 = vadd.f32 %v3429, %v3643
      %v3756 = vadd.f32 %v3430, %v3646
      %v3757 = vadd.f32 %v3431, %v3651
      %v3758 = vadd.f32 %v3432, %v3654
      %v3759 = vadd.f32 %v3433, %v3659
      %v3760 = vadd.f32 %v3434, %v3662
      %v3761 = vadd.f32 %v3435, %v3667
      %v3762 = vadd.f32 %v3436, %v3670
      %v3763 = vadd.f32 %v3437, %v3675
      %v3764 = vadd.f32 %v3438, %v3678
      %v3765 = vadd.f32 %v3439, %v3683
      %v3766 = vadd.f32 %v3440, %v3686
      %v3767 = vadd.f32 %v3441, %v3691
      %v3768 = vadd.f32 %v3442, %v3694
      %v3769 = vadd.f32 %v3443, %v3699
      %v3770 = vadd.f32 %v3444, %v3702
      %v3771 = vadd.f32 %v3445, %v3707
      %v3772 = vadd.f32 %v3446, %v3710
      %v3773 = vadd.f32 %v3447, %v3715
      %v3774 = vadd.f32 %v3448, %v3718
      %v3775 = vadd.f32 %v3449, %v3723
      %v3776 = vadd.f32 %v3450, %v3726
      %v3777 = vadd.f32 %v3451, %v3731
      %v3778 = vadd.f32 %v3452, %v3734
      %v3779 = vadd.f32 %v3453, %v3739
      %v3780 = vadd.f32 %v3454, %v3742
      %v3781 = vld [vmem:[%s2] sm:$0x1]
      %v3783 = vlaneseq
      %v3784 = vshrl.u32 %v3783, 7
      %v3785 = vsub.s32 0, %v3784
      %v3786 = vrot.slane %v3781, %v3785
      %v3788 = vadd.f32 %v3745, %v3786
      %v3789 = vadd.f32 %v3746, %v3786
      %v3790 = vadd.f32 %v3747, %v3786
      %v3791 = vadd.f32 %v3748, %v3786
      %v3792 = vadd.f32 %v3749, %v3786
      %v3793 = vadd.f32 %v3750, %v3786
      %v3794 = vadd.f32 %v3751, %v3786
      %v3795 = vadd.f32 %v3752, %v3786
      %v3796 = vadd.f32 %v3753, %v3786
      %v3797 = vadd.f32 %v3754, %v3786
      %v3798 = vadd.f32 %v3755, %v3786
      %v3799 = vadd.f32 %v3756, %v3786
      %v3800 = vadd.f32 %v3757, %v3786
      %v3801 = vadd.f32 %v3758, %v3786
      %v3802 = vadd.f32 %v3759, %v3786
      %v3803 = vadd.f32 %v3760, %v3786
      %v3804 = vadd.f32 %v3761, %v3786
      %v3805 = vadd.f32 %v3762, %v3786
      %v3806 = vadd.f32 %v3763, %v3786
      %v3807 = vadd.f32 %v3764, %v3786
      %v3808 = vadd.f32 %v3765, %v3786
      %v3809 = vadd.f32 %v3766, %v3786
      %v3810 = vadd.f32 %v3767, %v3786
      %v3811 = vadd.f32 %v3768, %v3786
      %v3812 = vadd.f32 %v3769, %v3786
      %v3813 = vadd.f32 %v3770, %v3786
      %v3814 = vadd.f32 %v3771, %v3786
      %v3815 = vadd.f32 %v3772, %v3786
      %v3816 = vadd.f32 %v3773, %v3786
      %v3817 = vadd.f32 %v3774, %v3786
      %v3818 = vadd.f32 %v3775, %v3786
      %v3819 = vadd.f32 %v3776, %v3786
      %v3820 = vadd.f32 %v3777, %v3786
      %v3821 = vadd.f32 %v3778, %v3786
      %v3822 = vadd.f32 %v3779, %v3786
      %v3823 = vadd.f32 %v3780, %v3786
      %v3824 = vmax.f32 %v3788, 0.0
      %v3825 = vmax.f32 %v3789, 0.0
      %v3826 = vmax.f32 %v3790, 0.0
      %v3827 = vmax.f32 %v3791, 0.0
      %v3828 = vmax.f32 %v3792, 0.0
      %v3829 = vmax.f32 %v3793, 0.0
      %v3830 = vmax.f32 %v3794, 0.0
      %v3831 = vmax.f32 %v3795, 0.0
      %v3832 = vmax.f32 %v3796, 0.0
      %v3833 = vmax.f32 %v3797, 0.0
      %v3834 = vmax.f32 %v3798, 0.0
      %v3835 = vmax.f32 %v3799, 0.0
      %v3836 = vmax.f32 %v3800, 0.0
      %v3837 = vmax.f32 %v3801, 0.0
      %v3838 = vmax.f32 %v3802, 0.0
      %v3839 = vmax.f32 %v3803, 0.0
      %v3840 = vmax.f32 %v3804, 0.0
      %v3841 = vmax.f32 %v3805, 0.0
      %v3842 = vmax.f32 %v3806, 0.0
      %v3843 = vmax.f32 %v3807, 0.0
      %v3844 = vmax.f32 %v3808, 0.0
      %v3845 = vmax.f32 %v3809, 0.0
      %v3846 = vmax.f32 %v3810, 0.0
      %v3847 = vmax.f32 %v3811, 0.0
      %v3848 = vmax.f32 %v3812, 0.0
      %v3849 = vmax.f32 %v3813, 0.0
      %v3850 = vmax.f32 %v3814, 0.0
      %v3851 = vmax.f32 %v3815, 0.0
      %v3852 = vmax.f32 %v3816, 0.0
      %v3853 = vmax.f32 %v3817, 0.0
      %v3854 = vmax.f32 %v3818, 0.0
      %v3855 = vmax.f32 %v3819, 0.0
      %v3856 = vmax.f32 %v3820, 0.0
      %v3857 = vmax.f32 %v3821, 0.0
      %v3858 = vmax.f32 %v3822, 0.0
      %v3859 = vmax.f32 %v3823, 0.0
      %v3860 = vpack.c.bf16 %v3825, %v3824
      %v3861 = vpack.c.bf16 %v3827, %v3826
      %v3862 = vpack.c.bf16 %v3829, %v3828
      %v3863 = vpack.c.bf16 %v3831, %v3830
      %v3864 = vpack.c.bf16 %v3833, %v3832
      %v3865 = vpack.c.bf16 %v3835, %v3834
      %v3866 = vpack.c.bf16 %v3837, %v3836
      %v3867 = vpack.c.bf16 %v3839, %v3838
      %v3868 = vpack.c.bf16 %v3841, %v3840
      %v3869 = vpack.c.bf16 %v3843, %v3842
      %v3870 = vpack.c.bf16 %v3845, %v3844
      %v3871 = vpack.c.bf16 %v3847, %v3846
      %v3872 = vpack.c.bf16 %v3849, %v3848
      %v3873 = vpack.c.bf16 %v3851, %v3850
      %v3874 = vpack.c.bf16 %v3853, %v3852
      %v3875 = vpack.c.bf16 %v3855, %v3854
      %v3876 = vpack.c.bf16 %v3857, %v3856
      %v3877 = vpack.c.bf16 %v3859, %v3858
      %v3878 = vld [vmem:[%s3] sm:$0xf]
      %v3879 = vld [vmem:[%s3 + $0x4] sm:$0xf]
      %v3880 = vld [vmem:[%s3 + $0x8] sm:$0xf]
      %v3881 = vld [vmem:[%s3 + $0xc] sm:$0xf]
      %v3882 = vld [vmem:[%s3 + $0x10] sm:$0xf]
      %v3883 = vld [vmem:[%s3 + $0x14] sm:$0xf]
      %v3884 = vld [vmem:[%s3 + $0x18] sm:$0xf]
      %v3885 = vld [vmem:[%s3 + $0x1c] sm:$0xf]
      %v3886 = vld [vmem:[%s3 + $0x20] sm:$0xf]
      %v3887 = vld [vmem:[%s3 + $0x24] sm:$0xf]
      %v3888 = vld [vmem:[%s3 + $0x28] sm:$0xf]
      %v3889 = vld [vmem:[%s3 + $0x2c] sm:$0xf]
      %v3890 = vld [vmem:[%s3 + $0x30] sm:$0xf]
      %v3891 = vld [vmem:[%s3 + $0x34] sm:$0xf]
      %v3892 = vld [vmem:[%s3 + $0x38] sm:$0xf]
      %v3893 = vld [vmem:[%s3 + $0x3c] sm:$0xf]
      %v3894 = vld [vmem:[%s4] sm:$0x1]
      %v3896 = vlaneseq
      %v3897 = vshrl.u32 %v3896, 7
      %v3898 = vsub.s32 0, %v3897
      %v3899 = vrot.slane %v3894, %v3898
      %v3917 = vunpack.c.l.b16 %v3878
      %v3918 = vunpack.c.l.b16 %v3879
      %v3919 = vunpack.c.l.b16 %v3880
      %v3920 = vunpack.c.l.b16 %v3881
      %v3921 = vunpack.c.l.b16 %v3882
      %v3922 = vunpack.c.l.b16 %v3883
      %v3923 = vunpack.c.l.b16 %v3884
      %v3924 = vunpack.c.l.b16 %v3885
      %v3925 = vunpack.c.l.b16 %v3886
      %v3926 = vunpack.c.l.b16 %v3887
      %v3927 = vunpack.c.l.b16 %v3888
      %v3928 = vunpack.c.l.b16 %v3889
      %v3929 = vunpack.c.l.b16 %v3890
      %v3930 = vunpack.c.l.b16 %v3891
      %v3931 = vunpack.c.l.b16 %v3892
      %v3932 = vunpack.c.l.b16 %v3893
      %v3933 = vpack.c.b16 %v3918, %v3917
      %v3934 = vpack.c.b16 %v3920, %v3919
      %v3935 = vpack.c.b16 %v3922, %v3921
      %v3936 = vpack.c.b16 %v3924, %v3923
      %v3937 = vpack.c.b16 %v3926, %v3925
      %v3938 = vpack.c.b16 %v3928, %v3927
      %v3939 = vpack.c.b16 %v3930, %v3929
      %v3940 = vpack.c.b16 %v3932, %v3931
      %3949 = vmatprep.subr.bf16.mxu0 0
      %3950 = vmatpush1.bf16.msra.mxu0 %v3940
      %3951 = vmatprep.subr.bf16.mxu0 0
      %3952 = vmatpush1.bf16.msra.mxu0 %v3939
      %3953 = vmatprep.subr.bf16.mxu0 0
      %3954 = vmatpush1.bf16.msra.mxu0 %v3938
      %3955 = vmatprep.subr.bf16.mxu0 0
      %3956 = vmatpush1.bf16.msra.mxu0 %v3937
      %3957 = vmatprep.subr.bf16.mxu0 0
      %3958 = vmatpush1.bf16.msra.mxu0 %v3936
      %3959 = vmatprep.subr.bf16.mxu0 0
      %3960 = vmatpush1.bf16.msra.mxu0 %v3935
      %3961 = vmatprep.subr.bf16.mxu0 0
      %3962 = vmatpush1.bf16.msra.mxu0 %v3934
      %3963 = vmatprep.subr.bf16.mxu0 0
      %3964 = vmatpush1.bf16.msra.mxu0 %v3933
      %3965 = vmatprep.subr.bf16.mxu0 0
      %3966 = vmatpush2.bf16.msra.mxu0 0
      %3967 = vmatprep.subr.bf16.mxu0 0
      %3968 = vmatpush2.bf16.msra.mxu0 0
      %3969 = vmatprep.subr.bf16.mxu0 0
      %3970 = vmatpush2.bf16.msra.mxu0 0
      %3971 = vmatprep.subr.bf16.mxu0 0
      %3972 = vmatpush2.bf16.msra.mxu0 0
      %3973 = vmatprep.subr.bf16.mxu0 0
      %3974 = vmatpush2.bf16.msra.mxu0 0
      %3975 = vmatprep.subr.bf16.mxu0 0
      %3976 = vmatpush2.bf16.msra.mxu0 0
      %3977 = vmatprep.subr.bf16.mxu0 0
      %3978 = vmatpush2.bf16.msra.mxu0 0
      %3979 = vmatprep.subr.bf16.mxu0 0
      %3980 = vmatpush2.bf16.msra.mxu0 0
      %3981 = vmatprep.mubr.bf16.mxu0 0
      %3982 = vmatmul.mubr.bf16.gmra.mxu0 %v3860
      %v3983 = vpop.f32.mrf.mxu0
      %v3984 = vadd.f32 %v3899, %v3983
      %v3985 = vpop.f32.mrf.mxu0
      %v3986 = vpop.f32.mrf.mxu0
      %v3987 = vadd.f32 %v3899, %v3986
      %v3988 = vpop.f32.mrf.mxu0
      %3989 = vmatprep.mubr.bf16.mxu0 0
      %3990 = vmatmul.mubr.bf16.gmra.mxu0 %v3861
      %v3991 = vpop.f32.mrf.mxu0
      %v3992 = vadd.f32 %v3899, %v3991
      %v3993 = vpop.f32.mrf.mxu0
      %v3994 = vpop.f32.mrf.mxu0
      %v3995 = vadd.f32 %v3899, %v3994
      %v3996 = vpop.f32.mrf.mxu0
      %3997 = vmatprep.mubr.bf16.mxu0 0
      %3998 = vmatmul.mubr.bf16.gmra.mxu0 %v3862
      %v3999 = vpop.f32.mrf.mxu0
      %v4000 = vadd.f32 %v3899, %v3999
      %v4001 = vpop.f32.mrf.mxu0
      %v4002 = vpop.f32.mrf.mxu0
      %v4003 = vadd.f32 %v3899, %v4002
      %v4004 = vpop.f32.mrf.mxu0
      %4005 = vmatprep.mubr.bf16.mxu0 0
      %4006 = vmatmul.mubr.bf16.gmra.mxu0 %v3863
      %v4007 = vpop.f32.mrf.mxu0
      %v4008 = vadd.f32 %v3899, %v4007
      %v4009 = vpop.f32.mrf.mxu0
      %v4010 = vpop.f32.mrf.mxu0
      %v4011 = vadd.f32 %v3899, %v4010
      %v4012 = vpop.f32.mrf.mxu0
      %4013 = vmatprep.mubr.bf16.mxu0 0
      %4014 = vmatmul.mubr.bf16.gmra.mxu0 %v3864
      %v4015 = vpop.f32.mrf.mxu0
      %v4016 = vadd.f32 %v3899, %v4015
      %v4017 = vpop.f32.mrf.mxu0
      %v4018 = vpop.f32.mrf.mxu0
      %v4019 = vadd.f32 %v3899, %v4018
      %v4020 = vpop.f32.mrf.mxu0
      %4021 = vmatprep.mubr.bf16.mxu0 0
      %4022 = vmatmul.mubr.bf16.gmra.mxu0 %v3865
      %v4023 = vpop.f32.mrf.mxu0
      %v4024 = vadd.f32 %v3899, %v4023
      %v4025 = vpop.f32.mrf.mxu0
      %v4026 = vpop.f32.mrf.mxu0
      %v4027 = vadd.f32 %v3899, %v4026
      %v4028 = vpop.f32.mrf.mxu0
      %4029 = vmatprep.mubr.bf16.mxu0 0
      %4030 = vmatmul.mubr.bf16.gmra.mxu0 %v3866
      %v4031 = vpop.f32.mrf.mxu0
      %v4032 = vadd.f32 %v3899, %v4031
      %v4033 = vpop.f32.mrf.mxu0
      %v4034 = vpop.f32.mrf.mxu0
      %v4035 = vadd.f32 %v3899, %v4034
      %v4036 = vpop.f32.mrf.mxu0
      %4037 = vmatprep.mubr.bf16.mxu0 0
      %4038 = vmatmul.mubr.bf16.gmra.mxu0 %v3867
      %v4039 = vpop.f32.mrf.mxu0
      %v4040 = vadd.f32 %v3899, %v4039
      %v4041 = vpop.f32.mrf.mxu0
      %v4042 = vpop.f32.mrf.mxu0
      %v4043 = vadd.f32 %v3899, %v4042
      %v4044 = vpop.f32.mrf.mxu0
      %4045 = vmatprep.mubr.bf16.mxu0 0
      %4046 = vmatmul.mubr.bf16.gmra.mxu0 %v3868
      %v4047 = vpop.f32.mrf.mxu0
      %v4048 = vadd.f32 %v3899, %v4047
      %v4049 = vpop.f32.mrf.mxu0
      %v4050 = vpop.f32.mrf.mxu0
      %v4051 = vadd.f32 %v3899, %v4050
      %v4052 = vpop.f32.mrf.mxu0
      %4053 = vmatprep.mubr.bf16.mxu0 0
      %4054 = vmatmul.mubr.bf16.gmra.mxu0 %v3869
      %v4055 = vpop.f32.mrf.mxu0
      %v4056 = vadd.f32 %v3899, %v4055
      %v4057 = vpop.f32.mrf.mxu0
      %v4058 = vpop.f32.mrf.mxu0
      %v4059 = vadd.f32 %v3899, %v4058
      %v4060 = vpop.f32.mrf.mxu0
      %4061 = vmatprep.mubr.bf16.mxu0 0
      %4062 = vmatmul.mubr.bf16.gmra.mxu0 %v3870
      %v4063 = vpop.f32.mrf.mxu0
      %v4064 = vadd.f32 %v3899, %v4063
      %v4065 = vpop.f32.mrf.mxu0
      %v4066 = vpop.f32.mrf.mxu0
      %v4067 = vadd.f32 %v3899, %v4066
      %v4068 = vpop.f32.mrf.mxu0
      %4069 = vmatprep.mubr.bf16.mxu0 0
      %4070 = vmatmul.mubr.bf16.gmra.mxu0 %v3871
      %v4071 = vpop.f32.mrf.mxu0
      %v4072 = vadd.f32 %v3899, %v4071
      %v4073 = vpop.f32.mrf.mxu0
      %v4074 = vpop.f32.mrf.mxu0
      %v4075 = vadd.f32 %v3899, %v4074
      %v4076 = vpop.f32.mrf.mxu0
      %4077 = vmatprep.mubr.bf16.mxu0 0
      %4078 = vmatmul.mubr.bf16.gmra.mxu0 %v3872
      %v4079 = vpop.f32.mrf.mxu0
      %v4080 = vadd.f32 %v3899, %v4079
      %v4081 = vpop.f32.mrf.mxu0
      %v4082 = vpop.f32.mrf.mxu0
      %v4083 = vadd.f32 %v3899, %v4082
      %v4084 = vpop.f32.mrf.mxu0
      %4085 = vmatprep.mubr.bf16.mxu0 0
      %4086 = vmatmul.mubr.bf16.gmra.mxu0 %v3873
      %v4087 = vpop.f32.mrf.mxu0
      %v4088 = vadd.f32 %v3899, %v4087
      %v4089 = vpop.f32.mrf.mxu0
      %v4090 = vpop.f32.mrf.mxu0
      %v4091 = vadd.f32 %v3899, %v4090
      %v4092 = vpop.f32.mrf.mxu0
      %4093 = vmatprep.mubr.bf16.mxu0 0
      %4094 = vmatmul.mubr.bf16.gmra.mxu0 %v3874
      %v4095 = vpop.f32.mrf.mxu0
      %v4096 = vadd.f32 %v3899, %v4095
      %v4097 = vpop.f32.mrf.mxu0
      %v4098 = vpop.f32.mrf.mxu0
      %v4099 = vadd.f32 %v3899, %v4098
      %v4100 = vpop.f32.mrf.mxu0
      %4101 = vmatprep.mubr.bf16.mxu0 0
      %4102 = vmatmul.mubr.bf16.gmra.mxu0 %v3875
      %v4103 = vpop.f32.mrf.mxu0
      %v4104 = vadd.f32 %v3899, %v4103
      %v4105 = vpop.f32.mrf.mxu0
      %v4106 = vpop.f32.mrf.mxu0
      %v4107 = vadd.f32 %v3899, %v4106
      %v4108 = vpop.f32.mrf.mxu0
      %4109 = vmatprep.mubr.bf16.mxu0 0
      %4110 = vmatmul.mubr.bf16.gmra.mxu0 %v3876
      %v4111 = vpop.f32.mrf.mxu0
      %v4112 = vadd.f32 %v3899, %v4111
      %v4113 = vpop.f32.mrf.mxu0
      %v4114 = vpop.f32.mrf.mxu0
      %v4115 = vadd.f32 %v3899, %v4114
      %v4116 = vpop.f32.mrf.mxu0
      %4117 = vmatprep.mubr.bf16.mxu0 0
      %4118 = vmatmul.mubr.bf16.gmra.mxu0 %v3877
      %v4119 = vpop.f32.mrf.mxu0
      %v4120 = vadd.f32 %v3899, %v4119
      %v4121 = vpop.f32.mrf.mxu0
      %v4122 = vpop.f32.mrf.mxu0
      %v4123 = vadd.f32 %v3899, %v4122
      %v4124 = vpop.f32.mrf.mxu0
      %4125 = vdwg.mxu0
      %vm4126 = vcmask 523264
      %4127 = vst.msk [vmem:[%s224] sm:$0xff] %vm4126, %v3984
      %4128 = vst.msk [vmem:[%s224 + $0x8] sm:$0xff] %vm4126, %v3987
      %4129 = vst.msk [vmem:[%s224 + $0x10] sm:$0xff] %vm4126, %v3992
      %4130 = vst.msk [vmem:[%s224 + $0x18] sm:$0xff] %vm4126, %v3995
      %4131 = vst.msk [vmem:[%s224 + $0x20] sm:$0xff] %vm4126, %v4000
      %4132 = vst.msk [vmem:[%s224 + $0x28] sm:$0xff] %vm4126, %v4003
      %4133 = vst.msk [vmem:[%s224 + $0x30] sm:$0xff] %vm4126, %v4008
      %4134 = vst.msk [vmem:[%s224 + $0x38] sm:$0xff] %vm4126, %v4011
      %4135 = vst.msk [vmem:[%s224 + $0x40] sm:$0xff] %vm4126, %v4016
      %4136 = vst.msk [vmem:[%s224 + $0x48] sm:$0xff] %vm4126, %v4019
      %4137 = vst.msk [vmem:[%s224 + $0x50] sm:$0xff] %vm4126, %v4024
      %4138 = vst.msk [vmem:[%s224 + $0x58] sm:$0xff] %vm4126, %v4027
      %4139 = vst.msk [vmem:[%s224 + $0x60] sm:$0xff] %vm4126, %v4032
      %4140 = vst.msk [vmem:[%s224 + $0x68] sm:$0xff] %vm4126, %v4035
      %4141 = vst.msk [vmem:[%s224 + $0x70] sm:$0xff] %vm4126, %v4040
      %4142 = vst.msk [vmem:[%s224 + $0x78] sm:$0xff] %vm4126, %v4043
      %4143 = vst.msk [vmem:[%s224 + $0x80] sm:$0xff] %vm4126, %v4048
      %4144 = vst.msk [vmem:[%s224 + $0x88] sm:$0xff] %vm4126, %v4051
      %4145 = vst.msk [vmem:[%s224 + $0x90] sm:$0xff] %vm4126, %v4056
      %4146 = vst.msk [vmem:[%s224 + $0x98] sm:$0xff] %vm4126, %v4059
      %4147 = vst.msk [vmem:[%s224 + $0xa0] sm:$0xff] %vm4126, %v4064
      %4148 = vst.msk [vmem:[%s224 + $0xa8] sm:$0xff] %vm4126, %v4067
      %4149 = vst.msk [vmem:[%s224 + $0xb0] sm:$0xff] %vm4126, %v4072
      %4150 = vst.msk [vmem:[%s224 + $0xb8] sm:$0xff] %vm4126, %v4075
      %4151 = vst.msk [vmem:[%s224 + $0xc0] sm:$0xff] %vm4126, %v4080
      %4152 = vst.msk [vmem:[%s224 + $0xc8] sm:$0xff] %vm4126, %v4083
      %4153 = vst.msk [vmem:[%s224 + $0xd0] sm:$0xff] %vm4126, %v4088
      %4154 = vst.msk [vmem:[%s224 + $0xd8] sm:$0xff] %vm4126, %v4091
      %4155 = vst.msk [vmem:[%s224 + $0xe0] sm:$0xff] %vm4126, %v4096
      %4156 = vst.msk [vmem:[%s224 + $0xe8] sm:$0xff] %vm4126, %v4099
      %4157 = vst.msk [vmem:[%s224 + $0xf0] sm:$0xff] %vm4126, %v4104
      %4158 = vst.msk [vmem:[%s224 + $0xf8] sm:$0xff] %vm4126, %v4107
      %4159 = vst.msk [vmem:[%s224 + $0x100] sm:$0xff] %vm4126, %v4112
      %4160 = vst.msk [vmem:[%s224 + $0x108] sm:$0xff] %vm4126, %v4115
      %4161 = vst.msk [vmem:[%s224 + $0x110] sm:$0xff] %vm4126, %v4120
      %4162 = vst.msk [vmem:[%s224 + $0x118] sm:$0xff] %vm4126, %v4123
      %p4163 = scmp.lt.s32.totalorder %s16, 1
      %s4164 = scalar_select %p4163, %s16, 1
      %s4165 = smul.addr %s4164, 36
      %s4166 = smul.addr %s4165, 8
      %s4167 = scalar_lea.vmem %s5, %s4166
      // Predicated region
      $region41: #{awr_forward.6} parent=39 // pred_check
        %p4168 = pneg %p144
      $region42: #{awr_forward.6} parent=39 // pred_check_branch
        %4170 = sbr.rel (%p4168) target = $region44
      $region43: #{awr_forward.6} parent=39 // pred_region
        _
      $region44: #{awr_forward.6} parent=39 // pred_fallthru
        _
    $region40: #{awr_forward.6} parent=5 // pred_fallthru
      _
    %p4171 = scmp.le.s32.totalorder 2, %s11
    // Predicated region
    $region45: #{awr_forward.6} parent=5 // pred_check
      %p4172 = pneg %p4171
    $region46: #{awr_forward.6} parent=5 // pred_check_branch
      %4174 = sbr.rel (%p4172) target = $region48
    $region47: #{awr_forward.6} parent=5 // pred_region
      %s4175 = ssub.s32 %s11, 2
      // Predicated region
      $region49: #{awr_forward.6} parent=47 // pred_check
        %p4176 = pneg %p150
      $region50: #{awr_forward.6} parent=47 // pred_check_branch
        %4178 = sbr.rel (%p4176) target = $region52
      $region51: #{awr_forward.6} parent=47 // pred_region
        %p4179 = scmp.lt.s32.totalorder %s17, 1
        %s4180 = scalar_select %p4179, %s17, 1
        %s4181 = smul.addr %s4180, 36
        %s4182 = smul.addr %s4181, 8
        %s4183 = scalar_lea.vmem %s5, %s4182
      $region52: #{awr_forward.6} parent=47 // pred_fallthru
        _
    $region48: #{awr_forward.6} parent=5 // pred_fallthru
      _
  $region6: #{awr_forward.6} parent=0 // loop_footer
    %s15 = sadd.s32 1, %s11
  $region7: #{awr_forward.6} parent=0 // loop_footer_branch
    %10 = sbr.rel target = $region3
  $region8: #{awr_forward.6} parent=0 // loop_exit
    _

// kernel: awr_forward.7
$region0: #{awr_forward.7}
  #allocation0 [shape = 'u32[]', space=smem, size = 0x4, offset = 0x4, fixed_abs, tag = 'smem constant byte address 0x4 - core index']
  #allocation1 [shape = 'u32[144,128]{1,0:T(1,128)}', space=vmem, size = 0x12000, scoped, tag = 'internal scratch']
  %s0 = inlined_call_operand.vmem [shape: f32[2,3,4,1024], index: 0, kind: input, shape index: {}]
  %s1 = inlined_call_operand.vmem [shape: f32[2,4,1024], index: 1, kind: input, shape index: {}]
  %s2 = inlined_call_operand.vmem [shape: f32[2,1,1024], index: 2, kind: input, shape index: {}]
  %s3 = inlined_call_operand.vmem [shape: f32[2,1024], index: 3, kind: input, shape index: {}]
  %s4 = inlined_call_operand.vmem [shape: f32[2,4,3], index: 4, kind: output, shape index: {}]
  %s5 = sld [smem:[#allocation0]]
  $region49: #{awr_forward.7} parent=0
    _
  %s7 = ssub.s32 1, %s5
  %s8 = scalar_select 0, %s7, %s5
  loop: start=0, step=1, limit=4
  $region2: #{awr_forward.7} parent=0 // loop_pre_header
    _
  $region3: #{awr_forward.7} parent=0 // loop_header
    %s10 = sphi 0, %s14
    %p11 = scmp.ge.s32.totalorder %s10, 4
    %s20 = sphi 0, %s22
    %s23 = sphi 0, %s20
    %s24 = sphi 0, %s23
    %s40 = sphi 0, %s24
    %s46 = sphi 0, %s48
    %s49 = sphi 0, %s46
    %s50 = sphi 0, %s49
    %s66 = sphi 0, %s50
    %s72 = sphi 0, %s74
    %s75 = sphi 0, %s72
    %s76 = sphi 0, %s75
    %s92 = sphi 0, %s76
    %s96 = sphi 0, %s96
    %s98 = sphi 0, %s96
    %s99 = sphi 0, %s98
    %s113 = sphi 0, %s99
    %s119 = sphi 0, %s121
    %s122 = sphi 0, %s119
    %s123 = sphi 0, %s122
    %s139 = sphi 0, %s123
  $region4: #{awr_forward.7} parent=0 // loop_header_branch
    %13 = sbr.rel (%p11) target = $region8
  $region5: #{awr_forward.7} parent=0 // loop_body
    %s15 = ssub.s32 %s10, 1
    %s16 = ssub.s32 %s10, 2
    %s17 = sadd.s32 %s10, 1
    %s18 = ssub.s32 %s10, %s17
    %p19 = scmp.eq.s32.totalorder %s18, 0
    %s21 = sadd.s32 %s20, 1
    %s22 = scalar_select %p19, %s20, %s21
    %p25 = pneg %p19
    %p26 = scmp.eq.s32.totalorder %s10, 1
    %p27 = por %p25, %p26
    %p28 = scmp.ne.s32.totalorder %s20, %s23
    %p29 = scmp.eq.s32.totalorder %s10, 0
    %p30 = por %p28, %p29
    %p31 = scmp.ne.s32.totalorder %s20, %s23
    %p32 = scmp.eq.s32.totalorder %s15, 1
    %p33 = por %p31, %p32
    %p34 = scmp.ne.s32.totalorder %s23, %s24
    %p35 = scmp.eq.s32.totalorder %s15, 0
    %p36 = por %p34, %p35
    %p37 = scmp.ne.s32.totalorder %s23, %s24
    %p38 = scmp.eq.s32.totalorder %s16, 1
    %p39 = por %p37, %p38
    %p41 = scmp.ne.s32.totalorder %s24, %s40
    %p42 = scmp.eq.s32.totalorder %s16, 0
    %p43 = por %p41, %p42
    %s44 = ssub.s32 %s10, %s17
    %p45 = scmp.eq.s32.totalorder %s44, 0
    %s47 = sadd.s32 %s46, 1
    %s48 = scalar_select %p45, %s46, %s47
    %p51 = pneg %p45
    %p52 = scmp.eq.s32.totalorder %s10, 1
    %p53 = por %p51, %p52
    %p54 = scmp.ne.s32.totalorder %s46, %s49
    %p55 = scmp.eq.s32.totalorder %s10, 0
    %p56 = por %p54, %p55
    %p57 = scmp.ne.s32.totalorder %s46, %s49
    %p58 = scmp.eq.s32.totalorder %s15, 1
    %p59 = por %p57, %p58
    %p60 = scmp.ne.s32.totalorder %s49, %s50
    %p61 = scmp.eq.s32.totalorder %s15, 0
    %p62 = por %p60, %p61
    %p63 = scmp.ne.s32.totalorder %s49, %s50
    %p64 = scmp.eq.s32.totalorder %s16, 1
    %p65 = por %p63, %p64
    %p67 = scmp.ne.s32.totalorder %s50, %s66
    %p68 = scmp.eq.s32.totalorder %s16, 0
    %p69 = por %p67, %p68
    %s70 = ssub.s32 %s10, %s17
    %p71 = scmp.eq.s32.totalorder %s70, 0
    %s73 = sadd.s32 %s72, 1
    %s74 = scalar_select %p71, %s72, %s73
    %p77 = pneg %p71
    %p78 = scmp.eq.s32.totalorder %s10, 1
    %p79 = por %p77, %p78
    %p80 = scmp.ne.s32.totalorder %s72, %s75
    %p81 = scmp.eq.s32.totalorder %s10, 0
    %p82 = por %p80, %p81
    %p83 = scmp.ne.s32.totalorder %s72, %s75
    %p84 = scmp.eq.s32.totalorder %s15, 1
    %p85 = por %p83, %p84
    %p86 = scmp.ne.s32.totalorder %s75, %s76
    %p87 = scmp.eq.s32.totalorder %s15, 0
    %p88 = por %p86, %p87
    %p89 = scmp.ne.s32.totalorder %s75, %s76
    %p90 = scmp.eq.s32.totalorder %s16, 1
    %p91 = por %p89, %p90
    %p93 = scmp.ne.s32.totalorder %s76, %s92
    %p94 = scmp.eq.s32.totalorder %s16, 0
    %p95 = por %p93, %p94
    %s97 = sadd.s32 %s96, 1
    %p100 = scmp.eq.s32.totalorder %s10, 1
    %p101 = scmp.ne.s32.totalorder %s96, %s98
    %p102 = scmp.eq.s32.totalorder %s10, 0
    %p103 = por %p101, %p102
    %p104 = scmp.ne.s32.totalorder %s96, %s98
    %p105 = scmp.eq.s32.totalorder %s15, 1
    %p106 = por %p104, %p105
    %p107 = scmp.ne.s32.totalorder %s98, %s99
    %p108 = scmp.eq.s32.totalorder %s15, 0
    %p109 = por %p107, %p108
    %p110 = scmp.ne.s32.totalorder %s98, %s99
    %p111 = scmp.eq.s32.totalorder %s16, 1
    %p112 = por %p110, %p111
    %p114 = scmp.ne.s32.totalorder %s99, %s113
    %p115 = scmp.eq.s32.totalorder %s16, 0
    %p116 = por %p114, %p115
    %s117 = ssub.s32 %s10, %s17
    %p118 = scmp.eq.s32.totalorder %s117, 0
    %s120 = sadd.s32 %s119, 1
    %s121 = scalar_select %p118, %s119, %s120
    %p124 = pneg %p118
    %p125 = scmp.eq.s32.totalorder %s10, 1
    %p126 = por %p124, %p125
    %p127 = scmp.ne.s32.totalorder %s119, %s122
    %p128 = scmp.eq.s32.totalorder %s10, 0
    %p129 = por %p127, %p128
    %p130 = scmp.ne.s32.totalorder %s119, %s122
    %p131 = scmp.eq.s32.totalorder %s15, 1
    %p132 = por %p130, %p131
    %p133 = scmp.ne.s32.totalorder %s122, %s123
    %p134 = scmp.eq.s32.totalorder %s15, 0
    %p135 = por %p133, %p134
    %p136 = scmp.ne.s32.totalorder %s122, %s123
    %p137 = scmp.eq.s32.totalorder %s16, 1
    %p138 = por %p136, %p137
    %p140 = scmp.ne.s32.totalorder %s123, %s139
    %p141 = scmp.eq.s32.totalorder %s16, 0
    %p142 = por %p140, %p141
    %p143 = scmp.le.s32.totalorder 1, %s10
    %p144 = scmp.lt.s32.totalorder %s10, 3
    %p145 = pnand %p143, %p144
    %p146 = pneg %p145
    // Predicated region
    $region9: #{awr_forward.7} parent=5 // pred_check
      _
    $region10: #{awr_forward.7} parent=5 // pred_check_branch
      %148 = sbr.rel (%p145) target = $region12
    $region11: #{awr_forward.7} parent=5 // pred_region
      %s149 = ssub.s32 %s10, 1
      // Predicated region
      $region13: #{awr_forward.7} parent=11 // pred_check
        %p150 = pneg %p109
      $region14: #{awr_forward.7} parent=11 // pred_check_branch
        %152 = sbr.rel (%p150) target = $region16
      $region15: #{awr_forward.7} parent=11 // pred_region
        _
      $region16: #{awr_forward.7} parent=11 // pred_fallthru
        _
    $region12: #{awr_forward.7} parent=5 // pred_fallthru
      _
    %p153 = scmp.lt.s32.totalorder %s10, 2
    // Predicated region
    $region17: #{awr_forward.7} parent=5 // pred_check
      %p154 = pneg %p153
    $region18: #{awr_forward.7} parent=5 // pred_check_branch
      %156 = sbr.rel (%p154) target = $region20
    $region19: #{awr_forward.7} parent=5 // pred_region
      // Predicated region
      $region21: #{awr_forward.7} parent=19 // pred_check
        %p157 = pneg %p30
      $region22: #{awr_forward.7} parent=19 // pred_check_branch
        %159 = sbr.rel (%p157) target = $region24
      $region23: #{awr_forward.7} parent=19 // pred_region
        %p160 = scmp.lt.s32.totalorder %s10, 1
        %s161 = scalar_select %p160, %s10, 1
        %s162 = smul.addr %s161, 24
        %s163 = smul.addr %s162, 4
        %s164 = scalar_lea.vmem %s0, %s163
      $region24: #{awr_forward.7} parent=19 // pred_fallthru
        _
      // Predicated region
      $region25: #{awr_forward.7} parent=19 // pred_check
        %p165 = pneg %p56
      $region26: #{awr_forward.7} parent=19 // pred_check_branch
        %167 = sbr.rel (%p165) target = $region28
      $region27: #{awr_forward.7} parent=19 // pred_region
        %p168 = scmp.lt.s32.totalorder %s10, 1
        %s169 = scalar_select %p168, %s10, 1
        %s170 = smul.addr %s169, 8
        %s171 = smul.addr %s170, 4
        %s172 = scalar_lea.vmem %s1, %s171
      $region28: #{awr_forward.7} parent=19 // pred_fallthru
        _
      // Predicated region
      $region29: #{awr_forward.7} parent=19 // pred_check
        %p173 = pneg %p82
      $region30: #{awr_forward.7} parent=19 // pred_check_branch
        %175 = sbr.rel (%p173) target = $region32
      $region31: #{awr_forward.7} parent=19 // pred_region
        %p176 = scmp.lt.s32.totalorder %s10, 1
        %s177 = scalar_select %p176, %s10, 1
        %s178 = smul.addr %s177, 8
        %s179 = scalar_lea.vmem %s2, %s178
      $region32: #{awr_forward.7} parent=19 // pred_fallthru
        _
    $region20: #{awr_forward.7} parent=5 // pred_fallthru
      _
    %p180 = scmp.le.s32.totalorder 1, %s10
    %p181 = scmp.lt.s32.totalorder %s10, 3
    %p182 = pnand %p180, %p181
    %p183 = pneg %p182
    // Predicated region
    $region33: #{awr_forward.7} parent=5 // pred_check
      _
    $region34: #{awr_forward.7} parent=5 // pred_check_branch
      %185 = sbr.rel (%p182) target = $region36
    $region35: #{awr_forward.7} parent=5 // pred_region
      %s186 = ssub.s32 %s10, 1
      %p187 = scmp.lt.s32.totalorder %s15, 1
      %s188 = scalar_select %p187, %s15, 1
      %s189 = smul.addr %s188, 24
      %s190 = smul.addr %s189, 4
      %s191 = scalar_lea.vmem %s0, %s190
      %p192 = pneg %p36
      %p193 = pneg %p33
      %p194 = scmp.lt.s32.totalorder %s15, 1
      %s195 = scalar_select %p194, %s15, 1
      %s196 = smul.addr %s195, 8
      %s197 = smul.addr %s196, 4
      %s198 = scalar_lea.vmem %s1, %s197
      %p199 = pneg %p62
      %p200 = pneg %p59
      %p201 = scmp.lt.s32.totalorder %s15, 1
      %s202 = scalar_select %p201, %s15, 1
      %s203 = smul.addr %s202, 8
      %s204 = scalar_lea.vmem %s2, %s203
      %p205 = pneg %p88
      %p206 = pneg %p85
      %p207 = pneg %p109
      %p208 = pneg %p106
      %p209 = pneg %p135
      %p210 = pneg %p132
      %p211 = scmp.lt.s32.totalorder %s15, 1
      %s212 = scalar_select %p211, %s15, 1
      %s213 = smul.addr %s212, 4
      %s214 = scalar_lea.vmem %s4, %s213
      %p215 = scmp.lt.s32.totalorder %s15, 1
      %s216 = scalar_select %p215, %s15, 1
      %s217 = smul.addr %s216, 24
      %s218 = smul.addr %s217, 4
      %s219 = scalar_lea.vmem %s0, %s218
      %p220 = scmp.lt.s32.totalorder %s15, 1
      %s221 = scalar_select %p220, %s15, 1
      %s222 = smul.addr %s221, 8
      %s223 = smul.addr %s222, 4
      %s224 = scalar_lea.vmem %s1, %s223
      %p225 = scmp.lt.s32.totalorder %s15, 1
      %s226 = scalar_select %p225, %s15, 1
      %s227 = smul.addr %s226, 8
      %s228 = scalar_lea.vmem %s2, %s227
      %p229 = scmp.lt.s32.totalorder %s15, 1
      %s230 = scalar_select %p229, %s15, 1
      %s231 = smul.addr %s230, 4
      %s232 = scalar_lea.vmem %s4, %s231
      %v233 = vld [vmem:[%s228] sm:$0xff]
      %vm234 = vcmp.lt.f32.partialorder %v233, 0.99
      %v235 = vsel %vm234, 1, 0
      %v236 = vcvt.s32.f32 %v235
      %v237 = vld [vmem:[%s224] sm:$0xff]
      %v238 = vld [vmem:[%s224 + $0x8] sm:$0xff]
      %v239 = vld [vmem:[%s224 + $0x10] sm:$0xff]
      %v240 = vld [vmem:[%s224 + $0x18] sm:$0xff]
      %v242 = vlaneseq
      %v243 = vshrl.u32 %v242, 7
      %v244 = vsub.s32 0, %v243
      %v245 = vrot.slane %v236, %v244
      %v246 = vlaneseq
      %v247 = vshrl.u32 %v246, 7
      %v248 = vsub.s32 1, %v247
      %v249 = vrot.slane %v236, %v248
      %v250 = vlaneseq
      %v251 = vshrl.u32 %v250, 7
      %v252 = vsub.s32 2, %v251
      %v253 = vrot.slane %v236, %v252
      %v254 = vlaneseq
      %v255 = vshrl.u32 %v254, 7
      %v256 = vsub.s32 3, %v255
      %v257 = vrot.slane %v236, %v256
      %v258 = vlaneseq
      %v259 = vshrl.u32 %v258, 7
      %v260 = vsub.s32 4, %v259
      %v261 = vrot.slane %v236, %v260
      %v262 = vlaneseq
      %v263 = vshrl.u32 %v262, 7
      %v264 = vsub.s32 5, %v263
      %v265 = vrot.slane %v236, %v264
      %v266 = vlaneseq
      %v267 = vshrl.u32 %v266, 7
      %v268 = vsub.s32 6, %v267
      %v269 = vrot.slane %v236, %v268
      %v270 = vlaneseq
      %v271 = vshrl.u32 %v270, 7
      %v272 = vsub.s32 7, %v271
      %v273 = vrot.slane %v236, %v272
      %v274 = vcombine.low %v245, %v249
      %v275 = vcombine.low %v253, %v257
      %v276 = vcombine.low %v261, %v265
      %v277 = vcombine.low %v269, %v273
      %v282 = vmul.f32 %v237, %v274
      %v283 = vmul.f32 %v238, %v275
      %v284 = vmul.f32 %v239, %v276
      %v285 = vmul.f32 %v240, %v277
      %v286 = vmul.f32 %v282, 30.0
      %v287 = vmul.f32 %v283, 30.0
      %v288 = vmul.f32 %v284, 30.0
      %v289 = vmul.f32 %v285, 30.0
      %v294 = vcombine.high %v286, %v286
      %v295 = vcombine.high %v287, %v287
      %v296 = vcombine.high %v288, %v288
      %v297 = vcombine.high %v289, %v289
      %vm302 = vcmask 1043456
      %v303 = vsel %vm302, %v286, -inf
      %v304 = vsel %vm302, %v294, -inf
      %v305 = vsel %vm302, %v287, -inf
      %v306 = vsel %vm302, %v295, -inf
      %v307 = vsel %vm302, %v288, -inf
      %v308 = vmax.f32 %v303, %v307
      %v309 = vsel %vm302, %v296, -inf
      %v310 = vmax.f32 %v304, %v309
      %v311 = vsel %vm302, %v289, -inf
      %v312 = vmax.f32 %v305, %v311
      %v313 = vsel %vm302, %v297, -inf
      %v314 = vmax.f32 %v306, %v313
      %v315 = vmax.f32 %v308, %v310
      %v316 = vmax.f32 %v312, %v314
      %v317 = vmax.f32 %v315, %v316
      %318 = vmax.xlane.f32.xlu0 %v317
      %v319 = vpop.xlane.xlu0 %318
      %v322 = vunpack.c.l.s4 839922192
      %v323 = vunpack.c.0.s8 %v322
      %v324 = vlaneseq
      %v325 = vshrl.u32 %v324, 7
      %v326 = vsub.s32 %v323, %v325
      %v327 = vrot.slane %v319, %v326
      %v329 = vsub.f32 %v286, %v327
      %v330 = vsub.f32 %v287, %v327
      %v331 = vsub.f32 %v288, %v327
      %v332 = vsub.f32 %v289, %v327
      %v333 = vmul.f32 %v329, 1.442695
      %v334 = vpow.pop %v333
      %v335 = vmul.f32 %v330, 1.442695
      %v336 = vpow.pop %v335
      %v337 = vmul.f32 %v331, 1.442695
      %v338 = vpow.pop %v337
      %v339 = vmul.f32 %v332, 1.442695
      %v340 = vpow.pop %v339
      %v345 = vcombine.high %v334, %v334
      %v346 = vcombine.high %v336, %v336
      %v347 = vcombine.high %v338, %v338
      %v348 = vcombine.high %v340, %v340
      %v353 = vsel %vm302, %v334, 0.0
      %v354 = vsel %vm302, %v345, 0.0
      %v355 = vadd.f32 %v353, %v354
      %v356 = vsel %vm302, %v336, 0.0
      %v357 = vadd.f32 %v355, %v356
      %v358 = vsel %vm302, %v346, 0.0
      %v359 = vadd.f32 %v357, %v358
      %v360 = vsel %vm302, %v338, 0.0
      %v361 = vadd.f32 %v359, %v360
      %v362 = vsel %vm302, %v347, 0.0
      %v363 = vadd.f32 %v361, %v362
      %v364 = vsel %vm302, %v340, 0.0
      %v365 = vadd.f32 %v363, %v364
      %v366 = vsel %vm302, %v348, 0.0
      %v367 = vadd.f32 %v365, %v366
      %368 = vadd.xlane.f32.xlu0 %v367
      %v369 = vpop.xlane.xlu0 %368
      %v372 = vunpack.c.l.s4 839922192
      %v373 = vunpack.c.0.s8 %v372
      %v374 = vlaneseq
      %v375 = vshrl.u32 %v374, 7
      %v376 = vsub.s32 %v373, %v375
      %v377 = vrot.slane %v369, %v376
      %v379 = vrcp.pop %v377
      %v380 = vmul.f32 %v334, %v379
      %v381 = vmul.f32 %v336, %v379
      %v382 = vmul.f32 %v338, %v379
      %v383 = vmul.f32 %v340, %v379
      %v384 = vmul.f32 %v282, 0.4
      %v385 = vmul.f32 %v283, 0.4
      %v386 = vmul.f32 %v284, 0.4
      %v387 = vmul.f32 %v285, 0.4
      %v388 = vsub.f32 0.4, %v384
      %v389 = vsub.f32 0.4, %v385
      %v390 = vsub.f32 0.4, %v386
      %v391 = vsub.f32 0.4, %v387
      %v392 = vld [vmem:[%s219] sm:$0xff]
      %v393 = vld [vmem:[%s219 + $0x8] sm:$0xff]
      %v394 = vld [vmem:[%s219 + $0x10] sm:$0xff]
      %v395 = vld [vmem:[%s219 + $0x18] sm:$0xff]
      %v396 = vmul.f32 %v392, %v274
      %v397 = vmul.f32 %v393, %v275
      %v398 = vmul.f32 %v394, %v276
      %v399 = vmul.f32 %v395, %v277
      %s400 = scalar_lea.vmem %s219, 32
      %v401 = vld [vmem:[%s400] sm:$0xff]
      %v402 = vld [vmem:[%s400 + $0x8] sm:$0xff]
      %v403 = vld [vmem:[%s400 + $0x10] sm:$0xff]
      %v404 = vld [vmem:[%s400 + $0x18] sm:$0xff]
      %v405 = vmul.f32 %v401, %v274
      %v406 = vmul.f32 %v402, %v275
      %v407 = vmul.f32 %v403, %v276
      %v408 = vmul.f32 %v404, %v277
      %s409 = scalar_lea.vmem %s219, 64
      %v410 = vld [vmem:[%s409] sm:$0xff]
      %v411 = vld [vmem:[%s409 + $0x8] sm:$0xff]
      %v412 = vld [vmem:[%s409 + $0x10] sm:$0xff]
      %v413 = vld [vmem:[%s409 + $0x18] sm:$0xff]
      %v414 = vmul.f32 %v410, %v274
      %v415 = vmul.f32 %v411, %v275
      %v416 = vmul.f32 %v412, %v276
      %v417 = vmul.f32 %v413, %v277
      %v418 = vmul.f32 %v396, %v388
      %v419 = vmul.f32 %v397, %v389
      %v420 = vmul.f32 %v398, %v390
      %v421 = vmul.f32 %v399, %v391
      %v422 = vld [vmem:[%s3] ss:$2 sm:$0xff]
      %v424 = vlaneseq
      %v425 = vshrl.u32 %v424, 7
      %v426 = vsub.s32 0, %v425
      %v427 = vrot.slane %v422, %v426
      %v428 = vlaneseq
      %v429 = vshrl.u32 %v428, 7
      %v430 = vsub.s32 1, %v429
      %v431 = vrot.slane %v422, %v430
      %v432 = vlaneseq
      %v433 = vshrl.u32 %v432, 7
      %v434 = vsub.s32 2, %v433
      %v435 = vrot.slane %v422, %v434
      %v436 = vlaneseq
      %v437 = vshrl.u32 %v436, 7
      %v438 = vsub.s32 3, %v437
      %v439 = vrot.slane %v422, %v438
      %v440 = vlaneseq
      %v441 = vshrl.u32 %v440, 7
      %v442 = vsub.s32 4, %v441
      %v443 = vrot.slane %v422, %v442
      %v444 = vlaneseq
      %v445 = vshrl.u32 %v444, 7
      %v446 = vsub.s32 5, %v445
      %v447 = vrot.slane %v422, %v446
      %v448 = vlaneseq
      %v449 = vshrl.u32 %v448, 7
      %v450 = vsub.s32 6, %v449
      %v451 = vrot.slane %v422, %v450
      %v452 = vlaneseq
      %v453 = vshrl.u32 %v452, 7
      %v454 = vsub.s32 7, %v453
      %v455 = vrot.slane %v422, %v454
      %v456 = vcombine.low %v427, %v431
      %v457 = vcombine.low %v435, %v439
      %v458 = vcombine.low %v443, %v447
      %v459 = vcombine.low %v451, %v455
      %v464 = vadd.f32 %v418, %v456
      %v465 = vadd.f32 %v419, %v457
      %v466 = vadd.f32 %v420, %v458
      %v467 = vadd.f32 %v421, %v459
      %v468 = vmul.f32 %v464, %v380
      %v469 = vmul.f32 %v465, %v381
      %v470 = vmul.f32 %v466, %v382
      %v471 = vmul.f32 %v467, %v383
      %v476 = vcombine.high %v468, %v468
      %v477 = vcombine.high %v469, %v469
      %v478 = vcombine.high %v470, %v470
      %v479 = vcombine.high %v471, %v471
      %v484 = vsel %vm302, %v468, 0.0
      %v485 = vsel %vm302, %v476, 0.0
      %v486 = vadd.f32 %v484, %v485
      %v487 = vsel %vm302, %v469, 0.0
      %v488 = vadd.f32 %v486, %v487
      %v489 = vsel %vm302, %v477, 0.0
      %v490 = vadd.f32 %v488, %v489
      %v491 = vsel %vm302, %v470, 0.0
      %v492 = vadd.f32 %v490, %v491
      %v493 = vsel %vm302, %v478, 0.0
      %v494 = vadd.f32 %v492, %v493
      %v495 = vsel %vm302, %v471, 0.0
      %v496 = vadd.f32 %v494, %v495
      %v497 = vsel %vm302, %v479, 0.0
      %v498 = vadd.f32 %v496, %v497
      %499 = vadd.xlane.f32.xlu0 %v498
      %v500 = vpop.xlane.xlu0 %499
      %v501 = vmul.f32 %v405, %v388
      %v502 = vmul.f32 %v406, %v389
      %v503 = vmul.f32 %v407, %v390
      %v504 = vmul.f32 %v408, %v391
      %s505 = scalar_lea.vmem %s3, 1
      %v506 = vld [vmem:[%s505] ss:$2 sm:$0xff]
      %v508 = vlaneseq
      %v509 = vshrl.u32 %v508, 7
      %v510 = vsub.s32 0, %v509
      %v511 = vrot.slane %v506, %v510
      %v512 = vlaneseq
      %v513 = vshrl.u32 %v512, 7
      %v514 = vsub.s32 1, %v513
      %v515 = vrot.slane %v506, %v514
      %v516 = vlaneseq
      %v517 = vshrl.u32 %v516, 7
      %v518 = vsub.s32 2, %v517
      %v519 = vrot.slane %v506, %v518
      %v520 = vlaneseq
      %v521 = vshrl.u32 %v520, 7
      %v522 = vsub.s32 3, %v521
      %v523 = vrot.slane %v506, %v522
      %v524 = vlaneseq
      %v525 = vshrl.u32 %v524, 7
      %v526 = vsub.s32 4, %v525
      %v527 = vrot.slane %v506, %v526
      %v528 = vlaneseq
      %v529 = vshrl.u32 %v528, 7
      %v530 = vsub.s32 5, %v529
      %v531 = vrot.slane %v506, %v530
      %v532 = vlaneseq
      %v533 = vshrl.u32 %v532, 7
      %v534 = vsub.s32 6, %v533
      %v535 = vrot.slane %v506, %v534
      %v536 = vlaneseq
      %v537 = vshrl.u32 %v536, 7
      %v538 = vsub.s32 7, %v537
      %v539 = vrot.slane %v506, %v538
      %v540 = vcombine.low %v511, %v515
      %v541 = vcombine.low %v519, %v523
      %v542 = vcombine.low %v527, %v531
      %v543 = vcombine.low %v535, %v539
      %v548 = vadd.f32 %v501, %v540
      %v549 = vadd.f32 %v502, %v541
      %v550 = vadd.f32 %v503, %v542
      %v551 = vadd.f32 %v504, %v543
      %v552 = vmul.f32 %v548, %v380
      %v553 = vmul.f32 %v549, %v381
      %v554 = vmul.f32 %v550, %v382
      %v555 = vmul.f32 %v551, %v383
      %v560 = vcombine.high %v552, %v552
      %v561 = vcombine.high %v553, %v553
      %v562 = vcombine.high %v554, %v554
      %v563 = vcombine.high %v555, %v555
      %v568 = vsel %vm302, %v552, 0.0
      %v569 = vsel %vm302, %v560, 0.0
      %v570 = vadd.f32 %v568, %v569
      %v571 = vsel %vm302, %v553, 0.0
      %v572 = vadd.f32 %v570, %v571
      %v573 = vsel %vm302, %v561, 0.0
      %v574 = vadd.f32 %v572, %v573
      %v575 = vsel %vm302, %v554, 0.0
      %v576 = vadd.f32 %v574, %v575
      %v577 = vsel %vm302, %v562, 0.0
      %v578 = vadd.f32 %v576, %v577
      %v579 = vsel %vm302, %v555, 0.0
      %v580 = vadd.f32 %v578, %v579
      %v581 = vsel %vm302, %v563, 0.0
      %v582 = vadd.f32 %v580, %v581
      %583 = vadd.xlane.f32.xlu0 %v582
      %v584 = vpop.xlane.xlu0 %583
      %v585 = vmul.f32 %v414, %v388
      %v586 = vmul.f32 %v415, %v389
      %v587 = vmul.f32 %v416, %v390
      %v588 = vmul.f32 %v417, %v391
      %v590 = vlaneseq
      %v591 = vshrl.u32 %v590, 7
      %v592 = vsub.s32 0, %v591
      %v593 = vrot.slane %v233, %v592
      %v594 = vlaneseq
      %v595 = vshrl.u32 %v594, 7
      %v596 = vsub.s32 1, %v595
      %v597 = vrot.slane %v233, %v596
      %v598 = vlaneseq
      %v599 = vshrl.u32 %v598, 7
      %v600 = vsub.s32 2, %v599
      %v601 = vrot.slane %v233, %v600
      %v602 = vlaneseq
      %v603 = vshrl.u32 %v602, 7
      %v604 = vsub.s32 3, %v603
      %v605 = vrot.slane %v233, %v604
      %v606 = vlaneseq
      %v607 = vshrl.u32 %v606, 7
      %v608 = vsub.s32 4, %v607
      %v609 = vrot.slane %v233, %v608
      %v610 = vlaneseq
      %v611 = vshrl.u32 %v610, 7
      %v612 = vsub.s32 5, %v611
      %v613 = vrot.slane %v233, %v612
      %v614 = vlaneseq
      %v615 = vshrl.u32 %v614, 7
      %v616 = vsub.s32 6, %v615
      %v617 = vrot.slane %v233, %v616
      %v618 = vlaneseq
      %v619 = vshrl.u32 %v618, 7
      %v620 = vsub.s32 7, %v619
      %v621 = vrot.slane %v233, %v620
      %v622 = vcombine.low %v593, %v597
      %v623 = vcombine.low %v601, %v605
      %v624 = vcombine.low %v609, %v613
      %v625 = vcombine.low %v617, %v621
      %v630 = vadd.f32 %v585, %v622
      %v631 = vadd.f32 %v586, %v623
      %v632 = vadd.f32 %v587, %v624
      %v633 = vadd.f32 %v588, %v625
      %v634 = vmul.f32 %v630, %v380
      %v635 = vmul.f32 %v631, %v381
      %v636 = vmul.f32 %v632, %v382
      %v637 = vmul.f32 %v633, %v383
      %v642 = vcombine.high %v634, %v634
      %v643 = vcombine.high %v635, %v635
      %v644 = vcombine.high %v636, %v636
      %v645 = vcombine.high %v637, %v637
      %v650 = vsel %vm302, %v634, 0.0
      %v651 = vsel %vm302, %v642, 0.0
      %v652 = vadd.f32 %v650, %v651
      %v653 = vsel %vm302, %v635, 0.0
      %v654 = vadd.f32 %v652, %v653
      %v655 = vsel %vm302, %v643, 0.0
      %v656 = vadd.f32 %v654, %v655
      %v657 = vsel %vm302, %v636, 0.0
      %v658 = vadd.f32 %v656, %v657
      %v659 = vsel %vm302, %v644, 0.0
      %v660 = vadd.f32 %v658, %v659
      %v661 = vsel %vm302, %v637, 0.0
      %v662 = vadd.f32 %v660, %v661
      %v663 = vsel %vm302, %v645, 0.0
      %v664 = vadd.f32 %v662, %v663
      %665 = vadd.xlane.f32.xlu0 %v664
      %v666 = vpop.xlane.xlu0 %665
      %vm667 = vcmask 7168
      %v668 = vsel %vm667, %v500, %v584
      %vm669 = vcmask 15360
      %v670 = vsel %vm669, %v668, %v666
      %vm671 = vcmask 19456
      %672 = vst.msk [vmem:[%s232] sm:$0xf] %vm671, %v670
      %p673 = scmp.lt.s32.totalorder %s15, 1
      %s674 = scalar_select %p673, %s15, 1
      %s675 = smul.addr %s674, 4
      %s676 = scalar_lea.vmem %s4, %s675
      // Predicated region
      $region37: #{awr_forward.7} parent=35 // pred_check
        %p677 = pneg %p132
      $region38: #{awr_forward.7} parent=35 // pred_check_branch
        %679 = sbr.rel (%p677) target = $region40
      $region39: #{awr_forward.7} parent=35 // pred_region
        _
      $region40: #{awr_forward.7} parent=35 // pred_fallthru
        _
    $region36: #{awr_forward.7} parent=5 // pred_fallthru
      _
    %p680 = scmp.le.s32.totalorder 2, %s10
    // Predicated region
    $region41: #{awr_forward.7} parent=5 // pred_check
      %p681 = pneg %p680
    $region42: #{awr_forward.7} parent=5 // pred_check_branch
      %683 = sbr.rel (%p681) target = $region44
    $region43: #{awr_forward.7} parent=5 // pred_region
      %s684 = ssub.s32 %s10, 2
      // Predicated region
      $region45: #{awr_forward.7} parent=43 // pred_check
        %p685 = pneg %p138
      $region46: #{awr_forward.7} parent=43 // pred_check_branch
        %687 = sbr.rel (%p685) target = $region48
      $region47: #{awr_forward.7} parent=43 // pred_region
        %p688 = scmp.lt.s32.totalorder %s16, 1
        %s689 = scalar_select %p688, %s16, 1
        %s690 = smul.addr %s689, 4
        %s691 = scalar_lea.vmem %s4, %s690
      $region48: #{awr_forward.7} parent=43 // pred_fallthru
        _
    $region44: #{awr_forward.7} parent=5 // pred_fallthru
      _
  $region6: #{awr_forward.7} parent=0 // loop_footer
    %s14 = sadd.s32 1, %s10
  $region7: #{awr_forward.7} parent=0 // loop_footer_branch
    %9 = sbr.rel target = $region3
  $region8: #{awr_forward.7} parent=0 // loop_exit
    _

</llo_original>
